<compile_context>
chip_gen: v7x
topology: tpu7x:2x2x1
jax: 0.10.0
libtpu: 0.0.40
codegen_flags: <defaults>
</compile_context>

<pallas_src>
import numpy as np

import jax
import jax.numpy as jnp
from jax import lax
from jax.experimental import pallas as pl
from jax.experimental.pallas import tpu as pltpu


# ----------------------------------------------------------------------------
# Constant 0/1 gather matrices: G[s] @ x_flat produces the im2col patch rows for
# kernel tap s (rows are all-zero where the tap lands in the zero padding).
# Each row has at most a single 1, so the gather matmul is an exact selection.
# ----------------------------------------------------------------------------
def _build_tap_gather(h_in, w_in, stride):
    h_out = (h_in + 2 - 3) // stride + 1
    w_out = (w_in + 2 - 3) // stride + 1
    g = np.zeros((9, h_out * w_out, h_in * w_in), np.float32)
    for kh in range(3):
        for kw in range(3):
            s = kh * 3 + kw
            for oh in range(h_out):
                for ow in range(w_out):
                    hi = oh * stride + kh - 1   # -1 == padding of 1
                    wi = ow * stride + kw - 1
                    if 0 <= hi < h_in and 0 <= wi < w_in:
                        g[s, oh * w_out + ow, hi * w_in + wi] = 1.0
    return g, h_out, w_out


# ----------------------------------------------------------------------------
# Fused kernel: one grid step = one sample.
# ----------------------------------------------------------------------------
def _proposal_head_kernel(x_ref, g1_ref, g2_ref, g3_ref,
                          w1_ref, b1_ref, w2_ref, b2_ref, w3_ref, b3_ref,
                          wt1_ref, bt1_ref, wt2_ref, bt2_ref, wt3_ref, bt3_ref,
                          t1_ref, t2_ref, t3_ref):
    f32 = jnp.float32
    bf16 = jnp.bfloat16

    def conv3x3_relu(inp_bf16, g_ref, w_ref, b_ref):
        m_out = g_ref.shape[1]
        cout = w_ref.shape[2]
        acc = jnp.zeros((m_out, cout), f32)
        for s in range(g_ref.shape[0]):           # 9 kernel taps, unrolled
            # Exact bf16 row-selection of the input (each G row has <= one 1).
            patches = jnp.dot(g_ref[s], inp_bf16,
                              preferred_element_type=f32).astype(bf16)
            acc = acc + jnp.dot(patches, w_ref[s],
                                preferred_element_type=f32)
        return jnp.maximum(acc + b_ref[...], 0.0)

    def tidy(inp_bf16, wt_ref, bt_ref):           # fused 1x1 conv
        return jnp.dot(inp_bf16, wt_ref[...],
                       preferred_element_type=f32) + bt_ref[...]

    x = x_ref[0]                                   # (H*W, 512) bf16

    d1 = conv3x3_relu(x, g1_ref, w1_ref, b1_ref)   # (H1*W1, 128) f32, VMEM-resident
    d1b = d1.astype(bf16)
    d2 = conv3x3_relu(d1b, g2_ref, w2_ref, b2_ref) # (H2*W2, 128)
    d2b = d2.astype(bf16)
    d3 = conv3x3_relu(d2b, g3_ref, w3_ref, b3_ref) # (H3*W3, 128)
    d3b = d3.astype(bf16)

    t1_ref[0] = tidy(d1b, wt1_ref, bt1_ref).astype(t1_ref.dtype)
    t2_ref[0] = tidy(d2b, wt2_ref, bt2_ref).astype(t2_ref.dtype)
    t3_ref[0] = tidy(d3b, wt3_ref, bt3_ref).astype(t3_ref.dtype)


# ----------------------------------------------------------------------------
# ProposalNet forward (single pallas_call).
# ----------------------------------------------------------------------------
def proposal_net_forward(x_nchw, params):
    N, cin, H, W = x_nchw.shape
    bf16 = jnp.bfloat16

    g1_np, H1, W1 = _build_tap_gather(H, W, 1)      # down1: stride 1
    g2_np, H2, W2 = _build_tap_gather(H1, W1, 2)    # down2: stride 2
    g3_np, H3, W3 = _build_tap_gather(H2, W2, 2)    # down3: stride 2
    M0, M1, M2, M3 = H * W, H1 * W1, H2 * W2, H3 * W3

    # NCHW -> NHWC -> (N, H*W, Cin), bf16 matmul operand.
    x_flat = jnp.transpose(x_nchw, (0, 2, 3, 1)).reshape(N, M0, cin).astype(bf16)

    g1 = jnp.asarray(g1_np, bf16)                   # 0/1 exact in bf16
    g2 = jnp.asarray(g2_np, bf16)
    g3 = jnp.asarray(g3_np, bf16)

    # HWIO (3,3,Cin,Cout) -> (9, Cin, Cout), tap order s = kh*3 + kw.
    w1 = params["w_down1"].reshape(9, cin, 128).astype(bf16)
    w2 = params["w_down2"].reshape(9, 128, 128).astype(bf16)
    w3 = params["w_down3"].reshape(9, 128, 128).astype(bf16)
    wt1 = params["w_tidy1"].reshape(128, 6).astype(bf16)
    wt2 = params["w_tidy2"].reshape(128, 6).astype(bf16)
    wt3 = params["w_tidy3"].reshape(128, 9).astype(bf16)
    b1 = params["b_down1"].reshape(1, 128)
    b2 = params["b_down2"].reshape(1, 128)
    b3 = params["b_down3"].reshape(1, 128)
    bt1 = params["b_tidy1"].reshape(1, 6)
    bt2 = params["b_tidy2"].reshape(1, 6)
    bt3 = params["b_tidy3"].reshape(1, 9)

    def whole(a):  # whole-array block, constant index -> stays VMEM-resident
        return pl.BlockSpec(a.shape, lambda n, nd=a.ndim: (0,) * nd)

    t1, t2, t3 = pl.pallas_call(
        _proposal_head_kernel,
        out_shape=(jax.ShapeDtypeStruct((N, M1, 6), jnp.float32),
                   jax.ShapeDtypeStruct((N, M2, 6), jnp.float32),
                   jax.ShapeDtypeStruct((N, M3, 9), jnp.float32)),
        grid=(N,),
        in_specs=[
            pl.BlockSpec((1, M0, cin), lambda n: (n, 0, 0)),
            whole(g1), whole(g2), whole(g3),
            whole(w1), whole(b1), whole(w2), whole(b2), whole(w3), whole(b3),
            whole(wt1), whole(bt1), whole(wt2), whole(bt2), whole(wt3), whole(bt3),
        ],
        out_specs=(pl.BlockSpec((1, M1, 6), lambda n: (n, 0, 0)),
                   pl.BlockSpec((1, M2, 6), lambda n: (n, 0, 0)),
                   pl.BlockSpec((1, M3, 9), lambda n: (n, 0, 0))),
        compiler_params=pltpu.CompilerParams(
            dimension_semantics=("parallel",)),   # lets v7x split the batch across TCs
    )(x_flat, g1, g2, g3, w1, b1, w2, b2, w3, b3,
      wt1, bt1, wt2, bt2, wt3, bt3)

    # torch `.view(batch, -1)` on NCHW flattens in (C, H, W) order.
    def flat_chw(t):
        return jnp.transpose(t, (0, 2, 1)).reshape(N, -1)

    return jnp.concatenate([flat_chw(t1), flat_chw(t2), flat_chw(t3)], axis=1)


# ----------------------------------------------------------------------------
# Pure-JAX reference (lax.conv, f32) for the correctness spot-check.
# ----------------------------------------------------------------------------
def proposal_net_reference(x_nchw, params):
    dn = lax.conv_dimension_numbers(x_nchw.shape, (1, 1, 1, 1),
                                    ("NCHW", "HWIO", "NCHW"))

    def conv(x, w, b, stride, pad, relu):
        y = lax.conv_general_dilated(x, w, (stride, stride),
                                     [(pad, pad), (pad, pad)],
                                     dimension_numbers=dn)
        y = y + b.reshape(1, -1, 1, 1)
        return jnp.maximum(y, 0.0) if relu else y

    N = x_nchw.shape[0]
    d1 = conv(x_nchw, params["w_down1"], params["b_down1"], 1, 1, True)
    d2 = conv(d1, params["w_down2"], params["b_down2"], 2, 1, True)
    d3 = conv(d2, params["w_down3"], params["b_down3"], 2, 1, True)
    t1 = conv(d1, params["w_tidy1"], params["b_tidy1"], 1, 0, False)
    t2 = conv(d2, params["w_tidy2"], params["b_tidy2"], 1, 0, False)
    t3 = conv(d3, params["w_tidy3"], params["b_tidy3"], 1, 0, False)
    return jnp.concatenate([t1.reshape(N, -1), t2.reshape(N, -1),
                            t3.reshape(N, -1)], axis=1)


# ----------------------------------------------------------------------------
# Deterministic parameter init (HWIO weights, matching nn.Conv2d shapes).
# ----------------------------------------------------------------------------
def init_params(key):
    ks = jax.random.split(key, 12)
    s = 0.02

    def w(k, kh, kw, ci, co):
        return s * jax.random.normal(k, (kh, kw, ci, co), jnp.float32)

    def b(k, co):
        return s * jax.random.normal(k, (co,), jnp.float32)

    return {
        "w_down1": w(ks[0], 3, 3, 512, 128), "b_down1": b(ks[1], 128),
        "w_down2": w(ks[2], 3, 3, 128, 128), "b_down2": b(ks[3], 128),
        "w_down3": w(ks[4], 3, 3, 128, 128), "b_down3": b(ks[5], 128),
        "w_tidy1": w(ks[6], 1, 1, 128, 6),   "b_tidy1": b(ks[7], 6),
        "w_tidy2": w(ks[8], 1, 1, 128, 6),   "b_tidy2": b(ks[9], 6),
        "w_tidy3": w(ks[10], 1, 1, 128, 9),  "b_tidy3": b(ks[11], 9),
    }


if __name__ == "__main__":
    key = jax.random.PRNGKey(0)
    k_param, k_x = jax.random.split(key)

    params = init_params(k_param)
    # Small spatial size (8x8) -> d1: 8x8, d2: 4x4, d3: 2x2 (channels fixed by module).
    x = jax.random.normal(k_x, (2, 512, 8, 8), jnp.float32)   # NCHW, like torch

    out = jax.jit(proposal_net_forward)(x, params)
    out = jax.block_until_ready(out)

    # expected flattened size: 6*8*8 + 6*4*4 + 9*2*2 = 516
    assert out.shape == (2, 6 * 8 * 8 + 6 * 4 * 4 + 9 * 2 * 2), out.shape

    ref = jax.jit(proposal_net_reference)(x, params)
    ref = jax.block_until_ready(ref)
    assert jnp.allclose(out, ref, rtol=2e-2, atol=2e-2), (
        float(jnp.max(jnp.abs(out - ref))))

    print("KERNEL_OK")
</pallas_src>

<mosaic_0001>
module attributes {stable_mosaic.version = 11 : i64} {
  func.func @_proposal_head_kernel(%arg0: i32, %arg1: memref<1x64x512xbf16, #tpu.memory_space<vmem>>, %arg2: memref<9x64x64xbf16, #tpu.memory_space<vmem>>, %arg3: memref<9x16x64xbf16, #tpu.memory_space<vmem>>, %arg4: memref<9x4x16xbf16, #tpu.memory_space<vmem>>, %arg5: memref<9x512x128xbf16, #tpu.memory_space<vmem>>, %arg6: memref<1x128xf32, #tpu.memory_space<vmem>>, %arg7: memref<9x128x128xbf16, #tpu.memory_space<vmem>>, %arg8: memref<1x128xf32, #tpu.memory_space<vmem>>, %arg9: memref<9x128x128xbf16, #tpu.memory_space<vmem>>, %arg10: memref<1x128xf32, #tpu.memory_space<vmem>>, %arg11: memref<128x6xbf16, #tpu.memory_space<vmem>>, %arg12: memref<1x6xf32, #tpu.memory_space<vmem>>, %arg13: memref<128x6xbf16, #tpu.memory_space<vmem>>, %arg14: memref<1x6xf32, #tpu.memory_space<vmem>>, %arg15: memref<128x9xbf16, #tpu.memory_space<vmem>>, %arg16: memref<1x9xf32, #tpu.memory_space<vmem>>, %arg17: memref<1x64x6xf32, #tpu.memory_space<vmem>>, %arg18: memref<1x16x6xf32, #tpu.memory_space<vmem>>, %arg19: memref<1x4x9xf32, #tpu.memory_space<vmem>>) attributes {dimension_semantics = [#tpu.dimension_semantics<parallel>], iteration_bounds = array<i64: 2>, scalar_prefetch = 0 : i64, scratch_operands = 0 : i64, tpu.core_type = #tpu.core_type<tc>, window_params = [{transform_indices = @transform_0, window_bounds = array<i64: 1, 64, 512>}, {pipeline_mode = #tpu.pipeline_mode<synchronous>, transform_indices = @transform_1, window_bounds = array<i64: 9, 64, 64>}, {pipeline_mode = #tpu.pipeline_mode<synchronous>, transform_indices = @transform_2, window_bounds = array<i64: 9, 16, 64>}, {pipeline_mode = #tpu.pipeline_mode<synchronous>, transform_indices = @transform_3, window_bounds = array<i64: 9, 4, 16>}, {pipeline_mode = #tpu.pipeline_mode<synchronous>, transform_indices = @transform_4, window_bounds = array<i64: 9, 512, 128>}, {pipeline_mode = #tpu.pipeline_mode<synchronous>, transform_indices = @transform_5, window_bounds = array<i64: 1, 128>}, {pipeline_mode = #tpu.pipeline_mode<synchronous>, transform_indices = @transform_6, window_bounds = array<i64: 9, 128, 128>}, {pipeline_mode = #tpu.pipeline_mode<synchronous>, transform_indices = @transform_7, window_bounds = array<i64: 1, 128>}, {pipeline_mode = #tpu.pipeline_mode<synchronous>, transform_indices = @transform_8, window_bounds = array<i64: 9, 128, 128>}, {pipeline_mode = #tpu.pipeline_mode<synchronous>, transform_indices = @transform_9, window_bounds = array<i64: 1, 128>}, {pipeline_mode = #tpu.pipeline_mode<synchronous>, transform_indices = @transform_10, window_bounds = array<i64: 128, 6>}, {pipeline_mode = #tpu.pipeline_mode<synchronous>, transform_indices = @transform_11, window_bounds = array<i64: 1, 6>}, {pipeline_mode = #tpu.pipeline_mode<synchronous>, transform_indices = @transform_12, window_bounds = array<i64: 128, 6>}, {pipeline_mode = #tpu.pipeline_mode<synchronous>, transform_indices = @transform_13, window_bounds = array<i64: 1, 6>}, {pipeline_mode = #tpu.pipeline_mode<synchronous>, transform_indices = @transform_14, window_bounds = array<i64: 128, 9>}, {pipeline_mode = #tpu.pipeline_mode<synchronous>, transform_indices = @transform_15, window_bounds = array<i64: 1, 9>}, {transform_indices = @transform_16, window_bounds = array<i64: 1, 64, 6>}, {transform_indices = @transform_17, window_bounds = array<i64: 1, 16, 6>}, {transform_indices = @transform_18, window_bounds = array<i64: 1, 4, 9>}]} {
    %c0 = arith.constant 0 : index
    %c0_0 = arith.constant 0 : index
    %c0_1 = arith.constant 0 : index
    %0 = vector.load %arg1[%c0, %c0_0, %c0_1] : memref<1x64x512xbf16, #tpu.memory_space<vmem>>, vector<1x64x512xbf16>
    %1 = vector.shape_cast %0 : vector<1x64x512xbf16> to vector<64x512xbf16>
    %cst = arith.constant 0.000000e+00 : f32
    %2 = vector.broadcast %cst : f32 to vector<64x128xf32>
    %c0_2 = arith.constant 0 : index
    %c0_3 = arith.constant 0 : index
    %c0_4 = arith.constant 0 : index
    %3 = vector.load %arg2[%c0_2, %c0_3, %c0_4] : memref<9x64x64xbf16, #tpu.memory_space<vmem>>, vector<1x64x64xbf16>
    %4 = vector.shape_cast %3 : vector<1x64x64xbf16> to vector<64x64xbf16>
    %cst_5 = arith.constant dense<0.000000e+00> : vector<64x512xf32>
    %5 = tpu.matmul %4, %1, %cst_5 {dimension_numbers = #tpu.dot_dimension_numbers<[1], [0], [0], [1], [0, 0, 1, 1], [], []>} : vector<64x64xbf16>, vector<64x512xbf16>, vector<64x512xf32> -> vector<64x512xf32>
    %6 = arith.truncf %5 : vector<64x512xf32> to vector<64x512xbf16>
    %c0_6 = arith.constant 0 : index
    %c0_7 = arith.constant 0 : index
    %c0_8 = arith.constant 0 : index
    %7 = vector.load %arg5[%c0_6, %c0_7, %c0_8] : memref<9x512x128xbf16, #tpu.memory_space<vmem>>, vector<1x512x128xbf16>
    %8 = vector.shape_cast %7 : vector<1x512x128xbf16> to vector<512x128xbf16>
    %cst_9 = arith.constant dense<0.000000e+00> : vector<64x128xf32>
    %9 = tpu.matmul %6, %8, %cst_9 {dimension_numbers = #tpu.dot_dimension_numbers<[1], [0], [0], [1], [0, 0, 1, 1], [], []>} : vector<64x512xbf16>, vector<512x128xbf16>, vector<64x128xf32> -> vector<64x128xf32>
    %10 = arith.addf %2, %9 : vector<64x128xf32>
    %c1 = arith.constant 1 : index
    %c0_10 = arith.constant 0 : index
    %c0_11 = arith.constant 0 : index
    %11 = vector.load %arg2[%c1, %c0_10, %c0_11] : memref<9x64x64xbf16, #tpu.memory_space<vmem>>, vector<1x64x64xbf16>
    %12 = vector.shape_cast %11 : vector<1x64x64xbf16> to vector<64x64xbf16>
    %cst_12 = arith.constant dense<0.000000e+00> : vector<64x512xf32>
    %13 = tpu.matmul %12, %1, %cst_12 {dimension_numbers = #tpu.dot_dimension_numbers<[1], [0], [0], [1], [0, 0, 1, 1], [], []>} : vector<64x64xbf16>, vector<64x512xbf16>, vector<64x512xf32> -> vector<64x512xf32>
    %14 = arith.truncf %13 : vector<64x512xf32> to vector<64x512xbf16>
    %c1_13 = arith.constant 1 : index
    %c0_14 = arith.constant 0 : index
    %c0_15 = arith.constant 0 : index
    %15 = vector.load %arg5[%c1_13, %c0_14, %c0_15] : memref<9x512x128xbf16, #tpu.memory_space<vmem>>, vector<1x512x128xbf16>
    %16 = vector.shape_cast %15 : vector<1x512x128xbf16> to vector<512x128xbf16>
    %cst_16 = arith.constant dense<0.000000e+00> : vector<64x128xf32>
    %17 = tpu.matmul %14, %16, %cst_16 {dimension_numbers = #tpu.dot_dimension_numbers<[1], [0], [0], [1], [0, 0, 1, 1], [], []>} : vector<64x512xbf16>, vector<512x128xbf16>, vector<64x128xf32> -> vector<64x128xf32>
    %18 = arith.addf %10, %17 : vector<64x128xf32>
    %c2 = arith.constant 2 : index
    %c0_17 = arith.constant 0 : index
    %c0_18 = arith.constant 0 : index
    %19 = vector.load %arg2[%c2, %c0_17, %c0_18] : memref<9x64x64xbf16, #tpu.memory_space<vmem>>, vector<1x64x64xbf16>
    %20 = vector.shape_cast %19 : vector<1x64x64xbf16> to vector<64x64xbf16>
    %cst_19 = arith.constant dense<0.000000e+00> : vector<64x512xf32>
    %21 = tpu.matmul %20, %1, %cst_19 {dimension_numbers = #tpu.dot_dimension_numbers<[1], [0], [0], [1], [0, 0, 1, 1], [], []>} : vector<64x64xbf16>, vector<64x512xbf16>, vector<64x512xf32> -> vector<64x512xf32>
    %22 = arith.truncf %21 : vector<64x512xf32> to vector<64x512xbf16>
    %c2_20 = arith.constant 2 : index
    %c0_21 = arith.constant 0 : index
    %c0_22 = arith.constant 0 : index
    %23 = vector.load %arg5[%c2_20, %c0_21, %c0_22] : memref<9x512x128xbf16, #tpu.memory_space<vmem>>, vector<1x512x128xbf16>
    %24 = vector.shape_cast %23 : vector<1x512x128xbf16> to vector<512x128xbf16>
    %cst_23 = arith.constant dense<0.000000e+00> : vector<64x128xf32>
    %25 = tpu.matmul %22, %24, %cst_23 {dimension_numbers = #tpu.dot_dimension_numbers<[1], [0], [0], [1], [0, 0, 1, 1], [], []>} : vector<64x512xbf16>, vector<512x128xbf16>, vector<64x128xf32> -> vector<64x128xf32>
    %26 = arith.addf %18, %25 : vector<64x128xf32>
    %c3 = arith.constant 3 : index
    %c0_24 = arith.constant 0 : index
    %c0_25 = arith.constant 0 : index
    %27 = vector.load %arg2[%c3, %c0_24, %c0_25] : memref<9x64x64xbf16, #tpu.memory_space<vmem>>, vector<1x64x64xbf16>
    %28 = vector.shape_cast %27 : vector<1x64x64xbf16> to vector<64x64xbf16>
    %cst_26 = arith.constant dense<0.000000e+00> : vector<64x512xf32>
    %29 = tpu.matmul %28, %1, %cst_26 {dimension_numbers = #tpu.dot_dimension_numbers<[1], [0], [0], [1], [0, 0, 1, 1], [], []>} : vector<64x64xbf16>, vector<64x512xbf16>, vector<64x512xf32> -> vector<64x512xf32>
    %30 = arith.truncf %29 : vector<64x512xf32> to vector<64x512xbf16>
    %c3_27 = arith.constant 3 : index
    %c0_28 = arith.constant 0 : index
    %c0_29 = arith.constant 0 : index
    %31 = vector.load %arg5[%c3_27, %c0_28, %c0_29] : memref<9x512x128xbf16, #tpu.memory_space<vmem>>, vector<1x512x128xbf16>
    %32 = vector.shape_cast %31 : vector<1x512x128xbf16> to vector<512x128xbf16>
    %cst_30 = arith.constant dense<0.000000e+00> : vector<64x128xf32>
    %33 = tpu.matmul %30, %32, %cst_30 {dimension_numbers = #tpu.dot_dimension_numbers<[1], [0], [0], [1], [0, 0, 1, 1], [], []>} : vector<64x512xbf16>, vector<512x128xbf16>, vector<64x128xf32> -> vector<64x128xf32>
    %34 = arith.addf %26, %33 : vector<64x128xf32>
    %c4 = arith.constant 4 : index
    %c0_31 = arith.constant 0 : index
    %c0_32 = arith.constant 0 : index
    %35 = vector.load %arg2[%c4, %c0_31, %c0_32] : memref<9x64x64xbf16, #tpu.memory_space<vmem>>, vector<1x64x64xbf16>
    %36 = vector.shape_cast %35 : vector<1x64x64xbf16> to vector<64x64xbf16>
    %cst_33 = arith.constant dense<0.000000e+00> : vector<64x512xf32>
    %37 = tpu.matmul %36, %1, %cst_33 {dimension_numbers = #tpu.dot_dimension_numbers<[1], [0], [0], [1], [0, 0, 1, 1], [], []>} : vector<64x64xbf16>, vector<64x512xbf16>, vector<64x512xf32> -> vector<64x512xf32>
    %38 = arith.truncf %37 : vector<64x512xf32> to vector<64x512xbf16>
    %c4_34 = arith.constant 4 : index
    %c0_35 = arith.constant 0 : index
    %c0_36 = arith.constant 0 : index
    %39 = vector.load %arg5[%c4_34, %c0_35, %c0_36] : memref<9x512x128xbf16, #tpu.memory_space<vmem>>, vector<1x512x128xbf16>
    %40 = vector.shape_cast %39 : vector<1x512x128xbf16> to vector<512x128xbf16>
    %cst_37 = arith.constant dense<0.000000e+00> : vector<64x128xf32>
    %41 = tpu.matmul %38, %40, %cst_37 {dimension_numbers = #tpu.dot_dimension_numbers<[1], [0], [0], [1], [0, 0, 1, 1], [], []>} : vector<64x512xbf16>, vector<512x128xbf16>, vector<64x128xf32> -> vector<64x128xf32>
    %42 = arith.addf %34, %41 : vector<64x128xf32>
    %c5 = arith.constant 5 : index
    %c0_38 = arith.constant 0 : index
    %c0_39 = arith.constant 0 : index
    %43 = vector.load %arg2[%c5, %c0_38, %c0_39] : memref<9x64x64xbf16, #tpu.memory_space<vmem>>, vector<1x64x64xbf16>
    %44 = vector.shape_cast %43 : vector<1x64x64xbf16> to vector<64x64xbf16>
    %cst_40 = arith.constant dense<0.000000e+00> : vector<64x512xf32>
    %45 = tpu.matmul %44, %1, %cst_40 {dimension_numbers = #tpu.dot_dimension_numbers<[1], [0], [0], [1], [0, 0, 1, 1], [], []>} : vector<64x64xbf16>, vector<64x512xbf16>, vector<64x512xf32> -> vector<64x512xf32>
    %46 = arith.truncf %45 : vector<64x512xf32> to vector<64x512xbf16>
    %c5_41 = arith.constant 5 : index
    %c0_42 = arith.constant 0 : index
    %c0_43 = arith.constant 0 : index
    %47 = vector.load %arg5[%c5_41, %c0_42, %c0_43] : memref<9x512x128xbf16, #tpu.memory_space<vmem>>, vector<1x512x128xbf16>
    %48 = vector.shape_cast %47 : vector<1x512x128xbf16> to vector<512x128xbf16>
    %cst_44 = arith.constant dense<0.000000e+00> : vector<64x128xf32>
    %49 = tpu.matmul %46, %48, %cst_44 {dimension_numbers = #tpu.dot_dimension_numbers<[1], [0], [0], [1], [0, 0, 1, 1], [], []>} : vector<64x512xbf16>, vector<512x128xbf16>, vector<64x128xf32> -> vector<64x128xf32>
    %50 = arith.addf %42, %49 : vector<64x128xf32>
    %c6 = arith.constant 6 : index
    %c0_45 = arith.constant 0 : index
    %c0_46 = arith.constant 0 : index
    %51 = vector.load %arg2[%c6, %c0_45, %c0_46] : memref<9x64x64xbf16, #tpu.memory_space<vmem>>, vector<1x64x64xbf16>
    %52 = vector.shape_cast %51 : vector<1x64x64xbf16> to vector<64x64xbf16>
    %cst_47 = arith.constant dense<0.000000e+00> : vector<64x512xf32>
    %53 = tpu.matmul %52, %1, %cst_47 {dimension_numbers = #tpu.dot_dimension_numbers<[1], [0], [0], [1], [0, 0, 1, 1], [], []>} : vector<64x64xbf16>, vector<64x512xbf16>, vector<64x512xf32> -> vector<64x512xf32>
    %54 = arith.truncf %53 : vector<64x512xf32> to vector<64x512xbf16>
    %c6_48 = arith.constant 6 : index
    %c0_49 = arith.constant 0 : index
    %c0_50 = arith.constant 0 : index
    %55 = vector.load %arg5[%c6_48, %c0_49, %c0_50] : memref<9x512x128xbf16, #tpu.memory_space<vmem>>, vector<1x512x128xbf16>
    %56 = vector.shape_cast %55 : vector<1x512x128xbf16> to vector<512x128xbf16>
    %cst_51 = arith.constant dense<0.000000e+00> : vector<64x128xf32>
    %57 = tpu.matmul %54, %56, %cst_51 {dimension_numbers = #tpu.dot_dimension_numbers<[1], [0], [0], [1], [0, 0, 1, 1], [], []>} : vector<64x512xbf16>, vector<512x128xbf16>, vector<64x128xf32> -> vector<64x128xf32>
    %58 = arith.addf %50, %57 : vector<64x128xf32>
    %c7 = arith.constant 7 : index
    %c0_52 = arith.constant 0 : index
    %c0_53 = arith.constant 0 : index
    %59 = vector.load %arg2[%c7, %c0_52, %c0_53] : memref<9x64x64xbf16, #tpu.memory_space<vmem>>, vector<1x64x64xbf16>
    %60 = vector.shape_cast %59 : vector<1x64x64xbf16> to vector<64x64xbf16>
    %cst_54 = arith.constant dense<0.000000e+00> : vector<64x512xf32>
    %61 = tpu.matmul %60, %1, %cst_54 {dimension_numbers = #tpu.dot_dimension_numbers<[1], [0], [0], [1], [0, 0, 1, 1], [], []>} : vector<64x64xbf16>, vector<64x512xbf16>, vector<64x512xf32> -> vector<64x512xf32>
    %62 = arith.truncf %61 : vector<64x512xf32> to vector<64x512xbf16>
    %c7_55 = arith.constant 7 : index
    %c0_56 = arith.constant 0 : index
    %c0_57 = arith.constant 0 : index
    %63 = vector.load %arg5[%c7_55, %c0_56, %c0_57] : memref<9x512x128xbf16, #tpu.memory_space<vmem>>, vector<1x512x128xbf16>
    %64 = vector.shape_cast %63 : vector<1x512x128xbf16> to vector<512x128xbf16>
    %cst_58 = arith.constant dense<0.000000e+00> : vector<64x128xf32>
    %65 = tpu.matmul %62, %64, %cst_58 {dimension_numbers = #tpu.dot_dimension_numbers<[1], [0], [0], [1], [0, 0, 1, 1], [], []>} : vector<64x512xbf16>, vector<512x128xbf16>, vector<64x128xf32> -> vector<64x128xf32>
    %66 = arith.addf %58, %65 : vector<64x128xf32>
    %c8 = arith.constant 8 : index
    %c0_59 = arith.constant 0 : index
    %c0_60 = arith.constant 0 : index
    %67 = vector.load %arg2[%c8, %c0_59, %c0_60] : memref<9x64x64xbf16, #tpu.memory_space<vmem>>, vector<1x64x64xbf16>
    %68 = vector.shape_cast %67 : vector<1x64x64xbf16> to vector<64x64xbf16>
    %cst_61 = arith.constant dense<0.000000e+00> : vector<64x512xf32>
    %69 = tpu.matmul %68, %1, %cst_61 {dimension_numbers = #tpu.dot_dimension_numbers<[1], [0], [0], [1], [0, 0, 1, 1], [], []>} : vector<64x64xbf16>, vector<64x512xbf16>, vector<64x512xf32> -> vector<64x512xf32>
    %70 = arith.truncf %69 : vector<64x512xf32> to vector<64x512xbf16>
    %c8_62 = arith.constant 8 : index
    %c0_63 = arith.constant 0 : index
    %c0_64 = arith.constant 0 : index
    %71 = vector.load %arg5[%c8_62, %c0_63, %c0_64] : memref<9x512x128xbf16, #tpu.memory_space<vmem>>, vector<1x512x128xbf16>
    %72 = vector.shape_cast %71 : vector<1x512x128xbf16> to vector<512x128xbf16>
    %cst_65 = arith.constant dense<0.000000e+00> : vector<64x128xf32>
    %73 = tpu.matmul %70, %72, %cst_65 {dimension_numbers = #tpu.dot_dimension_numbers<[1], [0], [0], [1], [0, 0, 1, 1], [], []>} : vector<64x512xbf16>, vector<512x128xbf16>, vector<64x128xf32> -> vector<64x128xf32>
    %74 = arith.addf %66, %73 : vector<64x128xf32>
    %c0_66 = arith.constant 0 : index
    %c0_67 = arith.constant 0 : index
    %75 = vector.load %arg6[%c0_66, %c0_67] : memref<1x128xf32, #tpu.memory_space<vmem>>, vector<1x128xf32>
    %76 = vector.broadcast %75 : vector<1x128xf32> to vector<64x128xf32>
    %77 = arith.addf %74, %76 : vector<64x128xf32>
    %cst_68 = arith.constant 0.000000e+00 : f32
    %78 = vector.broadcast %cst_68 : f32 to vector<64x128xf32>
    %79 = arith.maximumf %77, %78 : vector<64x128xf32>
    %80 = arith.truncf %79 : vector<64x128xf32> to vector<64x128xbf16>
    %cst_69 = arith.constant 0.000000e+00 : f32
    %81 = vector.broadcast %cst_69 : f32 to vector<16x128xf32>
    %c0_70 = arith.constant 0 : index
    %c0_71 = arith.constant 0 : index
    %c0_72 = arith.constant 0 : index
    %82 = vector.load %arg3[%c0_70, %c0_71, %c0_72] : memref<9x16x64xbf16, #tpu.memory_space<vmem>>, vector<1x16x64xbf16>
    %83 = vector.shape_cast %82 : vector<1x16x64xbf16> to vector<16x64xbf16>
    %cst_73 = arith.constant dense<0.000000e+00> : vector<16x128xf32>
    %84 = tpu.matmul %83, %80, %cst_73 {dimension_numbers = #tpu.dot_dimension_numbers<[1], [0], [0], [1], [0, 0, 1, 1], [], []>} : vector<16x64xbf16>, vector<64x128xbf16>, vector<16x128xf32> -> vector<16x128xf32>
    %85 = arith.truncf %84 : vector<16x128xf32> to vector<16x128xbf16>
    %c0_74 = arith.constant 0 : index
    %c0_75 = arith.constant 0 : index
    %c0_76 = arith.constant 0 : index
    %86 = vector.load %arg7[%c0_74, %c0_75, %c0_76] : memref<9x128x128xbf16, #tpu.memory_space<vmem>>, vector<1x128x128xbf16>
    %87 = vector.shape_cast %86 : vector<1x128x128xbf16> to vector<128x128xbf16>
    %cst_77 = arith.constant dense<0.000000e+00> : vector<16x128xf32>
    %88 = tpu.matmul %85, %87, %cst_77 {dimension_numbers = #tpu.dot_dimension_numbers<[1], [0], [0], [1], [0, 0, 1, 1], [], []>} : vector<16x128xbf16>, vector<128x128xbf16>, vector<16x128xf32> -> vector<16x128xf32>
    %89 = arith.addf %81, %88 : vector<16x128xf32>
    %c1_78 = arith.constant 1 : index
    %c0_79 = arith.constant 0 : index
    %c0_80 = arith.constant 0 : index
    %90 = vector.load %arg3[%c1_78, %c0_79, %c0_80] : memref<9x16x64xbf16, #tpu.memory_space<vmem>>, vector<1x16x64xbf16>
    %91 = vector.shape_cast %90 : vector<1x16x64xbf16> to vector<16x64xbf16>
    %cst_81 = arith.constant dense<0.000000e+00> : vector<16x128xf32>
    %92 = tpu.matmul %91, %80, %cst_81 {dimension_numbers = #tpu.dot_dimension_numbers<[1], [0], [0], [1], [0, 0, 1, 1], [], []>} : vector<16x64xbf16>, vector<64x128xbf16>, vector<16x128xf32> -> vector<16x128xf32>
    %93 = arith.truncf %92 : vector<16x128xf32> to vector<16x128xbf16>
    %c1_82 = arith.constant 1 : index
    %c0_83 = arith.constant 0 : index
    %c0_84 = arith.constant 0 : index
    %94 = vector.load %arg7[%c1_82, %c0_83, %c0_84] : memref<9x128x128xbf16, #tpu.memory_space<vmem>>, vector<1x128x128xbf16>
    %95 = vector.shape_cast %94 : vector<1x128x128xbf16> to vector<128x128xbf16>
    %cst_85 = arith.constant dense<0.000000e+00> : vector<16x128xf32>
    %96 = tpu.matmul %93, %95, %cst_85 {dimension_numbers = #tpu.dot_dimension_numbers<[1], [0], [0], [1], [0, 0, 1, 1], [], []>} : vector<16x128xbf16>, vector<128x128xbf16>, vector<16x128xf32> -> vector<16x128xf32>
    %97 = arith.addf %89, %96 : vector<16x128xf32>
    %c2_86 = arith.constant 2 : index
    %c0_87 = arith.constant 0 : index
    %c0_88 = arith.constant 0 : index
    %98 = vector.load %arg3[%c2_86, %c0_87, %c0_88] : memref<9x16x64xbf16, #tpu.memory_space<vmem>>, vector<1x16x64xbf16>
    %99 = vector.shape_cast %98 : vector<1x16x64xbf16> to vector<16x64xbf16>
    %cst_89 = arith.constant dense<0.000000e+00> : vector<16x128xf32>
    %100 = tpu.matmul %99, %80, %cst_89 {dimension_numbers = #tpu.dot_dimension_numbers<[1], [0], [0], [1], [0, 0, 1, 1], [], []>} : vector<16x64xbf16>, vector<64x128xbf16>, vector<16x128xf32> -> vector<16x128xf32>
    %101 = arith.truncf %100 : vector<16x128xf32> to vector<16x128xbf16>
    %c2_90 = arith.constant 2 : index
    %c0_91 = arith.constant 0 : index
    %c0_92 = arith.constant 0 : index
    %102 = vector.load %arg7[%c2_90, %c0_91, %c0_92] : memref<9x128x128xbf16, #tpu.memory_space<vmem>>, vector<1x128x128xbf16>
    %103 = vector.shape_cast %102 : vector<1x128x128xbf16> to vector<128x128xbf16>
    %cst_93 = arith.constant dense<0.000000e+00> : vector<16x128xf32>
    %104 = tpu.matmul %101, %103, %cst_93 {dimension_numbers = #tpu.dot_dimension_numbers<[1], [0], [0], [1], [0, 0, 1, 1], [], []>} : vector<16x128xbf16>, vector<128x128xbf16>, vector<16x128xf32> -> vector<16x128xf32>
    %105 = arith.addf %97, %104 : vector<16x128xf32>
    %c3_94 = arith.constant 3 : index
    %c0_95 = arith.constant 0 : index
    %c0_96 = arith.constant 0 : index
    %106 = vector.load %arg3[%c3_94, %c0_95, %c0_96] : memref<9x16x64xbf16, #tpu.memory_space<vmem>>, vector<1x16x64xbf16>
    %107 = vector.shape_cast %106 : vector<1x16x64xbf16> to vector<16x64xbf16>
    %cst_97 = arith.constant dense<0.000000e+00> : vector<16x128xf32>
    %108 = tpu.matmul %107, %80, %cst_97 {dimension_numbers = #tpu.dot_dimension_numbers<[1], [0], [0], [1], [0, 0, 1, 1], [], []>} : vector<16x64xbf16>, vector<64x128xbf16>, vector<16x128xf32> -> vector<16x128xf32>
    %109 = arith.truncf %108 : vector<16x128xf32> to vector<16x128xbf16>
    %c3_98 = arith.constant 3 : index
    %c0_99 = arith.constant 0 : index
    %c0_100 = arith.constant 0 : index
    %110 = vector.load %arg7[%c3_98, %c0_99, %c0_100] : memref<9x128x128xbf16, #tpu.memory_space<vmem>>, vector<1x128x128xbf16>
    %111 = vector.shape_cast %110 : vector<1x128x128xbf16> to vector<128x128xbf16>
    %cst_101 = arith.constant dense<0.000000e+00> : vector<16x128xf32>
    %112 = tpu.matmul %109, %111, %cst_101 {dimension_numbers = #tpu.dot_dimension_numbers<[1], [0], [0], [1], [0, 0, 1, 1], [], []>} : vector<16x128xbf16>, vector<128x128xbf16>, vector<16x128xf32> -> vector<16x128xf32>
    %113 = arith.addf %105, %112 : vector<16x128xf32>
    %c4_102 = arith.constant 4 : index
    %c0_103 = arith.constant 0 : index
    %c0_104 = arith.constant 0 : index
    %114 = vector.load %arg3[%c4_102, %c0_103, %c0_104] : memref<9x16x64xbf16, #tpu.memory_space<vmem>>, vector<1x16x64xbf16>
    %115 = vector.shape_cast %114 : vector<1x16x64xbf16> to vector<16x64xbf16>
    %cst_105 = arith.constant dense<0.000000e+00> : vector<16x128xf32>
    %116 = tpu.matmul %115, %80, %cst_105 {dimension_numbers = #tpu.dot_dimension_numbers<[1], [0], [0], [1], [0, 0, 1, 1], [], []>} : vector<16x64xbf16>, vector<64x128xbf16>, vector<16x128xf32> -> vector<16x128xf32>
    %117 = arith.truncf %116 : vector<16x128xf32> to vector<16x128xbf16>
    %c4_106 = arith.constant 4 : index
    %c0_107 = arith.constant 0 : index
    %c0_108 = arith.constant 0 : index
    %118 = vector.load %arg7[%c4_106, %c0_107, %c0_108] : memref<9x128x128xbf16, #tpu.memory_space<vmem>>, vector<1x128x128xbf16>
    %119 = vector.shape_cast %118 : vector<1x128x128xbf16> to vector<128x128xbf16>
    %cst_109 = arith.constant dense<0.000000e+00> : vector<16x128xf32>
    %120 = tpu.matmul %117, %119, %cst_109 {dimension_numbers = #tpu.dot_dimension_numbers<[1], [0], [0], [1], [0, 0, 1, 1], [], []>} : vector<16x128xbf16>, vector<128x128xbf16>, vector<16x128xf32> -> vector<16x128xf32>
    %121 = arith.addf %113, %120 : vector<16x128xf32>
    %c5_110 = arith.constant 5 : index
    %c0_111 = arith.constant 0 : index
    %c0_112 = arith.constant 0 : index
    %122 = vector.load %arg3[%c5_110, %c0_111, %c0_112] : memref<9x16x64xbf16, #tpu.memory_space<vmem>>, vector<1x16x64xbf16>
    %123 = vector.shape_cast %122 : vector<1x16x64xbf16> to vector<16x64xbf16>
    %cst_113 = arith.constant dense<0.000000e+00> : vector<16x128xf32>
    %124 = tpu.matmul %123, %80, %cst_113 {dimension_numbers = #tpu.dot_dimension_numbers<[1], [0], [0], [1], [0, 0, 1, 1], [], []>} : vector<16x64xbf16>, vector<64x128xbf16>, vector<16x128xf32> -> vector<16x128xf32>
    %125 = arith.truncf %124 : vector<16x128xf32> to vector<16x128xbf16>
    %c5_114 = arith.constant 5 : index
    %c0_115 = arith.constant 0 : index
    %c0_116 = arith.constant 0 : index
    %126 = vector.load %arg7[%c5_114, %c0_115, %c0_116] : memref<9x128x128xbf16, #tpu.memory_space<vmem>>, vector<1x128x128xbf16>
    %127 = vector.shape_cast %126 : vector<1x128x128xbf16> to vector<128x128xbf16>
    %cst_117 = arith.constant dense<0.000000e+00> : vector<16x128xf32>
    %128 = tpu.matmul %125, %127, %cst_117 {dimension_numbers = #tpu.dot_dimension_numbers<[1], [0], [0], [1], [0, 0, 1, 1], [], []>} : vector<16x128xbf16>, vector<128x128xbf16>, vector<16x128xf32> -> vector<16x128xf32>
    %129 = arith.addf %121, %128 : vector<16x128xf32>
    %c6_118 = arith.constant 6 : index
    %c0_119 = arith.constant 0 : index
    %c0_120 = arith.constant 0 : index
    %130 = vector.load %arg3[%c6_118, %c0_119, %c0_120] : memref<9x16x64xbf16, #tpu.memory_space<vmem>>, vector<1x16x64xbf16>
    %131 = vector.shape_cast %130 : vector<1x16x64xbf16> to vector<16x64xbf16>
    %cst_121 = arith.constant dense<0.000000e+00> : vector<16x128xf32>
    %132 = tpu.matmul %131, %80, %cst_121 {dimension_numbers = #tpu.dot_dimension_numbers<[1], [0], [0], [1], [0, 0, 1, 1], [], []>} : vector<16x64xbf16>, vector<64x128xbf16>, vector<16x128xf32> -> vector<16x128xf32>
    %133 = arith.truncf %132 : vector<16x128xf32> to vector<16x128xbf16>
    %c6_122 = arith.constant 6 : index
    %c0_123 = arith.constant 0 : index
    %c0_124 = arith.constant 0 : index
    %134 = vector.load %arg7[%c6_122, %c0_123, %c0_124] : memref<9x128x128xbf16, #tpu.memory_space<vmem>>, vector<1x128x128xbf16>
    %135 = vector.shape_cast %134 : vector<1x128x128xbf16> to vector<128x128xbf16>
    %cst_125 = arith.constant dense<0.000000e+00> : vector<16x128xf32>
    %136 = tpu.matmul %133, %135, %cst_125 {dimension_numbers = #tpu.dot_dimension_numbers<[1], [0], [0], [1], [0, 0, 1, 1], [], []>} : vector<16x128xbf16>, vector<128x128xbf16>, vector<16x128xf32> -> vector<16x128xf32>
    %137 = arith.addf %129, %136 : vector<16x128xf32>
    %c7_126 = arith.constant 7 : index
    %c0_127 = arith.constant 0 : index
    %c0_128 = arith.constant 0 : index
    %138 = vector.load %arg3[%c7_126, %c0_127, %c0_128] : memref<9x16x64xbf16, #tpu.memory_space<vmem>>, vector<1x16x64xbf16>
    %139 = vector.shape_cast %138 : vector<1x16x64xbf16> to vector<16x64xbf16>
    %cst_129 = arith.constant dense<0.000000e+00> : vector<16x128xf32>
    %140 = tpu.matmul %139, %80, %cst_129 {dimension_numbers = #tpu.dot_dimension_numbers<[1], [0], [0], [1], [0, 0, 1, 1], [], []>} : vector<16x64xbf16>, vector<64x128xbf16>, vector<16x128xf32> -> vector<16x128xf32>
    %141 = arith.truncf %140 : vector<16x128xf32> to vector<16x128xbf16>
    %c7_130 = arith.constant 7 : index
    %c0_131 = arith.constant 0 : index
    %c0_132 = arith.constant 0 : index
    %142 = vector.load %arg7[%c7_130, %c0_131, %c0_132] : memref<9x128x128xbf16, #tpu.memory_space<vmem>>, vector<1x128x128xbf16>
    %143 = vector.shape_cast %142 : vector<1x128x128xbf16> to vector<128x128xbf16>
    %cst_133 = arith.constant dense<0.000000e+00> : vector<16x128xf32>
    %144 = tpu.matmul %141, %143, %cst_133 {dimension_numbers = #tpu.dot_dimension_numbers<[1], [0], [0], [1], [0, 0, 1, 1], [], []>} : vector<16x128xbf16>, vector<128x128xbf16>, vector<16x128xf32> -> vector<16x128xf32>
    %145 = arith.addf %137, %144 : vector<16x128xf32>
    %c8_134 = arith.constant 8 : index
    %c0_135 = arith.constant 0 : index
    %c0_136 = arith.constant 0 : index
    %146 = vector.load %arg3[%c8_134, %c0_135, %c0_136] : memref<9x16x64xbf16, #tpu.memory_space<vmem>>, vector<1x16x64xbf16>
    %147 = vector.shape_cast %146 : vector<1x16x64xbf16> to vector<16x64xbf16>
    %cst_137 = arith.constant dense<0.000000e+00> : vector<16x128xf32>
    %148 = tpu.matmul %147, %80, %cst_137 {dimension_numbers = #tpu.dot_dimension_numbers<[1], [0], [0], [1], [0, 0, 1, 1], [], []>} : vector<16x64xbf16>, vector<64x128xbf16>, vector<16x128xf32> -> vector<16x128xf32>
    %149 = arith.truncf %148 : vector<16x128xf32> to vector<16x128xbf16>
    %c8_138 = arith.constant 8 : index
    %c0_139 = arith.constant 0 : index
    %c0_140 = arith.constant 0 : index
    %150 = vector.load %arg7[%c8_138, %c0_139, %c0_140] : memref<9x128x128xbf16, #tpu.memory_space<vmem>>, vector<1x128x128xbf16>
    %151 = vector.shape_cast %150 : vector<1x128x128xbf16> to vector<128x128xbf16>
    %cst_141 = arith.constant dense<0.000000e+00> : vector<16x128xf32>
    %152 = tpu.matmul %149, %151, %cst_141 {dimension_numbers = #tpu.dot_dimension_numbers<[1], [0], [0], [1], [0, 0, 1, 1], [], []>} : vector<16x128xbf16>, vector<128x128xbf16>, vector<16x128xf32> -> vector<16x128xf32>
    %153 = arith.addf %145, %152 : vector<16x128xf32>
    %c0_142 = arith.constant 0 : index
    %c0_143 = arith.constant 0 : index
    %154 = vector.load %arg8[%c0_142, %c0_143] : memref<1x128xf32, #tpu.memory_space<vmem>>, vector<1x128xf32>
    %155 = vector.broadcast %154 : vector<1x128xf32> to vector<16x128xf32>
    %156 = arith.addf %153, %155 : vector<16x128xf32>
    %cst_144 = arith.constant 0.000000e+00 : f32
    %157 = vector.broadcast %cst_144 : f32 to vector<16x128xf32>
    %158 = arith.maximumf %156, %157 : vector<16x128xf32>
    %159 = arith.truncf %158 : vector<16x128xf32> to vector<16x128xbf16>
    %cst_145 = arith.constant 0.000000e+00 : f32
    %160 = vector.broadcast %cst_145 : f32 to vector<4x128xf32>
    %c0_146 = arith.constant 0 : index
    %c0_147 = arith.constant 0 : index
    %c0_148 = arith.constant 0 : index
    %161 = vector.load %arg4[%c0_146, %c0_147, %c0_148] : memref<9x4x16xbf16, #tpu.memory_space<vmem>>, vector<1x4x16xbf16>
    %162 = vector.shape_cast %161 : vector<1x4x16xbf16> to vector<4x16xbf16>
    %cst_149 = arith.constant dense<0.000000e+00> : vector<4x128xf32>
    %163 = tpu.matmul %162, %159, %cst_149 {dimension_numbers = #tpu.dot_dimension_numbers<[1], [0], [0], [1], [0, 0, 1, 1], [], []>} : vector<4x16xbf16>, vector<16x128xbf16>, vector<4x128xf32> -> vector<4x128xf32>
    %164 = arith.truncf %163 : vector<4x128xf32> to vector<4x128xbf16>
    %c0_150 = arith.constant 0 : index
    %c0_151 = arith.constant 0 : index
    %c0_152 = arith.constant 0 : index
    %165 = vector.load %arg9[%c0_150, %c0_151, %c0_152] : memref<9x128x128xbf16, #tpu.memory_space<vmem>>, vector<1x128x128xbf16>
    %166 = vector.shape_cast %165 : vector<1x128x128xbf16> to vector<128x128xbf16>
    %cst_153 = arith.constant dense<0.000000e+00> : vector<4x128xf32>
    %167 = tpu.matmul %164, %166, %cst_153 {dimension_numbers = #tpu.dot_dimension_numbers<[1], [0], [0], [1], [0, 0, 1, 1], [], []>} : vector<4x128xbf16>, vector<128x128xbf16>, vector<4x128xf32> -> vector<4x128xf32>
    %168 = arith.addf %160, %167 : vector<4x128xf32>
    %c1_154 = arith.constant 1 : index
    %c0_155 = arith.constant 0 : index
    %c0_156 = arith.constant 0 : index
    %169 = vector.load %arg4[%c1_154, %c0_155, %c0_156] : memref<9x4x16xbf16, #tpu.memory_space<vmem>>, vector<1x4x16xbf16>
    %170 = vector.shape_cast %169 : vector<1x4x16xbf16> to vector<4x16xbf16>
    %cst_157 = arith.constant dense<0.000000e+00> : vector<4x128xf32>
    %171 = tpu.matmul %170, %159, %cst_157 {dimension_numbers = #tpu.dot_dimension_numbers<[1], [0], [0], [1], [0, 0, 1, 1], [], []>} : vector<4x16xbf16>, vector<16x128xbf16>, vector<4x128xf32> -> vector<4x128xf32>
    %172 = arith.truncf %171 : vector<4x128xf32> to vector<4x128xbf16>
    %c1_158 = arith.constant 1 : index
    %c0_159 = arith.constant 0 : index
    %c0_160 = arith.constant 0 : index
    %173 = vector.load %arg9[%c1_158, %c0_159, %c0_160] : memref<9x128x128xbf16, #tpu.memory_space<vmem>>, vector<1x128x128xbf16>
    %174 = vector.shape_cast %173 : vector<1x128x128xbf16> to vector<128x128xbf16>
    %cst_161 = arith.constant dense<0.000000e+00> : vector<4x128xf32>
    %175 = tpu.matmul %172, %174, %cst_161 {dimension_numbers = #tpu.dot_dimension_numbers<[1], [0], [0], [1], [0, 0, 1, 1], [], []>} : vector<4x128xbf16>, vector<128x128xbf16>, vector<4x128xf32> -> vector<4x128xf32>
    %176 = arith.addf %168, %175 : vector<4x128xf32>
    %c2_162 = arith.constant 2 : index
    %c0_163 = arith.constant 0 : index
    %c0_164 = arith.constant 0 : index
    %177 = vector.load %arg4[%c2_162, %c0_163, %c0_164] : memref<9x4x16xbf16, #tpu.memory_space<vmem>>, vector<1x4x16xbf16>
    %178 = vector.shape_cast %177 : vector<1x4x16xbf16> to vector<4x16xbf16>
    %cst_165 = arith.constant dense<0.000000e+00> : vector<4x128xf32>
    %179 = tpu.matmul %178, %159, %cst_165 {dimension_numbers = #tpu.dot_dimension_numbers<[1], [0], [0], [1], [0, 0, 1, 1], [], []>} : vector<4x16xbf16>, vector<16x128xbf16>, vector<4x128xf32> -> vector<4x128xf32>
    %180 = arith.truncf %179 : vector<4x128xf32> to vector<4x128xbf16>
    %c2_166 = arith.constant 2 : index
    %c0_167 = arith.constant 0 : index
    %c0_168 = arith.constant 0 : index
    %181 = vector.load %arg9[%c2_166, %c0_167, %c0_168] : memref<9x128x128xbf16, #tpu.memory_space<vmem>>, vector<1x128x128xbf16>
    %182 = vector.shape_cast %181 : vector<1x128x128xbf16> to vector<128x128xbf16>
    %cst_169 = arith.constant dense<0.000000e+00> : vector<4x128xf32>
    %183 = tpu.matmul %180, %182, %cst_169 {dimension_numbers = #tpu.dot_dimension_numbers<[1], [0], [0], [1], [0, 0, 1, 1], [], []>} : vector<4x128xbf16>, vector<128x128xbf16>, vector<4x128xf32> -> vector<4x128xf32>
    %184 = arith.addf %176, %183 : vector<4x128xf32>
    %c3_170 = arith.constant 3 : index
    %c0_171 = arith.constant 0 : index
    %c0_172 = arith.constant 0 : index
    %185 = vector.load %arg4[%c3_170, %c0_171, %c0_172] : memref<9x4x16xbf16, #tpu.memory_space<vmem>>, vector<1x4x16xbf16>
    %186 = vector.shape_cast %185 : vector<1x4x16xbf16> to vector<4x16xbf16>
    %cst_173 = arith.constant dense<0.000000e+00> : vector<4x128xf32>
    %187 = tpu.matmul %186, %159, %cst_173 {dimension_numbers = #tpu.dot_dimension_numbers<[1], [0], [0], [1], [0, 0, 1, 1], [], []>} : vector<4x16xbf16>, vector<16x128xbf16>, vector<4x128xf32> -> vector<4x128xf32>
    %188 = arith.truncf %187 : vector<4x128xf32> to vector<4x128xbf16>
    %c3_174 = arith.constant 3 : index
    %c0_175 = arith.constant 0 : index
    %c0_176 = arith.constant 0 : index
    %189 = vector.load %arg9[%c3_174, %c0_175, %c0_176] : memref<9x128x128xbf16, #tpu.memory_space<vmem>>, vector<1x128x128xbf16>
    %190 = vector.shape_cast %189 : vector<1x128x128xbf16> to vector<128x128xbf16>
    %cst_177 = arith.constant dense<0.000000e+00> : vector<4x128xf32>
    %191 = tpu.matmul %188, %190, %cst_177 {dimension_numbers = #tpu.dot_dimension_numbers<[1], [0], [0], [1], [0, 0, 1, 1], [], []>} : vector<4x128xbf16>, vector<128x128xbf16>, vector<4x128xf32> -> vector<4x128xf32>
    %192 = arith.addf %184, %191 : vector<4x128xf32>
    %c4_178 = arith.constant 4 : index
    %c0_179 = arith.constant 0 : index
    %c0_180 = arith.constant 0 : index
    %193 = vector.load %arg4[%c4_178, %c0_179, %c0_180] : memref<9x4x16xbf16, #tpu.memory_space<vmem>>, vector<1x4x16xbf16>
    %194 = vector.shape_cast %193 : vector<1x4x16xbf16> to vector<4x16xbf16>
    %cst_181 = arith.constant dense<0.000000e+00> : vector<4x128xf32>
    %195 = tpu.matmul %194, %159, %cst_181 {dimension_numbers = #tpu.dot_dimension_numbers<[1], [0], [0], [1], [0, 0, 1, 1], [], []>} : vector<4x16xbf16>, vector<16x128xbf16>, vector<4x128xf32> -> vector<4x128xf32>
    %196 = arith.truncf %195 : vector<4x128xf32> to vector<4x128xbf16>
    %c4_182 = arith.constant 4 : index
    %c0_183 = arith.constant 0 : index
    %c0_184 = arith.constant 0 : index
    %197 = vector.load %arg9[%c4_182, %c0_183, %c0_184] : memref<9x128x128xbf16, #tpu.memory_space<vmem>>, vector<1x128x128xbf16>
    %198 = vector.shape_cast %197 : vector<1x128x128xbf16> to vector<128x128xbf16>
    %cst_185 = arith.constant dense<0.000000e+00> : vector<4x128xf32>
    %199 = tpu.matmul %196, %198, %cst_185 {dimension_numbers = #tpu.dot_dimension_numbers<[1], [0], [0], [1], [0, 0, 1, 1], [], []>} : vector<4x128xbf16>, vector<128x128xbf16>, vector<4x128xf32> -> vector<4x128xf32>
    %200 = arith.addf %192, %199 : vector<4x128xf32>
    %c5_186 = arith.constant 5 : index
    %c0_187 = arith.constant 0 : index
    %c0_188 = arith.constant 0 : index
    %201 = vector.load %arg4[%c5_186, %c0_187, %c0_188] : memref<9x4x16xbf16, #tpu.memory_space<vmem>>, vector<1x4x16xbf16>
    %202 = vector.shape_cast %201 : vector<1x4x16xbf16> to vector<4x16xbf16>
    %cst_189 = arith.constant dense<0.000000e+00> : vector<4x128xf32>
    %203 = tpu.matmul %202, %159, %cst_189 {dimension_numbers = #tpu.dot_dimension_numbers<[1], [0], [0], [1], [0, 0, 1, 1], [], []>} : vector<4x16xbf16>, vector<16x128xbf16>, vector<4x128xf32> -> vector<4x128xf32>
    %204 = arith.truncf %203 : vector<4x128xf32> to vector<4x128xbf16>
    %c5_190 = arith.constant 5 : index
    %c0_191 = arith.constant 0 : index
    %c0_192 = arith.constant 0 : index
    %205 = vector.load %arg9[%c5_190, %c0_191, %c0_192] : memref<9x128x128xbf16, #tpu.memory_space<vmem>>, vector<1x128x128xbf16>
    %206 = vector.shape_cast %205 : vector<1x128x128xbf16> to vector<128x128xbf16>
    %cst_193 = arith.constant dense<0.000000e+00> : vector<4x128xf32>
    %207 = tpu.matmul %204, %206, %cst_193 {dimension_numbers = #tpu.dot_dimension_numbers<[1], [0], [0], [1], [0, 0, 1, 1], [], []>} : vector<4x128xbf16>, vector<128x128xbf16>, vector<4x128xf32> -> vector<4x128xf32>
    %208 = arith.addf %200, %207 : vector<4x128xf32>
    %c6_194 = arith.constant 6 : index
    %c0_195 = arith.constant 0 : index
    %c0_196 = arith.constant 0 : index
    %209 = vector.load %arg4[%c6_194, %c0_195, %c0_196] : memref<9x4x16xbf16, #tpu.memory_space<vmem>>, vector<1x4x16xbf16>
    %210 = vector.shape_cast %209 : vector<1x4x16xbf16> to vector<4x16xbf16>
    %cst_197 = arith.constant dense<0.000000e+00> : vector<4x128xf32>
    %211 = tpu.matmul %210, %159, %cst_197 {dimension_numbers = #tpu.dot_dimension_numbers<[1], [0], [0], [1], [0, 0, 1, 1], [], []>} : vector<4x16xbf16>, vector<16x128xbf16>, vector<4x128xf32> -> vector<4x128xf32>
    %212 = arith.truncf %211 : vector<4x128xf32> to vector<4x128xbf16>
    %c6_198 = arith.constant 6 : index
    %c0_199 = arith.constant 0 : index
    %c0_200 = arith.constant 0 : index
    %213 = vector.load %arg9[%c6_198, %c0_199, %c0_200] : memref<9x128x128xbf16, #tpu.memory_space<vmem>>, vector<1x128x128xbf16>
    %214 = vector.shape_cast %213 : vector<1x128x128xbf16> to vector<128x128xbf16>
    %cst_201 = arith.constant dense<0.000000e+00> : vector<4x128xf32>
    %215 = tpu.matmul %212, %214, %cst_201 {dimension_numbers = #tpu.dot_dimension_numbers<[1], [0], [0], [1], [0, 0, 1, 1], [], []>} : vector<4x128xbf16>, vector<128x128xbf16>, vector<4x128xf32> -> vector<4x128xf32>
    %216 = arith.addf %208, %215 : vector<4x128xf32>
    %c7_202 = arith.constant 7 : index
    %c0_203 = arith.constant 0 : index
    %c0_204 = arith.constant 0 : index
    %217 = vector.load %arg4[%c7_202, %c0_203, %c0_204] : memref<9x4x16xbf16, #tpu.memory_space<vmem>>, vector<1x4x16xbf16>
    %218 = vector.shape_cast %217 : vector<1x4x16xbf16> to vector<4x16xbf16>
    %cst_205 = arith.constant dense<0.000000e+00> : vector<4x128xf32>
    %219 = tpu.matmul %218, %159, %cst_205 {dimension_numbers = #tpu.dot_dimension_numbers<[1], [0], [0], [1], [0, 0, 1, 1], [], []>} : vector<4x16xbf16>, vector<16x128xbf16>, vector<4x128xf32> -> vector<4x128xf32>
    %220 = arith.truncf %219 : vector<4x128xf32> to vector<4x128xbf16>
    %c7_206 = arith.constant 7 : index
    %c0_207 = arith.constant 0 : index
    %c0_208 = arith.constant 0 : index
    %221 = vector.load %arg9[%c7_206, %c0_207, %c0_208] : memref<9x128x128xbf16, #tpu.memory_space<vmem>>, vector<1x128x128xbf16>
    %222 = vector.shape_cast %221 : vector<1x128x128xbf16> to vector<128x128xbf16>
    %cst_209 = arith.constant dense<0.000000e+00> : vector<4x128xf32>
    %223 = tpu.matmul %220, %222, %cst_209 {dimension_numbers = #tpu.dot_dimension_numbers<[1], [0], [0], [1], [0, 0, 1, 1], [], []>} : vector<4x128xbf16>, vector<128x128xbf16>, vector<4x128xf32> -> vector<4x128xf32>
    %224 = arith.addf %216, %223 : vector<4x128xf32>
    %c8_210 = arith.constant 8 : index
    %c0_211 = arith.constant 0 : index
    %c0_212 = arith.constant 0 : index
    %225 = vector.load %arg4[%c8_210, %c0_211, %c0_212] : memref<9x4x16xbf16, #tpu.memory_space<vmem>>, vector<1x4x16xbf16>
    %226 = vector.shape_cast %225 : vector<1x4x16xbf16> to vector<4x16xbf16>
    %cst_213 = arith.constant dense<0.000000e+00> : vector<4x128xf32>
    %227 = tpu.matmul %226, %159, %cst_213 {dimension_numbers = #tpu.dot_dimension_numbers<[1], [0], [0], [1], [0, 0, 1, 1], [], []>} : vector<4x16xbf16>, vector<16x128xbf16>, vector<4x128xf32> -> vector<4x128xf32>
    %228 = arith.truncf %227 : vector<4x128xf32> to vector<4x128xbf16>
    %c8_214 = arith.constant 8 : index
    %c0_215 = arith.constant 0 : index
    %c0_216 = arith.constant 0 : index
    %229 = vector.load %arg9[%c8_214, %c0_215, %c0_216] : memref<9x128x128xbf16, #tpu.memory_space<vmem>>, vector<1x128x128xbf16>
    %230 = vector.shape_cast %229 : vector<1x128x128xbf16> to vector<128x128xbf16>
    %cst_217 = arith.constant dense<0.000000e+00> : vector<4x128xf32>
    %231 = tpu.matmul %228, %230, %cst_217 {dimension_numbers = #tpu.dot_dimension_numbers<[1], [0], [0], [1], [0, 0, 1, 1], [], []>} : vector<4x128xbf16>, vector<128x128xbf16>, vector<4x128xf32> -> vector<4x128xf32>
    %232 = arith.addf %224, %231 : vector<4x128xf32>
    %c0_218 = arith.constant 0 : index
    %c0_219 = arith.constant 0 : index
    %233 = vector.load %arg10[%c0_218, %c0_219] : memref<1x128xf32, #tpu.memory_space<vmem>>, vector<1x128xf32>
    %234 = vector.broadcast %233 : vector<1x128xf32> to vector<4x128xf32>
    %235 = arith.addf %232, %234 : vector<4x128xf32>
    %cst_220 = arith.constant 0.000000e+00 : f32
    %236 = vector.broadcast %cst_220 : f32 to vector<4x128xf32>
    %237 = arith.maximumf %235, %236 : vector<4x128xf32>
    %238 = arith.truncf %237 : vector<4x128xf32> to vector<4x128xbf16>
    %c0_221 = arith.constant 0 : index
    %c0_222 = arith.constant 0 : index
    %239 = vector.load %arg11[%c0_221, %c0_222] : memref<128x6xbf16, #tpu.memory_space<vmem>>, vector<128x6xbf16>
    %cst_223 = arith.constant dense<0.000000e+00> : vector<64x6xf32>
    %240 = tpu.matmul %80, %239, %cst_223 {dimension_numbers = #tpu.dot_dimension_numbers<[1], [0], [0], [1], [0, 0, 1, 1], [], []>} : vector<64x128xbf16>, vector<128x6xbf16>, vector<64x6xf32> -> vector<64x6xf32>
    %c0_224 = arith.constant 0 : index
    %c0_225 = arith.constant 0 : index
    %241 = vector.load %arg12[%c0_224, %c0_225] : memref<1x6xf32, #tpu.memory_space<vmem>>, vector<1x6xf32>
    %242 = vector.broadcast %241 : vector<1x6xf32> to vector<64x6xf32>
    %243 = arith.addf %240, %242 : vector<64x6xf32>
    %c0_226 = arith.constant 0 : index
    %c0_227 = arith.constant 0 : index
    %c0_228 = arith.constant 0 : index
    %244 = vector.load %arg17[%c0_226, %c0_227, %c0_228] : memref<1x64x6xf32, #tpu.memory_space<vmem>>, vector<1x64x6xf32>
    %245 = vector.shape_cast %244 : vector<1x64x6xf32> to vector<64x6xf32>
    %246 = vector.shape_cast %243 : vector<64x6xf32> to vector<1x64x6xf32>
    tpu.vector_store %arg17[%c0_226, %c0_227, %c0_228], %246 {strides = array<i32>} : memref<1x64x6xf32, #tpu.memory_space<vmem>>, vector<1x64x6xf32>,
    %c0_229 = arith.constant 0 : index
    %c0_230 = arith.constant 0 : index
    %247 = vector.load %arg13[%c0_229, %c0_230] : memref<128x6xbf16, #tpu.memory_space<vmem>>, vector<128x6xbf16>
    %cst_231 = arith.constant dense<0.000000e+00> : vector<16x6xf32>
    %248 = tpu.matmul %159, %247, %cst_231 {dimension_numbers = #tpu.dot_dimension_numbers<[1], [0], [0], [1], [0, 0, 1, 1], [], []>} : vector<16x128xbf16>, vector<128x6xbf16>, vector<16x6xf32> -> vector<16x6xf32>
    %c0_232 = arith.constant 0 : index
    %c0_233 = arith.constant 0 : index
    %249 = vector.load %arg14[%c0_232, %c0_233] : memref<1x6xf32, #tpu.memory_space<vmem>>, vector<1x6xf32>
    %250 = vector.broadcast %249 : vector<1x6xf32> to vector<16x6xf32>
    %251 = arith.addf %248, %250 : vector<16x6xf32>
    %c0_234 = arith.constant 0 : index
    %c0_235 = arith.constant 0 : index
    %c0_236 = arith.constant 0 : index
    %252 = vector.load %arg18[%c0_234, %c0_235, %c0_236] : memref<1x16x6xf32, #tpu.memory_space<vmem>>, vector<1x16x6xf32>
    %253 = vector.shape_cast %252 : vector<1x16x6xf32> to vector<16x6xf32>
    %254 = vector.shape_cast %251 : vector<16x6xf32> to vector<1x16x6xf32>
    tpu.vector_store %arg18[%c0_234, %c0_235, %c0_236], %254 {strides = array<i32>} : memref<1x16x6xf32, #tpu.memory_space<vmem>>, vector<1x16x6xf32>,
    %c0_237 = arith.constant 0 : index
    %c0_238 = arith.constant 0 : index
    %255 = vector.load %arg15[%c0_237, %c0_238] : memref<128x9xbf16, #tpu.memory_space<vmem>>, vector<128x9xbf16>
    %cst_239 = arith.constant dense<0.000000e+00> : vector<4x9xf32>
    %256 = tpu.matmul %238, %255, %cst_239 {dimension_numbers = #tpu.dot_dimension_numbers<[1], [0], [0], [1], [0, 0, 1, 1], [], []>} : vector<4x128xbf16>, vector<128x9xbf16>, vector<4x9xf32> -> vector<4x9xf32>
    %c0_240 = arith.constant 0 : index
    %c0_241 = arith.constant 0 : index
    %257 = vector.load %arg16[%c0_240, %c0_241] : memref<1x9xf32, #tpu.memory_space<vmem>>, vector<1x9xf32>
    %258 = vector.broadcast %257 : vector<1x9xf32> to vector<4x9xf32>
    %259 = arith.addf %256, %258 : vector<4x9xf32>
    %c0_242 = arith.constant 0 : index
    %c0_243 = arith.constant 0 : index
    %c0_244 = arith.constant 0 : index
    %260 = vector.load %arg19[%c0_242, %c0_243, %c0_244] : memref<1x4x9xf32, #tpu.memory_space<vmem>>, vector<1x4x9xf32>
    %261 = vector.shape_cast %260 : vector<1x4x9xf32> to vector<4x9xf32>
    %262 = vector.shape_cast %259 : vector<4x9xf32> to vector<1x4x9xf32>
    tpu.vector_store %arg19[%c0_242, %c0_243, %c0_244], %262 {strides = array<i32>} : memref<1x4x9xf32, #tpu.memory_space<vmem>>, vector<1x4x9xf32>,
    return
  }
  func.func @transform_0(%arg0: i32) -> (i32, i32, i32) {
    %c0_i32 = arith.constant 0 : i32
    %c0_i32_0 = arith.constant 0 : i32
    %c0_i32_1 = arith.constant 0 : i32
    return %arg0, %c0_i32, %c0_i32_0 : i32, i32, i32
  }
  func.func @transform_1(%arg0: i32) -> (i32, i32, i32) {
    %c0_i32 = arith.constant 0 : i32
    %c0_i32_0 = arith.constant 0 : i32
    %c0_i32_1 = arith.constant 0 : i32
    %c0_i32_2 = arith.constant 0 : i32
    return %c0_i32, %c0_i32_0, %c0_i32_1 : i32, i32, i32
  }
  func.func @transform_2(%arg0: i32) -> (i32, i32, i32) {
    %c0_i32 = arith.constant 0 : i32
    %c0_i32_0 = arith.constant 0 : i32
    %c0_i32_1 = arith.constant 0 : i32
    %c0_i32_2 = arith.constant 0 : i32
    return %c0_i32, %c0_i32_0, %c0_i32_1 : i32, i32, i32
  }
  func.func @transform_3(%arg0: i32) -> (i32, i32, i32) {
    %c0_i32 = arith.constant 0 : i32
    %c0_i32_0 = arith.constant 0 : i32
    %c0_i32_1 = arith.constant 0 : i32
    %c0_i32_2 = arith.constant 0 : i32
    return %c0_i32, %c0_i32_0, %c0_i32_1 : i32, i32, i32
  }
  func.func @transform_4(%arg0: i32) -> (i32, i32, i32) {
    %c0_i32 = arith.constant 0 : i32
    %c0_i32_0 = arith.constant 0 : i32
    %c0_i32_1 = arith.constant 0 : i32
    %c0_i32_2 = arith.constant 0 : i32
    return %c0_i32, %c0_i32_0, %c0_i32_1 : i32, i32, i32
  }
  func.func @transform_5(%arg0: i32) -> (i32, i32) {
    %c0_i32 = arith.constant 0 : i32
    %c0_i32_0 = arith.constant 0 : i32
    %c0_i32_1 = arith.constant 0 : i32
    return %c0_i32, %c0_i32_0 : i32, i32
  }
  func.func @transform_6(%arg0: i32) -> (i32, i32, i32) {
    %c0_i32 = arith.constant 0 : i32
    %c0_i32_0 = arith.constant 0 : i32
    %c0_i32_1 = arith.constant 0 : i32
    %c0_i32_2 = arith.constant 0 : i32
    return %c0_i32, %c0_i32_0, %c0_i32_1 : i32, i32, i32
  }
  func.func @transform_7(%arg0: i32) -> (i32, i32) {
    %c0_i32 = arith.constant 0 : i32
    %c0_i32_0 = arith.constant 0 : i32
    %c0_i32_1 = arith.constant 0 : i32
    return %c0_i32, %c0_i32_0 : i32, i32
  }
  func.func @transform_8(%arg0: i32) -> (i32, i32, i32) {
    %c0_i32 = arith.constant 0 : i32
    %c0_i32_0 = arith.constant 0 : i32
    %c0_i32_1 = arith.constant 0 : i32
    %c0_i32_2 = arith.constant 0 : i32
    return %c0_i32, %c0_i32_0, %c0_i32_1 : i32, i32, i32
  }
  func.func @transform_9(%arg0: i32) -> (i32, i32) {
    %c0_i32 = arith.constant 0 : i32
    %c0_i32_0 = arith.constant 0 : i32
    %c0_i32_1 = arith.constant 0 : i32
    return %c0_i32, %c0_i32_0 : i32, i32
  }
  func.func @transform_10(%arg0: i32) -> (i32, i32) {
    %c0_i32 = arith.constant 0 : i32
    %c0_i32_0 = arith.constant 0 : i32
    %c0_i32_1 = arith.constant 0 : i32
    return %c0_i32, %c0_i32_0 : i32, i32
  }
  func.func @transform_11(%arg0: i32) -> (i32, i32) {
    %c0_i32 = arith.constant 0 : i32
    %c0_i32_0 = arith.constant 0 : i32
    %c0_i32_1 = arith.constant 0 : i32
    return %c0_i32, %c0_i32_0 : i32, i32
  }
  func.func @transform_12(%arg0: i32) -> (i32, i32) {
    %c0_i32 = arith.constant 0 : i32
    %c0_i32_0 = arith.constant 0 : i32
    %c0_i32_1 = arith.constant 0 : i32
    return %c0_i32, %c0_i32_0 : i32, i32
  }
  func.func @transform_13(%arg0: i32) -> (i32, i32) {
    %c0_i32 = arith.constant 0 : i32
    %c0_i32_0 = arith.constant 0 : i32
    %c0_i32_1 = arith.constant 0 : i32
    return %c0_i32, %c0_i32_0 : i32, i32
  }
  func.func @transform_14(%arg0: i32) -> (i32, i32) {
    %c0_i32 = arith.constant 0 : i32
    %c0_i32_0 = arith.constant 0 : i32
    %c0_i32_1 = arith.constant 0 : i32
    return %c0_i32, %c0_i32_0 : i32, i32
  }
  func.func @transform_15(%arg0: i32) -> (i32, i32) {
    %c0_i32 = arith.constant 0 : i32
    %c0_i32_0 = arith.constant 0 : i32
    %c0_i32_1 = arith.constant 0 : i32
    return %c0_i32, %c0_i32_0 : i32, i32
  }
  func.func @transform_16(%arg0: i32) -> (i32, i32, i32) {
    %c0_i32 = arith.constant 0 : i32
    %c0_i32_0 = arith.constant 0 : i32
    %c0_i32_1 = arith.constant 0 : i32
    return %arg0, %c0_i32, %c0_i32_0 : i32, i32, i32
  }
  func.func @transform_17(%arg0: i32) -> (i32, i32, i32) {
    %c0_i32 = arith.constant 0 : i32
    %c0_i32_0 = arith.constant 0 : i32
    %c0_i32_1 = arith.constant 0 : i32
    return %arg0, %c0_i32, %c0_i32_0 : i32, i32, i32
  }
  func.func @transform_18(%arg0: i32) -> (i32, i32, i32) {
    %c0_i32 = arith.constant 0 : i32
    %c0_i32_0 = arith.constant 0 : i32
    %c0_i32_1 = arith.constant 0 : i32
    return %arg0, %c0_i32, %c0_i32_0 : i32, i32, i32
  }
}

</mosaic_0001>

<llo_original>
// kernel: proposal_net_forward.1
$region0: #{proposal_net_forward.1}
  #allocation0 [shape = 'u32[]', space=smem, size = 0x4, offset = 0x4, fixed_abs, tag = 'smem constant byte address 0x4 - core index']
  #allocation1 [shape = 'u32[144,128]{1,0:T(1,128)}', space=vmem, size = 0x12000, scoped, tag = 'internal scratch']
  %s0 = inlined_call_operand.vmem [shape: bf16[2,64,512], index: 0, kind: input, shape index: {}]
  %s1 = inlined_call_operand.vmem [shape: bf16[9,64,64], index: 1, kind: input, shape index: {}]
  %s2 = inlined_call_operand.vmem [shape: bf16[9,16,64], index: 2, kind: input, shape index: {}]
  %s3 = inlined_call_operand.vmem [shape: bf16[9,4,16], index: 3, kind: input, shape index: {}]
  %s4 = inlined_call_operand.vmem [shape: bf16[9,512,128], index: 4, kind: input, shape index: {}]
  %s5 = inlined_call_operand.vmem [shape: f32[1,128], index: 5, kind: input, shape index: {}]
  %s6 = inlined_call_operand.vmem [shape: bf16[9,128,128], index: 6, kind: input, shape index: {}]
  %s7 = inlined_call_operand.vmem [shape: f32[1,128], index: 7, kind: input, shape index: {}]
  %s8 = inlined_call_operand.vmem [shape: bf16[9,128,128], index: 8, kind: input, shape index: {}]
  %s9 = inlined_call_operand.vmem [shape: f32[1,128], index: 9, kind: input, shape index: {}]
  %s10 = inlined_call_operand.vmem [shape: bf16[128,6], index: 10, kind: input, shape index: {}]
  %s11 = inlined_call_operand.vmem [shape: f32[1,6], index: 11, kind: input, shape index: {}]
  %s12 = inlined_call_operand.vmem [shape: bf16[128,6], index: 12, kind: input, shape index: {}]
  %s13 = inlined_call_operand.vmem [shape: f32[1,6], index: 13, kind: input, shape index: {}]
  %s14 = inlined_call_operand.vmem [shape: bf16[128,9], index: 14, kind: input, shape index: {}]
  %s15 = inlined_call_operand.vmem [shape: f32[1,9], index: 15, kind: input, shape index: {}]
  %s16 = inlined_call_operand.vmem [shape: f32[2,64,6], index: 16, kind: output, shape index: {0}]
  %s17 = inlined_call_operand.vmem [shape: f32[2,16,6], index: 17, kind: output, shape index: {1}]
  %s18 = inlined_call_operand.vmem [shape: f32[2,4,9], index: 18, kind: output, shape index: {2}]
  %19 = xla_tuple %s16, %s17, %s18
  %s20 = sld [smem:[#allocation0]]
  $region113: #{proposal_net_forward.1} parent=0
    _
  %s22 = ssub.s32 1, %s20
  %s23 = scalar_select 0, %s22, %s20
  loop: start=0, step=1, limit=4
  $region2: #{proposal_net_forward.1} parent=0 // loop_pre_header
    _
  $region3: #{proposal_net_forward.1} parent=0 // loop_header
    %s25 = sphi 0, %s29
    %p26 = scmp.ge.s32.totalorder %s25, 4
    %s35 = sphi 0, %s37
    %s38 = sphi 0, %s35
    %s39 = sphi 0, %s38
    %s55 = sphi 0, %s39
    %s59 = sphi 0, %s59
    %s61 = sphi 0, %s59
    %s62 = sphi 0, %s61
    %s76 = sphi 0, %s62
    %s80 = sphi 0, %s80
    %s82 = sphi 0, %s80
    %s83 = sphi 0, %s82
    %s97 = sphi 0, %s83
    %s101 = sphi 0, %s101
    %s103 = sphi 0, %s101
    %s104 = sphi 0, %s103
    %s118 = sphi 0, %s104
    %s122 = sphi 0, %s122
    %s124 = sphi 0, %s122
    %s125 = sphi 0, %s124
    %s139 = sphi 0, %s125
    %s143 = sphi 0, %s143
    %s145 = sphi 0, %s143
    %s146 = sphi 0, %s145
    %s160 = sphi 0, %s146
    %s164 = sphi 0, %s164
    %s166 = sphi 0, %s164
    %s167 = sphi 0, %s166
    %s181 = sphi 0, %s167
    %s185 = sphi 0, %s185
    %s187 = sphi 0, %s185
    %s188 = sphi 0, %s187
    %s202 = sphi 0, %s188
    %s206 = sphi 0, %s206
    %s208 = sphi 0, %s206
    %s209 = sphi 0, %s208
    %s223 = sphi 0, %s209
    %s227 = sphi 0, %s227
    %s229 = sphi 0, %s227
    %s230 = sphi 0, %s229
    %s244 = sphi 0, %s230
    %s248 = sphi 0, %s248
    %s250 = sphi 0, %s248
    %s251 = sphi 0, %s250
    %s265 = sphi 0, %s251
    %s269 = sphi 0, %s269
    %s271 = sphi 0, %s269
    %s272 = sphi 0, %s271
    %s286 = sphi 0, %s272
    %s290 = sphi 0, %s290
    %s292 = sphi 0, %s290
    %s293 = sphi 0, %s292
    %s307 = sphi 0, %s293
    %s311 = sphi 0, %s311
    %s313 = sphi 0, %s311
    %s314 = sphi 0, %s313
    %s328 = sphi 0, %s314
    %s332 = sphi 0, %s332
    %s334 = sphi 0, %s332
    %s335 = sphi 0, %s334
    %s349 = sphi 0, %s335
    %s353 = sphi 0, %s353
    %s355 = sphi 0, %s353
    %s356 = sphi 0, %s355
    %s370 = sphi 0, %s356
    %s376 = sphi 0, %s378
    %s379 = sphi 0, %s376
    %s380 = sphi 0, %s379
    %s396 = sphi 0, %s380
    %s402 = sphi 0, %s404
    %s405 = sphi 0, %s402
    %s406 = sphi 0, %s405
    %s422 = sphi 0, %s406
    %s428 = sphi 0, %s430
    %s431 = sphi 0, %s428
    %s432 = sphi 0, %s431
    %s448 = sphi 0, %s432
  $region4: #{proposal_net_forward.1} parent=0 // loop_header_branch
    %28 = sbr.rel (%p26) target = $region8
  $region5: #{proposal_net_forward.1} parent=0 // loop_body
    %s30 = ssub.s32 %s25, 1
    %s31 = ssub.s32 %s25, 2
    %s32 = sadd.s32 %s25, 1
    %s33 = ssub.s32 %s25, %s32
    %p34 = scmp.eq.s32.totalorder %s33, 0
    %s36 = sadd.s32 %s35, 1
    %s37 = scalar_select %p34, %s35, %s36
    %p40 = pneg %p34
    %p41 = scmp.eq.s32.totalorder %s25, 1
    %p42 = por %p40, %p41
    %p43 = scmp.ne.s32.totalorder %s35, %s38
    %p44 = scmp.eq.s32.totalorder %s25, 0
    %p45 = por %p43, %p44
    %p46 = scmp.ne.s32.totalorder %s35, %s38
    %p47 = scmp.eq.s32.totalorder %s30, 1
    %p48 = por %p46, %p47
    %p49 = scmp.ne.s32.totalorder %s38, %s39
    %p50 = scmp.eq.s32.totalorder %s30, 0
    %p51 = por %p49, %p50
    %p52 = scmp.ne.s32.totalorder %s38, %s39
    %p53 = scmp.eq.s32.totalorder %s31, 1
    %p54 = por %p52, %p53
    %p56 = scmp.ne.s32.totalorder %s39, %s55
    %p57 = scmp.eq.s32.totalorder %s31, 0
    %p58 = por %p56, %p57
    %s60 = sadd.s32 %s59, 1
    %p63 = scmp.eq.s32.totalorder %s25, 1
    %p64 = scmp.ne.s32.totalorder %s59, %s61
    %p65 = scmp.eq.s32.totalorder %s25, 0
    %p66 = por %p64, %p65
    %p67 = scmp.ne.s32.totalorder %s59, %s61
    %p68 = scmp.eq.s32.totalorder %s30, 1
    %p69 = por %p67, %p68
    %p70 = scmp.ne.s32.totalorder %s61, %s62
    %p71 = scmp.eq.s32.totalorder %s30, 0
    %p72 = por %p70, %p71
    %p73 = scmp.ne.s32.totalorder %s61, %s62
    %p74 = scmp.eq.s32.totalorder %s31, 1
    %p75 = por %p73, %p74
    %p77 = scmp.ne.s32.totalorder %s62, %s76
    %p78 = scmp.eq.s32.totalorder %s31, 0
    %p79 = por %p77, %p78
    %s81 = sadd.s32 %s80, 1
    %p84 = scmp.eq.s32.totalorder %s25, 1
    %p85 = scmp.ne.s32.totalorder %s80, %s82
    %p86 = scmp.eq.s32.totalorder %s25, 0
    %p87 = por %p85, %p86
    %p88 = scmp.ne.s32.totalorder %s80, %s82
    %p89 = scmp.eq.s32.totalorder %s30, 1
    %p90 = por %p88, %p89
    %p91 = scmp.ne.s32.totalorder %s82, %s83
    %p92 = scmp.eq.s32.totalorder %s30, 0
    %p93 = por %p91, %p92
    %p94 = scmp.ne.s32.totalorder %s82, %s83
    %p95 = scmp.eq.s32.totalorder %s31, 1
    %p96 = por %p94, %p95
    %p98 = scmp.ne.s32.totalorder %s83, %s97
    %p99 = scmp.eq.s32.totalorder %s31, 0
    %p100 = por %p98, %p99
    %s102 = sadd.s32 %s101, 1
    %p105 = scmp.eq.s32.totalorder %s25, 1
    %p106 = scmp.ne.s32.totalorder %s101, %s103
    %p107 = scmp.eq.s32.totalorder %s25, 0
    %p108 = por %p106, %p107
    %p109 = scmp.ne.s32.totalorder %s101, %s103
    %p110 = scmp.eq.s32.totalorder %s30, 1
    %p111 = por %p109, %p110
    %p112 = scmp.ne.s32.totalorder %s103, %s104
    %p113 = scmp.eq.s32.totalorder %s30, 0
    %p114 = por %p112, %p113
    %p115 = scmp.ne.s32.totalorder %s103, %s104
    %p116 = scmp.eq.s32.totalorder %s31, 1
    %p117 = por %p115, %p116
    %p119 = scmp.ne.s32.totalorder %s104, %s118
    %p120 = scmp.eq.s32.totalorder %s31, 0
    %p121 = por %p119, %p120
    %s123 = sadd.s32 %s122, 1
    %p126 = scmp.eq.s32.totalorder %s25, 1
    %p127 = scmp.ne.s32.totalorder %s122, %s124
    %p128 = scmp.eq.s32.totalorder %s25, 0
    %p129 = por %p127, %p128
    %p130 = scmp.ne.s32.totalorder %s122, %s124
    %p131 = scmp.eq.s32.totalorder %s30, 1
    %p132 = por %p130, %p131
    %p133 = scmp.ne.s32.totalorder %s124, %s125
    %p134 = scmp.eq.s32.totalorder %s30, 0
    %p135 = por %p133, %p134
    %p136 = scmp.ne.s32.totalorder %s124, %s125
    %p137 = scmp.eq.s32.totalorder %s31, 1
    %p138 = por %p136, %p137
    %p140 = scmp.ne.s32.totalorder %s125, %s139
    %p141 = scmp.eq.s32.totalorder %s31, 0
    %p142 = por %p140, %p141
    %s144 = sadd.s32 %s143, 1
    %p147 = scmp.eq.s32.totalorder %s25, 1
    %p148 = scmp.ne.s32.totalorder %s143, %s145
    %p149 = scmp.eq.s32.totalorder %s25, 0
    %p150 = por %p148, %p149
    %p151 = scmp.ne.s32.totalorder %s143, %s145
    %p152 = scmp.eq.s32.totalorder %s30, 1
    %p153 = por %p151, %p152
    %p154 = scmp.ne.s32.totalorder %s145, %s146
    %p155 = scmp.eq.s32.totalorder %s30, 0
    %p156 = por %p154, %p155
    %p157 = scmp.ne.s32.totalorder %s145, %s146
    %p158 = scmp.eq.s32.totalorder %s31, 1
    %p159 = por %p157, %p158
    %p161 = scmp.ne.s32.totalorder %s146, %s160
    %p162 = scmp.eq.s32.totalorder %s31, 0
    %p163 = por %p161, %p162
    %s165 = sadd.s32 %s164, 1
    %p168 = scmp.eq.s32.totalorder %s25, 1
    %p169 = scmp.ne.s32.totalorder %s164, %s166
    %p170 = scmp.eq.s32.totalorder %s25, 0
    %p171 = por %p169, %p170
    %p172 = scmp.ne.s32.totalorder %s164, %s166
    %p173 = scmp.eq.s32.totalorder %s30, 1
    %p174 = por %p172, %p173
    %p175 = scmp.ne.s32.totalorder %s166, %s167
    %p176 = scmp.eq.s32.totalorder %s30, 0
    %p177 = por %p175, %p176
    %p178 = scmp.ne.s32.totalorder %s166, %s167
    %p179 = scmp.eq.s32.totalorder %s31, 1
    %p180 = por %p178, %p179
    %p182 = scmp.ne.s32.totalorder %s167, %s181
    %p183 = scmp.eq.s32.totalorder %s31, 0
    %p184 = por %p182, %p183
    %s186 = sadd.s32 %s185, 1
    %p189 = scmp.eq.s32.totalorder %s25, 1
    %p190 = scmp.ne.s32.totalorder %s185, %s187
    %p191 = scmp.eq.s32.totalorder %s25, 0
    %p192 = por %p190, %p191
    %p193 = scmp.ne.s32.totalorder %s185, %s187
    %p194 = scmp.eq.s32.totalorder %s30, 1
    %p195 = por %p193, %p194
    %p196 = scmp.ne.s32.totalorder %s187, %s188
    %p197 = scmp.eq.s32.totalorder %s30, 0
    %p198 = por %p196, %p197
    %p199 = scmp.ne.s32.totalorder %s187, %s188
    %p200 = scmp.eq.s32.totalorder %s31, 1
    %p201 = por %p199, %p200
    %p203 = scmp.ne.s32.totalorder %s188, %s202
    %p204 = scmp.eq.s32.totalorder %s31, 0
    %p205 = por %p203, %p204
    %s207 = sadd.s32 %s206, 1
    %p210 = scmp.eq.s32.totalorder %s25, 1
    %p211 = scmp.ne.s32.totalorder %s206, %s208
    %p212 = scmp.eq.s32.totalorder %s25, 0
    %p213 = por %p211, %p212
    %p214 = scmp.ne.s32.totalorder %s206, %s208
    %p215 = scmp.eq.s32.totalorder %s30, 1
    %p216 = por %p214, %p215
    %p217 = scmp.ne.s32.totalorder %s208, %s209
    %p218 = scmp.eq.s32.totalorder %s30, 0
    %p219 = por %p217, %p218
    %p220 = scmp.ne.s32.totalorder %s208, %s209
    %p221 = scmp.eq.s32.totalorder %s31, 1
    %p222 = por %p220, %p221
    %p224 = scmp.ne.s32.totalorder %s209, %s223
    %p225 = scmp.eq.s32.totalorder %s31, 0
    %p226 = por %p224, %p225
    %s228 = sadd.s32 %s227, 1
    %p231 = scmp.eq.s32.totalorder %s25, 1
    %p232 = scmp.ne.s32.totalorder %s227, %s229
    %p233 = scmp.eq.s32.totalorder %s25, 0
    %p234 = por %p232, %p233
    %p235 = scmp.ne.s32.totalorder %s227, %s229
    %p236 = scmp.eq.s32.totalorder %s30, 1
    %p237 = por %p235, %p236
    %p238 = scmp.ne.s32.totalorder %s229, %s230
    %p239 = scmp.eq.s32.totalorder %s30, 0
    %p240 = por %p238, %p239
    %p241 = scmp.ne.s32.totalorder %s229, %s230
    %p242 = scmp.eq.s32.totalorder %s31, 1
    %p243 = por %p241, %p242
    %p245 = scmp.ne.s32.totalorder %s230, %s244
    %p246 = scmp.eq.s32.totalorder %s31, 0
    %p247 = por %p245, %p246
    %s249 = sadd.s32 %s248, 1
    %p252 = scmp.eq.s32.totalorder %s25, 1
    %p253 = scmp.ne.s32.totalorder %s248, %s250
    %p254 = scmp.eq.s32.totalorder %s25, 0
    %p255 = por %p253, %p254
    %p256 = scmp.ne.s32.totalorder %s248, %s250
    %p257 = scmp.eq.s32.totalorder %s30, 1
    %p258 = por %p256, %p257
    %p259 = scmp.ne.s32.totalorder %s250, %s251
    %p260 = scmp.eq.s32.totalorder %s30, 0
    %p261 = por %p259, %p260
    %p262 = scmp.ne.s32.totalorder %s250, %s251
    %p263 = scmp.eq.s32.totalorder %s31, 1
    %p264 = por %p262, %p263
    %p266 = scmp.ne.s32.totalorder %s251, %s265
    %p267 = scmp.eq.s32.totalorder %s31, 0
    %p268 = por %p266, %p267
    %s270 = sadd.s32 %s269, 1
    %p273 = scmp.eq.s32.totalorder %s25, 1
    %p274 = scmp.ne.s32.totalorder %s269, %s271
    %p275 = scmp.eq.s32.totalorder %s25, 0
    %p276 = por %p274, %p275
    %p277 = scmp.ne.s32.totalorder %s269, %s271
    %p278 = scmp.eq.s32.totalorder %s30, 1
    %p279 = por %p277, %p278
    %p280 = scmp.ne.s32.totalorder %s271, %s272
    %p281 = scmp.eq.s32.totalorder %s30, 0
    %p282 = por %p280, %p281
    %p283 = scmp.ne.s32.totalorder %s271, %s272
    %p284 = scmp.eq.s32.totalorder %s31, 1
    %p285 = por %p283, %p284
    %p287 = scmp.ne.s32.totalorder %s272, %s286
    %p288 = scmp.eq.s32.totalorder %s31, 0
    %p289 = por %p287, %p288
    %s291 = sadd.s32 %s290, 1
    %p294 = scmp.eq.s32.totalorder %s25, 1
    %p295 = scmp.ne.s32.totalorder %s290, %s292
    %p296 = scmp.eq.s32.totalorder %s25, 0
    %p297 = por %p295, %p296
    %p298 = scmp.ne.s32.totalorder %s290, %s292
    %p299 = scmp.eq.s32.totalorder %s30, 1
    %p300 = por %p298, %p299
    %p301 = scmp.ne.s32.totalorder %s292, %s293
    %p302 = scmp.eq.s32.totalorder %s30, 0
    %p303 = por %p301, %p302
    %p304 = scmp.ne.s32.totalorder %s292, %s293
    %p305 = scmp.eq.s32.totalorder %s31, 1
    %p306 = por %p304, %p305
    %p308 = scmp.ne.s32.totalorder %s293, %s307
    %p309 = scmp.eq.s32.totalorder %s31, 0
    %p310 = por %p308, %p309
    %s312 = sadd.s32 %s311, 1
    %p315 = scmp.eq.s32.totalorder %s25, 1
    %p316 = scmp.ne.s32.totalorder %s311, %s313
    %p317 = scmp.eq.s32.totalorder %s25, 0
    %p318 = por %p316, %p317
    %p319 = scmp.ne.s32.totalorder %s311, %s313
    %p320 = scmp.eq.s32.totalorder %s30, 1
    %p321 = por %p319, %p320
    %p322 = scmp.ne.s32.totalorder %s313, %s314
    %p323 = scmp.eq.s32.totalorder %s30, 0
    %p324 = por %p322, %p323
    %p325 = scmp.ne.s32.totalorder %s313, %s314
    %p326 = scmp.eq.s32.totalorder %s31, 1
    %p327 = por %p325, %p326
    %p329 = scmp.ne.s32.totalorder %s314, %s328
    %p330 = scmp.eq.s32.totalorder %s31, 0
    %p331 = por %p329, %p330
    %s333 = sadd.s32 %s332, 1
    %p336 = scmp.eq.s32.totalorder %s25, 1
    %p337 = scmp.ne.s32.totalorder %s332, %s334
    %p338 = scmp.eq.s32.totalorder %s25, 0
    %p339 = por %p337, %p338
    %p340 = scmp.ne.s32.totalorder %s332, %s334
    %p341 = scmp.eq.s32.totalorder %s30, 1
    %p342 = por %p340, %p341
    %p343 = scmp.ne.s32.totalorder %s334, %s335
    %p344 = scmp.eq.s32.totalorder %s30, 0
    %p345 = por %p343, %p344
    %p346 = scmp.ne.s32.totalorder %s334, %s335
    %p347 = scmp.eq.s32.totalorder %s31, 1
    %p348 = por %p346, %p347
    %p350 = scmp.ne.s32.totalorder %s335, %s349
    %p351 = scmp.eq.s32.totalorder %s31, 0
    %p352 = por %p350, %p351
    %s354 = sadd.s32 %s353, 1
    %p357 = scmp.eq.s32.totalorder %s25, 1
    %p358 = scmp.ne.s32.totalorder %s353, %s355
    %p359 = scmp.eq.s32.totalorder %s25, 0
    %p360 = por %p358, %p359
    %p361 = scmp.ne.s32.totalorder %s353, %s355
    %p362 = scmp.eq.s32.totalorder %s30, 1
    %p363 = por %p361, %p362
    %p364 = scmp.ne.s32.totalorder %s355, %s356
    %p365 = scmp.eq.s32.totalorder %s30, 0
    %p366 = por %p364, %p365
    %p367 = scmp.ne.s32.totalorder %s355, %s356
    %p368 = scmp.eq.s32.totalorder %s31, 1
    %p369 = por %p367, %p368
    %p371 = scmp.ne.s32.totalorder %s356, %s370
    %p372 = scmp.eq.s32.totalorder %s31, 0
    %p373 = por %p371, %p372
    %s374 = ssub.s32 %s25, %s32
    %p375 = scmp.eq.s32.totalorder %s374, 0
    %s377 = sadd.s32 %s376, 1
    %s378 = scalar_select %p375, %s376, %s377
    %p381 = pneg %p375
    %p382 = scmp.eq.s32.totalorder %s25, 1
    %p383 = por %p381, %p382
    %p384 = scmp.ne.s32.totalorder %s376, %s379
    %p385 = scmp.eq.s32.totalorder %s25, 0
    %p386 = por %p384, %p385
    %p387 = scmp.ne.s32.totalorder %s376, %s379
    %p388 = scmp.eq.s32.totalorder %s30, 1
    %p389 = por %p387, %p388
    %p390 = scmp.ne.s32.totalorder %s379, %s380
    %p391 = scmp.eq.s32.totalorder %s30, 0
    %p392 = por %p390, %p391
    %p393 = scmp.ne.s32.totalorder %s379, %s380
    %p394 = scmp.eq.s32.totalorder %s31, 1
    %p395 = por %p393, %p394
    %p397 = scmp.ne.s32.totalorder %s380, %s396
    %p398 = scmp.eq.s32.totalorder %s31, 0
    %p399 = por %p397, %p398
    %s400 = ssub.s32 %s25, %s32
    %p401 = scmp.eq.s32.totalorder %s400, 0
    %s403 = sadd.s32 %s402, 1
    %s404 = scalar_select %p401, %s402, %s403
    %p407 = pneg %p401
    %p408 = scmp.eq.s32.totalorder %s25, 1
    %p409 = por %p407, %p408
    %p410 = scmp.ne.s32.totalorder %s402, %s405
    %p411 = scmp.eq.s32.totalorder %s25, 0
    %p412 = por %p410, %p411
    %p413 = scmp.ne.s32.totalorder %s402, %s405
    %p414 = scmp.eq.s32.totalorder %s30, 1
    %p415 = por %p413, %p414
    %p416 = scmp.ne.s32.totalorder %s405, %s406
    %p417 = scmp.eq.s32.totalorder %s30, 0
    %p418 = por %p416, %p417
    %p419 = scmp.ne.s32.totalorder %s405, %s406
    %p420 = scmp.eq.s32.totalorder %s31, 1
    %p421 = por %p419, %p420
    %p423 = scmp.ne.s32.totalorder %s406, %s422
    %p424 = scmp.eq.s32.totalorder %s31, 0
    %p425 = por %p423, %p424
    %s426 = ssub.s32 %s25, %s32
    %p427 = scmp.eq.s32.totalorder %s426, 0
    %s429 = sadd.s32 %s428, 1
    %s430 = scalar_select %p427, %s428, %s429
    %p433 = pneg %p427
    %p434 = scmp.eq.s32.totalorder %s25, 1
    %p435 = por %p433, %p434
    %p436 = scmp.ne.s32.totalorder %s428, %s431
    %p437 = scmp.eq.s32.totalorder %s25, 0
    %p438 = por %p436, %p437
    %p439 = scmp.ne.s32.totalorder %s428, %s431
    %p440 = scmp.eq.s32.totalorder %s30, 1
    %p441 = por %p439, %p440
    %p442 = scmp.ne.s32.totalorder %s431, %s432
    %p443 = scmp.eq.s32.totalorder %s30, 0
    %p444 = por %p442, %p443
    %p445 = scmp.ne.s32.totalorder %s431, %s432
    %p446 = scmp.eq.s32.totalorder %s31, 1
    %p447 = por %p445, %p446
    %p449 = scmp.ne.s32.totalorder %s432, %s448
    %p450 = scmp.eq.s32.totalorder %s31, 0
    %p451 = por %p449, %p450
    %p452 = scmp.le.s32.totalorder 1, %s25
    %p453 = scmp.lt.s32.totalorder %s25, 3
    %p454 = pnand %p452, %p453
    %p455 = pneg %p454
    // Predicated region
    $region9: #{proposal_net_forward.1} parent=5 // pred_check
      _
    $region10: #{proposal_net_forward.1} parent=5 // pred_check_branch
      %457 = sbr.rel (%p454) target = $region12
    $region11: #{proposal_net_forward.1} parent=5 // pred_region
      %s458 = ssub.s32 %s25, 1
      // Predicated region
      $region13: #{proposal_net_forward.1} parent=11 // pred_check
        %p459 = pneg %p72
      $region14: #{proposal_net_forward.1} parent=11 // pred_check_branch
        %461 = sbr.rel (%p459) target = $region16
      $region15: #{proposal_net_forward.1} parent=11 // pred_region
        _
      $region16: #{proposal_net_forward.1} parent=11 // pred_fallthru
        _
      // Predicated region
      $region17: #{proposal_net_forward.1} parent=11 // pred_check
        %p462 = pneg %p93
      $region18: #{proposal_net_forward.1} parent=11 // pred_check_branch
        %464 = sbr.rel (%p462) target = $region20
      $region19: #{proposal_net_forward.1} parent=11 // pred_region
        _
      $region20: #{proposal_net_forward.1} parent=11 // pred_fallthru
        _
      // Predicated region
      $region21: #{proposal_net_forward.1} parent=11 // pred_check
        %p465 = pneg %p114
      $region22: #{proposal_net_forward.1} parent=11 // pred_check_branch
        %467 = sbr.rel (%p465) target = $region24
      $region23: #{proposal_net_forward.1} parent=11 // pred_region
        _
      $region24: #{proposal_net_forward.1} parent=11 // pred_fallthru
        _
      // Predicated region
      $region25: #{proposal_net_forward.1} parent=11 // pred_check
        %p468 = pneg %p135
      $region26: #{proposal_net_forward.1} parent=11 // pred_check_branch
        %470 = sbr.rel (%p468) target = $region28
      $region27: #{proposal_net_forward.1} parent=11 // pred_region
        _
      $region28: #{proposal_net_forward.1} parent=11 // pred_fallthru
        _
      // Predicated region
      $region29: #{proposal_net_forward.1} parent=11 // pred_check
        %p471 = pneg %p156
      $region30: #{proposal_net_forward.1} parent=11 // pred_check_branch
        %473 = sbr.rel (%p471) target = $region32
      $region31: #{proposal_net_forward.1} parent=11 // pred_region
        _
      $region32: #{proposal_net_forward.1} parent=11 // pred_fallthru
        _
      // Predicated region
      $region33: #{proposal_net_forward.1} parent=11 // pred_check
        %p474 = pneg %p177
      $region34: #{proposal_net_forward.1} parent=11 // pred_check_branch
        %476 = sbr.rel (%p474) target = $region36
      $region35: #{proposal_net_forward.1} parent=11 // pred_region
        _
      $region36: #{proposal_net_forward.1} parent=11 // pred_fallthru
        _
      // Predicated region
      $region37: #{proposal_net_forward.1} parent=11 // pred_check
        %p477 = pneg %p198
      $region38: #{proposal_net_forward.1} parent=11 // pred_check_branch
        %479 = sbr.rel (%p477) target = $region40
      $region39: #{proposal_net_forward.1} parent=11 // pred_region
        _
      $region40: #{proposal_net_forward.1} parent=11 // pred_fallthru
        _
      // Predicated region
      $region41: #{proposal_net_forward.1} parent=11 // pred_check
        %p480 = pneg %p219
      $region42: #{proposal_net_forward.1} parent=11 // pred_check_branch
        %482 = sbr.rel (%p480) target = $region44
      $region43: #{proposal_net_forward.1} parent=11 // pred_region
        _
      $region44: #{proposal_net_forward.1} parent=11 // pred_fallthru
        _
      // Predicated region
      $region45: #{proposal_net_forward.1} parent=11 // pred_check
        %p483 = pneg %p240
      $region46: #{proposal_net_forward.1} parent=11 // pred_check_branch
        %485 = sbr.rel (%p483) target = $region48
      $region47: #{proposal_net_forward.1} parent=11 // pred_region
        _
      $region48: #{proposal_net_forward.1} parent=11 // pred_fallthru
        _
      // Predicated region
      $region49: #{proposal_net_forward.1} parent=11 // pred_check
        %p486 = pneg %p261
      $region50: #{proposal_net_forward.1} parent=11 // pred_check_branch
        %488 = sbr.rel (%p486) target = $region52
      $region51: #{proposal_net_forward.1} parent=11 // pred_region
        _
      $region52: #{proposal_net_forward.1} parent=11 // pred_fallthru
        _
      // Predicated region
      $region53: #{proposal_net_forward.1} parent=11 // pred_check
        %p489 = pneg %p282
      $region54: #{proposal_net_forward.1} parent=11 // pred_check_branch
        %491 = sbr.rel (%p489) target = $region56
      $region55: #{proposal_net_forward.1} parent=11 // pred_region
        _
      $region56: #{proposal_net_forward.1} parent=11 // pred_fallthru
        _
      // Predicated region
      $region57: #{proposal_net_forward.1} parent=11 // pred_check
        %p492 = pneg %p303
      $region58: #{proposal_net_forward.1} parent=11 // pred_check_branch
        %494 = sbr.rel (%p492) target = $region60
      $region59: #{proposal_net_forward.1} parent=11 // pred_region
        _
      $region60: #{proposal_net_forward.1} parent=11 // pred_fallthru
        _
      // Predicated region
      $region61: #{proposal_net_forward.1} parent=11 // pred_check
        %p495 = pneg %p324
      $region62: #{proposal_net_forward.1} parent=11 // pred_check_branch
        %497 = sbr.rel (%p495) target = $region64
      $region63: #{proposal_net_forward.1} parent=11 // pred_region
        _
      $region64: #{proposal_net_forward.1} parent=11 // pred_fallthru
        _
      // Predicated region
      $region65: #{proposal_net_forward.1} parent=11 // pred_check
        %p498 = pneg %p345
      $region66: #{proposal_net_forward.1} parent=11 // pred_check_branch
        %500 = sbr.rel (%p498) target = $region68
      $region67: #{proposal_net_forward.1} parent=11 // pred_region
        _
      $region68: #{proposal_net_forward.1} parent=11 // pred_fallthru
        _
      // Predicated region
      $region69: #{proposal_net_forward.1} parent=11 // pred_check
        %p501 = pneg %p366
      $region70: #{proposal_net_forward.1} parent=11 // pred_check_branch
        %503 = sbr.rel (%p501) target = $region72
      $region71: #{proposal_net_forward.1} parent=11 // pred_region
        _
      $region72: #{proposal_net_forward.1} parent=11 // pred_fallthru
        _
    $region12: #{proposal_net_forward.1} parent=5 // pred_fallthru
      _
    %p504 = scmp.lt.s32.totalorder %s25, 2
    // Predicated region
    $region73: #{proposal_net_forward.1} parent=5 // pred_check
      %p505 = pneg %p504
    $region74: #{proposal_net_forward.1} parent=5 // pred_check_branch
      %507 = sbr.rel (%p505) target = $region76
    $region75: #{proposal_net_forward.1} parent=5 // pred_region
      // Predicated region
      $region77: #{proposal_net_forward.1} parent=75 // pred_check
        %p508 = pneg %p45
      $region78: #{proposal_net_forward.1} parent=75 // pred_check_branch
        %510 = sbr.rel (%p508) target = $region80
      $region79: #{proposal_net_forward.1} parent=75 // pred_region
        %p511 = scmp.lt.s32.totalorder %s25, 1
        %s512 = scalar_select %p511, %s25, 1
        %s513 = smul.addr %s512, 32
        %s514 = smul.addr %s513, 4
        %s515 = scalar_lea.vmem %s0, %s514
      $region80: #{proposal_net_forward.1} parent=75 // pred_fallthru
        _
    $region76: #{proposal_net_forward.1} parent=5 // pred_fallthru
      _
    %p516 = scmp.le.s32.totalorder 1, %s25
    %p517 = scmp.lt.s32.totalorder %s25, 3
    %p518 = pnand %p516, %p517
    %p519 = pneg %p518
    // Predicated region
    $region81: #{proposal_net_forward.1} parent=5 // pred_check
      _
    $region82: #{proposal_net_forward.1} parent=5 // pred_check_branch
      %521 = sbr.rel (%p518) target = $region84
    $region83: #{proposal_net_forward.1} parent=5 // pred_region
      %s522 = ssub.s32 %s25, 1
      %p523 = scmp.lt.s32.totalorder %s30, 1
      %s524 = scalar_select %p523, %s30, 1
      %s525 = smul.addr %s524, 32
      %s526 = smul.addr %s525, 4
      %s527 = scalar_lea.vmem %s0, %s526
      %p528 = pneg %p51
      %p529 = pneg %p48
      %p530 = pneg %p72
      %p531 = pneg %p69
      %p532 = pneg %p93
      %p533 = pneg %p90
      %p534 = pneg %p114
      %p535 = pneg %p111
      %p536 = pneg %p135
      %p537 = pneg %p132
      %p538 = pneg %p156
      %p539 = pneg %p153
      %p540 = pneg %p177
      %p541 = pneg %p174
      %p542 = pneg %p198
      %p543 = pneg %p195
      %p544 = pneg %p219
      %p545 = pneg %p216
      %p546 = pneg %p240
      %p547 = pneg %p237
      %p548 = pneg %p261
      %p549 = pneg %p258
      %p550 = pneg %p282
      %p551 = pneg %p279
      %p552 = pneg %p303
      %p553 = pneg %p300
      %p554 = pneg %p324
      %p555 = pneg %p321
      %p556 = pneg %p345
      %p557 = pneg %p342
      %p558 = pneg %p366
      %p559 = pneg %p363
      %p560 = pneg %p392
      %p561 = pneg %p389
      %p562 = scmp.lt.s32.totalorder %s30, 1
      %s563 = scalar_select %p562, %s30, 1
      %s564 = smul.addr %s563, 8
      %s565 = smul.addr %s564, 8
      %s566 = scalar_lea.vmem %s16, %s565
      %p567 = pneg %p418
      %p568 = pneg %p415
      %p569 = scmp.lt.s32.totalorder %s30, 1
      %s570 = scalar_select %p569, %s30, 1
      %s571 = smul.addr %s570, 2
      %s572 = smul.addr %s571, 8
      %s573 = scalar_lea.vmem %s17, %s572
      %p574 = pneg %p444
      %p575 = pneg %p441
      %p576 = scmp.lt.s32.totalorder %s30, 1
      %s577 = scalar_select %p576, %s30, 1
      %s578 = smul.addr %s577, 4
      %s579 = scalar_lea.vmem %s18, %s578
      %p580 = scmp.lt.s32.totalorder %s30, 1
      %s581 = scalar_select %p580, %s30, 1
      %s582 = smul.addr %s581, 32
      %s583 = smul.addr %s582, 4
      %s584 = scalar_lea.vmem %s0, %s583
      %p585 = scmp.lt.s32.totalorder %s30, 1
      %s586 = scalar_select %p585, %s30, 1
      %s587 = smul.addr %s586, 8
      %s588 = smul.addr %s587, 8
      %s589 = scalar_lea.vmem %s16, %s588
      %p590 = scmp.lt.s32.totalorder %s30, 1
      %s591 = scalar_select %p590, %s30, 1
      %s592 = smul.addr %s591, 2
      %s593 = smul.addr %s592, 8
      %s594 = scalar_lea.vmem %s17, %s593
      %p595 = scmp.lt.s32.totalorder %s30, 1
      %s596 = scalar_select %p595, %s30, 1
      %s597 = smul.addr %s596, 4
      %s598 = scalar_lea.vmem %s18, %s597
      %v600 = vld [vmem:[%s584] sm:$0xff]
      %v601 = vld [vmem:[%s584 + $0x8] sm:$0xff]
      %v602 = vld [vmem:[%s584 + $0x10] sm:$0xff]
      %v603 = vld [vmem:[%s584 + $0x18] sm:$0xff]
      %v604 = vld [vmem:[%s584 + $0x20] sm:$0xff]
      %v605 = vld [vmem:[%s584 + $0x28] sm:$0xff]
      %v606 = vld [vmem:[%s584 + $0x30] sm:$0xff]
      %v607 = vld [vmem:[%s584 + $0x38] sm:$0xff]
      %v608 = vld [vmem:[%s584 + $0x40] sm:$0xff]
      %v609 = vld [vmem:[%s584 + $0x48] sm:$0xff]
      %v610 = vld [vmem:[%s584 + $0x50] sm:$0xff]
      %v611 = vld [vmem:[%s584 + $0x58] sm:$0xff]
      %v612 = vld [vmem:[%s584 + $0x60] sm:$0xff]
      %v613 = vld [vmem:[%s584 + $0x68] sm:$0xff]
      %v614 = vld [vmem:[%s584 + $0x70] sm:$0xff]
      %v615 = vld [vmem:[%s584 + $0x78] sm:$0xff]
      %v616 = vld [vmem:[%s1] sm:$0xf]
      %v617 = vld [vmem:[%s1 + $0x4] sm:$0xf]
      %v618 = vld [vmem:[%s1 + $0x8] sm:$0xf]
      %v619 = vld [vmem:[%s1 + $0xc] sm:$0xf]
      %v620 = vld [vmem:[%s1 + $0x10] sm:$0xf]
      %v621 = vld [vmem:[%s1 + $0x14] sm:$0xf]
      %v622 = vld [vmem:[%s1 + $0x18] sm:$0xf]
      %v623 = vld [vmem:[%s1 + $0x1c] sm:$0xf]
      %v632 = vunpack.c.l.b16 %v616
      %v633 = vunpack.c.l.b16 %v617
      %v634 = vunpack.c.l.b16 %v618
      %v635 = vunpack.c.l.b16 %v619
      %v636 = vunpack.c.l.b16 %v620
      %v637 = vunpack.c.l.b16 %v621
      %v638 = vunpack.c.l.b16 %v622
      %v639 = vunpack.c.l.b16 %v623
      %v640 = vpack.c.b16 %v633, %v632
      %v641 = vpack.c.b16 %v635, %v634
      %v642 = vpack.c.b16 %v637, %v636
      %v643 = vpack.c.b16 %v639, %v638
      %v660 = vunpack.c.l.b16 %v600
      %v661 = vunpack.c.h.b16 %v600
      %v662 = vunpack.c.l.b16 %v601
      %v663 = vunpack.c.h.b16 %v601
      %v664 = vunpack.c.l.b16 %v602
      %v665 = vunpack.c.h.b16 %v602
      %v666 = vunpack.c.l.b16 %v603
      %v667 = vunpack.c.h.b16 %v603
      %v668 = vunpack.c.l.b16 %v604
      %v669 = vunpack.c.h.b16 %v604
      %v670 = vunpack.c.l.b16 %v605
      %v671 = vunpack.c.h.b16 %v605
      %v672 = vunpack.c.l.b16 %v606
      %v673 = vunpack.c.h.b16 %v606
      %v674 = vunpack.c.l.b16 %v607
      %v675 = vunpack.c.h.b16 %v607
      %v676 = vunpack.c.l.b16 %v608
      %v677 = vunpack.c.h.b16 %v608
      %v678 = vunpack.c.l.b16 %v609
      %v679 = vunpack.c.h.b16 %v609
      %v680 = vunpack.c.l.b16 %v610
      %v681 = vunpack.c.h.b16 %v610
      %v682 = vunpack.c.l.b16 %v611
      %v683 = vunpack.c.h.b16 %v611
      %v684 = vunpack.c.l.b16 %v612
      %v685 = vunpack.c.h.b16 %v612
      %v686 = vunpack.c.l.b16 %v613
      %v687 = vunpack.c.h.b16 %v613
      %v688 = vunpack.c.l.b16 %v614
      %v689 = vunpack.c.h.b16 %v614
      %v690 = vunpack.c.l.b16 %v615
      %v691 = vunpack.c.h.b16 %v615
      %v692 = vpack.c.b16 %v664, %v660
      %v693 = vpack.c.b16 %v665, %v661
      %v694 = vpack.c.b16 %v666, %v662
      %v695 = vpack.c.b16 %v667, %v663
      %v696 = vpack.c.b16 %v672, %v668
      %v697 = vpack.c.b16 %v673, %v669
      %v698 = vpack.c.b16 %v674, %v670
      %v699 = vpack.c.b16 %v675, %v671
      %v700 = vpack.c.b16 %v680, %v676
      %v701 = vpack.c.b16 %v681, %v677
      %v702 = vpack.c.b16 %v682, %v678
      %v703 = vpack.c.b16 %v683, %v679
      %v704 = vpack.c.b16 %v688, %v684
      %v705 = vpack.c.b16 %v689, %v685
      %v706 = vpack.c.b16 %v690, %v686
      %v707 = vpack.c.b16 %v691, %v687
      %vm724 = vcmask 523264
      %v726 = vsel %vm724, %v640, 0
      %v729 = vsel %vm724, %v641, 0
      %v732 = vsel %vm724, %v642, 0
      %v735 = vsel %vm724, %v643, 0
      %737 = vmatprep.subr.bf16.mxu0 %v693
      %738 = vmatpush1.bf16.msra.mxu0 %v692
      %739 = vmatprep.subr.bf16.mxu0 %v697
      %740 = vmatpush1.bf16.msra.mxu0 %v696
      %741 = vmatprep.subr.bf16.mxu0 %v701
      %742 = vmatpush1.bf16.msra.mxu0 %v700
      %743 = vmatprep.subr.bf16.mxu0 %v705
      %744 = vmatpush1.bf16.msra.mxu0 %v704
      %745 = vmatprep.subr.bf16.mxu0 0
      %746 = vmatpush1.bf16.msra.mxu0 0
      %747 = vmatprep.subr.bf16.mxu0 0
      %748 = vmatpush1.bf16.msra.mxu0 0
      %749 = vmatprep.subr.bf16.mxu0 0
      %750 = vmatpush1.bf16.msra.mxu0 0
      %751 = vmatprep.subr.bf16.mxu0 0
      %752 = vmatpush1.bf16.msra.mxu0 0
      %753 = vmatprep.subr.bf16.mxu0 0
      %754 = vmatpush1.bf16.msra.mxu0 0
      %755 = vmatprep.subr.bf16.mxu0 0
      %756 = vmatpush1.bf16.msra.mxu0 0
      %757 = vmatprep.subr.bf16.mxu0 0
      %758 = vmatpush1.bf16.msra.mxu0 0
      %759 = vmatprep.subr.bf16.mxu0 0
      %760 = vmatpush1.bf16.msra.mxu0 0
      %761 = vmatprep.subr.bf16.mxu0 0
      %762 = vmatpush1.bf16.msra.mxu0 0
      %763 = vmatprep.subr.bf16.mxu0 0
      %764 = vmatpush1.bf16.msra.mxu0 0
      %765 = vmatprep.subr.bf16.mxu0 0
      %766 = vmatpush1.bf16.msra.mxu0 0
      %767 = vmatprep.subr.bf16.mxu0 0
      %768 = vmatpush1.bf16.msra.mxu0 0
      %769 = vmatprep.mubr.bf16.mxu0 0
      %770 = vmatmul.mubr.bf16.gmra.mrb[0].mxu0 %v726
      %v771 = vpop.f32.mrb[0].mxu0
      %v772 = vadd.f32 0.0, %v771
      %v773 = vpop.f32.mrb[0].mxu0
      %v774 = vadd.f32 0.0, %v773
      %v775 = vpop.f32.mrb[0].mxu0
      %v776 = vadd.f32 0.0, %v775
      %v777 = vpop.f32.mrb[0].mxu0
      %v778 = vadd.f32 0.0, %v777
      %779 = vmatprep.mubr.bf16.mxu0 0
      %780 = vmatmul.mubr.bf16.gmra.mrb[0].mxu0 %v729
      %v781 = vpop.f32.mrb[0].mxu0
      %v782 = vadd.f32 0.0, %v781
      %v783 = vpop.f32.mrb[0].mxu0
      %v784 = vadd.f32 0.0, %v783
      %v785 = vpop.f32.mrb[0].mxu0
      %v786 = vadd.f32 0.0, %v785
      %v787 = vpop.f32.mrb[0].mxu0
      %v788 = vadd.f32 0.0, %v787
      %789 = vmatprep.mubr.bf16.mxu0 0
      %790 = vmatmul.mubr.bf16.gmra.mrb[0].mxu0 %v732
      %v791 = vpop.f32.mrb[0].mxu0
      %v792 = vadd.f32 0.0, %v791
      %v793 = vpop.f32.mrb[0].mxu0
      %v794 = vadd.f32 0.0, %v793
      %v795 = vpop.f32.mrb[0].mxu0
      %v796 = vadd.f32 0.0, %v795
      %v797 = vpop.f32.mrb[0].mxu0
      %v798 = vadd.f32 0.0, %v797
      %799 = vmatprep.mubr.bf16.mxu0 0
      %800 = vmatmul.mubr.bf16.gmra.mrb[0].mxu0 %v735
      %v801 = vpop.f32.mrb[0].mxu0
      %v802 = vadd.f32 0.0, %v801
      %v803 = vpop.f32.mrb[0].mxu0
      %v804 = vadd.f32 0.0, %v803
      %v805 = vpop.f32.mrb[0].mxu0
      %v806 = vadd.f32 0.0, %v805
      %v807 = vpop.f32.mrb[0].mxu0
      %v808 = vadd.f32 0.0, %v807
      %809 = vdwg.mxu0
      %810 = vmatprep.subr.bf16.mxu0 %v695
      %811 = vmatpush1.bf16.msra.mxu0 %v694
      %812 = vmatprep.subr.bf16.mxu0 %v699
      %813 = vmatpush1.bf16.msra.mxu0 %v698
      %814 = vmatprep.subr.bf16.mxu0 %v703
      %815 = vmatpush1.bf16.msra.mxu0 %v702
      %816 = vmatprep.subr.bf16.mxu0 %v707
      %817 = vmatpush1.bf16.msra.mxu0 %v706
      %818 = vmatprep.subr.bf16.mxu0 0
      %819 = vmatpush1.bf16.msra.mxu0 0
      %820 = vmatprep.subr.bf16.mxu0 0
      %821 = vmatpush1.bf16.msra.mxu0 0
      %822 = vmatprep.subr.bf16.mxu0 0
      %823 = vmatpush1.bf16.msra.mxu0 0
      %824 = vmatprep.subr.bf16.mxu0 0
      %825 = vmatpush1.bf16.msra.mxu0 0
      %826 = vmatprep.subr.bf16.mxu0 0
      %827 = vmatpush1.bf16.msra.mxu0 0
      %828 = vmatprep.subr.bf16.mxu0 0
      %829 = vmatpush1.bf16.msra.mxu0 0
      %830 = vmatprep.subr.bf16.mxu0 0
      %831 = vmatpush1.bf16.msra.mxu0 0
      %832 = vmatprep.subr.bf16.mxu0 0
      %833 = vmatpush1.bf16.msra.mxu0 0
      %834 = vmatprep.subr.bf16.mxu0 0
      %835 = vmatpush1.bf16.msra.mxu0 0
      %836 = vmatprep.subr.bf16.mxu0 0
      %837 = vmatpush1.bf16.msra.mxu0 0
      %838 = vmatprep.subr.bf16.mxu0 0
      %839 = vmatpush1.bf16.msra.mxu0 0
      %840 = vmatprep.subr.bf16.mxu0 0
      %841 = vmatpush1.bf16.msra.mxu0 0
      %842 = vmatprep.mubr.bf16.mxu0 0
      %843 = vmatmul.mubr.bf16.gmra.mrb[0].mxu0 %v726
      %v844 = vpop.f32.mrb[0].mxu0
      %v845 = vadd.f32 0.0, %v844
      %v846 = vpop.f32.mrb[0].mxu0
      %v847 = vadd.f32 0.0, %v846
      %v848 = vpop.f32.mrb[0].mxu0
      %v849 = vadd.f32 0.0, %v848
      %v850 = vpop.f32.mrb[0].mxu0
      %v851 = vadd.f32 0.0, %v850
      %852 = vmatprep.mubr.bf16.mxu0 0
      %853 = vmatmul.mubr.bf16.gmra.mrb[0].mxu0 %v729
      %v854 = vpop.f32.mrb[0].mxu0
      %v855 = vadd.f32 0.0, %v854
      %v856 = vpop.f32.mrb[0].mxu0
      %v857 = vadd.f32 0.0, %v856
      %v858 = vpop.f32.mrb[0].mxu0
      %v859 = vadd.f32 0.0, %v858
      %v860 = vpop.f32.mrb[0].mxu0
      %v861 = vadd.f32 0.0, %v860
      %862 = vmatprep.mubr.bf16.mxu0 0
      %863 = vmatmul.mubr.bf16.gmra.mrb[0].mxu0 %v732
      %v864 = vpop.f32.mrb[0].mxu0
      %v865 = vadd.f32 0.0, %v864
      %v866 = vpop.f32.mrb[0].mxu0
      %v867 = vadd.f32 0.0, %v866
      %v868 = vpop.f32.mrb[0].mxu0
      %v869 = vadd.f32 0.0, %v868
      %v870 = vpop.f32.mrb[0].mxu0
      %v871 = vadd.f32 0.0, %v870
      %872 = vmatprep.mubr.bf16.mxu0 0
      %873 = vmatmul.mubr.bf16.gmra.mrb[0].mxu0 %v735
      %v874 = vpop.f32.mrb[0].mxu0
      %v875 = vadd.f32 0.0, %v874
      %v876 = vpop.f32.mrb[0].mxu0
      %v877 = vadd.f32 0.0, %v876
      %v878 = vpop.f32.mrb[0].mxu0
      %v879 = vadd.f32 0.0, %v878
      %v880 = vpop.f32.mrb[0].mxu0
      %v881 = vadd.f32 0.0, %v880
      %882 = vdwg.mxu0
      %v883 = vpack.c.bf16 %v776, %v772
      %v884 = vpack.c.bf16 %v778, %v774
      %v885 = vpack.c.bf16 %v849, %v845
      %v886 = vpack.c.bf16 %v851, %v847
      %v887 = vpack.c.bf16 %v786, %v782
      %v888 = vpack.c.bf16 %v788, %v784
      %v889 = vpack.c.bf16 %v859, %v855
      %v890 = vpack.c.bf16 %v861, %v857
      %v891 = vpack.c.bf16 %v796, %v792
      %v892 = vpack.c.bf16 %v798, %v794
      %v893 = vpack.c.bf16 %v869, %v865
      %v894 = vpack.c.bf16 %v871, %v867
      %v895 = vpack.c.bf16 %v806, %v802
      %v896 = vpack.c.bf16 %v808, %v804
      %v897 = vpack.c.bf16 %v879, %v875
      %v898 = vpack.c.bf16 %v881, %v877
      %v899 = vld [vmem:[%s4] sm:$0xf]
      %v900 = vld [vmem:[%s4 + $0x4] sm:$0xf]
      %v901 = vld [vmem:[%s4 + $0x8] sm:$0xf]
      %v902 = vld [vmem:[%s4 + $0xc] sm:$0xf]
      %v903 = vld [vmem:[%s4 + $0x10] sm:$0xf]
      %v904 = vld [vmem:[%s4 + $0x14] sm:$0xf]
      %v905 = vld [vmem:[%s4 + $0x18] sm:$0xf]
      %v906 = vld [vmem:[%s4 + $0x1c] sm:$0xf]
      %v907 = vld [vmem:[%s4 + $0x20] sm:$0xf]
      %v908 = vld [vmem:[%s4 + $0x24] sm:$0xf]
      %v909 = vld [vmem:[%s4 + $0x28] sm:$0xf]
      %v910 = vld [vmem:[%s4 + $0x2c] sm:$0xf]
      %v911 = vld [vmem:[%s4 + $0x30] sm:$0xf]
      %v912 = vld [vmem:[%s4 + $0x34] sm:$0xf]
      %v913 = vld [vmem:[%s4 + $0x38] sm:$0xf]
      %v914 = vld [vmem:[%s4 + $0x3c] sm:$0xf]
      %v915 = vld [vmem:[%s4 + $0x40] sm:$0xf]
      %v916 = vld [vmem:[%s4 + $0x44] sm:$0xf]
      %v917 = vld [vmem:[%s4 + $0x48] sm:$0xf]
      %v918 = vld [vmem:[%s4 + $0x4c] sm:$0xf]
      %v919 = vld [vmem:[%s4 + $0x50] sm:$0xf]
      %v920 = vld [vmem:[%s4 + $0x54] sm:$0xf]
      %v921 = vld [vmem:[%s4 + $0x58] sm:$0xf]
      %v922 = vld [vmem:[%s4 + $0x5c] sm:$0xf]
      %v923 = vld [vmem:[%s4 + $0x60] sm:$0xf]
      %v924 = vld [vmem:[%s4 + $0x64] sm:$0xf]
      %v925 = vld [vmem:[%s4 + $0x68] sm:$0xf]
      %v926 = vld [vmem:[%s4 + $0x6c] sm:$0xf]
      %v927 = vld [vmem:[%s4 + $0x70] sm:$0xf]
      %v928 = vld [vmem:[%s4 + $0x74] sm:$0xf]
      %v929 = vld [vmem:[%s4 + $0x78] sm:$0xf]
      %v930 = vld [vmem:[%s4 + $0x7c] sm:$0xf]
      %v931 = vld [vmem:[%s4 + $0x80] sm:$0xf]
      %v932 = vld [vmem:[%s4 + $0x84] sm:$0xf]
      %v933 = vld [vmem:[%s4 + $0x88] sm:$0xf]
      %v934 = vld [vmem:[%s4 + $0x8c] sm:$0xf]
      %v935 = vld [vmem:[%s4 + $0x90] sm:$0xf]
      %v936 = vld [vmem:[%s4 + $0x94] sm:$0xf]
      %v937 = vld [vmem:[%s4 + $0x98] sm:$0xf]
      %v938 = vld [vmem:[%s4 + $0x9c] sm:$0xf]
      %v939 = vld [vmem:[%s4 + $0xa0] sm:$0xf]
      %v940 = vld [vmem:[%s4 + $0xa4] sm:$0xf]
      %v941 = vld [vmem:[%s4 + $0xa8] sm:$0xf]
      %v942 = vld [vmem:[%s4 + $0xac] sm:$0xf]
      %v943 = vld [vmem:[%s4 + $0xb0] sm:$0xf]
      %v944 = vld [vmem:[%s4 + $0xb4] sm:$0xf]
      %v945 = vld [vmem:[%s4 + $0xb8] sm:$0xf]
      %v946 = vld [vmem:[%s4 + $0xbc] sm:$0xf]
      %v947 = vld [vmem:[%s4 + $0xc0] sm:$0xf]
      %v948 = vld [vmem:[%s4 + $0xc4] sm:$0xf]
      %v949 = vld [vmem:[%s4 + $0xc8] sm:$0xf]
      %v950 = vld [vmem:[%s4 + $0xcc] sm:$0xf]
      %v951 = vld [vmem:[%s4 + $0xd0] sm:$0xf]
      %v952 = vld [vmem:[%s4 + $0xd4] sm:$0xf]
      %v953 = vld [vmem:[%s4 + $0xd8] sm:$0xf]
      %v954 = vld [vmem:[%s4 + $0xdc] sm:$0xf]
      %v955 = vld [vmem:[%s4 + $0xe0] sm:$0xf]
      %v956 = vld [vmem:[%s4 + $0xe4] sm:$0xf]
      %v957 = vld [vmem:[%s4 + $0xe8] sm:$0xf]
      %v958 = vld [vmem:[%s4 + $0xec] sm:$0xf]
      %v959 = vld [vmem:[%s4 + $0xf0] sm:$0xf]
      %v960 = vld [vmem:[%s4 + $0xf4] sm:$0xf]
      %v961 = vld [vmem:[%s4 + $0xf8] sm:$0xf]
      %v962 = vld [vmem:[%s4 + $0xfc] sm:$0xf]
      %s963 = scalar_lea.vmem %s1, 32
      %v964 = vld [vmem:[%s963] sm:$0xf]
      %v965 = vld [vmem:[%s963 + $0x4] sm:$0xf]
      %v966 = vld [vmem:[%s963 + $0x8] sm:$0xf]
      %v967 = vld [vmem:[%s963 + $0xc] sm:$0xf]
      %v968 = vld [vmem:[%s963 + $0x10] sm:$0xf]
      %v969 = vld [vmem:[%s963 + $0x14] sm:$0xf]
      %v970 = vld [vmem:[%s963 + $0x18] sm:$0xf]
      %v971 = vld [vmem:[%s963 + $0x1c] sm:$0xf]
      %v980 = vunpack.c.l.b16 %v964
      %v981 = vunpack.c.l.b16 %v965
      %v982 = vunpack.c.l.b16 %v966
      %v983 = vunpack.c.l.b16 %v967
      %v984 = vunpack.c.l.b16 %v968
      %v985 = vunpack.c.l.b16 %v969
      %v986 = vunpack.c.l.b16 %v970
      %v987 = vunpack.c.l.b16 %v971
      %v988 = vpack.c.b16 %v981, %v980
      %v989 = vpack.c.b16 %v983, %v982
      %v990 = vpack.c.b16 %v985, %v984
      %v991 = vpack.c.b16 %v987, %v986
      %v993 = vsel %vm724, %v988, 0
      %v996 = vsel %vm724, %v989, 0
      %v999 = vsel %vm724, %v990, 0
      %v1002 = vsel %vm724, %v991, 0
      %1004 = vmatprep.subr.bf16.mxu0 %v693
      %1005 = vmatpush1.bf16.msra.mxu0 %v692
      %1006 = vmatprep.subr.bf16.mxu0 %v697
      %1007 = vmatpush1.bf16.msra.mxu0 %v696
      %1008 = vmatprep.subr.bf16.mxu0 %v701
      %1009 = vmatpush1.bf16.msra.mxu0 %v700
      %1010 = vmatprep.subr.bf16.mxu0 %v705
      %1011 = vmatpush1.bf16.msra.mxu0 %v704
      %1012 = vmatprep.subr.bf16.mxu0 0
      %1013 = vmatpush1.bf16.msra.mxu0 0
      %1014 = vmatprep.subr.bf16.mxu0 0
      %1015 = vmatpush1.bf16.msra.mxu0 0
      %1016 = vmatprep.subr.bf16.mxu0 0
      %1017 = vmatpush1.bf16.msra.mxu0 0
      %1018 = vmatprep.subr.bf16.mxu0 0
      %1019 = vmatpush1.bf16.msra.mxu0 0
      %1020 = vmatprep.subr.bf16.mxu0 0
      %1021 = vmatpush1.bf16.msra.mxu0 0
      %1022 = vmatprep.subr.bf16.mxu0 0
      %1023 = vmatpush1.bf16.msra.mxu0 0
      %1024 = vmatprep.subr.bf16.mxu0 0
      %1025 = vmatpush1.bf16.msra.mxu0 0
      %1026 = vmatprep.subr.bf16.mxu0 0
      %1027 = vmatpush1.bf16.msra.mxu0 0
      %1028 = vmatprep.subr.bf16.mxu0 0
      %1029 = vmatpush1.bf16.msra.mxu0 0
      %1030 = vmatprep.subr.bf16.mxu0 0
      %1031 = vmatpush1.bf16.msra.mxu0 0
      %1032 = vmatprep.subr.bf16.mxu0 0
      %1033 = vmatpush1.bf16.msra.mxu0 0
      %1034 = vmatprep.subr.bf16.mxu0 0
      %1035 = vmatpush1.bf16.msra.mxu0 0
      %1036 = vmatprep.mubr.bf16.mxu0 0
      %1037 = vmatmul.mubr.bf16.gmra.mrb[0].mxu0 %v993
      %v1038 = vpop.f32.mrb[0].mxu0
      %v1039 = vadd.f32 0.0, %v1038
      %v1040 = vpop.f32.mrb[0].mxu0
      %v1041 = vadd.f32 0.0, %v1040
      %v1042 = vpop.f32.mrb[0].mxu0
      %v1043 = vadd.f32 0.0, %v1042
      %v1044 = vpop.f32.mrb[0].mxu0
      %v1045 = vadd.f32 0.0, %v1044
      %1046 = vmatprep.mubr.bf16.mxu0 0
      %1047 = vmatmul.mubr.bf16.gmra.mrb[0].mxu0 %v996
      %v1048 = vpop.f32.mrb[0].mxu0
      %v1049 = vadd.f32 0.0, %v1048
      %v1050 = vpop.f32.mrb[0].mxu0
      %v1051 = vadd.f32 0.0, %v1050
      %v1052 = vpop.f32.mrb[0].mxu0
      %v1053 = vadd.f32 0.0, %v1052
      %v1054 = vpop.f32.mrb[0].mxu0
      %v1055 = vadd.f32 0.0, %v1054
      %1056 = vmatprep.mubr.bf16.mxu0 0
      %1057 = vmatmul.mubr.bf16.gmra.mrb[0].mxu0 %v999
      %v1058 = vpop.f32.mrb[0].mxu0
      %v1059 = vadd.f32 0.0, %v1058
      %v1060 = vpop.f32.mrb[0].mxu0
      %v1061 = vadd.f32 0.0, %v1060
      %v1062 = vpop.f32.mrb[0].mxu0
      %v1063 = vadd.f32 0.0, %v1062
      %v1064 = vpop.f32.mrb[0].mxu0
      %v1065 = vadd.f32 0.0, %v1064
      %1066 = vmatprep.mubr.bf16.mxu0 0
      %1067 = vmatmul.mubr.bf16.gmra.mrb[0].mxu0 %v1002
      %v1068 = vpop.f32.mrb[0].mxu0
      %v1069 = vadd.f32 0.0, %v1068
      %v1070 = vpop.f32.mrb[0].mxu0
      %v1071 = vadd.f32 0.0, %v1070
      %v1072 = vpop.f32.mrb[0].mxu0
      %v1073 = vadd.f32 0.0, %v1072
      %v1074 = vpop.f32.mrb[0].mxu0
      %v1075 = vadd.f32 0.0, %v1074
      %1076 = vdwg.mxu0
      %1077 = vmatprep.subr.bf16.mxu0 %v695
      %1078 = vmatpush1.bf16.msra.mxu0 %v694
      %1079 = vmatprep.subr.bf16.mxu0 %v699
      %1080 = vmatpush1.bf16.msra.mxu0 %v698
      %1081 = vmatprep.subr.bf16.mxu0 %v703
      %1082 = vmatpush1.bf16.msra.mxu0 %v702
      %1083 = vmatprep.subr.bf16.mxu0 %v707
      %1084 = vmatpush1.bf16.msra.mxu0 %v706
      %1085 = vmatprep.subr.bf16.mxu0 0
      %1086 = vmatpush1.bf16.msra.mxu0 0
      %1087 = vmatprep.subr.bf16.mxu0 0
      %1088 = vmatpush1.bf16.msra.mxu0 0
      %1089 = vmatprep.subr.bf16.mxu0 0
      %1090 = vmatpush1.bf16.msra.mxu0 0
      %1091 = vmatprep.subr.bf16.mxu0 0
      %1092 = vmatpush1.bf16.msra.mxu0 0
      %1093 = vmatprep.subr.bf16.mxu0 0
      %1094 = vmatpush1.bf16.msra.mxu0 0
      %1095 = vmatprep.subr.bf16.mxu0 0
      %1096 = vmatpush1.bf16.msra.mxu0 0
      %1097 = vmatprep.subr.bf16.mxu0 0
      %1098 = vmatpush1.bf16.msra.mxu0 0
      %1099 = vmatprep.subr.bf16.mxu0 0
      %1100 = vmatpush1.bf16.msra.mxu0 0
      %1101 = vmatprep.subr.bf16.mxu0 0
      %1102 = vmatpush1.bf16.msra.mxu0 0
      %1103 = vmatprep.subr.bf16.mxu0 0
      %1104 = vmatpush1.bf16.msra.mxu0 0
      %1105 = vmatprep.subr.bf16.mxu0 0
      %1106 = vmatpush1.bf16.msra.mxu0 0
      %1107 = vmatprep.subr.bf16.mxu0 0
      %1108 = vmatpush1.bf16.msra.mxu0 0
      %1109 = vmatprep.mubr.bf16.mxu0 0
      %1110 = vmatmul.mubr.bf16.gmra.mrb[0].mxu0 %v993
      %v1111 = vpop.f32.mrb[0].mxu0
      %v1112 = vadd.f32 0.0, %v1111
      %v1113 = vpop.f32.mrb[0].mxu0
      %v1114 = vadd.f32 0.0, %v1113
      %v1115 = vpop.f32.mrb[0].mxu0
      %v1116 = vadd.f32 0.0, %v1115
      %v1117 = vpop.f32.mrb[0].mxu0
      %v1118 = vadd.f32 0.0, %v1117
      %1119 = vmatprep.mubr.bf16.mxu0 0
      %1120 = vmatmul.mubr.bf16.gmra.mrb[0].mxu0 %v996
      %v1121 = vpop.f32.mrb[0].mxu0
      %v1122 = vadd.f32 0.0, %v1121
      %v1123 = vpop.f32.mrb[0].mxu0
      %v1124 = vadd.f32 0.0, %v1123
      %v1125 = vpop.f32.mrb[0].mxu0
      %v1126 = vadd.f32 0.0, %v1125
      %v1127 = vpop.f32.mrb[0].mxu0
      %v1128 = vadd.f32 0.0, %v1127
      %1129 = vmatprep.mubr.bf16.mxu0 0
      %1130 = vmatmul.mubr.bf16.gmra.mrb[0].mxu0 %v999
      %v1131 = vpop.f32.mrb[0].mxu0
      %v1132 = vadd.f32 0.0, %v1131
      %v1133 = vpop.f32.mrb[0].mxu0
      %v1134 = vadd.f32 0.0, %v1133
      %v1135 = vpop.f32.mrb[0].mxu0
      %v1136 = vadd.f32 0.0, %v1135
      %v1137 = vpop.f32.mrb[0].mxu0
      %v1138 = vadd.f32 0.0, %v1137
      %1139 = vmatprep.mubr.bf16.mxu0 0
      %1140 = vmatmul.mubr.bf16.gmra.mrb[0].mxu0 %v1002
      %v1141 = vpop.f32.mrb[0].mxu0
      %v1142 = vadd.f32 0.0, %v1141
      %v1143 = vpop.f32.mrb[0].mxu0
      %v1144 = vadd.f32 0.0, %v1143
      %v1145 = vpop.f32.mrb[0].mxu0
      %v1146 = vadd.f32 0.0, %v1145
      %v1147 = vpop.f32.mrb[0].mxu0
      %v1148 = vadd.f32 0.0, %v1147
      %1149 = vdwg.mxu0
      %v1150 = vpack.c.bf16 %v1043, %v1039
      %v1151 = vpack.c.bf16 %v1045, %v1041
      %v1152 = vpack.c.bf16 %v1116, %v1112
      %v1153 = vpack.c.bf16 %v1118, %v1114
      %v1154 = vpack.c.bf16 %v1053, %v1049
      %v1155 = vpack.c.bf16 %v1055, %v1051
      %v1156 = vpack.c.bf16 %v1126, %v1122
      %v1157 = vpack.c.bf16 %v1128, %v1124
      %v1158 = vpack.c.bf16 %v1063, %v1059
      %v1159 = vpack.c.bf16 %v1065, %v1061
      %v1160 = vpack.c.bf16 %v1136, %v1132
      %v1161 = vpack.c.bf16 %v1138, %v1134
      %v1162 = vpack.c.bf16 %v1073, %v1069
      %v1163 = vpack.c.bf16 %v1075, %v1071
      %v1164 = vpack.c.bf16 %v1146, %v1142
      %v1165 = vpack.c.bf16 %v1148, %v1144
      %s1166 = scalar_lea.vmem %s4, 256
      %v1167 = vld [vmem:[%s1166] sm:$0xf]
      %v1168 = vld [vmem:[%s1166 + $0x4] sm:$0xf]
      %v1169 = vld [vmem:[%s1166 + $0x8] sm:$0xf]
      %v1170 = vld [vmem:[%s1166 + $0xc] sm:$0xf]
      %v1171 = vld [vmem:[%s1166 + $0x10] sm:$0xf]
      %v1172 = vld [vmem:[%s1166 + $0x14] sm:$0xf]
      %v1173 = vld [vmem:[%s1166 + $0x18] sm:$0xf]
      %v1174 = vld [vmem:[%s1166 + $0x1c] sm:$0xf]
      %v1175 = vld [vmem:[%s1166 + $0x20] sm:$0xf]
      %v1176 = vld [vmem:[%s1166 + $0x24] sm:$0xf]
      %v1177 = vld [vmem:[%s1166 + $0x28] sm:$0xf]
      %v1178 = vld [vmem:[%s1166 + $0x2c] sm:$0xf]
      %v1179 = vld [vmem:[%s1166 + $0x30] sm:$0xf]
      %v1180 = vld [vmem:[%s1166 + $0x34] sm:$0xf]
      %v1181 = vld [vmem:[%s1166 + $0x38] sm:$0xf]
      %v1182 = vld [vmem:[%s1166 + $0x3c] sm:$0xf]
      %v1183 = vld [vmem:[%s1166 + $0x40] sm:$0xf]
      %v1184 = vld [vmem:[%s1166 + $0x44] sm:$0xf]
      %v1185 = vld [vmem:[%s1166 + $0x48] sm:$0xf]
      %v1186 = vld [vmem:[%s1166 + $0x4c] sm:$0xf]
      %v1187 = vld [vmem:[%s1166 + $0x50] sm:$0xf]
      %v1188 = vld [vmem:[%s1166 + $0x54] sm:$0xf]
      %v1189 = vld [vmem:[%s1166 + $0x58] sm:$0xf]
      %v1190 = vld [vmem:[%s1166 + $0x5c] sm:$0xf]
      %v1191 = vld [vmem:[%s1166 + $0x60] sm:$0xf]
      %v1192 = vld [vmem:[%s1166 + $0x64] sm:$0xf]
      %v1193 = vld [vmem:[%s1166 + $0x68] sm:$0xf]
      %v1194 = vld [vmem:[%s1166 + $0x6c] sm:$0xf]
      %v1195 = vld [vmem:[%s1166 + $0x70] sm:$0xf]
      %v1196 = vld [vmem:[%s1166 + $0x74] sm:$0xf]
      %v1197 = vld [vmem:[%s1166 + $0x78] sm:$0xf]
      %v1198 = vld [vmem:[%s1166 + $0x7c] sm:$0xf]
      %v1199 = vld [vmem:[%s1166 + $0x80] sm:$0xf]
      %v1200 = vld [vmem:[%s1166 + $0x84] sm:$0xf]
      %v1201 = vld [vmem:[%s1166 + $0x88] sm:$0xf]
      %v1202 = vld [vmem:[%s1166 + $0x8c] sm:$0xf]
      %v1203 = vld [vmem:[%s1166 + $0x90] sm:$0xf]
      %v1204 = vld [vmem:[%s1166 + $0x94] sm:$0xf]
      %v1205 = vld [vmem:[%s1166 + $0x98] sm:$0xf]
      %v1206 = vld [vmem:[%s1166 + $0x9c] sm:$0xf]
      %v1207 = vld [vmem:[%s1166 + $0xa0] sm:$0xf]
      %v1208 = vld [vmem:[%s1166 + $0xa4] sm:$0xf]
      %v1209 = vld [vmem:[%s1166 + $0xa8] sm:$0xf]
      %v1210 = vld [vmem:[%s1166 + $0xac] sm:$0xf]
      %v1211 = vld [vmem:[%s1166 + $0xb0] sm:$0xf]
      %v1212 = vld [vmem:[%s1166 + $0xb4] sm:$0xf]
      %v1213 = vld [vmem:[%s1166 + $0xb8] sm:$0xf]
      %v1214 = vld [vmem:[%s1166 + $0xbc] sm:$0xf]
      %v1215 = vld [vmem:[%s1166 + $0xc0] sm:$0xf]
      %v1216 = vld [vmem:[%s1166 + $0xc4] sm:$0xf]
      %v1217 = vld [vmem:[%s1166 + $0xc8] sm:$0xf]
      %v1218 = vld [vmem:[%s1166 + $0xcc] sm:$0xf]
      %v1219 = vld [vmem:[%s1166 + $0xd0] sm:$0xf]
      %v1220 = vld [vmem:[%s1166 + $0xd4] sm:$0xf]
      %v1221 = vld [vmem:[%s1166 + $0xd8] sm:$0xf]
      %v1222 = vld [vmem:[%s1166 + $0xdc] sm:$0xf]
      %v1223 = vld [vmem:[%s1166 + $0xe0] sm:$0xf]
      %v1224 = vld [vmem:[%s1166 + $0xe4] sm:$0xf]
      %v1225 = vld [vmem:[%s1166 + $0xe8] sm:$0xf]
      %v1226 = vld [vmem:[%s1166 + $0xec] sm:$0xf]
      %v1227 = vld [vmem:[%s1166 + $0xf0] sm:$0xf]
      %v1228 = vld [vmem:[%s1166 + $0xf4] sm:$0xf]
      %v1229 = vld [vmem:[%s1166 + $0xf8] sm:$0xf]
      %v1230 = vld [vmem:[%s1166 + $0xfc] sm:$0xf]
      %v1295 = vunpack.c.l.b16 %v1167
      %v1296 = vunpack.c.l.b16 %v1168
      %v1297 = vunpack.c.l.b16 %v1169
      %v1298 = vunpack.c.l.b16 %v1170
      %v1299 = vunpack.c.l.b16 %v1171
      %v1300 = vunpack.c.l.b16 %v1172
      %v1301 = vunpack.c.l.b16 %v1173
      %v1302 = vunpack.c.l.b16 %v1174
      %v1303 = vunpack.c.l.b16 %v1175
      %v1304 = vunpack.c.l.b16 %v1176
      %v1305 = vunpack.c.l.b16 %v1177
      %v1306 = vunpack.c.l.b16 %v1178
      %v1307 = vunpack.c.l.b16 %v1179
      %v1308 = vunpack.c.l.b16 %v1180
      %v1309 = vunpack.c.l.b16 %v1181
      %v1310 = vunpack.c.l.b16 %v1182
      %v1311 = vunpack.c.l.b16 %v1183
      %v1312 = vunpack.c.l.b16 %v1184
      %v1313 = vunpack.c.l.b16 %v1185
      %v1314 = vunpack.c.l.b16 %v1186
      %v1315 = vunpack.c.l.b16 %v1187
      %v1316 = vunpack.c.l.b16 %v1188
      %v1317 = vunpack.c.l.b16 %v1189
      %v1318 = vunpack.c.l.b16 %v1190
      %v1319 = vunpack.c.l.b16 %v1191
      %v1320 = vunpack.c.l.b16 %v1192
      %v1321 = vunpack.c.l.b16 %v1193
      %v1322 = vunpack.c.l.b16 %v1194
      %v1323 = vunpack.c.l.b16 %v1195
      %v1324 = vunpack.c.l.b16 %v1196
      %v1325 = vunpack.c.l.b16 %v1197
      %v1326 = vunpack.c.l.b16 %v1198
      %v1327 = vunpack.c.l.b16 %v1199
      %v1328 = vunpack.c.l.b16 %v1200
      %v1329 = vunpack.c.l.b16 %v1201
      %v1330 = vunpack.c.l.b16 %v1202
      %v1331 = vunpack.c.l.b16 %v1203
      %v1332 = vunpack.c.l.b16 %v1204
      %v1333 = vunpack.c.l.b16 %v1205
      %v1334 = vunpack.c.l.b16 %v1206
      %v1335 = vunpack.c.l.b16 %v1207
      %v1336 = vunpack.c.l.b16 %v1208
      %v1337 = vunpack.c.l.b16 %v1209
      %v1338 = vunpack.c.l.b16 %v1210
      %v1339 = vunpack.c.l.b16 %v1211
      %v1340 = vunpack.c.l.b16 %v1212
      %v1341 = vunpack.c.l.b16 %v1213
      %v1342 = vunpack.c.l.b16 %v1214
      %v1343 = vunpack.c.l.b16 %v1215
      %v1344 = vunpack.c.l.b16 %v1216
      %v1345 = vunpack.c.l.b16 %v1217
      %v1346 = vunpack.c.l.b16 %v1218
      %v1347 = vunpack.c.l.b16 %v1219
      %v1348 = vunpack.c.l.b16 %v1220
      %v1349 = vunpack.c.l.b16 %v1221
      %v1350 = vunpack.c.l.b16 %v1222
      %v1351 = vunpack.c.l.b16 %v1223
      %v1352 = vunpack.c.l.b16 %v1224
      %v1353 = vunpack.c.l.b16 %v1225
      %v1354 = vunpack.c.l.b16 %v1226
      %v1355 = vunpack.c.l.b16 %v1227
      %v1356 = vunpack.c.l.b16 %v1228
      %v1357 = vunpack.c.l.b16 %v1229
      %v1358 = vunpack.c.l.b16 %v1230
      %v1359 = vpack.c.b16 %v1296, %v1295
      %v1360 = vpack.c.b16 %v1298, %v1297
      %v1361 = vpack.c.b16 %v1300, %v1299
      %v1362 = vpack.c.b16 %v1302, %v1301
      %v1363 = vpack.c.b16 %v1304, %v1303
      %v1364 = vpack.c.b16 %v1306, %v1305
      %v1365 = vpack.c.b16 %v1308, %v1307
      %v1366 = vpack.c.b16 %v1310, %v1309
      %v1367 = vpack.c.b16 %v1312, %v1311
      %v1368 = vpack.c.b16 %v1314, %v1313
      %v1369 = vpack.c.b16 %v1316, %v1315
      %v1370 = vpack.c.b16 %v1318, %v1317
      %v1371 = vpack.c.b16 %v1320, %v1319
      %v1372 = vpack.c.b16 %v1322, %v1321
      %v1373 = vpack.c.b16 %v1324, %v1323
      %v1374 = vpack.c.b16 %v1326, %v1325
      %v1375 = vpack.c.b16 %v1328, %v1327
      %v1376 = vpack.c.b16 %v1330, %v1329
      %v1377 = vpack.c.b16 %v1332, %v1331
      %v1378 = vpack.c.b16 %v1334, %v1333
      %v1379 = vpack.c.b16 %v1336, %v1335
      %v1380 = vpack.c.b16 %v1338, %v1337
      %v1381 = vpack.c.b16 %v1340, %v1339
      %v1382 = vpack.c.b16 %v1342, %v1341
      %v1383 = vpack.c.b16 %v1344, %v1343
      %v1384 = vpack.c.b16 %v1346, %v1345
      %v1385 = vpack.c.b16 %v1348, %v1347
      %v1386 = vpack.c.b16 %v1350, %v1349
      %v1387 = vpack.c.b16 %v1352, %v1351
      %v1388 = vpack.c.b16 %v1354, %v1353
      %v1389 = vpack.c.b16 %v1356, %v1355
      %v1390 = vpack.c.b16 %v1358, %v1357
      %1423 = vmatprep.subr.bf16.mxu0 0
      %1424 = vmatpush1.bf16.msra.mxu0 %v1359
      %1425 = vmatprep.subr.bf16.mxu0 0
      %1426 = vmatpush1.bf16.msra.mxu0 %v1360
      %1427 = vmatprep.subr.bf16.mxu0 0
      %1428 = vmatpush1.bf16.msra.mxu0 %v1361
      %1429 = vmatprep.subr.bf16.mxu0 0
      %1430 = vmatpush1.bf16.msra.mxu0 %v1362
      %1431 = vmatprep.subr.bf16.mxu0 0
      %1432 = vmatpush1.bf16.msra.mxu0 %v1363
      %1433 = vmatprep.subr.bf16.mxu0 0
      %1434 = vmatpush1.bf16.msra.mxu0 %v1364
      %1435 = vmatprep.subr.bf16.mxu0 0
      %1436 = vmatpush1.bf16.msra.mxu0 %v1365
      %1437 = vmatprep.subr.bf16.mxu0 0
      %1438 = vmatpush1.bf16.msra.mxu0 %v1366
      %1439 = vmatprep.subr.bf16.mxu0 0
      %1440 = vmatpush1.bf16.msra.mxu0 %v1367
      %1441 = vmatprep.subr.bf16.mxu0 0
      %1442 = vmatpush1.bf16.msra.mxu0 %v1368
      %1443 = vmatprep.subr.bf16.mxu0 0
      %1444 = vmatpush1.bf16.msra.mxu0 %v1369
      %1445 = vmatprep.subr.bf16.mxu0 0
      %1446 = vmatpush1.bf16.msra.mxu0 %v1370
      %1447 = vmatprep.subr.bf16.mxu0 0
      %1448 = vmatpush1.bf16.msra.mxu0 %v1371
      %1449 = vmatprep.subr.bf16.mxu0 0
      %1450 = vmatpush1.bf16.msra.mxu0 %v1372
      %1451 = vmatprep.subr.bf16.mxu0 0
      %1452 = vmatpush1.bf16.msra.mxu0 %v1373
      %1453 = vmatprep.subr.bf16.mxu0 0
      %1454 = vmatpush1.bf16.msra.mxu0 %v1374
      %1455 = vmatprep.mubr.bf16.mxu0 %v1151
      %1456 = vmatmul.mubr.bf16.gmra.mrb[0].mxu0 %v1150
      %v1457 = vpop.f32.mrb[0].mxu0
      %v1458 = vadd.f32 0.0, %v1457
      %v1459 = vpop.f32.mrb[0].mxu0
      %v1460 = vpop.f32.mrb[0].mxu0
      %v1461 = vadd.f32 0.0, %v1460
      %v1462 = vpop.f32.mrb[0].mxu0
      %1463 = vmatprep.mubr.bf16.mxu0 %v1155
      %1464 = vmatmul.mubr.bf16.gmra.mrb[0].mxu0 %v1154
      %v1465 = vpop.f32.mrb[0].mxu0
      %v1466 = vadd.f32 0.0, %v1465
      %v1467 = vpop.f32.mrb[0].mxu0
      %v1468 = vpop.f32.mrb[0].mxu0
      %v1469 = vadd.f32 0.0, %v1468
      %v1470 = vpop.f32.mrb[0].mxu0
      %1471 = vmatprep.mubr.bf16.mxu0 %v1159
      %1472 = vmatmul.mubr.bf16.gmra.mrb[0].mxu0 %v1158
      %v1473 = vpop.f32.mrb[0].mxu0
      %v1474 = vadd.f32 0.0, %v1473
      %v1475 = vpop.f32.mrb[0].mxu0
      %v1476 = vpop.f32.mrb[0].mxu0
      %v1477 = vadd.f32 0.0, %v1476
      %v1478 = vpop.f32.mrb[0].mxu0
      %1479 = vmatprep.mubr.bf16.mxu0 %v1163
      %1480 = vmatmul.mubr.bf16.gmra.mrb[0].mxu0 %v1162
      %v1481 = vpop.f32.mrb[0].mxu0
      %v1482 = vadd.f32 0.0, %v1481
      %v1483 = vpop.f32.mrb[0].mxu0
      %v1484 = vpop.f32.mrb[0].mxu0
      %v1485 = vadd.f32 0.0, %v1484
      %v1486 = vpop.f32.mrb[0].mxu0
      %1487 = vdwg.mxu0
      %1488 = vmatprep.subr.bf16.mxu0 0
      %1489 = vmatpush1.bf16.msra.mxu0 %v1375
      %1490 = vmatprep.subr.bf16.mxu0 0
      %1491 = vmatpush1.bf16.msra.mxu0 %v1376
      %1492 = vmatprep.subr.bf16.mxu0 0
      %1493 = vmatpush1.bf16.msra.mxu0 %v1377
      %1494 = vmatprep.subr.bf16.mxu0 0
      %1495 = vmatpush1.bf16.msra.mxu0 %v1378
      %1496 = vmatprep.subr.bf16.mxu0 0
      %1497 = vmatpush1.bf16.msra.mxu0 %v1379
      %1498 = vmatprep.subr.bf16.mxu0 0
      %1499 = vmatpush1.bf16.msra.mxu0 %v1380
      %1500 = vmatprep.subr.bf16.mxu0 0
      %1501 = vmatpush1.bf16.msra.mxu0 %v1381
      %1502 = vmatprep.subr.bf16.mxu0 0
      %1503 = vmatpush1.bf16.msra.mxu0 %v1382
      %1504 = vmatprep.subr.bf16.mxu0 0
      %1505 = vmatpush1.bf16.msra.mxu0 %v1383
      %1506 = vmatprep.subr.bf16.mxu0 0
      %1507 = vmatpush1.bf16.msra.mxu0 %v1384
      %1508 = vmatprep.subr.bf16.mxu0 0
      %1509 = vmatpush1.bf16.msra.mxu0 %v1385
      %1510 = vmatprep.subr.bf16.mxu0 0
      %1511 = vmatpush1.bf16.msra.mxu0 %v1386
      %1512 = vmatprep.subr.bf16.mxu0 0
      %1513 = vmatpush1.bf16.msra.mxu0 %v1387
      %1514 = vmatprep.subr.bf16.mxu0 0
      %1515 = vmatpush1.bf16.msra.mxu0 %v1388
      %1516 = vmatprep.subr.bf16.mxu0 0
      %1517 = vmatpush1.bf16.msra.mxu0 %v1389
      %1518 = vmatprep.subr.bf16.mxu0 0
      %1519 = vmatpush1.bf16.msra.mxu0 %v1390
      %1520 = vmatprep.mubr.bf16.mxu0 %v1153
      %1521 = vmatmul.mubr.bf16.gmra.mrb[0].mxu0 %v1152
      %v1522 = vpop.f32.mrb[0].mxu0
      %v1523 = vadd.f32 %v1458, %v1522
      %v1524 = vpop.f32.mrb[0].mxu0
      %v1525 = vpop.f32.mrb[0].mxu0
      %v1526 = vadd.f32 %v1461, %v1525
      %v1527 = vpop.f32.mrb[0].mxu0
      %1528 = vmatprep.mubr.bf16.mxu0 %v1157
      %1529 = vmatmul.mubr.bf16.gmra.mrb[0].mxu0 %v1156
      %v1530 = vpop.f32.mrb[0].mxu0
      %v1531 = vadd.f32 %v1466, %v1530
      %v1532 = vpop.f32.mrb[0].mxu0
      %v1533 = vpop.f32.mrb[0].mxu0
      %v1534 = vadd.f32 %v1469, %v1533
      %v1535 = vpop.f32.mrb[0].mxu0
      %1536 = vmatprep.mubr.bf16.mxu0 %v1161
      %1537 = vmatmul.mubr.bf16.gmra.mrb[0].mxu0 %v1160
      %v1538 = vpop.f32.mrb[0].mxu0
      %v1539 = vadd.f32 %v1474, %v1538
      %v1540 = vpop.f32.mrb[0].mxu0
      %v1541 = vpop.f32.mrb[0].mxu0
      %v1542 = vadd.f32 %v1477, %v1541
      %v1543 = vpop.f32.mrb[0].mxu0
      %1544 = vmatprep.mubr.bf16.mxu0 %v1165
      %1545 = vmatmul.mubr.bf16.gmra.mrb[0].mxu0 %v1164
      %v1546 = vpop.f32.mrb[0].mxu0
      %v1547 = vadd.f32 %v1482, %v1546
      %v1548 = vpop.f32.mrb[0].mxu0
      %v1549 = vpop.f32.mrb[0].mxu0
      %v1550 = vadd.f32 %v1485, %v1549
      %v1551 = vpop.f32.mrb[0].mxu0
      %1552 = vdwg.mxu0
      %v1617 = vunpack.c.l.b16 %v899
      %v1618 = vunpack.c.l.b16 %v900
      %v1619 = vunpack.c.l.b16 %v901
      %v1620 = vunpack.c.l.b16 %v902
      %v1621 = vunpack.c.l.b16 %v903
      %v1622 = vunpack.c.l.b16 %v904
      %v1623 = vunpack.c.l.b16 %v905
      %v1624 = vunpack.c.l.b16 %v906
      %v1625 = vunpack.c.l.b16 %v907
      %v1626 = vunpack.c.l.b16 %v908
      %v1627 = vunpack.c.l.b16 %v909
      %v1628 = vunpack.c.l.b16 %v910
      %v1629 = vunpack.c.l.b16 %v911
      %v1630 = vunpack.c.l.b16 %v912
      %v1631 = vunpack.c.l.b16 %v913
      %v1632 = vunpack.c.l.b16 %v914
      %v1633 = vunpack.c.l.b16 %v915
      %v1634 = vunpack.c.l.b16 %v916
      %v1635 = vunpack.c.l.b16 %v917
      %v1636 = vunpack.c.l.b16 %v918
      %v1637 = vunpack.c.l.b16 %v919
      %v1638 = vunpack.c.l.b16 %v920
      %v1639 = vunpack.c.l.b16 %v921
      %v1640 = vunpack.c.l.b16 %v922
      %v1641 = vunpack.c.l.b16 %v923
      %v1642 = vunpack.c.l.b16 %v924
      %v1643 = vunpack.c.l.b16 %v925
      %v1644 = vunpack.c.l.b16 %v926
      %v1645 = vunpack.c.l.b16 %v927
      %v1646 = vunpack.c.l.b16 %v928
      %v1647 = vunpack.c.l.b16 %v929
      %v1648 = vunpack.c.l.b16 %v930
      %v1649 = vunpack.c.l.b16 %v931
      %v1650 = vunpack.c.l.b16 %v932
      %v1651 = vunpack.c.l.b16 %v933
      %v1652 = vunpack.c.l.b16 %v934
      %v1653 = vunpack.c.l.b16 %v935
      %v1654 = vunpack.c.l.b16 %v936
      %v1655 = vunpack.c.l.b16 %v937
      %v1656 = vunpack.c.l.b16 %v938
      %v1657 = vunpack.c.l.b16 %v939
      %v1658 = vunpack.c.l.b16 %v940
      %v1659 = vunpack.c.l.b16 %v941
      %v1660 = vunpack.c.l.b16 %v942
      %v1661 = vunpack.c.l.b16 %v943
      %v1662 = vunpack.c.l.b16 %v944
      %v1663 = vunpack.c.l.b16 %v945
      %v1664 = vunpack.c.l.b16 %v946
      %v1665 = vunpack.c.l.b16 %v947
      %v1666 = vunpack.c.l.b16 %v948
      %v1667 = vunpack.c.l.b16 %v949
      %v1668 = vunpack.c.l.b16 %v950
      %v1669 = vunpack.c.l.b16 %v951
      %v1670 = vunpack.c.l.b16 %v952
      %v1671 = vunpack.c.l.b16 %v953
      %v1672 = vunpack.c.l.b16 %v954
      %v1673 = vunpack.c.l.b16 %v955
      %v1674 = vunpack.c.l.b16 %v956
      %v1675 = vunpack.c.l.b16 %v957
      %v1676 = vunpack.c.l.b16 %v958
      %v1677 = vunpack.c.l.b16 %v959
      %v1678 = vunpack.c.l.b16 %v960
      %v1679 = vunpack.c.l.b16 %v961
      %v1680 = vunpack.c.l.b16 %v962
      %v1681 = vpack.c.b16 %v1618, %v1617
      %v1682 = vpack.c.b16 %v1620, %v1619
      %v1683 = vpack.c.b16 %v1622, %v1621
      %v1684 = vpack.c.b16 %v1624, %v1623
      %v1685 = vpack.c.b16 %v1626, %v1625
      %v1686 = vpack.c.b16 %v1628, %v1627
      %v1687 = vpack.c.b16 %v1630, %v1629
      %v1688 = vpack.c.b16 %v1632, %v1631
      %v1689 = vpack.c.b16 %v1634, %v1633
      %v1690 = vpack.c.b16 %v1636, %v1635
      %v1691 = vpack.c.b16 %v1638, %v1637
      %v1692 = vpack.c.b16 %v1640, %v1639
      %v1693 = vpack.c.b16 %v1642, %v1641
      %v1694 = vpack.c.b16 %v1644, %v1643
      %v1695 = vpack.c.b16 %v1646, %v1645
      %v1696 = vpack.c.b16 %v1648, %v1647
      %v1697 = vpack.c.b16 %v1650, %v1649
      %v1698 = vpack.c.b16 %v1652, %v1651
      %v1699 = vpack.c.b16 %v1654, %v1653
      %v1700 = vpack.c.b16 %v1656, %v1655
      %v1701 = vpack.c.b16 %v1658, %v1657
      %v1702 = vpack.c.b16 %v1660, %v1659
      %v1703 = vpack.c.b16 %v1662, %v1661
      %v1704 = vpack.c.b16 %v1664, %v1663
      %v1705 = vpack.c.b16 %v1666, %v1665
      %v1706 = vpack.c.b16 %v1668, %v1667
      %v1707 = vpack.c.b16 %v1670, %v1669
      %v1708 = vpack.c.b16 %v1672, %v1671
      %v1709 = vpack.c.b16 %v1674, %v1673
      %v1710 = vpack.c.b16 %v1676, %v1675
      %v1711 = vpack.c.b16 %v1678, %v1677
      %v1712 = vpack.c.b16 %v1680, %v1679
      %1745 = vmatprep.subr.bf16.mxu0 0
      %1746 = vmatpush1.bf16.msra.mxu0 %v1681
      %1747 = vmatprep.subr.bf16.mxu0 0
      %1748 = vmatpush1.bf16.msra.mxu0 %v1682
      %1749 = vmatprep.subr.bf16.mxu0 0
      %1750 = vmatpush1.bf16.msra.mxu0 %v1683
      %1751 = vmatprep.subr.bf16.mxu0 0
      %1752 = vmatpush1.bf16.msra.mxu0 %v1684
      %1753 = vmatprep.subr.bf16.mxu0 0
      %1754 = vmatpush1.bf16.msra.mxu0 %v1685
      %1755 = vmatprep.subr.bf16.mxu0 0
      %1756 = vmatpush1.bf16.msra.mxu0 %v1686
      %1757 = vmatprep.subr.bf16.mxu0 0
      %1758 = vmatpush1.bf16.msra.mxu0 %v1687
      %1759 = vmatprep.subr.bf16.mxu0 0
      %1760 = vmatpush1.bf16.msra.mxu0 %v1688
      %1761 = vmatprep.subr.bf16.mxu0 0
      %1762 = vmatpush1.bf16.msra.mxu0 %v1689
      %1763 = vmatprep.subr.bf16.mxu0 0
      %1764 = vmatpush1.bf16.msra.mxu0 %v1690
      %1765 = vmatprep.subr.bf16.mxu0 0
      %1766 = vmatpush1.bf16.msra.mxu0 %v1691
      %1767 = vmatprep.subr.bf16.mxu0 0
      %1768 = vmatpush1.bf16.msra.mxu0 %v1692
      %1769 = vmatprep.subr.bf16.mxu0 0
      %1770 = vmatpush1.bf16.msra.mxu0 %v1693
      %1771 = vmatprep.subr.bf16.mxu0 0
      %1772 = vmatpush1.bf16.msra.mxu0 %v1694
      %1773 = vmatprep.subr.bf16.mxu0 0
      %1774 = vmatpush1.bf16.msra.mxu0 %v1695
      %1775 = vmatprep.subr.bf16.mxu0 0
      %1776 = vmatpush1.bf16.msra.mxu0 %v1696
      %1777 = vmatprep.mubr.bf16.mxu0 %v884
      %1778 = vmatmul.mubr.bf16.gmra.mrb[0].mxu0 %v883
      %v1779 = vpop.f32.mrb[0].mxu0
      %v1780 = vadd.f32 %v1523, %v1779
      %v1781 = vpop.f32.mrb[0].mxu0
      %v1782 = vpop.f32.mrb[0].mxu0
      %v1783 = vadd.f32 %v1526, %v1782
      %v1784 = vpop.f32.mrb[0].mxu0
      %1785 = vmatprep.mubr.bf16.mxu0 %v888
      %1786 = vmatmul.mubr.bf16.gmra.mrb[0].mxu0 %v887
      %v1787 = vpop.f32.mrb[0].mxu0
      %v1788 = vadd.f32 %v1531, %v1787
      %v1789 = vpop.f32.mrb[0].mxu0
      %v1790 = vpop.f32.mrb[0].mxu0
      %v1791 = vadd.f32 %v1534, %v1790
      %v1792 = vpop.f32.mrb[0].mxu0
      %1793 = vmatprep.mubr.bf16.mxu0 %v892
      %1794 = vmatmul.mubr.bf16.gmra.mrb[0].mxu0 %v891
      %v1795 = vpop.f32.mrb[0].mxu0
      %v1796 = vadd.f32 %v1539, %v1795
      %v1797 = vpop.f32.mrb[0].mxu0
      %v1798 = vpop.f32.mrb[0].mxu0
      %v1799 = vadd.f32 %v1542, %v1798
      %v1800 = vpop.f32.mrb[0].mxu0
      %1801 = vmatprep.mubr.bf16.mxu0 %v896
      %1802 = vmatmul.mubr.bf16.gmra.mrb[0].mxu0 %v895
      %v1803 = vpop.f32.mrb[0].mxu0
      %v1804 = vadd.f32 %v1547, %v1803
      %v1805 = vpop.f32.mrb[0].mxu0
      %v1806 = vpop.f32.mrb[0].mxu0
      %v1807 = vadd.f32 %v1550, %v1806
      %v1808 = vpop.f32.mrb[0].mxu0
      %1809 = vdwg.mxu0
      %1810 = vmatprep.subr.bf16.mxu0 0
      %1811 = vmatpush1.bf16.msra.mxu0 %v1697
      %1812 = vmatprep.subr.bf16.mxu0 0
      %1813 = vmatpush1.bf16.msra.mxu0 %v1698
      %1814 = vmatprep.subr.bf16.mxu0 0
      %1815 = vmatpush1.bf16.msra.mxu0 %v1699
      %1816 = vmatprep.subr.bf16.mxu0 0
      %1817 = vmatpush1.bf16.msra.mxu0 %v1700
      %1818 = vmatprep.subr.bf16.mxu0 0
      %1819 = vmatpush1.bf16.msra.mxu0 %v1701
      %1820 = vmatprep.subr.bf16.mxu0 0
      %1821 = vmatpush1.bf16.msra.mxu0 %v1702
      %1822 = vmatprep.subr.bf16.mxu0 0
      %1823 = vmatpush1.bf16.msra.mxu0 %v1703
      %1824 = vmatprep.subr.bf16.mxu0 0
      %1825 = vmatpush1.bf16.msra.mxu0 %v1704
      %1826 = vmatprep.subr.bf16.mxu0 0
      %1827 = vmatpush1.bf16.msra.mxu0 %v1705
      %1828 = vmatprep.subr.bf16.mxu0 0
      %1829 = vmatpush1.bf16.msra.mxu0 %v1706
      %1830 = vmatprep.subr.bf16.mxu0 0
      %1831 = vmatpush1.bf16.msra.mxu0 %v1707
      %1832 = vmatprep.subr.bf16.mxu0 0
      %1833 = vmatpush1.bf16.msra.mxu0 %v1708
      %1834 = vmatprep.subr.bf16.mxu0 0
      %1835 = vmatpush1.bf16.msra.mxu0 %v1709
      %1836 = vmatprep.subr.bf16.mxu0 0
      %1837 = vmatpush1.bf16.msra.mxu0 %v1710
      %1838 = vmatprep.subr.bf16.mxu0 0
      %1839 = vmatpush1.bf16.msra.mxu0 %v1711
      %1840 = vmatprep.subr.bf16.mxu0 0
      %1841 = vmatpush1.bf16.msra.mxu0 %v1712
      %1842 = vmatprep.mubr.bf16.mxu0 %v886
      %1843 = vmatmul.mubr.bf16.gmra.mrb[0].mxu0 %v885
      %v1844 = vpop.f32.mrb[0].mxu0
      %v1845 = vadd.f32 %v1780, %v1844
      %v1846 = vpop.f32.mrb[0].mxu0
      %v1847 = vpop.f32.mrb[0].mxu0
      %v1848 = vadd.f32 %v1783, %v1847
      %v1849 = vpop.f32.mrb[0].mxu0
      %1850 = vmatprep.mubr.bf16.mxu0 %v890
      %1851 = vmatmul.mubr.bf16.gmra.mrb[0].mxu0 %v889
      %v1852 = vpop.f32.mrb[0].mxu0
      %v1853 = vadd.f32 %v1788, %v1852
      %v1854 = vpop.f32.mrb[0].mxu0
      %v1855 = vpop.f32.mrb[0].mxu0
      %v1856 = vadd.f32 %v1791, %v1855
      %v1857 = vpop.f32.mrb[0].mxu0
      %1858 = vmatprep.mubr.bf16.mxu0 %v894
      %1859 = vmatmul.mubr.bf16.gmra.mrb[0].mxu0 %v893
      %v1860 = vpop.f32.mrb[0].mxu0
      %v1861 = vadd.f32 %v1796, %v1860
      %v1862 = vpop.f32.mrb[0].mxu0
      %v1863 = vpop.f32.mrb[0].mxu0
      %v1864 = vadd.f32 %v1799, %v1863
      %v1865 = vpop.f32.mrb[0].mxu0
      %1866 = vmatprep.mubr.bf16.mxu0 %v898
      %1867 = vmatmul.mubr.bf16.gmra.mrb[0].mxu0 %v897
      %v1868 = vpop.f32.mrb[0].mxu0
      %v1869 = vadd.f32 %v1804, %v1868
      %v1870 = vpop.f32.mrb[0].mxu0
      %v1871 = vpop.f32.mrb[0].mxu0
      %v1872 = vadd.f32 %v1807, %v1871
      %v1873 = vpop.f32.mrb[0].mxu0
      %1874 = vdwg.mxu0
      %s1875 = scalar_lea.vmem %s1, 64
      %v1876 = vld [vmem:[%s1875] sm:$0xf]
      %v1877 = vld [vmem:[%s1875 + $0x4] sm:$0xf]
      %v1878 = vld [vmem:[%s1875 + $0x8] sm:$0xf]
      %v1879 = vld [vmem:[%s1875 + $0xc] sm:$0xf]
      %v1880 = vld [vmem:[%s1875 + $0x10] sm:$0xf]
      %v1881 = vld [vmem:[%s1875 + $0x14] sm:$0xf]
      %v1882 = vld [vmem:[%s1875 + $0x18] sm:$0xf]
      %v1883 = vld [vmem:[%s1875 + $0x1c] sm:$0xf]
      %v1892 = vunpack.c.l.b16 %v1876
      %v1893 = vunpack.c.l.b16 %v1877
      %v1894 = vunpack.c.l.b16 %v1878
      %v1895 = vunpack.c.l.b16 %v1879
      %v1896 = vunpack.c.l.b16 %v1880
      %v1897 = vunpack.c.l.b16 %v1881
      %v1898 = vunpack.c.l.b16 %v1882
      %v1899 = vunpack.c.l.b16 %v1883
      %v1900 = vpack.c.b16 %v1893, %v1892
      %v1901 = vpack.c.b16 %v1895, %v1894
      %v1902 = vpack.c.b16 %v1897, %v1896
      %v1903 = vpack.c.b16 %v1899, %v1898
      %v1905 = vsel %vm724, %v1900, 0
      %v1908 = vsel %vm724, %v1901, 0
      %v1911 = vsel %vm724, %v1902, 0
      %v1914 = vsel %vm724, %v1903, 0
      %1916 = vmatprep.subr.bf16.mxu0 %v693
      %1917 = vmatpush1.bf16.msra.mxu0 %v692
      %1918 = vmatprep.subr.bf16.mxu0 %v697
      %1919 = vmatpush1.bf16.msra.mxu0 %v696
      %1920 = vmatprep.subr.bf16.mxu0 %v701
      %1921 = vmatpush1.bf16.msra.mxu0 %v700
      %1922 = vmatprep.subr.bf16.mxu0 %v705
      %1923 = vmatpush1.bf16.msra.mxu0 %v704
      %1924 = vmatprep.subr.bf16.mxu0 0
      %1925 = vmatpush1.bf16.msra.mxu0 0
      %1926 = vmatprep.subr.bf16.mxu0 0
      %1927 = vmatpush1.bf16.msra.mxu0 0
      %1928 = vmatprep.subr.bf16.mxu0 0
      %1929 = vmatpush1.bf16.msra.mxu0 0
      %1930 = vmatprep.subr.bf16.mxu0 0
      %1931 = vmatpush1.bf16.msra.mxu0 0
      %1932 = vmatprep.subr.bf16.mxu0 0
      %1933 = vmatpush1.bf16.msra.mxu0 0
      %1934 = vmatprep.subr.bf16.mxu0 0
      %1935 = vmatpush1.bf16.msra.mxu0 0
      %1936 = vmatprep.subr.bf16.mxu0 0
      %1937 = vmatpush1.bf16.msra.mxu0 0
      %1938 = vmatprep.subr.bf16.mxu0 0
      %1939 = vmatpush1.bf16.msra.mxu0 0
      %1940 = vmatprep.subr.bf16.mxu0 0
      %1941 = vmatpush1.bf16.msra.mxu0 0
      %1942 = vmatprep.subr.bf16.mxu0 0
      %1943 = vmatpush1.bf16.msra.mxu0 0
      %1944 = vmatprep.subr.bf16.mxu0 0
      %1945 = vmatpush1.bf16.msra.mxu0 0
      %1946 = vmatprep.subr.bf16.mxu0 0
      %1947 = vmatpush1.bf16.msra.mxu0 0
      %1948 = vmatprep.mubr.bf16.mxu0 0
      %1949 = vmatmul.mubr.bf16.gmra.mrb[0].mxu0 %v1905
      %v1950 = vpop.f32.mrb[0].mxu0
      %v1951 = vadd.f32 0.0, %v1950
      %v1952 = vpop.f32.mrb[0].mxu0
      %v1953 = vadd.f32 0.0, %v1952
      %v1954 = vpop.f32.mrb[0].mxu0
      %v1955 = vadd.f32 0.0, %v1954
      %v1956 = vpop.f32.mrb[0].mxu0
      %v1957 = vadd.f32 0.0, %v1956
      %1958 = vmatprep.mubr.bf16.mxu0 0
      %1959 = vmatmul.mubr.bf16.gmra.mrb[0].mxu0 %v1908
      %v1960 = vpop.f32.mrb[0].mxu0
      %v1961 = vadd.f32 0.0, %v1960
      %v1962 = vpop.f32.mrb[0].mxu0
      %v1963 = vadd.f32 0.0, %v1962
      %v1964 = vpop.f32.mrb[0].mxu0
      %v1965 = vadd.f32 0.0, %v1964
      %v1966 = vpop.f32.mrb[0].mxu0
      %v1967 = vadd.f32 0.0, %v1966
      %1968 = vmatprep.mubr.bf16.mxu0 0
      %1969 = vmatmul.mubr.bf16.gmra.mrb[0].mxu0 %v1911
      %v1970 = vpop.f32.mrb[0].mxu0
      %v1971 = vadd.f32 0.0, %v1970
      %v1972 = vpop.f32.mrb[0].mxu0
      %v1973 = vadd.f32 0.0, %v1972
      %v1974 = vpop.f32.mrb[0].mxu0
      %v1975 = vadd.f32 0.0, %v1974
      %v1976 = vpop.f32.mrb[0].mxu0
      %v1977 = vadd.f32 0.0, %v1976
      %1978 = vmatprep.mubr.bf16.mxu0 0
      %1979 = vmatmul.mubr.bf16.gmra.mrb[0].mxu0 %v1914
      %v1980 = vpop.f32.mrb[0].mxu0
      %v1981 = vadd.f32 0.0, %v1980
      %v1982 = vpop.f32.mrb[0].mxu0
      %v1983 = vadd.f32 0.0, %v1982
      %v1984 = vpop.f32.mrb[0].mxu0
      %v1985 = vadd.f32 0.0, %v1984
      %v1986 = vpop.f32.mrb[0].mxu0
      %v1987 = vadd.f32 0.0, %v1986
      %1988 = vdwg.mxu0
      %1989 = vmatprep.subr.bf16.mxu0 %v695
      %1990 = vmatpush1.bf16.msra.mxu0 %v694
      %1991 = vmatprep.subr.bf16.mxu0 %v699
      %1992 = vmatpush1.bf16.msra.mxu0 %v698
      %1993 = vmatprep.subr.bf16.mxu0 %v703
      %1994 = vmatpush1.bf16.msra.mxu0 %v702
      %1995 = vmatprep.subr.bf16.mxu0 %v707
      %1996 = vmatpush1.bf16.msra.mxu0 %v706
      %1997 = vmatprep.subr.bf16.mxu0 0
      %1998 = vmatpush1.bf16.msra.mxu0 0
      %1999 = vmatprep.subr.bf16.mxu0 0
      %2000 = vmatpush1.bf16.msra.mxu0 0
      %2001 = vmatprep.subr.bf16.mxu0 0
      %2002 = vmatpush1.bf16.msra.mxu0 0
      %2003 = vmatprep.subr.bf16.mxu0 0
      %2004 = vmatpush1.bf16.msra.mxu0 0
      %2005 = vmatprep.subr.bf16.mxu0 0
      %2006 = vmatpush1.bf16.msra.mxu0 0
      %2007 = vmatprep.subr.bf16.mxu0 0
      %2008 = vmatpush1.bf16.msra.mxu0 0
      %2009 = vmatprep.subr.bf16.mxu0 0
      %2010 = vmatpush1.bf16.msra.mxu0 0
      %2011 = vmatprep.subr.bf16.mxu0 0
      %2012 = vmatpush1.bf16.msra.mxu0 0
      %2013 = vmatprep.subr.bf16.mxu0 0
      %2014 = vmatpush1.bf16.msra.mxu0 0
      %2015 = vmatprep.subr.bf16.mxu0 0
      %2016 = vmatpush1.bf16.msra.mxu0 0
      %2017 = vmatprep.subr.bf16.mxu0 0
      %2018 = vmatpush1.bf16.msra.mxu0 0
      %2019 = vmatprep.subr.bf16.mxu0 0
      %2020 = vmatpush1.bf16.msra.mxu0 0
      %2021 = vmatprep.mubr.bf16.mxu0 0
      %2022 = vmatmul.mubr.bf16.gmra.mrb[0].mxu0 %v1905
      %v2023 = vpop.f32.mrb[0].mxu0
      %v2024 = vadd.f32 0.0, %v2023
      %v2025 = vpop.f32.mrb[0].mxu0
      %v2026 = vadd.f32 0.0, %v2025
      %v2027 = vpop.f32.mrb[0].mxu0
      %v2028 = vadd.f32 0.0, %v2027
      %v2029 = vpop.f32.mrb[0].mxu0
      %v2030 = vadd.f32 0.0, %v2029
      %2031 = vmatprep.mubr.bf16.mxu0 0
      %2032 = vmatmul.mubr.bf16.gmra.mrb[0].mxu0 %v1908
      %v2033 = vpop.f32.mrb[0].mxu0
      %v2034 = vadd.f32 0.0, %v2033
      %v2035 = vpop.f32.mrb[0].mxu0
      %v2036 = vadd.f32 0.0, %v2035
      %v2037 = vpop.f32.mrb[0].mxu0
      %v2038 = vadd.f32 0.0, %v2037
      %v2039 = vpop.f32.mrb[0].mxu0
      %v2040 = vadd.f32 0.0, %v2039
      %2041 = vmatprep.mubr.bf16.mxu0 0
      %2042 = vmatmul.mubr.bf16.gmra.mrb[0].mxu0 %v1911
      %v2043 = vpop.f32.mrb[0].mxu0
      %v2044 = vadd.f32 0.0, %v2043
      %v2045 = vpop.f32.mrb[0].mxu0
      %v2046 = vadd.f32 0.0, %v2045
      %v2047 = vpop.f32.mrb[0].mxu0
      %v2048 = vadd.f32 0.0, %v2047
      %v2049 = vpop.f32.mrb[0].mxu0
      %v2050 = vadd.f32 0.0, %v2049
      %2051 = vmatprep.mubr.bf16.mxu0 0
      %2052 = vmatmul.mubr.bf16.gmra.mrb[0].mxu0 %v1914
      %v2053 = vpop.f32.mrb[0].mxu0
      %v2054 = vadd.f32 0.0, %v2053
      %v2055 = vpop.f32.mrb[0].mxu0
      %v2056 = vadd.f32 0.0, %v2055
      %v2057 = vpop.f32.mrb[0].mxu0
      %v2058 = vadd.f32 0.0, %v2057
      %v2059 = vpop.f32.mrb[0].mxu0
      %v2060 = vadd.f32 0.0, %v2059
      %2061 = vdwg.mxu0
      %v2062 = vpack.c.bf16 %v1955, %v1951
      %v2063 = vpack.c.bf16 %v1957, %v1953
      %v2064 = vpack.c.bf16 %v2028, %v2024
      %v2065 = vpack.c.bf16 %v2030, %v2026
      %v2066 = vpack.c.bf16 %v1965, %v1961
      %v2067 = vpack.c.bf16 %v1967, %v1963
      %v2068 = vpack.c.bf16 %v2038, %v2034
      %v2069 = vpack.c.bf16 %v2040, %v2036
      %v2070 = vpack.c.bf16 %v1975, %v1971
      %v2071 = vpack.c.bf16 %v1977, %v1973
      %v2072 = vpack.c.bf16 %v2048, %v2044
      %v2073 = vpack.c.bf16 %v2050, %v2046
      %v2074 = vpack.c.bf16 %v1985, %v1981
      %v2075 = vpack.c.bf16 %v1987, %v1983
      %v2076 = vpack.c.bf16 %v2058, %v2054
      %v2077 = vpack.c.bf16 %v2060, %v2056
      %s2078 = scalar_lea.vmem %s4, 512
      %v2079 = vld [vmem:[%s2078] sm:$0xf]
      %v2080 = vld [vmem:[%s2078 + $0x4] sm:$0xf]
      %v2081 = vld [vmem:[%s2078 + $0x8] sm:$0xf]
      %v2082 = vld [vmem:[%s2078 + $0xc] sm:$0xf]
      %v2083 = vld [vmem:[%s2078 + $0x10] sm:$0xf]
      %v2084 = vld [vmem:[%s2078 + $0x14] sm:$0xf]
      %v2085 = vld [vmem:[%s2078 + $0x18] sm:$0xf]
      %v2086 = vld [vmem:[%s2078 + $0x1c] sm:$0xf]
      %v2087 = vld [vmem:[%s2078 + $0x20] sm:$0xf]
      %v2088 = vld [vmem:[%s2078 + $0x24] sm:$0xf]
      %v2089 = vld [vmem:[%s2078 + $0x28] sm:$0xf]
      %v2090 = vld [vmem:[%s2078 + $0x2c] sm:$0xf]
      %v2091 = vld [vmem:[%s2078 + $0x30] sm:$0xf]
      %v2092 = vld [vmem:[%s2078 + $0x34] sm:$0xf]
      %v2093 = vld [vmem:[%s2078 + $0x38] sm:$0xf]
      %v2094 = vld [vmem:[%s2078 + $0x3c] sm:$0xf]
      %v2095 = vld [vmem:[%s2078 + $0x40] sm:$0xf]
      %v2096 = vld [vmem:[%s2078 + $0x44] sm:$0xf]
      %v2097 = vld [vmem:[%s2078 + $0x48] sm:$0xf]
      %v2098 = vld [vmem:[%s2078 + $0x4c] sm:$0xf]
      %v2099 = vld [vmem:[%s2078 + $0x50] sm:$0xf]
      %v2100 = vld [vmem:[%s2078 + $0x54] sm:$0xf]
      %v2101 = vld [vmem:[%s2078 + $0x58] sm:$0xf]
      %v2102 = vld [vmem:[%s2078 + $0x5c] sm:$0xf]
      %v2103 = vld [vmem:[%s2078 + $0x60] sm:$0xf]
      %v2104 = vld [vmem:[%s2078 + $0x64] sm:$0xf]
      %v2105 = vld [vmem:[%s2078 + $0x68] sm:$0xf]
      %v2106 = vld [vmem:[%s2078 + $0x6c] sm:$0xf]
      %v2107 = vld [vmem:[%s2078 + $0x70] sm:$0xf]
      %v2108 = vld [vmem:[%s2078 + $0x74] sm:$0xf]
      %v2109 = vld [vmem:[%s2078 + $0x78] sm:$0xf]
      %v2110 = vld [vmem:[%s2078 + $0x7c] sm:$0xf]
      %v2111 = vld [vmem:[%s2078 + $0x80] sm:$0xf]
      %v2112 = vld [vmem:[%s2078 + $0x84] sm:$0xf]
      %v2113 = vld [vmem:[%s2078 + $0x88] sm:$0xf]
      %v2114 = vld [vmem:[%s2078 + $0x8c] sm:$0xf]
      %v2115 = vld [vmem:[%s2078 + $0x90] sm:$0xf]
      %v2116 = vld [vmem:[%s2078 + $0x94] sm:$0xf]
      %v2117 = vld [vmem:[%s2078 + $0x98] sm:$0xf]
      %v2118 = vld [vmem:[%s2078 + $0x9c] sm:$0xf]
      %v2119 = vld [vmem:[%s2078 + $0xa0] sm:$0xf]
      %v2120 = vld [vmem:[%s2078 + $0xa4] sm:$0xf]
      %v2121 = vld [vmem:[%s2078 + $0xa8] sm:$0xf]
      %v2122 = vld [vmem:[%s2078 + $0xac] sm:$0xf]
      %v2123 = vld [vmem:[%s2078 + $0xb0] sm:$0xf]
      %v2124 = vld [vmem:[%s2078 + $0xb4] sm:$0xf]
      %v2125 = vld [vmem:[%s2078 + $0xb8] sm:$0xf]
      %v2126 = vld [vmem:[%s2078 + $0xbc] sm:$0xf]
      %v2127 = vld [vmem:[%s2078 + $0xc0] sm:$0xf]
      %v2128 = vld [vmem:[%s2078 + $0xc4] sm:$0xf]
      %v2129 = vld [vmem:[%s2078 + $0xc8] sm:$0xf]
      %v2130 = vld [vmem:[%s2078 + $0xcc] sm:$0xf]
      %v2131 = vld [vmem:[%s2078 + $0xd0] sm:$0xf]
      %v2132 = vld [vmem:[%s2078 + $0xd4] sm:$0xf]
      %v2133 = vld [vmem:[%s2078 + $0xd8] sm:$0xf]
      %v2134 = vld [vmem:[%s2078 + $0xdc] sm:$0xf]
      %v2135 = vld [vmem:[%s2078 + $0xe0] sm:$0xf]
      %v2136 = vld [vmem:[%s2078 + $0xe4] sm:$0xf]
      %v2137 = vld [vmem:[%s2078 + $0xe8] sm:$0xf]
      %v2138 = vld [vmem:[%s2078 + $0xec] sm:$0xf]
      %v2139 = vld [vmem:[%s2078 + $0xf0] sm:$0xf]
      %v2140 = vld [vmem:[%s2078 + $0xf4] sm:$0xf]
      %v2141 = vld [vmem:[%s2078 + $0xf8] sm:$0xf]
      %v2142 = vld [vmem:[%s2078 + $0xfc] sm:$0xf]
      %v2207 = vunpack.c.l.b16 %v2079
      %v2208 = vunpack.c.l.b16 %v2080
      %v2209 = vunpack.c.l.b16 %v2081
      %v2210 = vunpack.c.l.b16 %v2082
      %v2211 = vunpack.c.l.b16 %v2083
      %v2212 = vunpack.c.l.b16 %v2084
      %v2213 = vunpack.c.l.b16 %v2085
      %v2214 = vunpack.c.l.b16 %v2086
      %v2215 = vunpack.c.l.b16 %v2087
      %v2216 = vunpack.c.l.b16 %v2088
      %v2217 = vunpack.c.l.b16 %v2089
      %v2218 = vunpack.c.l.b16 %v2090
      %v2219 = vunpack.c.l.b16 %v2091
      %v2220 = vunpack.c.l.b16 %v2092
      %v2221 = vunpack.c.l.b16 %v2093
      %v2222 = vunpack.c.l.b16 %v2094
      %v2223 = vunpack.c.l.b16 %v2095
      %v2224 = vunpack.c.l.b16 %v2096
      %v2225 = vunpack.c.l.b16 %v2097
      %v2226 = vunpack.c.l.b16 %v2098
      %v2227 = vunpack.c.l.b16 %v2099
      %v2228 = vunpack.c.l.b16 %v2100
      %v2229 = vunpack.c.l.b16 %v2101
      %v2230 = vunpack.c.l.b16 %v2102
      %v2231 = vunpack.c.l.b16 %v2103
      %v2232 = vunpack.c.l.b16 %v2104
      %v2233 = vunpack.c.l.b16 %v2105
      %v2234 = vunpack.c.l.b16 %v2106
      %v2235 = vunpack.c.l.b16 %v2107
      %v2236 = vunpack.c.l.b16 %v2108
      %v2237 = vunpack.c.l.b16 %v2109
      %v2238 = vunpack.c.l.b16 %v2110
      %v2239 = vunpack.c.l.b16 %v2111
      %v2240 = vunpack.c.l.b16 %v2112
      %v2241 = vunpack.c.l.b16 %v2113
      %v2242 = vunpack.c.l.b16 %v2114
      %v2243 = vunpack.c.l.b16 %v2115
      %v2244 = vunpack.c.l.b16 %v2116
      %v2245 = vunpack.c.l.b16 %v2117
      %v2246 = vunpack.c.l.b16 %v2118
      %v2247 = vunpack.c.l.b16 %v2119
      %v2248 = vunpack.c.l.b16 %v2120
      %v2249 = vunpack.c.l.b16 %v2121
      %v2250 = vunpack.c.l.b16 %v2122
      %v2251 = vunpack.c.l.b16 %v2123
      %v2252 = vunpack.c.l.b16 %v2124
      %v2253 = vunpack.c.l.b16 %v2125
      %v2254 = vunpack.c.l.b16 %v2126
      %v2255 = vunpack.c.l.b16 %v2127
      %v2256 = vunpack.c.l.b16 %v2128
      %v2257 = vunpack.c.l.b16 %v2129
      %v2258 = vunpack.c.l.b16 %v2130
      %v2259 = vunpack.c.l.b16 %v2131
      %v2260 = vunpack.c.l.b16 %v2132
      %v2261 = vunpack.c.l.b16 %v2133
      %v2262 = vunpack.c.l.b16 %v2134
      %v2263 = vunpack.c.l.b16 %v2135
      %v2264 = vunpack.c.l.b16 %v2136
      %v2265 = vunpack.c.l.b16 %v2137
      %v2266 = vunpack.c.l.b16 %v2138
      %v2267 = vunpack.c.l.b16 %v2139
      %v2268 = vunpack.c.l.b16 %v2140
      %v2269 = vunpack.c.l.b16 %v2141
      %v2270 = vunpack.c.l.b16 %v2142
      %v2271 = vpack.c.b16 %v2208, %v2207
      %v2272 = vpack.c.b16 %v2210, %v2209
      %v2273 = vpack.c.b16 %v2212, %v2211
      %v2274 = vpack.c.b16 %v2214, %v2213
      %v2275 = vpack.c.b16 %v2216, %v2215
      %v2276 = vpack.c.b16 %v2218, %v2217
      %v2277 = vpack.c.b16 %v2220, %v2219
      %v2278 = vpack.c.b16 %v2222, %v2221
      %v2279 = vpack.c.b16 %v2224, %v2223
      %v2280 = vpack.c.b16 %v2226, %v2225
      %v2281 = vpack.c.b16 %v2228, %v2227
      %v2282 = vpack.c.b16 %v2230, %v2229
      %v2283 = vpack.c.b16 %v2232, %v2231
      %v2284 = vpack.c.b16 %v2234, %v2233
      %v2285 = vpack.c.b16 %v2236, %v2235
      %v2286 = vpack.c.b16 %v2238, %v2237
      %v2287 = vpack.c.b16 %v2240, %v2239
      %v2288 = vpack.c.b16 %v2242, %v2241
      %v2289 = vpack.c.b16 %v2244, %v2243
      %v2290 = vpack.c.b16 %v2246, %v2245
      %v2291 = vpack.c.b16 %v2248, %v2247
      %v2292 = vpack.c.b16 %v2250, %v2249
      %v2293 = vpack.c.b16 %v2252, %v2251
      %v2294 = vpack.c.b16 %v2254, %v2253
      %v2295 = vpack.c.b16 %v2256, %v2255
      %v2296 = vpack.c.b16 %v2258, %v2257
      %v2297 = vpack.c.b16 %v2260, %v2259
      %v2298 = vpack.c.b16 %v2262, %v2261
      %v2299 = vpack.c.b16 %v2264, %v2263
      %v2300 = vpack.c.b16 %v2266, %v2265
      %v2301 = vpack.c.b16 %v2268, %v2267
      %v2302 = vpack.c.b16 %v2270, %v2269
      %2335 = vmatprep.subr.bf16.mxu0 0
      %2336 = vmatpush1.bf16.msra.mxu0 %v2271
      %2337 = vmatprep.subr.bf16.mxu0 0
      %2338 = vmatpush1.bf16.msra.mxu0 %v2272
      %2339 = vmatprep.subr.bf16.mxu0 0
      %2340 = vmatpush1.bf16.msra.mxu0 %v2273
      %2341 = vmatprep.subr.bf16.mxu0 0
      %2342 = vmatpush1.bf16.msra.mxu0 %v2274
      %2343 = vmatprep.subr.bf16.mxu0 0
      %2344 = vmatpush1.bf16.msra.mxu0 %v2275
      %2345 = vmatprep.subr.bf16.mxu0 0
      %2346 = vmatpush1.bf16.msra.mxu0 %v2276
      %2347 = vmatprep.subr.bf16.mxu0 0
      %2348 = vmatpush1.bf16.msra.mxu0 %v2277
      %2349 = vmatprep.subr.bf16.mxu0 0
      %2350 = vmatpush1.bf16.msra.mxu0 %v2278
      %2351 = vmatprep.subr.bf16.mxu0 0
      %2352 = vmatpush1.bf16.msra.mxu0 %v2279
      %2353 = vmatprep.subr.bf16.mxu0 0
      %2354 = vmatpush1.bf16.msra.mxu0 %v2280
      %2355 = vmatprep.subr.bf16.mxu0 0
      %2356 = vmatpush1.bf16.msra.mxu0 %v2281
      %2357 = vmatprep.subr.bf16.mxu0 0
      %2358 = vmatpush1.bf16.msra.mxu0 %v2282
      %2359 = vmatprep.subr.bf16.mxu0 0
      %2360 = vmatpush1.bf16.msra.mxu0 %v2283
      %2361 = vmatprep.subr.bf16.mxu0 0
      %2362 = vmatpush1.bf16.msra.mxu0 %v2284
      %2363 = vmatprep.subr.bf16.mxu0 0
      %2364 = vmatpush1.bf16.msra.mxu0 %v2285
      %2365 = vmatprep.subr.bf16.mxu0 0
      %2366 = vmatpush1.bf16.msra.mxu0 %v2286
      %2367 = vmatprep.mubr.bf16.mxu0 %v2063
      %2368 = vmatmul.mubr.bf16.gmra.mrb[0].mxu0 %v2062
      %v2369 = vpop.f32.mrb[0].mxu0
      %v2370 = vadd.f32 0.0, %v2369
      %v2371 = vpop.f32.mrb[0].mxu0
      %v2372 = vpop.f32.mrb[0].mxu0
      %v2373 = vadd.f32 0.0, %v2372
      %v2374 = vpop.f32.mrb[0].mxu0
      %2375 = vmatprep.mubr.bf16.mxu0 %v2067
      %2376 = vmatmul.mubr.bf16.gmra.mrb[0].mxu0 %v2066
      %v2377 = vpop.f32.mrb[0].mxu0
      %v2378 = vadd.f32 0.0, %v2377
      %v2379 = vpop.f32.mrb[0].mxu0
      %v2380 = vpop.f32.mrb[0].mxu0
      %v2381 = vadd.f32 0.0, %v2380
      %v2382 = vpop.f32.mrb[0].mxu0
      %2383 = vmatprep.mubr.bf16.mxu0 %v2071
      %2384 = vmatmul.mubr.bf16.gmra.mrb[0].mxu0 %v2070
      %v2385 = vpop.f32.mrb[0].mxu0
      %v2386 = vadd.f32 0.0, %v2385
      %v2387 = vpop.f32.mrb[0].mxu0
      %v2388 = vpop.f32.mrb[0].mxu0
      %v2389 = vadd.f32 0.0, %v2388
      %v2390 = vpop.f32.mrb[0].mxu0
      %2391 = vmatprep.mubr.bf16.mxu0 %v2075
      %2392 = vmatmul.mubr.bf16.gmra.mrb[0].mxu0 %v2074
      %v2393 = vpop.f32.mrb[0].mxu0
      %v2394 = vadd.f32 0.0, %v2393
      %v2395 = vpop.f32.mrb[0].mxu0
      %v2396 = vpop.f32.mrb[0].mxu0
      %v2397 = vadd.f32 0.0, %v2396
      %v2398 = vpop.f32.mrb[0].mxu0
      %2399 = vdwg.mxu0
      %2400 = vmatprep.subr.bf16.mxu0 0
      %2401 = vmatpush1.bf16.msra.mxu0 %v2287
      %2402 = vmatprep.subr.bf16.mxu0 0
      %2403 = vmatpush1.bf16.msra.mxu0 %v2288
      %2404 = vmatprep.subr.bf16.mxu0 0
      %2405 = vmatpush1.bf16.msra.mxu0 %v2289
      %2406 = vmatprep.subr.bf16.mxu0 0
      %2407 = vmatpush1.bf16.msra.mxu0 %v2290
      %2408 = vmatprep.subr.bf16.mxu0 0
      %2409 = vmatpush1.bf16.msra.mxu0 %v2291
      %2410 = vmatprep.subr.bf16.mxu0 0
      %2411 = vmatpush1.bf16.msra.mxu0 %v2292
      %2412 = vmatprep.subr.bf16.mxu0 0
      %2413 = vmatpush1.bf16.msra.mxu0 %v2293
      %2414 = vmatprep.subr.bf16.mxu0 0
      %2415 = vmatpush1.bf16.msra.mxu0 %v2294
      %2416 = vmatprep.subr.bf16.mxu0 0
      %2417 = vmatpush1.bf16.msra.mxu0 %v2295
      %2418 = vmatprep.subr.bf16.mxu0 0
      %2419 = vmatpush1.bf16.msra.mxu0 %v2296
      %2420 = vmatprep.subr.bf16.mxu0 0
      %2421 = vmatpush1.bf16.msra.mxu0 %v2297
      %2422 = vmatprep.subr.bf16.mxu0 0
      %2423 = vmatpush1.bf16.msra.mxu0 %v2298
      %2424 = vmatprep.subr.bf16.mxu0 0
      %2425 = vmatpush1.bf16.msra.mxu0 %v2299
      %2426 = vmatprep.subr.bf16.mxu0 0
      %2427 = vmatpush1.bf16.msra.mxu0 %v2300
      %2428 = vmatprep.subr.bf16.mxu0 0
      %2429 = vmatpush1.bf16.msra.mxu0 %v2301
      %2430 = vmatprep.subr.bf16.mxu0 0
      %2431 = vmatpush1.bf16.msra.mxu0 %v2302
      %2432 = vmatprep.mubr.bf16.mxu0 %v2065
      %2433 = vmatmul.mubr.bf16.gmra.mrb[0].mxu0 %v2064
      %v2434 = vpop.f32.mrb[0].mxu0
      %v2435 = vadd.f32 %v2370, %v2434
      %v2436 = vpop.f32.mrb[0].mxu0
      %v2437 = vpop.f32.mrb[0].mxu0
      %v2438 = vadd.f32 %v2373, %v2437
      %v2439 = vpop.f32.mrb[0].mxu0
      %2440 = vmatprep.mubr.bf16.mxu0 %v2069
      %2441 = vmatmul.mubr.bf16.gmra.mrb[0].mxu0 %v2068
      %v2442 = vpop.f32.mrb[0].mxu0
      %v2443 = vadd.f32 %v2378, %v2442
      %v2444 = vpop.f32.mrb[0].mxu0
      %v2445 = vpop.f32.mrb[0].mxu0
      %v2446 = vadd.f32 %v2381, %v2445
      %v2447 = vpop.f32.mrb[0].mxu0
      %2448 = vmatprep.mubr.bf16.mxu0 %v2073
      %2449 = vmatmul.mubr.bf16.gmra.mrb[0].mxu0 %v2072
      %v2450 = vpop.f32.mrb[0].mxu0
      %v2451 = vadd.f32 %v2386, %v2450
      %v2452 = vpop.f32.mrb[0].mxu0
      %v2453 = vpop.f32.mrb[0].mxu0
      %v2454 = vadd.f32 %v2389, %v2453
      %v2455 = vpop.f32.mrb[0].mxu0
      %2456 = vmatprep.mubr.bf16.mxu0 %v2077
      %2457 = vmatmul.mubr.bf16.gmra.mrb[0].mxu0 %v2076
      %v2458 = vpop.f32.mrb[0].mxu0
      %v2459 = vadd.f32 %v2394, %v2458
      %v2460 = vpop.f32.mrb[0].mxu0
      %v2461 = vpop.f32.mrb[0].mxu0
      %v2462 = vadd.f32 %v2397, %v2461
      %v2463 = vpop.f32.mrb[0].mxu0
      %2464 = vdwg.mxu0
      %v2465 = vadd.f32 %v1845, %v2435
      %v2466 = vadd.f32 %v1848, %v2438
      %v2467 = vadd.f32 %v1853, %v2443
      %v2468 = vadd.f32 %v1856, %v2446
      %v2469 = vadd.f32 %v1861, %v2451
      %v2470 = vadd.f32 %v1864, %v2454
      %v2471 = vadd.f32 %v1869, %v2459
      %v2472 = vadd.f32 %v1872, %v2462
      %s2473 = scalar_lea.vmem %s1, 96
      %v2474 = vld [vmem:[%s2473] sm:$0xf]
      %v2475 = vld [vmem:[%s2473 + $0x4] sm:$0xf]
      %v2476 = vld [vmem:[%s2473 + $0x8] sm:$0xf]
      %v2477 = vld [vmem:[%s2473 + $0xc] sm:$0xf]
      %v2478 = vld [vmem:[%s2473 + $0x10] sm:$0xf]
      %v2479 = vld [vmem:[%s2473 + $0x14] sm:$0xf]
      %v2480 = vld [vmem:[%s2473 + $0x18] sm:$0xf]
      %v2481 = vld [vmem:[%s2473 + $0x1c] sm:$0xf]
      %v2490 = vunpack.c.l.b16 %v2474
      %v2491 = vunpack.c.l.b16 %v2475
      %v2492 = vunpack.c.l.b16 %v2476
      %v2493 = vunpack.c.l.b16 %v2477
      %v2494 = vunpack.c.l.b16 %v2478
      %v2495 = vunpack.c.l.b16 %v2479
      %v2496 = vunpack.c.l.b16 %v2480
      %v2497 = vunpack.c.l.b16 %v2481
      %v2498 = vpack.c.b16 %v2491, %v2490
      %v2499 = vpack.c.b16 %v2493, %v2492
      %v2500 = vpack.c.b16 %v2495, %v2494
      %v2501 = vpack.c.b16 %v2497, %v2496
      %v2503 = vsel %vm724, %v2498, 0
      %v2506 = vsel %vm724, %v2499, 0
      %v2509 = vsel %vm724, %v2500, 0
      %v2512 = vsel %vm724, %v2501, 0
      %2514 = vmatprep.subr.bf16.mxu0 %v693
      %2515 = vmatpush1.bf16.msra.mxu0 %v692
      %2516 = vmatprep.subr.bf16.mxu0 %v697
      %2517 = vmatpush1.bf16.msra.mxu0 %v696
      %2518 = vmatprep.subr.bf16.mxu0 %v701
      %2519 = vmatpush1.bf16.msra.mxu0 %v700
      %2520 = vmatprep.subr.bf16.mxu0 %v705
      %2521 = vmatpush1.bf16.msra.mxu0 %v704
      %2522 = vmatprep.subr.bf16.mxu0 0
      %2523 = vmatpush1.bf16.msra.mxu0 0
      %2524 = vmatprep.subr.bf16.mxu0 0
      %2525 = vmatpush1.bf16.msra.mxu0 0
      %2526 = vmatprep.subr.bf16.mxu0 0
      %2527 = vmatpush1.bf16.msra.mxu0 0
      %2528 = vmatprep.subr.bf16.mxu0 0
      %2529 = vmatpush1.bf16.msra.mxu0 0
      %2530 = vmatprep.subr.bf16.mxu0 0
      %2531 = vmatpush1.bf16.msra.mxu0 0
      %2532 = vmatprep.subr.bf16.mxu0 0
      %2533 = vmatpush1.bf16.msra.mxu0 0
      %2534 = vmatprep.subr.bf16.mxu0 0
      %2535 = vmatpush1.bf16.msra.mxu0 0
      %2536 = vmatprep.subr.bf16.mxu0 0
      %2537 = vmatpush1.bf16.msra.mxu0 0
      %2538 = vmatprep.subr.bf16.mxu0 0
      %2539 = vmatpush1.bf16.msra.mxu0 0
      %2540 = vmatprep.subr.bf16.mxu0 0
      %2541 = vmatpush1.bf16.msra.mxu0 0
      %2542 = vmatprep.subr.bf16.mxu0 0
      %2543 = vmatpush1.bf16.msra.mxu0 0
      %2544 = vmatprep.subr.bf16.mxu0 0
      %2545 = vmatpush1.bf16.msra.mxu0 0
      %2546 = vmatprep.mubr.bf16.mxu0 0
      %2547 = vmatmul.mubr.bf16.gmra.mrb[0].mxu0 %v2503
      %v2548 = vpop.f32.mrb[0].mxu0
      %v2549 = vadd.f32 0.0, %v2548
      %v2550 = vpop.f32.mrb[0].mxu0
      %v2551 = vadd.f32 0.0, %v2550
      %v2552 = vpop.f32.mrb[0].mxu0
      %v2553 = vadd.f32 0.0, %v2552
      %v2554 = vpop.f32.mrb[0].mxu0
      %v2555 = vadd.f32 0.0, %v2554
      %2556 = vmatprep.mubr.bf16.mxu0 0
      %2557 = vmatmul.mubr.bf16.gmra.mrb[0].mxu0 %v2506
      %v2558 = vpop.f32.mrb[0].mxu0
      %v2559 = vadd.f32 0.0, %v2558
      %v2560 = vpop.f32.mrb[0].mxu0
      %v2561 = vadd.f32 0.0, %v2560
      %v2562 = vpop.f32.mrb[0].mxu0
      %v2563 = vadd.f32 0.0, %v2562
      %v2564 = vpop.f32.mrb[0].mxu0
      %v2565 = vadd.f32 0.0, %v2564
      %2566 = vmatprep.mubr.bf16.mxu0 0
      %2567 = vmatmul.mubr.bf16.gmra.mrb[0].mxu0 %v2509
      %v2568 = vpop.f32.mrb[0].mxu0
      %v2569 = vadd.f32 0.0, %v2568
      %v2570 = vpop.f32.mrb[0].mxu0
      %v2571 = vadd.f32 0.0, %v2570
      %v2572 = vpop.f32.mrb[0].mxu0
      %v2573 = vadd.f32 0.0, %v2572
      %v2574 = vpop.f32.mrb[0].mxu0
      %v2575 = vadd.f32 0.0, %v2574
      %2576 = vmatprep.mubr.bf16.mxu0 0
      %2577 = vmatmul.mubr.bf16.gmra.mrb[0].mxu0 %v2512
      %v2578 = vpop.f32.mrb[0].mxu0
      %v2579 = vadd.f32 0.0, %v2578
      %v2580 = vpop.f32.mrb[0].mxu0
      %v2581 = vadd.f32 0.0, %v2580
      %v2582 = vpop.f32.mrb[0].mxu0
      %v2583 = vadd.f32 0.0, %v2582
      %v2584 = vpop.f32.mrb[0].mxu0
      %v2585 = vadd.f32 0.0, %v2584
      %2586 = vdwg.mxu0
      %2587 = vmatprep.subr.bf16.mxu0 %v695
      %2588 = vmatpush1.bf16.msra.mxu0 %v694
      %2589 = vmatprep.subr.bf16.mxu0 %v699
      %2590 = vmatpush1.bf16.msra.mxu0 %v698
      %2591 = vmatprep.subr.bf16.mxu0 %v703
      %2592 = vmatpush1.bf16.msra.mxu0 %v702
      %2593 = vmatprep.subr.bf16.mxu0 %v707
      %2594 = vmatpush1.bf16.msra.mxu0 %v706
      %2595 = vmatprep.subr.bf16.mxu0 0
      %2596 = vmatpush1.bf16.msra.mxu0 0
      %2597 = vmatprep.subr.bf16.mxu0 0
      %2598 = vmatpush1.bf16.msra.mxu0 0
      %2599 = vmatprep.subr.bf16.mxu0 0
      %2600 = vmatpush1.bf16.msra.mxu0 0
      %2601 = vmatprep.subr.bf16.mxu0 0
      %2602 = vmatpush1.bf16.msra.mxu0 0
      %2603 = vmatprep.subr.bf16.mxu0 0
      %2604 = vmatpush1.bf16.msra.mxu0 0
      %2605 = vmatprep.subr.bf16.mxu0 0
      %2606 = vmatpush1.bf16.msra.mxu0 0
      %2607 = vmatprep.subr.bf16.mxu0 0
      %2608 = vmatpush1.bf16.msra.mxu0 0
      %2609 = vmatprep.subr.bf16.mxu0 0
      %2610 = vmatpush1.bf16.msra.mxu0 0
      %2611 = vmatprep.subr.bf16.mxu0 0
      %2612 = vmatpush1.bf16.msra.mxu0 0
      %2613 = vmatprep.subr.bf16.mxu0 0
      %2614 = vmatpush1.bf16.msra.mxu0 0
      %2615 = vmatprep.subr.bf16.mxu0 0
      %2616 = vmatpush1.bf16.msra.mxu0 0
      %2617 = vmatprep.subr.bf16.mxu0 0
      %2618 = vmatpush1.bf16.msra.mxu0 0
      %2619 = vmatprep.mubr.bf16.mxu0 0
      %2620 = vmatmul.mubr.bf16.gmra.mrb[0].mxu0 %v2503
      %v2621 = vpop.f32.mrb[0].mxu0
      %v2622 = vadd.f32 0.0, %v2621
      %v2623 = vpop.f32.mrb[0].mxu0
      %v2624 = vadd.f32 0.0, %v2623
      %v2625 = vpop.f32.mrb[0].mxu0
      %v2626 = vadd.f32 0.0, %v2625
      %v2627 = vpop.f32.mrb[0].mxu0
      %v2628 = vadd.f32 0.0, %v2627
      %2629 = vmatprep.mubr.bf16.mxu0 0
      %2630 = vmatmul.mubr.bf16.gmra.mrb[0].mxu0 %v2506
      %v2631 = vpop.f32.mrb[0].mxu0
      %v2632 = vadd.f32 0.0, %v2631
      %v2633 = vpop.f32.mrb[0].mxu0
      %v2634 = vadd.f32 0.0, %v2633
      %v2635 = vpop.f32.mrb[0].mxu0
      %v2636 = vadd.f32 0.0, %v2635
      %v2637 = vpop.f32.mrb[0].mxu0
      %v2638 = vadd.f32 0.0, %v2637
      %2639 = vmatprep.mubr.bf16.mxu0 0
      %2640 = vmatmul.mubr.bf16.gmra.mrb[0].mxu0 %v2509
      %v2641 = vpop.f32.mrb[0].mxu0
      %v2642 = vadd.f32 0.0, %v2641
      %v2643 = vpop.f32.mrb[0].mxu0
      %v2644 = vadd.f32 0.0, %v2643
      %v2645 = vpop.f32.mrb[0].mxu0
      %v2646 = vadd.f32 0.0, %v2645
      %v2647 = vpop.f32.mrb[0].mxu0
      %v2648 = vadd.f32 0.0, %v2647
      %2649 = vmatprep.mubr.bf16.mxu0 0
      %2650 = vmatmul.mubr.bf16.gmra.mrb[0].mxu0 %v2512
      %v2651 = vpop.f32.mrb[0].mxu0
      %v2652 = vadd.f32 0.0, %v2651
      %v2653 = vpop.f32.mrb[0].mxu0
      %v2654 = vadd.f32 0.0, %v2653
      %v2655 = vpop.f32.mrb[0].mxu0
      %v2656 = vadd.f32 0.0, %v2655
      %v2657 = vpop.f32.mrb[0].mxu0
      %v2658 = vadd.f32 0.0, %v2657
      %2659 = vdwg.mxu0
      %v2660 = vpack.c.bf16 %v2553, %v2549
      %v2661 = vpack.c.bf16 %v2555, %v2551
      %v2662 = vpack.c.bf16 %v2626, %v2622
      %v2663 = vpack.c.bf16 %v2628, %v2624
      %v2664 = vpack.c.bf16 %v2563, %v2559
      %v2665 = vpack.c.bf16 %v2565, %v2561
      %v2666 = vpack.c.bf16 %v2636, %v2632
      %v2667 = vpack.c.bf16 %v2638, %v2634
      %v2668 = vpack.c.bf16 %v2573, %v2569
      %v2669 = vpack.c.bf16 %v2575, %v2571
      %v2670 = vpack.c.bf16 %v2646, %v2642
      %v2671 = vpack.c.bf16 %v2648, %v2644
      %v2672 = vpack.c.bf16 %v2583, %v2579
      %v2673 = vpack.c.bf16 %v2585, %v2581
      %v2674 = vpack.c.bf16 %v2656, %v2652
      %v2675 = vpack.c.bf16 %v2658, %v2654
      %s2676 = scalar_lea.vmem %s4, 768
      %v2677 = vld [vmem:[%s2676] sm:$0xf]
      %v2678 = vld [vmem:[%s2676 + $0x4] sm:$0xf]
      %v2679 = vld [vmem:[%s2676 + $0x8] sm:$0xf]
      %v2680 = vld [vmem:[%s2676 + $0xc] sm:$0xf]
      %v2681 = vld [vmem:[%s2676 + $0x10] sm:$0xf]
      %v2682 = vld [vmem:[%s2676 + $0x14] sm:$0xf]
      %v2683 = vld [vmem:[%s2676 + $0x18] sm:$0xf]
      %v2684 = vld [vmem:[%s2676 + $0x1c] sm:$0xf]
      %v2685 = vld [vmem:[%s2676 + $0x20] sm:$0xf]
      %v2686 = vld [vmem:[%s2676 + $0x24] sm:$0xf]
      %v2687 = vld [vmem:[%s2676 + $0x28] sm:$0xf]
      %v2688 = vld [vmem:[%s2676 + $0x2c] sm:$0xf]
      %v2689 = vld [vmem:[%s2676 + $0x30] sm:$0xf]
      %v2690 = vld [vmem:[%s2676 + $0x34] sm:$0xf]
      %v2691 = vld [vmem:[%s2676 + $0x38] sm:$0xf]
      %v2692 = vld [vmem:[%s2676 + $0x3c] sm:$0xf]
      %v2693 = vld [vmem:[%s2676 + $0x40] sm:$0xf]
      %v2694 = vld [vmem:[%s2676 + $0x44] sm:$0xf]
      %v2695 = vld [vmem:[%s2676 + $0x48] sm:$0xf]
      %v2696 = vld [vmem:[%s2676 + $0x4c] sm:$0xf]
      %v2697 = vld [vmem:[%s2676 + $0x50] sm:$0xf]
      %v2698 = vld [vmem:[%s2676 + $0x54] sm:$0xf]
      %v2699 = vld [vmem:[%s2676 + $0x58] sm:$0xf]
      %v2700 = vld [vmem:[%s2676 + $0x5c] sm:$0xf]
      %v2701 = vld [vmem:[%s2676 + $0x60] sm:$0xf]
      %v2702 = vld [vmem:[%s2676 + $0x64] sm:$0xf]
      %v2703 = vld [vmem:[%s2676 + $0x68] sm:$0xf]
      %v2704 = vld [vmem:[%s2676 + $0x6c] sm:$0xf]
      %v2705 = vld [vmem:[%s2676 + $0x70] sm:$0xf]
      %v2706 = vld [vmem:[%s2676 + $0x74] sm:$0xf]
      %v2707 = vld [vmem:[%s2676 + $0x78] sm:$0xf]
      %v2708 = vld [vmem:[%s2676 + $0x7c] sm:$0xf]
      %v2709 = vld [vmem:[%s2676 + $0x80] sm:$0xf]
      %v2710 = vld [vmem:[%s2676 + $0x84] sm:$0xf]
      %v2711 = vld [vmem:[%s2676 + $0x88] sm:$0xf]
      %v2712 = vld [vmem:[%s2676 + $0x8c] sm:$0xf]
      %v2713 = vld [vmem:[%s2676 + $0x90] sm:$0xf]
      %v2714 = vld [vmem:[%s2676 + $0x94] sm:$0xf]
      %v2715 = vld [vmem:[%s2676 + $0x98] sm:$0xf]
      %v2716 = vld [vmem:[%s2676 + $0x9c] sm:$0xf]
      %v2717 = vld [vmem:[%s2676 + $0xa0] sm:$0xf]
      %v2718 = vld [vmem:[%s2676 + $0xa4] sm:$0xf]
      %v2719 = vld [vmem:[%s2676 + $0xa8] sm:$0xf]
      %v2720 = vld [vmem:[%s2676 + $0xac] sm:$0xf]
      %v2721 = vld [vmem:[%s2676 + $0xb0] sm:$0xf]
      %v2722 = vld [vmem:[%s2676 + $0xb4] sm:$0xf]
      %v2723 = vld [vmem:[%s2676 + $0xb8] sm:$0xf]
      %v2724 = vld [vmem:[%s2676 + $0xbc] sm:$0xf]
      %v2725 = vld [vmem:[%s2676 + $0xc0] sm:$0xf]
      %v2726 = vld [vmem:[%s2676 + $0xc4] sm:$0xf]
      %v2727 = vld [vmem:[%s2676 + $0xc8] sm:$0xf]
      %v2728 = vld [vmem:[%s2676 + $0xcc] sm:$0xf]
      %v2729 = vld [vmem:[%s2676 + $0xd0] sm:$0xf]
      %v2730 = vld [vmem:[%s2676 + $0xd4] sm:$0xf]
      %v2731 = vld [vmem:[%s2676 + $0xd8] sm:$0xf]
      %v2732 = vld [vmem:[%s2676 + $0xdc] sm:$0xf]
      %v2733 = vld [vmem:[%s2676 + $0xe0] sm:$0xf]
      %v2734 = vld [vmem:[%s2676 + $0xe4] sm:$0xf]
      %v2735 = vld [vmem:[%s2676 + $0xe8] sm:$0xf]
      %v2736 = vld [vmem:[%s2676 + $0xec] sm:$0xf]
      %v2737 = vld [vmem:[%s2676 + $0xf0] sm:$0xf]
      %v2738 = vld [vmem:[%s2676 + $0xf4] sm:$0xf]
      %v2739 = vld [vmem:[%s2676 + $0xf8] sm:$0xf]
      %v2740 = vld [vmem:[%s2676 + $0xfc] sm:$0xf]
      %v2805 = vunpack.c.l.b16 %v2677
      %v2806 = vunpack.c.l.b16 %v2678
      %v2807 = vunpack.c.l.b16 %v2679
      %v2808 = vunpack.c.l.b16 %v2680
      %v2809 = vunpack.c.l.b16 %v2681
      %v2810 = vunpack.c.l.b16 %v2682
      %v2811 = vunpack.c.l.b16 %v2683
      %v2812 = vunpack.c.l.b16 %v2684
      %v2813 = vunpack.c.l.b16 %v2685
      %v2814 = vunpack.c.l.b16 %v2686
      %v2815 = vunpack.c.l.b16 %v2687
      %v2816 = vunpack.c.l.b16 %v2688
      %v2817 = vunpack.c.l.b16 %v2689
      %v2818 = vunpack.c.l.b16 %v2690
      %v2819 = vunpack.c.l.b16 %v2691
      %v2820 = vunpack.c.l.b16 %v2692
      %v2821 = vunpack.c.l.b16 %v2693
      %v2822 = vunpack.c.l.b16 %v2694
      %v2823 = vunpack.c.l.b16 %v2695
      %v2824 = vunpack.c.l.b16 %v2696
      %v2825 = vunpack.c.l.b16 %v2697
      %v2826 = vunpack.c.l.b16 %v2698
      %v2827 = vunpack.c.l.b16 %v2699
      %v2828 = vunpack.c.l.b16 %v2700
      %v2829 = vunpack.c.l.b16 %v2701
      %v2830 = vunpack.c.l.b16 %v2702
      %v2831 = vunpack.c.l.b16 %v2703
      %v2832 = vunpack.c.l.b16 %v2704
      %v2833 = vunpack.c.l.b16 %v2705
      %v2834 = vunpack.c.l.b16 %v2706
      %v2835 = vunpack.c.l.b16 %v2707
      %v2836 = vunpack.c.l.b16 %v2708
      %v2837 = vunpack.c.l.b16 %v2709
      %v2838 = vunpack.c.l.b16 %v2710
      %v2839 = vunpack.c.l.b16 %v2711
      %v2840 = vunpack.c.l.b16 %v2712
      %v2841 = vunpack.c.l.b16 %v2713
      %v2842 = vunpack.c.l.b16 %v2714
      %v2843 = vunpack.c.l.b16 %v2715
      %v2844 = vunpack.c.l.b16 %v2716
      %v2845 = vunpack.c.l.b16 %v2717
      %v2846 = vunpack.c.l.b16 %v2718
      %v2847 = vunpack.c.l.b16 %v2719
      %v2848 = vunpack.c.l.b16 %v2720
      %v2849 = vunpack.c.l.b16 %v2721
      %v2850 = vunpack.c.l.b16 %v2722
      %v2851 = vunpack.c.l.b16 %v2723
      %v2852 = vunpack.c.l.b16 %v2724
      %v2853 = vunpack.c.l.b16 %v2725
      %v2854 = vunpack.c.l.b16 %v2726
      %v2855 = vunpack.c.l.b16 %v2727
      %v2856 = vunpack.c.l.b16 %v2728
      %v2857 = vunpack.c.l.b16 %v2729
      %v2858 = vunpack.c.l.b16 %v2730
      %v2859 = vunpack.c.l.b16 %v2731
      %v2860 = vunpack.c.l.b16 %v2732
      %v2861 = vunpack.c.l.b16 %v2733
      %v2862 = vunpack.c.l.b16 %v2734
      %v2863 = vunpack.c.l.b16 %v2735
      %v2864 = vunpack.c.l.b16 %v2736
      %v2865 = vunpack.c.l.b16 %v2737
      %v2866 = vunpack.c.l.b16 %v2738
      %v2867 = vunpack.c.l.b16 %v2739
      %v2868 = vunpack.c.l.b16 %v2740
      %v2869 = vpack.c.b16 %v2806, %v2805
      %v2870 = vpack.c.b16 %v2808, %v2807
      %v2871 = vpack.c.b16 %v2810, %v2809
      %v2872 = vpack.c.b16 %v2812, %v2811
      %v2873 = vpack.c.b16 %v2814, %v2813
      %v2874 = vpack.c.b16 %v2816, %v2815
      %v2875 = vpack.c.b16 %v2818, %v2817
      %v2876 = vpack.c.b16 %v2820, %v2819
      %v2877 = vpack.c.b16 %v2822, %v2821
      %v2878 = vpack.c.b16 %v2824, %v2823
      %v2879 = vpack.c.b16 %v2826, %v2825
      %v2880 = vpack.c.b16 %v2828, %v2827
      %v2881 = vpack.c.b16 %v2830, %v2829
      %v2882 = vpack.c.b16 %v2832, %v2831
      %v2883 = vpack.c.b16 %v2834, %v2833
      %v2884 = vpack.c.b16 %v2836, %v2835
      %v2885 = vpack.c.b16 %v2838, %v2837
      %v2886 = vpack.c.b16 %v2840, %v2839
      %v2887 = vpack.c.b16 %v2842, %v2841
      %v2888 = vpack.c.b16 %v2844, %v2843
      %v2889 = vpack.c.b16 %v2846, %v2845
      %v2890 = vpack.c.b16 %v2848, %v2847
      %v2891 = vpack.c.b16 %v2850, %v2849
      %v2892 = vpack.c.b16 %v2852, %v2851
      %v2893 = vpack.c.b16 %v2854, %v2853
      %v2894 = vpack.c.b16 %v2856, %v2855
      %v2895 = vpack.c.b16 %v2858, %v2857
      %v2896 = vpack.c.b16 %v2860, %v2859
      %v2897 = vpack.c.b16 %v2862, %v2861
      %v2898 = vpack.c.b16 %v2864, %v2863
      %v2899 = vpack.c.b16 %v2866, %v2865
      %v2900 = vpack.c.b16 %v2868, %v2867
      %2933 = vmatprep.subr.bf16.mxu0 0
      %2934 = vmatpush1.bf16.msra.mxu0 %v2869
      %2935 = vmatprep.subr.bf16.mxu0 0
      %2936 = vmatpush1.bf16.msra.mxu0 %v2870
      %2937 = vmatprep.subr.bf16.mxu0 0
      %2938 = vmatpush1.bf16.msra.mxu0 %v2871
      %2939 = vmatprep.subr.bf16.mxu0 0
      %2940 = vmatpush1.bf16.msra.mxu0 %v2872
      %2941 = vmatprep.subr.bf16.mxu0 0
      %2942 = vmatpush1.bf16.msra.mxu0 %v2873
      %2943 = vmatprep.subr.bf16.mxu0 0
      %2944 = vmatpush1.bf16.msra.mxu0 %v2874
      %2945 = vmatprep.subr.bf16.mxu0 0
      %2946 = vmatpush1.bf16.msra.mxu0 %v2875
      %2947 = vmatprep.subr.bf16.mxu0 0
      %2948 = vmatpush1.bf16.msra.mxu0 %v2876
      %2949 = vmatprep.subr.bf16.mxu0 0
      %2950 = vmatpush1.bf16.msra.mxu0 %v2877
      %2951 = vmatprep.subr.bf16.mxu0 0
      %2952 = vmatpush1.bf16.msra.mxu0 %v2878
      %2953 = vmatprep.subr.bf16.mxu0 0
      %2954 = vmatpush1.bf16.msra.mxu0 %v2879
      %2955 = vmatprep.subr.bf16.mxu0 0
      %2956 = vmatpush1.bf16.msra.mxu0 %v2880
      %2957 = vmatprep.subr.bf16.mxu0 0
      %2958 = vmatpush1.bf16.msra.mxu0 %v2881
      %2959 = vmatprep.subr.bf16.mxu0 0
      %2960 = vmatpush1.bf16.msra.mxu0 %v2882
      %2961 = vmatprep.subr.bf16.mxu0 0
      %2962 = vmatpush1.bf16.msra.mxu0 %v2883
      %2963 = vmatprep.subr.bf16.mxu0 0
      %2964 = vmatpush1.bf16.msra.mxu0 %v2884
      %2965 = vmatprep.mubr.bf16.mxu0 %v2661
      %2966 = vmatmul.mubr.bf16.gmra.mrb[0].mxu0 %v2660
      %v2967 = vpop.f32.mrb[0].mxu0
      %v2968 = vadd.f32 0.0, %v2967
      %v2969 = vpop.f32.mrb[0].mxu0
      %v2970 = vpop.f32.mrb[0].mxu0
      %v2971 = vadd.f32 0.0, %v2970
      %v2972 = vpop.f32.mrb[0].mxu0
      %2973 = vmatprep.mubr.bf16.mxu0 %v2665
      %2974 = vmatmul.mubr.bf16.gmra.mrb[0].mxu0 %v2664
      %v2975 = vpop.f32.mrb[0].mxu0
      %v2976 = vadd.f32 0.0, %v2975
      %v2977 = vpop.f32.mrb[0].mxu0
      %v2978 = vpop.f32.mrb[0].mxu0
      %v2979 = vadd.f32 0.0, %v2978
      %v2980 = vpop.f32.mrb[0].mxu0
      %2981 = vmatprep.mubr.bf16.mxu0 %v2669
      %2982 = vmatmul.mubr.bf16.gmra.mrb[0].mxu0 %v2668
      %v2983 = vpop.f32.mrb[0].mxu0
      %v2984 = vadd.f32 0.0, %v2983
      %v2985 = vpop.f32.mrb[0].mxu0
      %v2986 = vpop.f32.mrb[0].mxu0
      %v2987 = vadd.f32 0.0, %v2986
      %v2988 = vpop.f32.mrb[0].mxu0
      %2989 = vmatprep.mubr.bf16.mxu0 %v2673
      %2990 = vmatmul.mubr.bf16.gmra.mrb[0].mxu0 %v2672
      %v2991 = vpop.f32.mrb[0].mxu0
      %v2992 = vadd.f32 0.0, %v2991
      %v2993 = vpop.f32.mrb[0].mxu0
      %v2994 = vpop.f32.mrb[0].mxu0
      %v2995 = vadd.f32 0.0, %v2994
      %v2996 = vpop.f32.mrb[0].mxu0
      %2997 = vdwg.mxu0
      %2998 = vmatprep.subr.bf16.mxu0 0
      %2999 = vmatpush1.bf16.msra.mxu0 %v2885
      %3000 = vmatprep.subr.bf16.mxu0 0
      %3001 = vmatpush1.bf16.msra.mxu0 %v2886
      %3002 = vmatprep.subr.bf16.mxu0 0
      %3003 = vmatpush1.bf16.msra.mxu0 %v2887
      %3004 = vmatprep.subr.bf16.mxu0 0
      %3005 = vmatpush1.bf16.msra.mxu0 %v2888
      %3006 = vmatprep.subr.bf16.mxu0 0
      %3007 = vmatpush1.bf16.msra.mxu0 %v2889
      %3008 = vmatprep.subr.bf16.mxu0 0
      %3009 = vmatpush1.bf16.msra.mxu0 %v2890
      %3010 = vmatprep.subr.bf16.mxu0 0
      %3011 = vmatpush1.bf16.msra.mxu0 %v2891
      %3012 = vmatprep.subr.bf16.mxu0 0
      %3013 = vmatpush1.bf16.msra.mxu0 %v2892
      %3014 = vmatprep.subr.bf16.mxu0 0
      %3015 = vmatpush1.bf16.msra.mxu0 %v2893
      %3016 = vmatprep.subr.bf16.mxu0 0
      %3017 = vmatpush1.bf16.msra.mxu0 %v2894
      %3018 = vmatprep.subr.bf16.mxu0 0
      %3019 = vmatpush1.bf16.msra.mxu0 %v2895
      %3020 = vmatprep.subr.bf16.mxu0 0
      %3021 = vmatpush1.bf16.msra.mxu0 %v2896
      %3022 = vmatprep.subr.bf16.mxu0 0
      %3023 = vmatpush1.bf16.msra.mxu0 %v2897
      %3024 = vmatprep.subr.bf16.mxu0 0
      %3025 = vmatpush1.bf16.msra.mxu0 %v2898
      %3026 = vmatprep.subr.bf16.mxu0 0
      %3027 = vmatpush1.bf16.msra.mxu0 %v2899
      %3028 = vmatprep.subr.bf16.mxu0 0
      %3029 = vmatpush1.bf16.msra.mxu0 %v2900
      %3030 = vmatprep.mubr.bf16.mxu0 %v2663
      %3031 = vmatmul.mubr.bf16.gmra.mrb[0].mxu0 %v2662
      %v3032 = vpop.f32.mrb[0].mxu0
      %v3033 = vadd.f32 %v2968, %v3032
      %v3034 = vpop.f32.mrb[0].mxu0
      %v3035 = vpop.f32.mrb[0].mxu0
      %v3036 = vadd.f32 %v2971, %v3035
      %v3037 = vpop.f32.mrb[0].mxu0
      %3038 = vmatprep.mubr.bf16.mxu0 %v2667
      %3039 = vmatmul.mubr.bf16.gmra.mrb[0].mxu0 %v2666
      %v3040 = vpop.f32.mrb[0].mxu0
      %v3041 = vadd.f32 %v2976, %v3040
      %v3042 = vpop.f32.mrb[0].mxu0
      %v3043 = vpop.f32.mrb[0].mxu0
      %v3044 = vadd.f32 %v2979, %v3043
      %v3045 = vpop.f32.mrb[0].mxu0
      %3046 = vmatprep.mubr.bf16.mxu0 %v2671
      %3047 = vmatmul.mubr.bf16.gmra.mrb[0].mxu0 %v2670
      %v3048 = vpop.f32.mrb[0].mxu0
      %v3049 = vadd.f32 %v2984, %v3048
      %v3050 = vpop.f32.mrb[0].mxu0
      %v3051 = vpop.f32.mrb[0].mxu0
      %v3052 = vadd.f32 %v2987, %v3051
      %v3053 = vpop.f32.mrb[0].mxu0
      %3054 = vmatprep.mubr.bf16.mxu0 %v2675
      %3055 = vmatmul.mubr.bf16.gmra.mrb[0].mxu0 %v2674
      %v3056 = vpop.f32.mrb[0].mxu0
      %v3057 = vadd.f32 %v2992, %v3056
      %v3058 = vpop.f32.mrb[0].mxu0
      %v3059 = vpop.f32.mrb[0].mxu0
      %v3060 = vadd.f32 %v2995, %v3059
      %v3061 = vpop.f32.mrb[0].mxu0
      %3062 = vdwg.mxu0
      %v3063 = vadd.f32 %v2465, %v3033
      %v3064 = vadd.f32 %v2466, %v3036
      %v3065 = vadd.f32 %v2467, %v3041
      %v3066 = vadd.f32 %v2468, %v3044
      %v3067 = vadd.f32 %v2469, %v3049
      %v3068 = vadd.f32 %v2470, %v3052
      %v3069 = vadd.f32 %v2471, %v3057
      %v3070 = vadd.f32 %v2472, %v3060
      %s3071 = scalar_lea.vmem %s1, 128
      %v3072 = vld [vmem:[%s3071] sm:$0xf]
      %v3073 = vld [vmem:[%s3071 + $0x4] sm:$0xf]
      %v3074 = vld [vmem:[%s3071 + $0x8] sm:$0xf]
      %v3075 = vld [vmem:[%s3071 + $0xc] sm:$0xf]
      %v3076 = vld [vmem:[%s3071 + $0x10] sm:$0xf]
      %v3077 = vld [vmem:[%s3071 + $0x14] sm:$0xf]
      %v3078 = vld [vmem:[%s3071 + $0x18] sm:$0xf]
      %v3079 = vld [vmem:[%s3071 + $0x1c] sm:$0xf]
      %v3088 = vunpack.c.l.b16 %v3072
      %v3089 = vunpack.c.l.b16 %v3073
      %v3090 = vunpack.c.l.b16 %v3074
      %v3091 = vunpack.c.l.b16 %v3075
      %v3092 = vunpack.c.l.b16 %v3076
      %v3093 = vunpack.c.l.b16 %v3077
      %v3094 = vunpack.c.l.b16 %v3078
      %v3095 = vunpack.c.l.b16 %v3079
      %v3096 = vpack.c.b16 %v3089, %v3088
      %v3097 = vpack.c.b16 %v3091, %v3090
      %v3098 = vpack.c.b16 %v3093, %v3092
      %v3099 = vpack.c.b16 %v3095, %v3094
      %v3101 = vsel %vm724, %v3096, 0
      %v3104 = vsel %vm724, %v3097, 0
      %v3107 = vsel %vm724, %v3098, 0
      %v3110 = vsel %vm724, %v3099, 0
      %3112 = vmatprep.subr.bf16.mxu0 %v693
      %3113 = vmatpush1.bf16.msra.mxu0 %v692
      %3114 = vmatprep.subr.bf16.mxu0 %v697
      %3115 = vmatpush1.bf16.msra.mxu0 %v696
      %3116 = vmatprep.subr.bf16.mxu0 %v701
      %3117 = vmatpush1.bf16.msra.mxu0 %v700
      %3118 = vmatprep.subr.bf16.mxu0 %v705
      %3119 = vmatpush1.bf16.msra.mxu0 %v704
      %3120 = vmatprep.subr.bf16.mxu0 0
      %3121 = vmatpush1.bf16.msra.mxu0 0
      %3122 = vmatprep.subr.bf16.mxu0 0
      %3123 = vmatpush1.bf16.msra.mxu0 0
      %3124 = vmatprep.subr.bf16.mxu0 0
      %3125 = vmatpush1.bf16.msra.mxu0 0
      %3126 = vmatprep.subr.bf16.mxu0 0
      %3127 = vmatpush1.bf16.msra.mxu0 0
      %3128 = vmatprep.subr.bf16.mxu0 0
      %3129 = vmatpush1.bf16.msra.mxu0 0
      %3130 = vmatprep.subr.bf16.mxu0 0
      %3131 = vmatpush1.bf16.msra.mxu0 0
      %3132 = vmatprep.subr.bf16.mxu0 0
      %3133 = vmatpush1.bf16.msra.mxu0 0
      %3134 = vmatprep.subr.bf16.mxu0 0
      %3135 = vmatpush1.bf16.msra.mxu0 0
      %3136 = vmatprep.subr.bf16.mxu0 0
      %3137 = vmatpush1.bf16.msra.mxu0 0
      %3138 = vmatprep.subr.bf16.mxu0 0
      %3139 = vmatpush1.bf16.msra.mxu0 0
      %3140 = vmatprep.subr.bf16.mxu0 0
      %3141 = vmatpush1.bf16.msra.mxu0 0
      %3142 = vmatprep.subr.bf16.mxu0 0
      %3143 = vmatpush1.bf16.msra.mxu0 0
      %3144 = vmatprep.mubr.bf16.mxu0 0
      %3145 = vmatmul.mubr.bf16.gmra.mrb[0].mxu0 %v3101
      %v3146 = vpop.f32.mrb[0].mxu0
      %v3147 = vadd.f32 0.0, %v3146
      %v3148 = vpop.f32.mrb[0].mxu0
      %v3149 = vadd.f32 0.0, %v3148
      %v3150 = vpop.f32.mrb[0].mxu0
      %v3151 = vadd.f32 0.0, %v3150
      %v3152 = vpop.f32.mrb[0].mxu0
      %v3153 = vadd.f32 0.0, %v3152
      %3154 = vmatprep.mubr.bf16.mxu0 0
      %3155 = vmatmul.mubr.bf16.gmra.mrb[0].mxu0 %v3104
      %v3156 = vpop.f32.mrb[0].mxu0
      %v3157 = vadd.f32 0.0, %v3156
      %v3158 = vpop.f32.mrb[0].mxu0
      %v3159 = vadd.f32 0.0, %v3158
      %v3160 = vpop.f32.mrb[0].mxu0
      %v3161 = vadd.f32 0.0, %v3160
      %v3162 = vpop.f32.mrb[0].mxu0
      %v3163 = vadd.f32 0.0, %v3162
      %3164 = vmatprep.mubr.bf16.mxu0 0
      %3165 = vmatmul.mubr.bf16.gmra.mrb[0].mxu0 %v3107
      %v3166 = vpop.f32.mrb[0].mxu0
      %v3167 = vadd.f32 0.0, %v3166
      %v3168 = vpop.f32.mrb[0].mxu0
      %v3169 = vadd.f32 0.0, %v3168
      %v3170 = vpop.f32.mrb[0].mxu0
      %v3171 = vadd.f32 0.0, %v3170
      %v3172 = vpop.f32.mrb[0].mxu0
      %v3173 = vadd.f32 0.0, %v3172
      %3174 = vmatprep.mubr.bf16.mxu0 0
      %3175 = vmatmul.mubr.bf16.gmra.mrb[0].mxu0 %v3110
      %v3176 = vpop.f32.mrb[0].mxu0
      %v3177 = vadd.f32 0.0, %v3176
      %v3178 = vpop.f32.mrb[0].mxu0
      %v3179 = vadd.f32 0.0, %v3178
      %v3180 = vpop.f32.mrb[0].mxu0
      %v3181 = vadd.f32 0.0, %v3180
      %v3182 = vpop.f32.mrb[0].mxu0
      %v3183 = vadd.f32 0.0, %v3182
      %3184 = vdwg.mxu0
      %3185 = vmatprep.subr.bf16.mxu0 %v695
      %3186 = vmatpush1.bf16.msra.mxu0 %v694
      %3187 = vmatprep.subr.bf16.mxu0 %v699
      %3188 = vmatpush1.bf16.msra.mxu0 %v698
      %3189 = vmatprep.subr.bf16.mxu0 %v703
      %3190 = vmatpush1.bf16.msra.mxu0 %v702
      %3191 = vmatprep.subr.bf16.mxu0 %v707
      %3192 = vmatpush1.bf16.msra.mxu0 %v706
      %3193 = vmatprep.subr.bf16.mxu0 0
      %3194 = vmatpush1.bf16.msra.mxu0 0
      %3195 = vmatprep.subr.bf16.mxu0 0
      %3196 = vmatpush1.bf16.msra.mxu0 0
      %3197 = vmatprep.subr.bf16.mxu0 0
      %3198 = vmatpush1.bf16.msra.mxu0 0
      %3199 = vmatprep.subr.bf16.mxu0 0
      %3200 = vmatpush1.bf16.msra.mxu0 0
      %3201 = vmatprep.subr.bf16.mxu0 0
      %3202 = vmatpush1.bf16.msra.mxu0 0
      %3203 = vmatprep.subr.bf16.mxu0 0
      %3204 = vmatpush1.bf16.msra.mxu0 0
      %3205 = vmatprep.subr.bf16.mxu0 0
      %3206 = vmatpush1.bf16.msra.mxu0 0
      %3207 = vmatprep.subr.bf16.mxu0 0
      %3208 = vmatpush1.bf16.msra.mxu0 0
      %3209 = vmatprep.subr.bf16.mxu0 0
      %3210 = vmatpush1.bf16.msra.mxu0 0
      %3211 = vmatprep.subr.bf16.mxu0 0
      %3212 = vmatpush1.bf16.msra.mxu0 0
      %3213 = vmatprep.subr.bf16.mxu0 0
      %3214 = vmatpush1.bf16.msra.mxu0 0
      %3215 = vmatprep.subr.bf16.mxu0 0
      %3216 = vmatpush1.bf16.msra.mxu0 0
      %3217 = vmatprep.mubr.bf16.mxu0 0
      %3218 = vmatmul.mubr.bf16.gmra.mrb[0].mxu0 %v3101
      %v3219 = vpop.f32.mrb[0].mxu0
      %v3220 = vadd.f32 0.0, %v3219
      %v3221 = vpop.f32.mrb[0].mxu0
      %v3222 = vadd.f32 0.0, %v3221
      %v3223 = vpop.f32.mrb[0].mxu0
      %v3224 = vadd.f32 0.0, %v3223
      %v3225 = vpop.f32.mrb[0].mxu0
      %v3226 = vadd.f32 0.0, %v3225
      %3227 = vmatprep.mubr.bf16.mxu0 0
      %3228 = vmatmul.mubr.bf16.gmra.mrb[0].mxu0 %v3104
      %v3229 = vpop.f32.mrb[0].mxu0
      %v3230 = vadd.f32 0.0, %v3229
      %v3231 = vpop.f32.mrb[0].mxu0
      %v3232 = vadd.f32 0.0, %v3231
      %v3233 = vpop.f32.mrb[0].mxu0
      %v3234 = vadd.f32 0.0, %v3233
      %v3235 = vpop.f32.mrb[0].mxu0
      %v3236 = vadd.f32 0.0, %v3235
      %3237 = vmatprep.mubr.bf16.mxu0 0
      %3238 = vmatmul.mubr.bf16.gmra.mrb[0].mxu0 %v3107
      %v3239 = vpop.f32.mrb[0].mxu0
      %v3240 = vadd.f32 0.0, %v3239
      %v3241 = vpop.f32.mrb[0].mxu0
      %v3242 = vadd.f32 0.0, %v3241
      %v3243 = vpop.f32.mrb[0].mxu0
      %v3244 = vadd.f32 0.0, %v3243
      %v3245 = vpop.f32.mrb[0].mxu0
      %v3246 = vadd.f32 0.0, %v3245
      %3247 = vmatprep.mubr.bf16.mxu0 0
      %3248 = vmatmul.mubr.bf16.gmra.mrb[0].mxu0 %v3110
      %v3249 = vpop.f32.mrb[0].mxu0
      %v3250 = vadd.f32 0.0, %v3249
      %v3251 = vpop.f32.mrb[0].mxu0
      %v3252 = vadd.f32 0.0, %v3251
      %v3253 = vpop.f32.mrb[0].mxu0
      %v3254 = vadd.f32 0.0, %v3253
      %v3255 = vpop.f32.mrb[0].mxu0
      %v3256 = vadd.f32 0.0, %v3255
      %3257 = vdwg.mxu0
      %v3258 = vpack.c.bf16 %v3151, %v3147
      %v3259 = vpack.c.bf16 %v3153, %v3149
      %v3260 = vpack.c.bf16 %v3224, %v3220
      %v3261 = vpack.c.bf16 %v3226, %v3222
      %v3262 = vpack.c.bf16 %v3161, %v3157
      %v3263 = vpack.c.bf16 %v3163, %v3159
      %v3264 = vpack.c.bf16 %v3234, %v3230
      %v3265 = vpack.c.bf16 %v3236, %v3232
      %v3266 = vpack.c.bf16 %v3171, %v3167
      %v3267 = vpack.c.bf16 %v3173, %v3169
      %v3268 = vpack.c.bf16 %v3244, %v3240
      %v3269 = vpack.c.bf16 %v3246, %v3242
      %v3270 = vpack.c.bf16 %v3181, %v3177
      %v3271 = vpack.c.bf16 %v3183, %v3179
      %v3272 = vpack.c.bf16 %v3254, %v3250
      %v3273 = vpack.c.bf16 %v3256, %v3252
      %s3274 = scalar_lea.vmem %s4, 1024
      %v3275 = vld [vmem:[%s3274] sm:$0xf]
      %v3276 = vld [vmem:[%s3274 + $0x4] sm:$0xf]
      %v3277 = vld [vmem:[%s3274 + $0x8] sm:$0xf]
      %v3278 = vld [vmem:[%s3274 + $0xc] sm:$0xf]
      %v3279 = vld [vmem:[%s3274 + $0x10] sm:$0xf]
      %v3280 = vld [vmem:[%s3274 + $0x14] sm:$0xf]
      %v3281 = vld [vmem:[%s3274 + $0x18] sm:$0xf]
      %v3282 = vld [vmem:[%s3274 + $0x1c] sm:$0xf]
      %v3283 = vld [vmem:[%s3274 + $0x20] sm:$0xf]
      %v3284 = vld [vmem:[%s3274 + $0x24] sm:$0xf]
      %v3285 = vld [vmem:[%s3274 + $0x28] sm:$0xf]
      %v3286 = vld [vmem:[%s3274 + $0x2c] sm:$0xf]
      %v3287 = vld [vmem:[%s3274 + $0x30] sm:$0xf]
      %v3288 = vld [vmem:[%s3274 + $0x34] sm:$0xf]
      %v3289 = vld [vmem:[%s3274 + $0x38] sm:$0xf]
      %v3290 = vld [vmem:[%s3274 + $0x3c] sm:$0xf]
      %v3291 = vld [vmem:[%s3274 + $0x40] sm:$0xf]
      %v3292 = vld [vmem:[%s3274 + $0x44] sm:$0xf]
      %v3293 = vld [vmem:[%s3274 + $0x48] sm:$0xf]
      %v3294 = vld [vmem:[%s3274 + $0x4c] sm:$0xf]
      %v3295 = vld [vmem:[%s3274 + $0x50] sm:$0xf]
      %v3296 = vld [vmem:[%s3274 + $0x54] sm:$0xf]
      %v3297 = vld [vmem:[%s3274 + $0x58] sm:$0xf]
      %v3298 = vld [vmem:[%s3274 + $0x5c] sm:$0xf]
      %v3299 = vld [vmem:[%s3274 + $0x60] sm:$0xf]
      %v3300 = vld [vmem:[%s3274 + $0x64] sm:$0xf]
      %v3301 = vld [vmem:[%s3274 + $0x68] sm:$0xf]
      %v3302 = vld [vmem:[%s3274 + $0x6c] sm:$0xf]
      %v3303 = vld [vmem:[%s3274 + $0x70] sm:$0xf]
      %v3304 = vld [vmem:[%s3274 + $0x74] sm:$0xf]
      %v3305 = vld [vmem:[%s3274 + $0x78] sm:$0xf]
      %v3306 = vld [vmem:[%s3274 + $0x7c] sm:$0xf]
      %v3307 = vld [vmem:[%s3274 + $0x80] sm:$0xf]
      %v3308 = vld [vmem:[%s3274 + $0x84] sm:$0xf]
      %v3309 = vld [vmem:[%s3274 + $0x88] sm:$0xf]
      %v3310 = vld [vmem:[%s3274 + $0x8c] sm:$0xf]
      %v3311 = vld [vmem:[%s3274 + $0x90] sm:$0xf]
      %v3312 = vld [vmem:[%s3274 + $0x94] sm:$0xf]
      %v3313 = vld [vmem:[%s3274 + $0x98] sm:$0xf]
      %v3314 = vld [vmem:[%s3274 + $0x9c] sm:$0xf]
      %v3315 = vld [vmem:[%s3274 + $0xa0] sm:$0xf]
      %v3316 = vld [vmem:[%s3274 + $0xa4] sm:$0xf]
      %v3317 = vld [vmem:[%s3274 + $0xa8] sm:$0xf]
      %v3318 = vld [vmem:[%s3274 + $0xac] sm:$0xf]
      %v3319 = vld [vmem:[%s3274 + $0xb0] sm:$0xf]
      %v3320 = vld [vmem:[%s3274 + $0xb4] sm:$0xf]
      %v3321 = vld [vmem:[%s3274 + $0xb8] sm:$0xf]
      %v3322 = vld [vmem:[%s3274 + $0xbc] sm:$0xf]
      %v3323 = vld [vmem:[%s3274 + $0xc0] sm:$0xf]
      %v3324 = vld [vmem:[%s3274 + $0xc4] sm:$0xf]
      %v3325 = vld [vmem:[%s3274 + $0xc8] sm:$0xf]
      %v3326 = vld [vmem:[%s3274 + $0xcc] sm:$0xf]
      %v3327 = vld [vmem:[%s3274 + $0xd0] sm:$0xf]
      %v3328 = vld [vmem:[%s3274 + $0xd4] sm:$0xf]
      %v3329 = vld [vmem:[%s3274 + $0xd8] sm:$0xf]
      %v3330 = vld [vmem:[%s3274 + $0xdc] sm:$0xf]
      %v3331 = vld [vmem:[%s3274 + $0xe0] sm:$0xf]
      %v3332 = vld [vmem:[%s3274 + $0xe4] sm:$0xf]
      %v3333 = vld [vmem:[%s3274 + $0xe8] sm:$0xf]
      %v3334 = vld [vmem:[%s3274 + $0xec] sm:$0xf]
      %v3335 = vld [vmem:[%s3274 + $0xf0] sm:$0xf]
      %v3336 = vld [vmem:[%s3274 + $0xf4] sm:$0xf]
      %v3337 = vld [vmem:[%s3274 + $0xf8] sm:$0xf]
      %v3338 = vld [vmem:[%s3274 + $0xfc] sm:$0xf]
      %v3403 = vunpack.c.l.b16 %v3275
      %v3404 = vunpack.c.l.b16 %v3276
      %v3405 = vunpack.c.l.b16 %v3277
      %v3406 = vunpack.c.l.b16 %v3278
      %v3407 = vunpack.c.l.b16 %v3279
      %v3408 = vunpack.c.l.b16 %v3280
      %v3409 = vunpack.c.l.b16 %v3281
      %v3410 = vunpack.c.l.b16 %v3282
      %v3411 = vunpack.c.l.b16 %v3283
      %v3412 = vunpack.c.l.b16 %v3284
      %v3413 = vunpack.c.l.b16 %v3285
      %v3414 = vunpack.c.l.b16 %v3286
      %v3415 = vunpack.c.l.b16 %v3287
      %v3416 = vunpack.c.l.b16 %v3288
      %v3417 = vunpack.c.l.b16 %v3289
      %v3418 = vunpack.c.l.b16 %v3290
      %v3419 = vunpack.c.l.b16 %v3291
      %v3420 = vunpack.c.l.b16 %v3292
      %v3421 = vunpack.c.l.b16 %v3293
      %v3422 = vunpack.c.l.b16 %v3294
      %v3423 = vunpack.c.l.b16 %v3295
      %v3424 = vunpack.c.l.b16 %v3296
      %v3425 = vunpack.c.l.b16 %v3297
      %v3426 = vunpack.c.l.b16 %v3298
      %v3427 = vunpack.c.l.b16 %v3299
      %v3428 = vunpack.c.l.b16 %v3300
      %v3429 = vunpack.c.l.b16 %v3301
      %v3430 = vunpack.c.l.b16 %v3302
      %v3431 = vunpack.c.l.b16 %v3303
      %v3432 = vunpack.c.l.b16 %v3304
      %v3433 = vunpack.c.l.b16 %v3305
      %v3434 = vunpack.c.l.b16 %v3306
      %v3435 = vunpack.c.l.b16 %v3307
      %v3436 = vunpack.c.l.b16 %v3308
      %v3437 = vunpack.c.l.b16 %v3309
      %v3438 = vunpack.c.l.b16 %v3310
      %v3439 = vunpack.c.l.b16 %v3311
      %v3440 = vunpack.c.l.b16 %v3312
      %v3441 = vunpack.c.l.b16 %v3313
      %v3442 = vunpack.c.l.b16 %v3314
      %v3443 = vunpack.c.l.b16 %v3315
      %v3444 = vunpack.c.l.b16 %v3316
      %v3445 = vunpack.c.l.b16 %v3317
      %v3446 = vunpack.c.l.b16 %v3318
      %v3447 = vunpack.c.l.b16 %v3319
      %v3448 = vunpack.c.l.b16 %v3320
      %v3449 = vunpack.c.l.b16 %v3321
      %v3450 = vunpack.c.l.b16 %v3322
      %v3451 = vunpack.c.l.b16 %v3323
      %v3452 = vunpack.c.l.b16 %v3324
      %v3453 = vunpack.c.l.b16 %v3325
      %v3454 = vunpack.c.l.b16 %v3326
      %v3455 = vunpack.c.l.b16 %v3327
      %v3456 = vunpack.c.l.b16 %v3328
      %v3457 = vunpack.c.l.b16 %v3329
      %v3458 = vunpack.c.l.b16 %v3330
      %v3459 = vunpack.c.l.b16 %v3331
      %v3460 = vunpack.c.l.b16 %v3332
      %v3461 = vunpack.c.l.b16 %v3333
      %v3462 = vunpack.c.l.b16 %v3334
      %v3463 = vunpack.c.l.b16 %v3335
      %v3464 = vunpack.c.l.b16 %v3336
      %v3465 = vunpack.c.l.b16 %v3337
      %v3466 = vunpack.c.l.b16 %v3338
      %v3467 = vpack.c.b16 %v3404, %v3403
      %v3468 = vpack.c.b16 %v3406, %v3405
      %v3469 = vpack.c.b16 %v3408, %v3407
      %v3470 = vpack.c.b16 %v3410, %v3409
      %v3471 = vpack.c.b16 %v3412, %v3411
      %v3472 = vpack.c.b16 %v3414, %v3413
      %v3473 = vpack.c.b16 %v3416, %v3415
      %v3474 = vpack.c.b16 %v3418, %v3417
      %v3475 = vpack.c.b16 %v3420, %v3419
      %v3476 = vpack.c.b16 %v3422, %v3421
      %v3477 = vpack.c.b16 %v3424, %v3423
      %v3478 = vpack.c.b16 %v3426, %v3425
      %v3479 = vpack.c.b16 %v3428, %v3427
      %v3480 = vpack.c.b16 %v3430, %v3429
      %v3481 = vpack.c.b16 %v3432, %v3431
      %v3482 = vpack.c.b16 %v3434, %v3433
      %v3483 = vpack.c.b16 %v3436, %v3435
      %v3484 = vpack.c.b16 %v3438, %v3437
      %v3485 = vpack.c.b16 %v3440, %v3439
      %v3486 = vpack.c.b16 %v3442, %v3441
      %v3487 = vpack.c.b16 %v3444, %v3443
      %v3488 = vpack.c.b16 %v3446, %v3445
      %v3489 = vpack.c.b16 %v3448, %v3447
      %v3490 = vpack.c.b16 %v3450, %v3449
      %v3491 = vpack.c.b16 %v3452, %v3451
      %v3492 = vpack.c.b16 %v3454, %v3453
      %v3493 = vpack.c.b16 %v3456, %v3455
      %v3494 = vpack.c.b16 %v3458, %v3457
      %v3495 = vpack.c.b16 %v3460, %v3459
      %v3496 = vpack.c.b16 %v3462, %v3461
      %v3497 = vpack.c.b16 %v3464, %v3463
      %v3498 = vpack.c.b16 %v3466, %v3465
      %3531 = vmatprep.subr.bf16.mxu0 0
      %3532 = vmatpush1.bf16.msra.mxu0 %v3467
      %3533 = vmatprep.subr.bf16.mxu0 0
      %3534 = vmatpush1.bf16.msra.mxu0 %v3468
      %3535 = vmatprep.subr.bf16.mxu0 0
      %3536 = vmatpush1.bf16.msra.mxu0 %v3469
      %3537 = vmatprep.subr.bf16.mxu0 0
      %3538 = vmatpush1.bf16.msra.mxu0 %v3470
      %3539 = vmatprep.subr.bf16.mxu0 0
      %3540 = vmatpush1.bf16.msra.mxu0 %v3471
      %3541 = vmatprep.subr.bf16.mxu0 0
      %3542 = vmatpush1.bf16.msra.mxu0 %v3472
      %3543 = vmatprep.subr.bf16.mxu0 0
      %3544 = vmatpush1.bf16.msra.mxu0 %v3473
      %3545 = vmatprep.subr.bf16.mxu0 0
      %3546 = vmatpush1.bf16.msra.mxu0 %v3474
      %3547 = vmatprep.subr.bf16.mxu0 0
      %3548 = vmatpush1.bf16.msra.mxu0 %v3475
      %3549 = vmatprep.subr.bf16.mxu0 0
      %3550 = vmatpush1.bf16.msra.mxu0 %v3476
      %3551 = vmatprep.subr.bf16.mxu0 0
      %3552 = vmatpush1.bf16.msra.mxu0 %v3477
      %3553 = vmatprep.subr.bf16.mxu0 0
      %3554 = vmatpush1.bf16.msra.mxu0 %v3478
      %3555 = vmatprep.subr.bf16.mxu0 0
      %3556 = vmatpush1.bf16.msra.mxu0 %v3479
      %3557 = vmatprep.subr.bf16.mxu0 0
      %3558 = vmatpush1.bf16.msra.mxu0 %v3480
      %3559 = vmatprep.subr.bf16.mxu0 0
      %3560 = vmatpush1.bf16.msra.mxu0 %v3481
      %3561 = vmatprep.subr.bf16.mxu0 0
      %3562 = vmatpush1.bf16.msra.mxu0 %v3482
      %3563 = vmatprep.mubr.bf16.mxu0 %v3259
      %3564 = vmatmul.mubr.bf16.gmra.mrb[0].mxu0 %v3258
      %v3565 = vpop.f32.mrb[0].mxu0
      %v3566 = vadd.f32 0.0, %v3565
      %v3567 = vpop.f32.mrb[0].mxu0
      %v3568 = vpop.f32.mrb[0].mxu0
      %v3569 = vadd.f32 0.0, %v3568
      %v3570 = vpop.f32.mrb[0].mxu0
      %3571 = vmatprep.mubr.bf16.mxu0 %v3263
      %3572 = vmatmul.mubr.bf16.gmra.mrb[0].mxu0 %v3262
      %v3573 = vpop.f32.mrb[0].mxu0
      %v3574 = vadd.f32 0.0, %v3573
      %v3575 = vpop.f32.mrb[0].mxu0
      %v3576 = vpop.f32.mrb[0].mxu0
      %v3577 = vadd.f32 0.0, %v3576
      %v3578 = vpop.f32.mrb[0].mxu0
      %3579 = vmatprep.mubr.bf16.mxu0 %v3267
      %3580 = vmatmul.mubr.bf16.gmra.mrb[0].mxu0 %v3266
      %v3581 = vpop.f32.mrb[0].mxu0
      %v3582 = vadd.f32 0.0, %v3581
      %v3583 = vpop.f32.mrb[0].mxu0
      %v3584 = vpop.f32.mrb[0].mxu0
      %v3585 = vadd.f32 0.0, %v3584
      %v3586 = vpop.f32.mrb[0].mxu0
      %3587 = vmatprep.mubr.bf16.mxu0 %v3271
      %3588 = vmatmul.mubr.bf16.gmra.mrb[0].mxu0 %v3270
      %v3589 = vpop.f32.mrb[0].mxu0
      %v3590 = vadd.f32 0.0, %v3589
      %v3591 = vpop.f32.mrb[0].mxu0
      %v3592 = vpop.f32.mrb[0].mxu0
      %v3593 = vadd.f32 0.0, %v3592
      %v3594 = vpop.f32.mrb[0].mxu0
      %3595 = vdwg.mxu0
      %3596 = vmatprep.subr.bf16.mxu0 0
      %3597 = vmatpush1.bf16.msra.mxu0 %v3483
      %3598 = vmatprep.subr.bf16.mxu0 0
      %3599 = vmatpush1.bf16.msra.mxu0 %v3484
      %3600 = vmatprep.subr.bf16.mxu0 0
      %3601 = vmatpush1.bf16.msra.mxu0 %v3485
      %3602 = vmatprep.subr.bf16.mxu0 0
      %3603 = vmatpush1.bf16.msra.mxu0 %v3486
      %3604 = vmatprep.subr.bf16.mxu0 0
      %3605 = vmatpush1.bf16.msra.mxu0 %v3487
      %3606 = vmatprep.subr.bf16.mxu0 0
      %3607 = vmatpush1.bf16.msra.mxu0 %v3488
      %3608 = vmatprep.subr.bf16.mxu0 0
      %3609 = vmatpush1.bf16.msra.mxu0 %v3489
      %3610 = vmatprep.subr.bf16.mxu0 0
      %3611 = vmatpush1.bf16.msra.mxu0 %v3490
      %3612 = vmatprep.subr.bf16.mxu0 0
      %3613 = vmatpush1.bf16.msra.mxu0 %v3491
      %3614 = vmatprep.subr.bf16.mxu0 0
      %3615 = vmatpush1.bf16.msra.mxu0 %v3492
      %3616 = vmatprep.subr.bf16.mxu0 0
      %3617 = vmatpush1.bf16.msra.mxu0 %v3493
      %3618 = vmatprep.subr.bf16.mxu0 0
      %3619 = vmatpush1.bf16.msra.mxu0 %v3494
      %3620 = vmatprep.subr.bf16.mxu0 0
      %3621 = vmatpush1.bf16.msra.mxu0 %v3495
      %3622 = vmatprep.subr.bf16.mxu0 0
      %3623 = vmatpush1.bf16.msra.mxu0 %v3496
      %3624 = vmatprep.subr.bf16.mxu0 0
      %3625 = vmatpush1.bf16.msra.mxu0 %v3497
      %3626 = vmatprep.subr.bf16.mxu0 0
      %3627 = vmatpush1.bf16.msra.mxu0 %v3498
      %3628 = vmatprep.mubr.bf16.mxu0 %v3261
      %3629 = vmatmul.mubr.bf16.gmra.mrb[0].mxu0 %v3260
      %v3630 = vpop.f32.mrb[0].mxu0
      %v3631 = vadd.f32 %v3566, %v3630
      %v3632 = vpop.f32.mrb[0].mxu0
      %v3633 = vpop.f32.mrb[0].mxu0
      %v3634 = vadd.f32 %v3569, %v3633
      %v3635 = vpop.f32.mrb[0].mxu0
      %3636 = vmatprep.mubr.bf16.mxu0 %v3265
      %3637 = vmatmul.mubr.bf16.gmra.mrb[0].mxu0 %v3264
      %v3638 = vpop.f32.mrb[0].mxu0
      %v3639 = vadd.f32 %v3574, %v3638
      %v3640 = vpop.f32.mrb[0].mxu0
      %v3641 = vpop.f32.mrb[0].mxu0
      %v3642 = vadd.f32 %v3577, %v3641
      %v3643 = vpop.f32.mrb[0].mxu0
      %3644 = vmatprep.mubr.bf16.mxu0 %v3269
      %3645 = vmatmul.mubr.bf16.gmra.mrb[0].mxu0 %v3268
      %v3646 = vpop.f32.mrb[0].mxu0
      %v3647 = vadd.f32 %v3582, %v3646
      %v3648 = vpop.f32.mrb[0].mxu0
      %v3649 = vpop.f32.mrb[0].mxu0
      %v3650 = vadd.f32 %v3585, %v3649
      %v3651 = vpop.f32.mrb[0].mxu0
      %3652 = vmatprep.mubr.bf16.mxu0 %v3273
      %3653 = vmatmul.mubr.bf16.gmra.mrb[0].mxu0 %v3272
      %v3654 = vpop.f32.mrb[0].mxu0
      %v3655 = vadd.f32 %v3590, %v3654
      %v3656 = vpop.f32.mrb[0].mxu0
      %v3657 = vpop.f32.mrb[0].mxu0
      %v3658 = vadd.f32 %v3593, %v3657
      %v3659 = vpop.f32.mrb[0].mxu0
      %3660 = vdwg.mxu0
      %v3661 = vadd.f32 %v3063, %v3631
      %v3662 = vadd.f32 %v3064, %v3634
      %v3663 = vadd.f32 %v3065, %v3639
      %v3664 = vadd.f32 %v3066, %v3642
      %v3665 = vadd.f32 %v3067, %v3647
      %v3666 = vadd.f32 %v3068, %v3650
      %v3667 = vadd.f32 %v3069, %v3655
      %v3668 = vadd.f32 %v3070, %v3658
      %s3669 = scalar_lea.vmem %s1, 160
      %v3670 = vld [vmem:[%s3669] sm:$0xf]
      %v3671 = vld [vmem:[%s3669 + $0x4] sm:$0xf]
      %v3672 = vld [vmem:[%s3669 + $0x8] sm:$0xf]
      %v3673 = vld [vmem:[%s3669 + $0xc] sm:$0xf]
      %v3674 = vld [vmem:[%s3669 + $0x10] sm:$0xf]
      %v3675 = vld [vmem:[%s3669 + $0x14] sm:$0xf]
      %v3676 = vld [vmem:[%s3669 + $0x18] sm:$0xf]
      %v3677 = vld [vmem:[%s3669 + $0x1c] sm:$0xf]
      %v3686 = vunpack.c.l.b16 %v3670
      %v3687 = vunpack.c.l.b16 %v3671
      %v3688 = vunpack.c.l.b16 %v3672
      %v3689 = vunpack.c.l.b16 %v3673
      %v3690 = vunpack.c.l.b16 %v3674
      %v3691 = vunpack.c.l.b16 %v3675
      %v3692 = vunpack.c.l.b16 %v3676
      %v3693 = vunpack.c.l.b16 %v3677
      %v3694 = vpack.c.b16 %v3687, %v3686
      %v3695 = vpack.c.b16 %v3689, %v3688
      %v3696 = vpack.c.b16 %v3691, %v3690
      %v3697 = vpack.c.b16 %v3693, %v3692
      %v3699 = vsel %vm724, %v3694, 0
      %v3702 = vsel %vm724, %v3695, 0
      %v3705 = vsel %vm724, %v3696, 0
      %v3708 = vsel %vm724, %v3697, 0
      %3710 = vmatprep.subr.bf16.mxu0 %v693
      %3711 = vmatpush1.bf16.msra.mxu0 %v692
      %3712 = vmatprep.subr.bf16.mxu0 %v697
      %3713 = vmatpush1.bf16.msra.mxu0 %v696
      %3714 = vmatprep.subr.bf16.mxu0 %v701
      %3715 = vmatpush1.bf16.msra.mxu0 %v700
      %3716 = vmatprep.subr.bf16.mxu0 %v705
      %3717 = vmatpush1.bf16.msra.mxu0 %v704
      %3718 = vmatprep.subr.bf16.mxu0 0
      %3719 = vmatpush1.bf16.msra.mxu0 0
      %3720 = vmatprep.subr.bf16.mxu0 0
      %3721 = vmatpush1.bf16.msra.mxu0 0
      %3722 = vmatprep.subr.bf16.mxu0 0
      %3723 = vmatpush1.bf16.msra.mxu0 0
      %3724 = vmatprep.subr.bf16.mxu0 0
      %3725 = vmatpush1.bf16.msra.mxu0 0
      %3726 = vmatprep.subr.bf16.mxu0 0
      %3727 = vmatpush1.bf16.msra.mxu0 0
      %3728 = vmatprep.subr.bf16.mxu0 0
      %3729 = vmatpush1.bf16.msra.mxu0 0
      %3730 = vmatprep.subr.bf16.mxu0 0
      %3731 = vmatpush1.bf16.msra.mxu0 0
      %3732 = vmatprep.subr.bf16.mxu0 0
      %3733 = vmatpush1.bf16.msra.mxu0 0
      %3734 = vmatprep.subr.bf16.mxu0 0
      %3735 = vmatpush1.bf16.msra.mxu0 0
      %3736 = vmatprep.subr.bf16.mxu0 0
      %3737 = vmatpush1.bf16.msra.mxu0 0
      %3738 = vmatprep.subr.bf16.mxu0 0
      %3739 = vmatpush1.bf16.msra.mxu0 0
      %3740 = vmatprep.subr.bf16.mxu0 0
      %3741 = vmatpush1.bf16.msra.mxu0 0
      %3742 = vmatprep.mubr.bf16.mxu0 0
      %3743 = vmatmul.mubr.bf16.gmra.mrb[0].mxu0 %v3699
      %v3744 = vpop.f32.mrb[0].mxu0
      %v3745 = vadd.f32 0.0, %v3744
      %v3746 = vpop.f32.mrb[0].mxu0
      %v3747 = vadd.f32 0.0, %v3746
      %v3748 = vpop.f32.mrb[0].mxu0
      %v3749 = vadd.f32 0.0, %v3748
      %v3750 = vpop.f32.mrb[0].mxu0
      %v3751 = vadd.f32 0.0, %v3750
      %3752 = vmatprep.mubr.bf16.mxu0 0
      %3753 = vmatmul.mubr.bf16.gmra.mrb[0].mxu0 %v3702
      %v3754 = vpop.f32.mrb[0].mxu0
      %v3755 = vadd.f32 0.0, %v3754
      %v3756 = vpop.f32.mrb[0].mxu0
      %v3757 = vadd.f32 0.0, %v3756
      %v3758 = vpop.f32.mrb[0].mxu0
      %v3759 = vadd.f32 0.0, %v3758
      %v3760 = vpop.f32.mrb[0].mxu0
      %v3761 = vadd.f32 0.0, %v3760
      %3762 = vmatprep.mubr.bf16.mxu0 0
      %3763 = vmatmul.mubr.bf16.gmra.mrb[0].mxu0 %v3705
      %v3764 = vpop.f32.mrb[0].mxu0
      %v3765 = vadd.f32 0.0, %v3764
      %v3766 = vpop.f32.mrb[0].mxu0
      %v3767 = vadd.f32 0.0, %v3766
      %v3768 = vpop.f32.mrb[0].mxu0
      %v3769 = vadd.f32 0.0, %v3768
      %v3770 = vpop.f32.mrb[0].mxu0
      %v3771 = vadd.f32 0.0, %v3770
      %3772 = vmatprep.mubr.bf16.mxu0 0
      %3773 = vmatmul.mubr.bf16.gmra.mrb[0].mxu0 %v3708
      %v3774 = vpop.f32.mrb[0].mxu0
      %v3775 = vadd.f32 0.0, %v3774
      %v3776 = vpop.f32.mrb[0].mxu0
      %v3777 = vadd.f32 0.0, %v3776
      %v3778 = vpop.f32.mrb[0].mxu0
      %v3779 = vadd.f32 0.0, %v3778
      %v3780 = vpop.f32.mrb[0].mxu0
      %v3781 = vadd.f32 0.0, %v3780
      %3782 = vdwg.mxu0
      %3783 = vmatprep.subr.bf16.mxu0 %v695
      %3784 = vmatpush1.bf16.msra.mxu0 %v694
      %3785 = vmatprep.subr.bf16.mxu0 %v699
      %3786 = vmatpush1.bf16.msra.mxu0 %v698
      %3787 = vmatprep.subr.bf16.mxu0 %v703
      %3788 = vmatpush1.bf16.msra.mxu0 %v702
      %3789 = vmatprep.subr.bf16.mxu0 %v707
      %3790 = vmatpush1.bf16.msra.mxu0 %v706
      %3791 = vmatprep.subr.bf16.mxu0 0
      %3792 = vmatpush1.bf16.msra.mxu0 0
      %3793 = vmatprep.subr.bf16.mxu0 0
      %3794 = vmatpush1.bf16.msra.mxu0 0
      %3795 = vmatprep.subr.bf16.mxu0 0
      %3796 = vmatpush1.bf16.msra.mxu0 0
      %3797 = vmatprep.subr.bf16.mxu0 0
      %3798 = vmatpush1.bf16.msra.mxu0 0
      %3799 = vmatprep.subr.bf16.mxu0 0
      %3800 = vmatpush1.bf16.msra.mxu0 0
      %3801 = vmatprep.subr.bf16.mxu0 0
      %3802 = vmatpush1.bf16.msra.mxu0 0
      %3803 = vmatprep.subr.bf16.mxu0 0
      %3804 = vmatpush1.bf16.msra.mxu0 0
      %3805 = vmatprep.subr.bf16.mxu0 0
      %3806 = vmatpush1.bf16.msra.mxu0 0
      %3807 = vmatprep.subr.bf16.mxu0 0
      %3808 = vmatpush1.bf16.msra.mxu0 0
      %3809 = vmatprep.subr.bf16.mxu0 0
      %3810 = vmatpush1.bf16.msra.mxu0 0
      %3811 = vmatprep.subr.bf16.mxu0 0
      %3812 = vmatpush1.bf16.msra.mxu0 0
      %3813 = vmatprep.subr.bf16.mxu0 0
      %3814 = vmatpush1.bf16.msra.mxu0 0
      %3815 = vmatprep.mubr.bf16.mxu0 0
      %3816 = vmatmul.mubr.bf16.gmra.mrb[0].mxu0 %v3699
      %v3817 = vpop.f32.mrb[0].mxu0
      %v3818 = vadd.f32 0.0, %v3817
      %v3819 = vpop.f32.mrb[0].mxu0
      %v3820 = vadd.f32 0.0, %v3819
      %v3821 = vpop.f32.mrb[0].mxu0
      %v3822 = vadd.f32 0.0, %v3821
      %v3823 = vpop.f32.mrb[0].mxu0
      %v3824 = vadd.f32 0.0, %v3823
      %3825 = vmatprep.mubr.bf16.mxu0 0
      %3826 = vmatmul.mubr.bf16.gmra.mrb[0].mxu0 %v3702
      %v3827 = vpop.f32.mrb[0].mxu0
      %v3828 = vadd.f32 0.0, %v3827
      %v3829 = vpop.f32.mrb[0].mxu0
      %v3830 = vadd.f32 0.0, %v3829
      %v3831 = vpop.f32.mrb[0].mxu0
      %v3832 = vadd.f32 0.0, %v3831
      %v3833 = vpop.f32.mrb[0].mxu0
      %v3834 = vadd.f32 0.0, %v3833
      %3835 = vmatprep.mubr.bf16.mxu0 0
      %3836 = vmatmul.mubr.bf16.gmra.mrb[0].mxu0 %v3705
      %v3837 = vpop.f32.mrb[0].mxu0
      %v3838 = vadd.f32 0.0, %v3837
      %v3839 = vpop.f32.mrb[0].mxu0
      %v3840 = vadd.f32 0.0, %v3839
      %v3841 = vpop.f32.mrb[0].mxu0
      %v3842 = vadd.f32 0.0, %v3841
      %v3843 = vpop.f32.mrb[0].mxu0
      %v3844 = vadd.f32 0.0, %v3843
      %3845 = vmatprep.mubr.bf16.mxu0 0
      %3846 = vmatmul.mubr.bf16.gmra.mrb[0].mxu0 %v3708
      %v3847 = vpop.f32.mrb[0].mxu0
      %v3848 = vadd.f32 0.0, %v3847
      %v3849 = vpop.f32.mrb[0].mxu0
      %v3850 = vadd.f32 0.0, %v3849
      %v3851 = vpop.f32.mrb[0].mxu0
      %v3852 = vadd.f32 0.0, %v3851
      %v3853 = vpop.f32.mrb[0].mxu0
      %v3854 = vadd.f32 0.0, %v3853
      %3855 = vdwg.mxu0
      %v3856 = vpack.c.bf16 %v3749, %v3745
      %v3857 = vpack.c.bf16 %v3751, %v3747
      %v3858 = vpack.c.bf16 %v3822, %v3818
      %v3859 = vpack.c.bf16 %v3824, %v3820
      %v3860 = vpack.c.bf16 %v3759, %v3755
      %v3861 = vpack.c.bf16 %v3761, %v3757
      %v3862 = vpack.c.bf16 %v3832, %v3828
      %v3863 = vpack.c.bf16 %v3834, %v3830
      %v3864 = vpack.c.bf16 %v3769, %v3765
      %v3865 = vpack.c.bf16 %v3771, %v3767
      %v3866 = vpack.c.bf16 %v3842, %v3838
      %v3867 = vpack.c.bf16 %v3844, %v3840
      %v3868 = vpack.c.bf16 %v3779, %v3775
      %v3869 = vpack.c.bf16 %v3781, %v3777
      %v3870 = vpack.c.bf16 %v3852, %v3848
      %v3871 = vpack.c.bf16 %v3854, %v3850
      %s3872 = scalar_lea.vmem %s4, 1280
      %v3873 = vld [vmem:[%s3872] sm:$0xf]
      %v3874 = vld [vmem:[%s3872 + $0x4] sm:$0xf]
      %v3875 = vld [vmem:[%s3872 + $0x8] sm:$0xf]
      %v3876 = vld [vmem:[%s3872 + $0xc] sm:$0xf]
      %v3877 = vld [vmem:[%s3872 + $0x10] sm:$0xf]
      %v3878 = vld [vmem:[%s3872 + $0x14] sm:$0xf]
      %v3879 = vld [vmem:[%s3872 + $0x18] sm:$0xf]
      %v3880 = vld [vmem:[%s3872 + $0x1c] sm:$0xf]
      %v3881 = vld [vmem:[%s3872 + $0x20] sm:$0xf]
      %v3882 = vld [vmem:[%s3872 + $0x24] sm:$0xf]
      %v3883 = vld [vmem:[%s3872 + $0x28] sm:$0xf]
      %v3884 = vld [vmem:[%s3872 + $0x2c] sm:$0xf]
      %v3885 = vld [vmem:[%s3872 + $0x30] sm:$0xf]
      %v3886 = vld [vmem:[%s3872 + $0x34] sm:$0xf]
      %v3887 = vld [vmem:[%s3872 + $0x38] sm:$0xf]
      %v3888 = vld [vmem:[%s3872 + $0x3c] sm:$0xf]
      %v3889 = vld [vmem:[%s3872 + $0x40] sm:$0xf]
      %v3890 = vld [vmem:[%s3872 + $0x44] sm:$0xf]
      %v3891 = vld [vmem:[%s3872 + $0x48] sm:$0xf]
      %v3892 = vld [vmem:[%s3872 + $0x4c] sm:$0xf]
      %v3893 = vld [vmem:[%s3872 + $0x50] sm:$0xf]
      %v3894 = vld [vmem:[%s3872 + $0x54] sm:$0xf]
      %v3895 = vld [vmem:[%s3872 + $0x58] sm:$0xf]
      %v3896 = vld [vmem:[%s3872 + $0x5c] sm:$0xf]
      %v3897 = vld [vmem:[%s3872 + $0x60] sm:$0xf]
      %v3898 = vld [vmem:[%s3872 + $0x64] sm:$0xf]
      %v3899 = vld [vmem:[%s3872 + $0x68] sm:$0xf]
      %v3900 = vld [vmem:[%s3872 + $0x6c] sm:$0xf]
      %v3901 = vld [vmem:[%s3872 + $0x70] sm:$0xf]
      %v3902 = vld [vmem:[%s3872 + $0x74] sm:$0xf]
      %v3903 = vld [vmem:[%s3872 + $0x78] sm:$0xf]
      %v3904 = vld [vmem:[%s3872 + $0x7c] sm:$0xf]
      %v3905 = vld [vmem:[%s3872 + $0x80] sm:$0xf]
      %v3906 = vld [vmem:[%s3872 + $0x84] sm:$0xf]
      %v3907 = vld [vmem:[%s3872 + $0x88] sm:$0xf]
      %v3908 = vld [vmem:[%s3872 + $0x8c] sm:$0xf]
      %v3909 = vld [vmem:[%s3872 + $0x90] sm:$0xf]
      %v3910 = vld [vmem:[%s3872 + $0x94] sm:$0xf]
      %v3911 = vld [vmem:[%s3872 + $0x98] sm:$0xf]
      %v3912 = vld [vmem:[%s3872 + $0x9c] sm:$0xf]
      %v3913 = vld [vmem:[%s3872 + $0xa0] sm:$0xf]
      %v3914 = vld [vmem:[%s3872 + $0xa4] sm:$0xf]
      %v3915 = vld [vmem:[%s3872 + $0xa8] sm:$0xf]
      %v3916 = vld [vmem:[%s3872 + $0xac] sm:$0xf]
      %v3917 = vld [vmem:[%s3872 + $0xb0] sm:$0xf]
      %v3918 = vld [vmem:[%s3872 + $0xb4] sm:$0xf]
      %v3919 = vld [vmem:[%s3872 + $0xb8] sm:$0xf]
      %v3920 = vld [vmem:[%s3872 + $0xbc] sm:$0xf]
      %v3921 = vld [vmem:[%s3872 + $0xc0] sm:$0xf]
      %v3922 = vld [vmem:[%s3872 + $0xc4] sm:$0xf]
      %v3923 = vld [vmem:[%s3872 + $0xc8] sm:$0xf]
      %v3924 = vld [vmem:[%s3872 + $0xcc] sm:$0xf]
      %v3925 = vld [vmem:[%s3872 + $0xd0] sm:$0xf]
      %v3926 = vld [vmem:[%s3872 + $0xd4] sm:$0xf]
      %v3927 = vld [vmem:[%s3872 + $0xd8] sm:$0xf]
      %v3928 = vld [vmem:[%s3872 + $0xdc] sm:$0xf]
      %v3929 = vld [vmem:[%s3872 + $0xe0] sm:$0xf]
      %v3930 = vld [vmem:[%s3872 + $0xe4] sm:$0xf]
      %v3931 = vld [vmem:[%s3872 + $0xe8] sm:$0xf]
      %v3932 = vld [vmem:[%s3872 + $0xec] sm:$0xf]
      %v3933 = vld [vmem:[%s3872 + $0xf0] sm:$0xf]
      %v3934 = vld [vmem:[%s3872 + $0xf4] sm:$0xf]
      %v3935 = vld [vmem:[%s3872 + $0xf8] sm:$0xf]
      %v3936 = vld [vmem:[%s3872 + $0xfc] sm:$0xf]
      %v4001 = vunpack.c.l.b16 %v3873
      %v4002 = vunpack.c.l.b16 %v3874
      %v4003 = vunpack.c.l.b16 %v3875
      %v4004 = vunpack.c.l.b16 %v3876
      %v4005 = vunpack.c.l.b16 %v3877
      %v4006 = vunpack.c.l.b16 %v3878
      %v4007 = vunpack.c.l.b16 %v3879
      %v4008 = vunpack.c.l.b16 %v3880
      %v4009 = vunpack.c.l.b16 %v3881
      %v4010 = vunpack.c.l.b16 %v3882
      %v4011 = vunpack.c.l.b16 %v3883
      %v4012 = vunpack.c.l.b16 %v3884
      %v4013 = vunpack.c.l.b16 %v3885
      %v4014 = vunpack.c.l.b16 %v3886
      %v4015 = vunpack.c.l.b16 %v3887
      %v4016 = vunpack.c.l.b16 %v3888
      %v4017 = vunpack.c.l.b16 %v3889
      %v4018 = vunpack.c.l.b16 %v3890
      %v4019 = vunpack.c.l.b16 %v3891
      %v4020 = vunpack.c.l.b16 %v3892
      %v4021 = vunpack.c.l.b16 %v3893
      %v4022 = vunpack.c.l.b16 %v3894
      %v4023 = vunpack.c.l.b16 %v3895
      %v4024 = vunpack.c.l.b16 %v3896
      %v4025 = vunpack.c.l.b16 %v3897
      %v4026 = vunpack.c.l.b16 %v3898
      %v4027 = vunpack.c.l.b16 %v3899
      %v4028 = vunpack.c.l.b16 %v3900
      %v4029 = vunpack.c.l.b16 %v3901
      %v4030 = vunpack.c.l.b16 %v3902
      %v4031 = vunpack.c.l.b16 %v3903
      %v4032 = vunpack.c.l.b16 %v3904
      %v4033 = vunpack.c.l.b16 %v3905
      %v4034 = vunpack.c.l.b16 %v3906
      %v4035 = vunpack.c.l.b16 %v3907
      %v4036 = vunpack.c.l.b16 %v3908
      %v4037 = vunpack.c.l.b16 %v3909
      %v4038 = vunpack.c.l.b16 %v3910
      %v4039 = vunpack.c.l.b16 %v3911
      %v4040 = vunpack.c.l.b16 %v3912
      %v4041 = vunpack.c.l.b16 %v3913
      %v4042 = vunpack.c.l.b16 %v3914
      %v4043 = vunpack.c.l.b16 %v3915
      %v4044 = vunpack.c.l.b16 %v3916
      %v4045 = vunpack.c.l.b16 %v3917
      %v4046 = vunpack.c.l.b16 %v3918
      %v4047 = vunpack.c.l.b16 %v3919
      %v4048 = vunpack.c.l.b16 %v3920
      %v4049 = vunpack.c.l.b16 %v3921
      %v4050 = vunpack.c.l.b16 %v3922
      %v4051 = vunpack.c.l.b16 %v3923
      %v4052 = vunpack.c.l.b16 %v3924
      %v4053 = vunpack.c.l.b16 %v3925
      %v4054 = vunpack.c.l.b16 %v3926
      %v4055 = vunpack.c.l.b16 %v3927
      %v4056 = vunpack.c.l.b16 %v3928
      %v4057 = vunpack.c.l.b16 %v3929
      %v4058 = vunpack.c.l.b16 %v3930
      %v4059 = vunpack.c.l.b16 %v3931
      %v4060 = vunpack.c.l.b16 %v3932
      %v4061 = vunpack.c.l.b16 %v3933
      %v4062 = vunpack.c.l.b16 %v3934
      %v4063 = vunpack.c.l.b16 %v3935
      %v4064 = vunpack.c.l.b16 %v3936
      %v4065 = vpack.c.b16 %v4002, %v4001
      %v4066 = vpack.c.b16 %v4004, %v4003
      %v4067 = vpack.c.b16 %v4006, %v4005
      %v4068 = vpack.c.b16 %v4008, %v4007
      %v4069 = vpack.c.b16 %v4010, %v4009
      %v4070 = vpack.c.b16 %v4012, %v4011
      %v4071 = vpack.c.b16 %v4014, %v4013
      %v4072 = vpack.c.b16 %v4016, %v4015
      %v4073 = vpack.c.b16 %v4018, %v4017
      %v4074 = vpack.c.b16 %v4020, %v4019
      %v4075 = vpack.c.b16 %v4022, %v4021
      %v4076 = vpack.c.b16 %v4024, %v4023
      %v4077 = vpack.c.b16 %v4026, %v4025
      %v4078 = vpack.c.b16 %v4028, %v4027
      %v4079 = vpack.c.b16 %v4030, %v4029
      %v4080 = vpack.c.b16 %v4032, %v4031
      %v4081 = vpack.c.b16 %v4034, %v4033
      %v4082 = vpack.c.b16 %v4036, %v4035
      %v4083 = vpack.c.b16 %v4038, %v4037
      %v4084 = vpack.c.b16 %v4040, %v4039
      %v4085 = vpack.c.b16 %v4042, %v4041
      %v4086 = vpack.c.b16 %v4044, %v4043
      %v4087 = vpack.c.b16 %v4046, %v4045
      %v4088 = vpack.c.b16 %v4048, %v4047
      %v4089 = vpack.c.b16 %v4050, %v4049
      %v4090 = vpack.c.b16 %v4052, %v4051
      %v4091 = vpack.c.b16 %v4054, %v4053
      %v4092 = vpack.c.b16 %v4056, %v4055
      %v4093 = vpack.c.b16 %v4058, %v4057
      %v4094 = vpack.c.b16 %v4060, %v4059
      %v4095 = vpack.c.b16 %v4062, %v4061
      %v4096 = vpack.c.b16 %v4064, %v4063
      %4129 = vmatprep.subr.bf16.mxu0 0
      %4130 = vmatpush1.bf16.msra.mxu0 %v4065
      %4131 = vmatprep.subr.bf16.mxu0 0
      %4132 = vmatpush1.bf16.msra.mxu0 %v4066
      %4133 = vmatprep.subr.bf16.mxu0 0
      %4134 = vmatpush1.bf16.msra.mxu0 %v4067
      %4135 = vmatprep.subr.bf16.mxu0 0
      %4136 = vmatpush1.bf16.msra.mxu0 %v4068
      %4137 = vmatprep.subr.bf16.mxu0 0
      %4138 = vmatpush1.bf16.msra.mxu0 %v4069
      %4139 = vmatprep.subr.bf16.mxu0 0
      %4140 = vmatpush1.bf16.msra.mxu0 %v4070
      %4141 = vmatprep.subr.bf16.mxu0 0
      %4142 = vmatpush1.bf16.msra.mxu0 %v4071
      %4143 = vmatprep.subr.bf16.mxu0 0
      %4144 = vmatpush1.bf16.msra.mxu0 %v4072
      %4145 = vmatprep.subr.bf16.mxu0 0
      %4146 = vmatpush1.bf16.msra.mxu0 %v4073
      %4147 = vmatprep.subr.bf16.mxu0 0
      %4148 = vmatpush1.bf16.msra.mxu0 %v4074
      %4149 = vmatprep.subr.bf16.mxu0 0
      %4150 = vmatpush1.bf16.msra.mxu0 %v4075
      %4151 = vmatprep.subr.bf16.mxu0 0
      %4152 = vmatpush1.bf16.msra.mxu0 %v4076
      %4153 = vmatprep.subr.bf16.mxu0 0
      %4154 = vmatpush1.bf16.msra.mxu0 %v4077
      %4155 = vmatprep.subr.bf16.mxu0 0
      %4156 = vmatpush1.bf16.msra.mxu0 %v4078
      %4157 = vmatprep.subr.bf16.mxu0 0
      %4158 = vmatpush1.bf16.msra.mxu0 %v4079
      %4159 = vmatprep.subr.bf16.mxu0 0
      %4160 = vmatpush1.bf16.msra.mxu0 %v4080
      %4161 = vmatprep.mubr.bf16.mxu0 %v3857
      %4162 = vmatmul.mubr.bf16.gmra.mrb[0].mxu0 %v3856
      %v4163 = vpop.f32.mrb[0].mxu0
      %v4164 = vadd.f32 0.0, %v4163
      %v4165 = vpop.f32.mrb[0].mxu0
      %v4166 = vpop.f32.mrb[0].mxu0
      %v4167 = vadd.f32 0.0, %v4166
      %v4168 = vpop.f32.mrb[0].mxu0
      %4169 = vmatprep.mubr.bf16.mxu0 %v3861
      %4170 = vmatmul.mubr.bf16.gmra.mrb[0].mxu0 %v3860
      %v4171 = vpop.f32.mrb[0].mxu0
      %v4172 = vadd.f32 0.0, %v4171
      %v4173 = vpop.f32.mrb[0].mxu0
      %v4174 = vpop.f32.mrb[0].mxu0
      %v4175 = vadd.f32 0.0, %v4174
      %v4176 = vpop.f32.mrb[0].mxu0
      %4177 = vmatprep.mubr.bf16.mxu0 %v3865
      %4178 = vmatmul.mubr.bf16.gmra.mrb[0].mxu0 %v3864
      %v4179 = vpop.f32.mrb[0].mxu0
      %v4180 = vadd.f32 0.0, %v4179
      %v4181 = vpop.f32.mrb[0].mxu0
      %v4182 = vpop.f32.mrb[0].mxu0
      %v4183 = vadd.f32 0.0, %v4182
      %v4184 = vpop.f32.mrb[0].mxu0
      %4185 = vmatprep.mubr.bf16.mxu0 %v3869
      %4186 = vmatmul.mubr.bf16.gmra.mrb[0].mxu0 %v3868
      %v4187 = vpop.f32.mrb[0].mxu0
      %v4188 = vadd.f32 0.0, %v4187
      %v4189 = vpop.f32.mrb[0].mxu0
      %v4190 = vpop.f32.mrb[0].mxu0
      %v4191 = vadd.f32 0.0, %v4190
      %v4192 = vpop.f32.mrb[0].mxu0
      %4193 = vdwg.mxu0
      %4194 = vmatprep.subr.bf16.mxu0 0
      %4195 = vmatpush1.bf16.msra.mxu0 %v4081
      %4196 = vmatprep.subr.bf16.mxu0 0
      %4197 = vmatpush1.bf16.msra.mxu0 %v4082
      %4198 = vmatprep.subr.bf16.mxu0 0
      %4199 = vmatpush1.bf16.msra.mxu0 %v4083
      %4200 = vmatprep.subr.bf16.mxu0 0
      %4201 = vmatpush1.bf16.msra.mxu0 %v4084
      %4202 = vmatprep.subr.bf16.mxu0 0
      %4203 = vmatpush1.bf16.msra.mxu0 %v4085
      %4204 = vmatprep.subr.bf16.mxu0 0
      %4205 = vmatpush1.bf16.msra.mxu0 %v4086
      %4206 = vmatprep.subr.bf16.mxu0 0
      %4207 = vmatpush1.bf16.msra.mxu0 %v4087
      %4208 = vmatprep.subr.bf16.mxu0 0
      %4209 = vmatpush1.bf16.msra.mxu0 %v4088
      %4210 = vmatprep.subr.bf16.mxu0 0
      %4211 = vmatpush1.bf16.msra.mxu0 %v4089
      %4212 = vmatprep.subr.bf16.mxu0 0
      %4213 = vmatpush1.bf16.msra.mxu0 %v4090
      %4214 = vmatprep.subr.bf16.mxu0 0
      %4215 = vmatpush1.bf16.msra.mxu0 %v4091
      %4216 = vmatprep.subr.bf16.mxu0 0
      %4217 = vmatpush1.bf16.msra.mxu0 %v4092
      %4218 = vmatprep.subr.bf16.mxu0 0
      %4219 = vmatpush1.bf16.msra.mxu0 %v4093
      %4220 = vmatprep.subr.bf16.mxu0 0
      %4221 = vmatpush1.bf16.msra.mxu0 %v4094
      %4222 = vmatprep.subr.bf16.mxu0 0
      %4223 = vmatpush1.bf16.msra.mxu0 %v4095
      %4224 = vmatprep.subr.bf16.mxu0 0
      %4225 = vmatpush1.bf16.msra.mxu0 %v4096
      %4226 = vmatprep.mubr.bf16.mxu0 %v3859
      %4227 = vmatmul.mubr.bf16.gmra.mrb[0].mxu0 %v3858
      %v4228 = vpop.f32.mrb[0].mxu0
      %v4229 = vadd.f32 %v4164, %v4228
      %v4230 = vpop.f32.mrb[0].mxu0
      %v4231 = vpop.f32.mrb[0].mxu0
      %v4232 = vadd.f32 %v4167, %v4231
      %v4233 = vpop.f32.mrb[0].mxu0
      %4234 = vmatprep.mubr.bf16.mxu0 %v3863
      %4235 = vmatmul.mubr.bf16.gmra.mrb[0].mxu0 %v3862
      %v4236 = vpop.f32.mrb[0].mxu0
      %v4237 = vadd.f32 %v4172, %v4236
      %v4238 = vpop.f32.mrb[0].mxu0
      %v4239 = vpop.f32.mrb[0].mxu0
      %v4240 = vadd.f32 %v4175, %v4239
      %v4241 = vpop.f32.mrb[0].mxu0
      %4242 = vmatprep.mubr.bf16.mxu0 %v3867
      %4243 = vmatmul.mubr.bf16.gmra.mrb[0].mxu0 %v3866
      %v4244 = vpop.f32.mrb[0].mxu0
      %v4245 = vadd.f32 %v4180, %v4244
      %v4246 = vpop.f32.mrb[0].mxu0
      %v4247 = vpop.f32.mrb[0].mxu0
      %v4248 = vadd.f32 %v4183, %v4247
      %v4249 = vpop.f32.mrb[0].mxu0
      %4250 = vmatprep.mubr.bf16.mxu0 %v3871
      %4251 = vmatmul.mubr.bf16.gmra.mrb[0].mxu0 %v3870
      %v4252 = vpop.f32.mrb[0].mxu0
      %v4253 = vadd.f32 %v4188, %v4252
      %v4254 = vpop.f32.mrb[0].mxu0
      %v4255 = vpop.f32.mrb[0].mxu0
      %v4256 = vadd.f32 %v4191, %v4255
      %v4257 = vpop.f32.mrb[0].mxu0
      %4258 = vdwg.mxu0
      %v4259 = vadd.f32 %v3661, %v4229
      %v4260 = vadd.f32 %v3662, %v4232
      %v4261 = vadd.f32 %v3663, %v4237
      %v4262 = vadd.f32 %v3664, %v4240
      %v4263 = vadd.f32 %v3665, %v4245
      %v4264 = vadd.f32 %v3666, %v4248
      %v4265 = vadd.f32 %v3667, %v4253
      %v4266 = vadd.f32 %v3668, %v4256
      %s4267 = scalar_lea.vmem %s1, 192
      %v4268 = vld [vmem:[%s4267] sm:$0xf]
      %v4269 = vld [vmem:[%s4267 + $0x4] sm:$0xf]
      %v4270 = vld [vmem:[%s4267 + $0x8] sm:$0xf]
      %v4271 = vld [vmem:[%s4267 + $0xc] sm:$0xf]
      %v4272 = vld [vmem:[%s4267 + $0x10] sm:$0xf]
      %v4273 = vld [vmem:[%s4267 + $0x14] sm:$0xf]
      %v4274 = vld [vmem:[%s4267 + $0x18] sm:$0xf]
      %v4275 = vld [vmem:[%s4267 + $0x1c] sm:$0xf]
      %v4284 = vunpack.c.l.b16 %v4268
      %v4285 = vunpack.c.l.b16 %v4269
      %v4286 = vunpack.c.l.b16 %v4270
      %v4287 = vunpack.c.l.b16 %v4271
      %v4288 = vunpack.c.l.b16 %v4272
      %v4289 = vunpack.c.l.b16 %v4273
      %v4290 = vunpack.c.l.b16 %v4274
      %v4291 = vunpack.c.l.b16 %v4275
      %v4292 = vpack.c.b16 %v4285, %v4284
      %v4293 = vpack.c.b16 %v4287, %v4286
      %v4294 = vpack.c.b16 %v4289, %v4288
      %v4295 = vpack.c.b16 %v4291, %v4290
      %v4297 = vsel %vm724, %v4292, 0
      %v4300 = vsel %vm724, %v4293, 0
      %v4303 = vsel %vm724, %v4294, 0
      %v4306 = vsel %vm724, %v4295, 0
      %4308 = vmatprep.subr.bf16.mxu0 %v693
      %4309 = vmatpush1.bf16.msra.mxu0 %v692
      %4310 = vmatprep.subr.bf16.mxu0 %v697
      %4311 = vmatpush1.bf16.msra.mxu0 %v696
      %4312 = vmatprep.subr.bf16.mxu0 %v701
      %4313 = vmatpush1.bf16.msra.mxu0 %v700
      %4314 = vmatprep.subr.bf16.mxu0 %v705
      %4315 = vmatpush1.bf16.msra.mxu0 %v704
      %4316 = vmatprep.subr.bf16.mxu0 0
      %4317 = vmatpush1.bf16.msra.mxu0 0
      %4318 = vmatprep.subr.bf16.mxu0 0
      %4319 = vmatpush1.bf16.msra.mxu0 0
      %4320 = vmatprep.subr.bf16.mxu0 0
      %4321 = vmatpush1.bf16.msra.mxu0 0
      %4322 = vmatprep.subr.bf16.mxu0 0
      %4323 = vmatpush1.bf16.msra.mxu0 0
      %4324 = vmatprep.subr.bf16.mxu0 0
      %4325 = vmatpush1.bf16.msra.mxu0 0
      %4326 = vmatprep.subr.bf16.mxu0 0
      %4327 = vmatpush1.bf16.msra.mxu0 0
      %4328 = vmatprep.subr.bf16.mxu0 0
      %4329 = vmatpush1.bf16.msra.mxu0 0
      %4330 = vmatprep.subr.bf16.mxu0 0
      %4331 = vmatpush1.bf16.msra.mxu0 0
      %4332 = vmatprep.subr.bf16.mxu0 0
      %4333 = vmatpush1.bf16.msra.mxu0 0
      %4334 = vmatprep.subr.bf16.mxu0 0
      %4335 = vmatpush1.bf16.msra.mxu0 0
      %4336 = vmatprep.subr.bf16.mxu0 0
      %4337 = vmatpush1.bf16.msra.mxu0 0
      %4338 = vmatprep.subr.bf16.mxu0 0
      %4339 = vmatpush1.bf16.msra.mxu0 0
      %4340 = vmatprep.mubr.bf16.mxu0 0
      %4341 = vmatmul.mubr.bf16.gmra.mrb[0].mxu0 %v4297
      %v4342 = vpop.f32.mrb[0].mxu0
      %v4343 = vadd.f32 0.0, %v4342
      %v4344 = vpop.f32.mrb[0].mxu0
      %v4345 = vadd.f32 0.0, %v4344
      %v4346 = vpop.f32.mrb[0].mxu0
      %v4347 = vadd.f32 0.0, %v4346
      %v4348 = vpop.f32.mrb[0].mxu0
      %v4349 = vadd.f32 0.0, %v4348
      %4350 = vmatprep.mubr.bf16.mxu0 0
      %4351 = vmatmul.mubr.bf16.gmra.mrb[0].mxu0 %v4300
      %v4352 = vpop.f32.mrb[0].mxu0
      %v4353 = vadd.f32 0.0, %v4352
      %v4354 = vpop.f32.mrb[0].mxu0
      %v4355 = vadd.f32 0.0, %v4354
      %v4356 = vpop.f32.mrb[0].mxu0
      %v4357 = vadd.f32 0.0, %v4356
      %v4358 = vpop.f32.mrb[0].mxu0
      %v4359 = vadd.f32 0.0, %v4358
      %4360 = vmatprep.mubr.bf16.mxu0 0
      %4361 = vmatmul.mubr.bf16.gmra.mrb[0].mxu0 %v4303
      %v4362 = vpop.f32.mrb[0].mxu0
      %v4363 = vadd.f32 0.0, %v4362
      %v4364 = vpop.f32.mrb[0].mxu0
      %v4365 = vadd.f32 0.0, %v4364
      %v4366 = vpop.f32.mrb[0].mxu0
      %v4367 = vadd.f32 0.0, %v4366
      %v4368 = vpop.f32.mrb[0].mxu0
      %v4369 = vadd.f32 0.0, %v4368
      %4370 = vmatprep.mubr.bf16.mxu0 0
      %4371 = vmatmul.mubr.bf16.gmra.mrb[0].mxu0 %v4306
      %v4372 = vpop.f32.mrb[0].mxu0
      %v4373 = vadd.f32 0.0, %v4372
      %v4374 = vpop.f32.mrb[0].mxu0
      %v4375 = vadd.f32 0.0, %v4374
      %v4376 = vpop.f32.mrb[0].mxu0
      %v4377 = vadd.f32 0.0, %v4376
      %v4378 = vpop.f32.mrb[0].mxu0
      %v4379 = vadd.f32 0.0, %v4378
      %4380 = vdwg.mxu0
      %4381 = vmatprep.subr.bf16.mxu0 %v695
      %4382 = vmatpush1.bf16.msra.mxu0 %v694
      %4383 = vmatprep.subr.bf16.mxu0 %v699
      %4384 = vmatpush1.bf16.msra.mxu0 %v698
      %4385 = vmatprep.subr.bf16.mxu0 %v703
      %4386 = vmatpush1.bf16.msra.mxu0 %v702
      %4387 = vmatprep.subr.bf16.mxu0 %v707
      %4388 = vmatpush1.bf16.msra.mxu0 %v706
      %4389 = vmatprep.subr.bf16.mxu0 0
      %4390 = vmatpush1.bf16.msra.mxu0 0
      %4391 = vmatprep.subr.bf16.mxu0 0
      %4392 = vmatpush1.bf16.msra.mxu0 0
      %4393 = vmatprep.subr.bf16.mxu0 0
      %4394 = vmatpush1.bf16.msra.mxu0 0
      %4395 = vmatprep.subr.bf16.mxu0 0
      %4396 = vmatpush1.bf16.msra.mxu0 0
      %4397 = vmatprep.subr.bf16.mxu0 0
      %4398 = vmatpush1.bf16.msra.mxu0 0
      %4399 = vmatprep.subr.bf16.mxu0 0
      %4400 = vmatpush1.bf16.msra.mxu0 0
      %4401 = vmatprep.subr.bf16.mxu0 0
      %4402 = vmatpush1.bf16.msra.mxu0 0
      %4403 = vmatprep.subr.bf16.mxu0 0
      %4404 = vmatpush1.bf16.msra.mxu0 0
      %4405 = vmatprep.subr.bf16.mxu0 0
      %4406 = vmatpush1.bf16.msra.mxu0 0
      %4407 = vmatprep.subr.bf16.mxu0 0
      %4408 = vmatpush1.bf16.msra.mxu0 0
      %4409 = vmatprep.subr.bf16.mxu0 0
      %4410 = vmatpush1.bf16.msra.mxu0 0
      %4411 = vmatprep.subr.bf16.mxu0 0
      %4412 = vmatpush1.bf16.msra.mxu0 0
      %4413 = vmatprep.mubr.bf16.mxu0 0
      %4414 = vmatmul.mubr.bf16.gmra.mrb[0].mxu0 %v4297
      %v4415 = vpop.f32.mrb[0].mxu0
      %v4416 = vadd.f32 0.0, %v4415
      %v4417 = vpop.f32.mrb[0].mxu0
      %v4418 = vadd.f32 0.0, %v4417
      %v4419 = vpop.f32.mrb[0].mxu0
      %v4420 = vadd.f32 0.0, %v4419
      %v4421 = vpop.f32.mrb[0].mxu0
      %v4422 = vadd.f32 0.0, %v4421
      %4423 = vmatprep.mubr.bf16.mxu0 0
      %4424 = vmatmul.mubr.bf16.gmra.mrb[0].mxu0 %v4300
      %v4425 = vpop.f32.mrb[0].mxu0
      %v4426 = vadd.f32 0.0, %v4425
      %v4427 = vpop.f32.mrb[0].mxu0
      %v4428 = vadd.f32 0.0, %v4427
      %v4429 = vpop.f32.mrb[0].mxu0
      %v4430 = vadd.f32 0.0, %v4429
      %v4431 = vpop.f32.mrb[0].mxu0
      %v4432 = vadd.f32 0.0, %v4431
      %4433 = vmatprep.mubr.bf16.mxu0 0
      %4434 = vmatmul.mubr.bf16.gmra.mrb[0].mxu0 %v4303
      %v4435 = vpop.f32.mrb[0].mxu0
      %v4436 = vadd.f32 0.0, %v4435
      %v4437 = vpop.f32.mrb[0].mxu0
      %v4438 = vadd.f32 0.0, %v4437
      %v4439 = vpop.f32.mrb[0].mxu0
      %v4440 = vadd.f32 0.0, %v4439
      %v4441 = vpop.f32.mrb[0].mxu0
      %v4442 = vadd.f32 0.0, %v4441
      %4443 = vmatprep.mubr.bf16.mxu0 0
      %4444 = vmatmul.mubr.bf16.gmra.mrb[0].mxu0 %v4306
      %v4445 = vpop.f32.mrb[0].mxu0
      %v4446 = vadd.f32 0.0, %v4445
      %v4447 = vpop.f32.mrb[0].mxu0
      %v4448 = vadd.f32 0.0, %v4447
      %v4449 = vpop.f32.mrb[0].mxu0
      %v4450 = vadd.f32 0.0, %v4449
      %v4451 = vpop.f32.mrb[0].mxu0
      %v4452 = vadd.f32 0.0, %v4451
      %4453 = vdwg.mxu0
      %v4454 = vpack.c.bf16 %v4347, %v4343
      %v4455 = vpack.c.bf16 %v4349, %v4345
      %v4456 = vpack.c.bf16 %v4420, %v4416
      %v4457 = vpack.c.bf16 %v4422, %v4418
      %v4458 = vpack.c.bf16 %v4357, %v4353
      %v4459 = vpack.c.bf16 %v4359, %v4355
      %v4460 = vpack.c.bf16 %v4430, %v4426
      %v4461 = vpack.c.bf16 %v4432, %v4428
      %v4462 = vpack.c.bf16 %v4367, %v4363
      %v4463 = vpack.c.bf16 %v4369, %v4365
      %v4464 = vpack.c.bf16 %v4440, %v4436
      %v4465 = vpack.c.bf16 %v4442, %v4438
      %v4466 = vpack.c.bf16 %v4377, %v4373
      %v4467 = vpack.c.bf16 %v4379, %v4375
      %v4468 = vpack.c.bf16 %v4450, %v4446
      %v4469 = vpack.c.bf16 %v4452, %v4448
      %s4470 = scalar_lea.vmem %s4, 1536
      %v4471 = vld [vmem:[%s4470] sm:$0xf]
      %v4472 = vld [vmem:[%s4470 + $0x4] sm:$0xf]
      %v4473 = vld [vmem:[%s4470 + $0x8] sm:$0xf]
      %v4474 = vld [vmem:[%s4470 + $0xc] sm:$0xf]
      %v4475 = vld [vmem:[%s4470 + $0x10] sm:$0xf]
      %v4476 = vld [vmem:[%s4470 + $0x14] sm:$0xf]
      %v4477 = vld [vmem:[%s4470 + $0x18] sm:$0xf]
      %v4478 = vld [vmem:[%s4470 + $0x1c] sm:$0xf]
      %v4479 = vld [vmem:[%s4470 + $0x20] sm:$0xf]
      %v4480 = vld [vmem:[%s4470 + $0x24] sm:$0xf]
      %v4481 = vld [vmem:[%s4470 + $0x28] sm:$0xf]
      %v4482 = vld [vmem:[%s4470 + $0x2c] sm:$0xf]
      %v4483 = vld [vmem:[%s4470 + $0x30] sm:$0xf]
      %v4484 = vld [vmem:[%s4470 + $0x34] sm:$0xf]
      %v4485 = vld [vmem:[%s4470 + $0x38] sm:$0xf]
      %v4486 = vld [vmem:[%s4470 + $0x3c] sm:$0xf]
      %v4487 = vld [vmem:[%s4470 + $0x40] sm:$0xf]
      %v4488 = vld [vmem:[%s4470 + $0x44] sm:$0xf]
      %v4489 = vld [vmem:[%s4470 + $0x48] sm:$0xf]
      %v4490 = vld [vmem:[%s4470 + $0x4c] sm:$0xf]
      %v4491 = vld [vmem:[%s4470 + $0x50] sm:$0xf]
      %v4492 = vld [vmem:[%s4470 + $0x54] sm:$0xf]
      %v4493 = vld [vmem:[%s4470 + $0x58] sm:$0xf]
      %v4494 = vld [vmem:[%s4470 + $0x5c] sm:$0xf]
      %v4495 = vld [vmem:[%s4470 + $0x60] sm:$0xf]
      %v4496 = vld [vmem:[%s4470 + $0x64] sm:$0xf]
      %v4497 = vld [vmem:[%s4470 + $0x68] sm:$0xf]
      %v4498 = vld [vmem:[%s4470 + $0x6c] sm:$0xf]
      %v4499 = vld [vmem:[%s4470 + $0x70] sm:$0xf]
      %v4500 = vld [vmem:[%s4470 + $0x74] sm:$0xf]
      %v4501 = vld [vmem:[%s4470 + $0x78] sm:$0xf]
      %v4502 = vld [vmem:[%s4470 + $0x7c] sm:$0xf]
      %v4503 = vld [vmem:[%s4470 + $0x80] sm:$0xf]
      %v4504 = vld [vmem:[%s4470 + $0x84] sm:$0xf]
      %v4505 = vld [vmem:[%s4470 + $0x88] sm:$0xf]
      %v4506 = vld [vmem:[%s4470 + $0x8c] sm:$0xf]
      %v4507 = vld [vmem:[%s4470 + $0x90] sm:$0xf]
      %v4508 = vld [vmem:[%s4470 + $0x94] sm:$0xf]
      %v4509 = vld [vmem:[%s4470 + $0x98] sm:$0xf]
      %v4510 = vld [vmem:[%s4470 + $0x9c] sm:$0xf]
      %v4511 = vld [vmem:[%s4470 + $0xa0] sm:$0xf]
      %v4512 = vld [vmem:[%s4470 + $0xa4] sm:$0xf]
      %v4513 = vld [vmem:[%s4470 + $0xa8] sm:$0xf]
      %v4514 = vld [vmem:[%s4470 + $0xac] sm:$0xf]
      %v4515 = vld [vmem:[%s4470 + $0xb0] sm:$0xf]
      %v4516 = vld [vmem:[%s4470 + $0xb4] sm:$0xf]
      %v4517 = vld [vmem:[%s4470 + $0xb8] sm:$0xf]
      %v4518 = vld [vmem:[%s4470 + $0xbc] sm:$0xf]
      %v4519 = vld [vmem:[%s4470 + $0xc0] sm:$0xf]
      %v4520 = vld [vmem:[%s4470 + $0xc4] sm:$0xf]
      %v4521 = vld [vmem:[%s4470 + $0xc8] sm:$0xf]
      %v4522 = vld [vmem:[%s4470 + $0xcc] sm:$0xf]
      %v4523 = vld [vmem:[%s4470 + $0xd0] sm:$0xf]
      %v4524 = vld [vmem:[%s4470 + $0xd4] sm:$0xf]
      %v4525 = vld [vmem:[%s4470 + $0xd8] sm:$0xf]
      %v4526 = vld [vmem:[%s4470 + $0xdc] sm:$0xf]
      %v4527 = vld [vmem:[%s4470 + $0xe0] sm:$0xf]
      %v4528 = vld [vmem:[%s4470 + $0xe4] sm:$0xf]
      %v4529 = vld [vmem:[%s4470 + $0xe8] sm:$0xf]
      %v4530 = vld [vmem:[%s4470 + $0xec] sm:$0xf]
      %v4531 = vld [vmem:[%s4470 + $0xf0] sm:$0xf]
      %v4532 = vld [vmem:[%s4470 + $0xf4] sm:$0xf]
      %v4533 = vld [vmem:[%s4470 + $0xf8] sm:$0xf]
      %v4534 = vld [vmem:[%s4470 + $0xfc] sm:$0xf]
      %v4599 = vunpack.c.l.b16 %v4471
      %v4600 = vunpack.c.l.b16 %v4472
      %v4601 = vunpack.c.l.b16 %v4473
      %v4602 = vunpack.c.l.b16 %v4474
      %v4603 = vunpack.c.l.b16 %v4475
      %v4604 = vunpack.c.l.b16 %v4476
      %v4605 = vunpack.c.l.b16 %v4477
      %v4606 = vunpack.c.l.b16 %v4478
      %v4607 = vunpack.c.l.b16 %v4479
      %v4608 = vunpack.c.l.b16 %v4480
      %v4609 = vunpack.c.l.b16 %v4481
      %v4610 = vunpack.c.l.b16 %v4482
      %v4611 = vunpack.c.l.b16 %v4483
      %v4612 = vunpack.c.l.b16 %v4484
      %v4613 = vunpack.c.l.b16 %v4485
      %v4614 = vunpack.c.l.b16 %v4486
      %v4615 = vunpack.c.l.b16 %v4487
      %v4616 = vunpack.c.l.b16 %v4488
      %v4617 = vunpack.c.l.b16 %v4489
      %v4618 = vunpack.c.l.b16 %v4490
      %v4619 = vunpack.c.l.b16 %v4491
      %v4620 = vunpack.c.l.b16 %v4492
      %v4621 = vunpack.c.l.b16 %v4493
      %v4622 = vunpack.c.l.b16 %v4494
      %v4623 = vunpack.c.l.b16 %v4495
      %v4624 = vunpack.c.l.b16 %v4496
      %v4625 = vunpack.c.l.b16 %v4497
      %v4626 = vunpack.c.l.b16 %v4498
      %v4627 = vunpack.c.l.b16 %v4499
      %v4628 = vunpack.c.l.b16 %v4500
      %v4629 = vunpack.c.l.b16 %v4501
      %v4630 = vunpack.c.l.b16 %v4502
      %v4631 = vunpack.c.l.b16 %v4503
      %v4632 = vunpack.c.l.b16 %v4504
      %v4633 = vunpack.c.l.b16 %v4505
      %v4634 = vunpack.c.l.b16 %v4506
      %v4635 = vunpack.c.l.b16 %v4507
      %v4636 = vunpack.c.l.b16 %v4508
      %v4637 = vunpack.c.l.b16 %v4509
      %v4638 = vunpack.c.l.b16 %v4510
      %v4639 = vunpack.c.l.b16 %v4511
      %v4640 = vunpack.c.l.b16 %v4512
      %v4641 = vunpack.c.l.b16 %v4513
      %v4642 = vunpack.c.l.b16 %v4514
      %v4643 = vunpack.c.l.b16 %v4515
      %v4644 = vunpack.c.l.b16 %v4516
      %v4645 = vunpack.c.l.b16 %v4517
      %v4646 = vunpack.c.l.b16 %v4518
      %v4647 = vunpack.c.l.b16 %v4519
      %v4648 = vunpack.c.l.b16 %v4520
      %v4649 = vunpack.c.l.b16 %v4521
      %v4650 = vunpack.c.l.b16 %v4522
      %v4651 = vunpack.c.l.b16 %v4523
      %v4652 = vunpack.c.l.b16 %v4524
      %v4653 = vunpack.c.l.b16 %v4525
      %v4654 = vunpack.c.l.b16 %v4526
      %v4655 = vunpack.c.l.b16 %v4527
      %v4656 = vunpack.c.l.b16 %v4528
      %v4657 = vunpack.c.l.b16 %v4529
      %v4658 = vunpack.c.l.b16 %v4530
      %v4659 = vunpack.c.l.b16 %v4531
      %v4660 = vunpack.c.l.b16 %v4532
      %v4661 = vunpack.c.l.b16 %v4533
      %v4662 = vunpack.c.l.b16 %v4534
      %v4663 = vpack.c.b16 %v4600, %v4599
      %v4664 = vpack.c.b16 %v4602, %v4601
      %v4665 = vpack.c.b16 %v4604, %v4603
      %v4666 = vpack.c.b16 %v4606, %v4605
      %v4667 = vpack.c.b16 %v4608, %v4607
      %v4668 = vpack.c.b16 %v4610, %v4609
      %v4669 = vpack.c.b16 %v4612, %v4611
      %v4670 = vpack.c.b16 %v4614, %v4613
      %v4671 = vpack.c.b16 %v4616, %v4615
      %v4672 = vpack.c.b16 %v4618, %v4617
      %v4673 = vpack.c.b16 %v4620, %v4619
      %v4674 = vpack.c.b16 %v4622, %v4621
      %v4675 = vpack.c.b16 %v4624, %v4623
      %v4676 = vpack.c.b16 %v4626, %v4625
      %v4677 = vpack.c.b16 %v4628, %v4627
      %v4678 = vpack.c.b16 %v4630, %v4629
      %v4679 = vpack.c.b16 %v4632, %v4631
      %v4680 = vpack.c.b16 %v4634, %v4633
      %v4681 = vpack.c.b16 %v4636, %v4635
      %v4682 = vpack.c.b16 %v4638, %v4637
      %v4683 = vpack.c.b16 %v4640, %v4639
      %v4684 = vpack.c.b16 %v4642, %v4641
      %v4685 = vpack.c.b16 %v4644, %v4643
      %v4686 = vpack.c.b16 %v4646, %v4645
      %v4687 = vpack.c.b16 %v4648, %v4647
      %v4688 = vpack.c.b16 %v4650, %v4649
      %v4689 = vpack.c.b16 %v4652, %v4651
      %v4690 = vpack.c.b16 %v4654, %v4653
      %v4691 = vpack.c.b16 %v4656, %v4655
      %v4692 = vpack.c.b16 %v4658, %v4657
      %v4693 = vpack.c.b16 %v4660, %v4659
      %v4694 = vpack.c.b16 %v4662, %v4661
      %4727 = vmatprep.subr.bf16.mxu0 0
      %4728 = vmatpush1.bf16.msra.mxu0 %v4663
      %4729 = vmatprep.subr.bf16.mxu0 0
      %4730 = vmatpush1.bf16.msra.mxu0 %v4664
      %4731 = vmatprep.subr.bf16.mxu0 0
      %4732 = vmatpush1.bf16.msra.mxu0 %v4665
      %4733 = vmatprep.subr.bf16.mxu0 0
      %4734 = vmatpush1.bf16.msra.mxu0 %v4666
      %4735 = vmatprep.subr.bf16.mxu0 0
      %4736 = vmatpush1.bf16.msra.mxu0 %v4667
      %4737 = vmatprep.subr.bf16.mxu0 0
      %4738 = vmatpush1.bf16.msra.mxu0 %v4668
      %4739 = vmatprep.subr.bf16.mxu0 0
      %4740 = vmatpush1.bf16.msra.mxu0 %v4669
      %4741 = vmatprep.subr.bf16.mxu0 0
      %4742 = vmatpush1.bf16.msra.mxu0 %v4670
      %4743 = vmatprep.subr.bf16.mxu0 0
      %4744 = vmatpush1.bf16.msra.mxu0 %v4671
      %4745 = vmatprep.subr.bf16.mxu0 0
      %4746 = vmatpush1.bf16.msra.mxu0 %v4672
      %4747 = vmatprep.subr.bf16.mxu0 0
      %4748 = vmatpush1.bf16.msra.mxu0 %v4673
      %4749 = vmatprep.subr.bf16.mxu0 0
      %4750 = vmatpush1.bf16.msra.mxu0 %v4674
      %4751 = vmatprep.subr.bf16.mxu0 0
      %4752 = vmatpush1.bf16.msra.mxu0 %v4675
      %4753 = vmatprep.subr.bf16.mxu0 0
      %4754 = vmatpush1.bf16.msra.mxu0 %v4676
      %4755 = vmatprep.subr.bf16.mxu0 0
      %4756 = vmatpush1.bf16.msra.mxu0 %v4677
      %4757 = vmatprep.subr.bf16.mxu0 0
      %4758 = vmatpush1.bf16.msra.mxu0 %v4678
      %4759 = vmatprep.mubr.bf16.mxu0 %v4455
      %4760 = vmatmul.mubr.bf16.gmra.mrb[0].mxu0 %v4454
      %v4761 = vpop.f32.mrb[0].mxu0
      %v4762 = vadd.f32 0.0, %v4761
      %v4763 = vpop.f32.mrb[0].mxu0
      %v4764 = vpop.f32.mrb[0].mxu0
      %v4765 = vadd.f32 0.0, %v4764
      %v4766 = vpop.f32.mrb[0].mxu0
      %4767 = vmatprep.mubr.bf16.mxu0 %v4459
      %4768 = vmatmul.mubr.bf16.gmra.mrb[0].mxu0 %v4458
      %v4769 = vpop.f32.mrb[0].mxu0
      %v4770 = vadd.f32 0.0, %v4769
      %v4771 = vpop.f32.mrb[0].mxu0
      %v4772 = vpop.f32.mrb[0].mxu0
      %v4773 = vadd.f32 0.0, %v4772
      %v4774 = vpop.f32.mrb[0].mxu0
      %4775 = vmatprep.mubr.bf16.mxu0 %v4463
      %4776 = vmatmul.mubr.bf16.gmra.mrb[0].mxu0 %v4462
      %v4777 = vpop.f32.mrb[0].mxu0
      %v4778 = vadd.f32 0.0, %v4777
      %v4779 = vpop.f32.mrb[0].mxu0
      %v4780 = vpop.f32.mrb[0].mxu0
      %v4781 = vadd.f32 0.0, %v4780
      %v4782 = vpop.f32.mrb[0].mxu0
      %4783 = vmatprep.mubr.bf16.mxu0 %v4467
      %4784 = vmatmul.mubr.bf16.gmra.mrb[0].mxu0 %v4466
      %v4785 = vpop.f32.mrb[0].mxu0
      %v4786 = vadd.f32 0.0, %v4785
      %v4787 = vpop.f32.mrb[0].mxu0
      %v4788 = vpop.f32.mrb[0].mxu0
      %v4789 = vadd.f32 0.0, %v4788
      %v4790 = vpop.f32.mrb[0].mxu0
      %4791 = vdwg.mxu0
      %4792 = vmatprep.subr.bf16.mxu0 0
      %4793 = vmatpush1.bf16.msra.mxu0 %v4679
      %4794 = vmatprep.subr.bf16.mxu0 0
      %4795 = vmatpush1.bf16.msra.mxu0 %v4680
      %4796 = vmatprep.subr.bf16.mxu0 0
      %4797 = vmatpush1.bf16.msra.mxu0 %v4681
      %4798 = vmatprep.subr.bf16.mxu0 0
      %4799 = vmatpush1.bf16.msra.mxu0 %v4682
      %4800 = vmatprep.subr.bf16.mxu0 0
      %4801 = vmatpush1.bf16.msra.mxu0 %v4683
      %4802 = vmatprep.subr.bf16.mxu0 0
      %4803 = vmatpush1.bf16.msra.mxu0 %v4684
      %4804 = vmatprep.subr.bf16.mxu0 0
      %4805 = vmatpush1.bf16.msra.mxu0 %v4685
      %4806 = vmatprep.subr.bf16.mxu0 0
      %4807 = vmatpush1.bf16.msra.mxu0 %v4686
      %4808 = vmatprep.subr.bf16.mxu0 0
      %4809 = vmatpush1.bf16.msra.mxu0 %v4687
      %4810 = vmatprep.subr.bf16.mxu0 0
      %4811 = vmatpush1.bf16.msra.mxu0 %v4688
      %4812 = vmatprep.subr.bf16.mxu0 0
      %4813 = vmatpush1.bf16.msra.mxu0 %v4689
      %4814 = vmatprep.subr.bf16.mxu0 0
      %4815 = vmatpush1.bf16.msra.mxu0 %v4690
      %4816 = vmatprep.subr.bf16.mxu0 0
      %4817 = vmatpush1.bf16.msra.mxu0 %v4691
      %4818 = vmatprep.subr.bf16.mxu0 0
      %4819 = vmatpush1.bf16.msra.mxu0 %v4692
      %4820 = vmatprep.subr.bf16.mxu0 0
      %4821 = vmatpush1.bf16.msra.mxu0 %v4693
      %4822 = vmatprep.subr.bf16.mxu0 0
      %4823 = vmatpush1.bf16.msra.mxu0 %v4694
      %4824 = vmatprep.mubr.bf16.mxu0 %v4457
      %4825 = vmatmul.mubr.bf16.gmra.mrb[0].mxu0 %v4456
      %v4826 = vpop.f32.mrb[0].mxu0
      %v4827 = vadd.f32 %v4762, %v4826
      %v4828 = vpop.f32.mrb[0].mxu0
      %v4829 = vpop.f32.mrb[0].mxu0
      %v4830 = vadd.f32 %v4765, %v4829
      %v4831 = vpop.f32.mrb[0].mxu0
      %4832 = vmatprep.mubr.bf16.mxu0 %v4461
      %4833 = vmatmul.mubr.bf16.gmra.mrb[0].mxu0 %v4460
      %v4834 = vpop.f32.mrb[0].mxu0
      %v4835 = vadd.f32 %v4770, %v4834
      %v4836 = vpop.f32.mrb[0].mxu0
      %v4837 = vpop.f32.mrb[0].mxu0
      %v4838 = vadd.f32 %v4773, %v4837
      %v4839 = vpop.f32.mrb[0].mxu0
      %4840 = vmatprep.mubr.bf16.mxu0 %v4465
      %4841 = vmatmul.mubr.bf16.gmra.mrb[0].mxu0 %v4464
      %v4842 = vpop.f32.mrb[0].mxu0
      %v4843 = vadd.f32 %v4778, %v4842
      %v4844 = vpop.f32.mrb[0].mxu0
      %v4845 = vpop.f32.mrb[0].mxu0
      %v4846 = vadd.f32 %v4781, %v4845
      %v4847 = vpop.f32.mrb[0].mxu0
      %4848 = vmatprep.mubr.bf16.mxu0 %v4469
      %4849 = vmatmul.mubr.bf16.gmra.mrb[0].mxu0 %v4468
      %v4850 = vpop.f32.mrb[0].mxu0
      %v4851 = vadd.f32 %v4786, %v4850
      %v4852 = vpop.f32.mrb[0].mxu0
      %v4853 = vpop.f32.mrb[0].mxu0
      %v4854 = vadd.f32 %v4789, %v4853
      %v4855 = vpop.f32.mrb[0].mxu0
      %4856 = vdwg.mxu0
      %v4857 = vadd.f32 %v4259, %v4827
      %v4858 = vadd.f32 %v4260, %v4830
      %v4859 = vadd.f32 %v4261, %v4835
      %v4860 = vadd.f32 %v4262, %v4838
      %v4861 = vadd.f32 %v4263, %v4843
      %v4862 = vadd.f32 %v4264, %v4846
      %v4863 = vadd.f32 %v4265, %v4851
      %v4864 = vadd.f32 %v4266, %v4854
      %s4865 = scalar_lea.vmem %s1, 224
      %v4866 = vld [vmem:[%s4865] sm:$0xf]
      %v4867 = vld [vmem:[%s4865 + $0x4] sm:$0xf]
      %v4868 = vld [vmem:[%s4865 + $0x8] sm:$0xf]
      %v4869 = vld [vmem:[%s4865 + $0xc] sm:$0xf]
      %v4870 = vld [vmem:[%s4865 + $0x10] sm:$0xf]
      %v4871 = vld [vmem:[%s4865 + $0x14] sm:$0xf]
      %v4872 = vld [vmem:[%s4865 + $0x18] sm:$0xf]
      %v4873 = vld [vmem:[%s4865 + $0x1c] sm:$0xf]
      %v4882 = vunpack.c.l.b16 %v4866
      %v4883 = vunpack.c.l.b16 %v4867
      %v4884 = vunpack.c.l.b16 %v4868
      %v4885 = vunpack.c.l.b16 %v4869
      %v4886 = vunpack.c.l.b16 %v4870
      %v4887 = vunpack.c.l.b16 %v4871
      %v4888 = vunpack.c.l.b16 %v4872
      %v4889 = vunpack.c.l.b16 %v4873
      %v4890 = vpack.c.b16 %v4883, %v4882
      %v4891 = vpack.c.b16 %v4885, %v4884
      %v4892 = vpack.c.b16 %v4887, %v4886
      %v4893 = vpack.c.b16 %v4889, %v4888
      %v4895 = vsel %vm724, %v4890, 0
      %v4898 = vsel %vm724, %v4891, 0
      %v4901 = vsel %vm724, %v4892, 0
      %v4904 = vsel %vm724, %v4893, 0
      %4906 = vmatprep.subr.bf16.mxu0 %v693
      %4907 = vmatpush1.bf16.msra.mxu0 %v692
      %4908 = vmatprep.subr.bf16.mxu0 %v697
      %4909 = vmatpush1.bf16.msra.mxu0 %v696
      %4910 = vmatprep.subr.bf16.mxu0 %v701
      %4911 = vmatpush1.bf16.msra.mxu0 %v700
      %4912 = vmatprep.subr.bf16.mxu0 %v705
      %4913 = vmatpush1.bf16.msra.mxu0 %v704
      %4914 = vmatprep.subr.bf16.mxu0 0
      %4915 = vmatpush1.bf16.msra.mxu0 0
      %4916 = vmatprep.subr.bf16.mxu0 0
      %4917 = vmatpush1.bf16.msra.mxu0 0
      %4918 = vmatprep.subr.bf16.mxu0 0
      %4919 = vmatpush1.bf16.msra.mxu0 0
      %4920 = vmatprep.subr.bf16.mxu0 0
      %4921 = vmatpush1.bf16.msra.mxu0 0
      %4922 = vmatprep.subr.bf16.mxu0 0
      %4923 = vmatpush1.bf16.msra.mxu0 0
      %4924 = vmatprep.subr.bf16.mxu0 0
      %4925 = vmatpush1.bf16.msra.mxu0 0
      %4926 = vmatprep.subr.bf16.mxu0 0
      %4927 = vmatpush1.bf16.msra.mxu0 0
      %4928 = vmatprep.subr.bf16.mxu0 0
      %4929 = vmatpush1.bf16.msra.mxu0 0
      %4930 = vmatprep.subr.bf16.mxu0 0
      %4931 = vmatpush1.bf16.msra.mxu0 0
      %4932 = vmatprep.subr.bf16.mxu0 0
      %4933 = vmatpush1.bf16.msra.mxu0 0
      %4934 = vmatprep.subr.bf16.mxu0 0
      %4935 = vmatpush1.bf16.msra.mxu0 0
      %4936 = vmatprep.subr.bf16.mxu0 0
      %4937 = vmatpush1.bf16.msra.mxu0 0
      %4938 = vmatprep.mubr.bf16.mxu0 0
      %4939 = vmatmul.mubr.bf16.gmra.mrb[0].mxu0 %v4895
      %v4940 = vpop.f32.mrb[0].mxu0
      %v4941 = vadd.f32 0.0, %v4940
      %v4942 = vpop.f32.mrb[0].mxu0
      %v4943 = vadd.f32 0.0, %v4942
      %v4944 = vpop.f32.mrb[0].mxu0
      %v4945 = vadd.f32 0.0, %v4944
      %v4946 = vpop.f32.mrb[0].mxu0
      %v4947 = vadd.f32 0.0, %v4946
      %4948 = vmatprep.mubr.bf16.mxu0 0
      %4949 = vmatmul.mubr.bf16.gmra.mrb[0].mxu0 %v4898
      %v4950 = vpop.f32.mrb[0].mxu0
      %v4951 = vadd.f32 0.0, %v4950
      %v4952 = vpop.f32.mrb[0].mxu0
      %v4953 = vadd.f32 0.0, %v4952
      %v4954 = vpop.f32.mrb[0].mxu0
      %v4955 = vadd.f32 0.0, %v4954
      %v4956 = vpop.f32.mrb[0].mxu0
      %v4957 = vadd.f32 0.0, %v4956
      %4958 = vmatprep.mubr.bf16.mxu0 0
      %4959 = vmatmul.mubr.bf16.gmra.mrb[0].mxu0 %v4901
      %v4960 = vpop.f32.mrb[0].mxu0
      %v4961 = vadd.f32 0.0, %v4960
      %v4962 = vpop.f32.mrb[0].mxu0
      %v4963 = vadd.f32 0.0, %v4962
      %v4964 = vpop.f32.mrb[0].mxu0
      %v4965 = vadd.f32 0.0, %v4964
      %v4966 = vpop.f32.mrb[0].mxu0
      %v4967 = vadd.f32 0.0, %v4966
      %4968 = vmatprep.mubr.bf16.mxu0 0
      %4969 = vmatmul.mubr.bf16.gmra.mrb[0].mxu0 %v4904
      %v4970 = vpop.f32.mrb[0].mxu0
      %v4971 = vadd.f32 0.0, %v4970
      %v4972 = vpop.f32.mrb[0].mxu0
      %v4973 = vadd.f32 0.0, %v4972
      %v4974 = vpop.f32.mrb[0].mxu0
      %v4975 = vadd.f32 0.0, %v4974
      %v4976 = vpop.f32.mrb[0].mxu0
      %v4977 = vadd.f32 0.0, %v4976
      %4978 = vdwg.mxu0
      %4979 = vmatprep.subr.bf16.mxu0 %v695
      %4980 = vmatpush1.bf16.msra.mxu0 %v694
      %4981 = vmatprep.subr.bf16.mxu0 %v699
      %4982 = vmatpush1.bf16.msra.mxu0 %v698
      %4983 = vmatprep.subr.bf16.mxu0 %v703
      %4984 = vmatpush1.bf16.msra.mxu0 %v702
      %4985 = vmatprep.subr.bf16.mxu0 %v707
      %4986 = vmatpush1.bf16.msra.mxu0 %v706
      %4987 = vmatprep.subr.bf16.mxu0 0
      %4988 = vmatpush1.bf16.msra.mxu0 0
      %4989 = vmatprep.subr.bf16.mxu0 0
      %4990 = vmatpush1.bf16.msra.mxu0 0
      %4991 = vmatprep.subr.bf16.mxu0 0
      %4992 = vmatpush1.bf16.msra.mxu0 0
      %4993 = vmatprep.subr.bf16.mxu0 0
      %4994 = vmatpush1.bf16.msra.mxu0 0
      %4995 = vmatprep.subr.bf16.mxu0 0
      %4996 = vmatpush1.bf16.msra.mxu0 0
      %4997 = vmatprep.subr.bf16.mxu0 0
      %4998 = vmatpush1.bf16.msra.mxu0 0
      %4999 = vmatprep.subr.bf16.mxu0 0
      %5000 = vmatpush1.bf16.msra.mxu0 0
      %5001 = vmatprep.subr.bf16.mxu0 0
      %5002 = vmatpush1.bf16.msra.mxu0 0
      %5003 = vmatprep.subr.bf16.mxu0 0
      %5004 = vmatpush1.bf16.msra.mxu0 0
      %5005 = vmatprep.subr.bf16.mxu0 0
      %5006 = vmatpush1.bf16.msra.mxu0 0
      %5007 = vmatprep.subr.bf16.mxu0 0
      %5008 = vmatpush1.bf16.msra.mxu0 0
      %5009 = vmatprep.subr.bf16.mxu0 0
      %5010 = vmatpush1.bf16.msra.mxu0 0
      %5011 = vmatprep.mubr.bf16.mxu0 0
      %5012 = vmatmul.mubr.bf16.gmra.mrb[0].mxu0 %v4895
      %v5013 = vpop.f32.mrb[0].mxu0
      %v5014 = vadd.f32 0.0, %v5013
      %v5015 = vpop.f32.mrb[0].mxu0
      %v5016 = vadd.f32 0.0, %v5015
      %v5017 = vpop.f32.mrb[0].mxu0
      %v5018 = vadd.f32 0.0, %v5017
      %v5019 = vpop.f32.mrb[0].mxu0
      %v5020 = vadd.f32 0.0, %v5019
      %5021 = vmatprep.mubr.bf16.mxu0 0
      %5022 = vmatmul.mubr.bf16.gmra.mrb[0].mxu0 %v4898
      %v5023 = vpop.f32.mrb[0].mxu0
      %v5024 = vadd.f32 0.0, %v5023
      %v5025 = vpop.f32.mrb[0].mxu0
      %v5026 = vadd.f32 0.0, %v5025
      %v5027 = vpop.f32.mrb[0].mxu0
      %v5028 = vadd.f32 0.0, %v5027
      %v5029 = vpop.f32.mrb[0].mxu0
      %v5030 = vadd.f32 0.0, %v5029
      %5031 = vmatprep.mubr.bf16.mxu0 0
      %5032 = vmatmul.mubr.bf16.gmra.mrb[0].mxu0 %v4901
      %v5033 = vpop.f32.mrb[0].mxu0
      %v5034 = vadd.f32 0.0, %v5033
      %v5035 = vpop.f32.mrb[0].mxu0
      %v5036 = vadd.f32 0.0, %v5035
      %v5037 = vpop.f32.mrb[0].mxu0
      %v5038 = vadd.f32 0.0, %v5037
      %v5039 = vpop.f32.mrb[0].mxu0
      %v5040 = vadd.f32 0.0, %v5039
      %5041 = vmatprep.mubr.bf16.mxu0 0
      %5042 = vmatmul.mubr.bf16.gmra.mrb[0].mxu0 %v4904
      %v5043 = vpop.f32.mrb[0].mxu0
      %v5044 = vadd.f32 0.0, %v5043
      %v5045 = vpop.f32.mrb[0].mxu0
      %v5046 = vadd.f32 0.0, %v5045
      %v5047 = vpop.f32.mrb[0].mxu0
      %v5048 = vadd.f32 0.0, %v5047
      %v5049 = vpop.f32.mrb[0].mxu0
      %v5050 = vadd.f32 0.0, %v5049
      %5051 = vdwg.mxu0
      %v5052 = vpack.c.bf16 %v4945, %v4941
      %v5053 = vpack.c.bf16 %v4947, %v4943
      %v5054 = vpack.c.bf16 %v5018, %v5014
      %v5055 = vpack.c.bf16 %v5020, %v5016
      %v5056 = vpack.c.bf16 %v4955, %v4951
      %v5057 = vpack.c.bf16 %v4957, %v4953
      %v5058 = vpack.c.bf16 %v5028, %v5024
      %v5059 = vpack.c.bf16 %v5030, %v5026
      %v5060 = vpack.c.bf16 %v4965, %v4961
      %v5061 = vpack.c.bf16 %v4967, %v4963
      %v5062 = vpack.c.bf16 %v5038, %v5034
      %v5063 = vpack.c.bf16 %v5040, %v5036
      %v5064 = vpack.c.bf16 %v4975, %v4971
      %v5065 = vpack.c.bf16 %v4977, %v4973
      %v5066 = vpack.c.bf16 %v5048, %v5044
      %v5067 = vpack.c.bf16 %v5050, %v5046
      %s5068 = scalar_lea.vmem %s4, 1792
      %v5069 = vld [vmem:[%s5068] sm:$0xf]
      %v5070 = vld [vmem:[%s5068 + $0x4] sm:$0xf]
      %v5071 = vld [vmem:[%s5068 + $0x8] sm:$0xf]
      %v5072 = vld [vmem:[%s5068 + $0xc] sm:$0xf]
      %v5073 = vld [vmem:[%s5068 + $0x10] sm:$0xf]
      %v5074 = vld [vmem:[%s5068 + $0x14] sm:$0xf]
      %v5075 = vld [vmem:[%s5068 + $0x18] sm:$0xf]
      %v5076 = vld [vmem:[%s5068 + $0x1c] sm:$0xf]
      %v5077 = vld [vmem:[%s5068 + $0x20] sm:$0xf]
      %v5078 = vld [vmem:[%s5068 + $0x24] sm:$0xf]
      %v5079 = vld [vmem:[%s5068 + $0x28] sm:$0xf]
      %v5080 = vld [vmem:[%s5068 + $0x2c] sm:$0xf]
      %v5081 = vld [vmem:[%s5068 + $0x30] sm:$0xf]
      %v5082 = vld [vmem:[%s5068 + $0x34] sm:$0xf]
      %v5083 = vld [vmem:[%s5068 + $0x38] sm:$0xf]
      %v5084 = vld [vmem:[%s5068 + $0x3c] sm:$0xf]
      %v5085 = vld [vmem:[%s5068 + $0x40] sm:$0xf]
      %v5086 = vld [vmem:[%s5068 + $0x44] sm:$0xf]
      %v5087 = vld [vmem:[%s5068 + $0x48] sm:$0xf]
      %v5088 = vld [vmem:[%s5068 + $0x4c] sm:$0xf]
      %v5089 = vld [vmem:[%s5068 + $0x50] sm:$0xf]
      %v5090 = vld [vmem:[%s5068 + $0x54] sm:$0xf]
      %v5091 = vld [vmem:[%s5068 + $0x58] sm:$0xf]
      %v5092 = vld [vmem:[%s5068 + $0x5c] sm:$0xf]
      %v5093 = vld [vmem:[%s5068 + $0x60] sm:$0xf]
      %v5094 = vld [vmem:[%s5068 + $0x64] sm:$0xf]
      %v5095 = vld [vmem:[%s5068 + $0x68] sm:$0xf]
      %v5096 = vld [vmem:[%s5068 + $0x6c] sm:$0xf]
      %v5097 = vld [vmem:[%s5068 + $0x70] sm:$0xf]
      %v5098 = vld [vmem:[%s5068 + $0x74] sm:$0xf]
      %v5099 = vld [vmem:[%s5068 + $0x78] sm:$0xf]
      %v5100 = vld [vmem:[%s5068 + $0x7c] sm:$0xf]
      %v5101 = vld [vmem:[%s5068 + $0x80] sm:$0xf]
      %v5102 = vld [vmem:[%s5068 + $0x84] sm:$0xf]
      %v5103 = vld [vmem:[%s5068 + $0x88] sm:$0xf]
      %v5104 = vld [vmem:[%s5068 + $0x8c] sm:$0xf]
      %v5105 = vld [vmem:[%s5068 + $0x90] sm:$0xf]
      %v5106 = vld [vmem:[%s5068 + $0x94] sm:$0xf]
      %v5107 = vld [vmem:[%s5068 + $0x98] sm:$0xf]
      %v5108 = vld [vmem:[%s5068 + $0x9c] sm:$0xf]
      %v5109 = vld [vmem:[%s5068 + $0xa0] sm:$0xf]
      %v5110 = vld [vmem:[%s5068 + $0xa4] sm:$0xf]
      %v5111 = vld [vmem:[%s5068 + $0xa8] sm:$0xf]
      %v5112 = vld [vmem:[%s5068 + $0xac] sm:$0xf]
      %v5113 = vld [vmem:[%s5068 + $0xb0] sm:$0xf]
      %v5114 = vld [vmem:[%s5068 + $0xb4] sm:$0xf]
      %v5115 = vld [vmem:[%s5068 + $0xb8] sm:$0xf]
      %v5116 = vld [vmem:[%s5068 + $0xbc] sm:$0xf]
      %v5117 = vld [vmem:[%s5068 + $0xc0] sm:$0xf]
      %v5118 = vld [vmem:[%s5068 + $0xc4] sm:$0xf]
      %v5119 = vld [vmem:[%s5068 + $0xc8] sm:$0xf]
      %v5120 = vld [vmem:[%s5068 + $0xcc] sm:$0xf]
      %v5121 = vld [vmem:[%s5068 + $0xd0] sm:$0xf]
      %v5122 = vld [vmem:[%s5068 + $0xd4] sm:$0xf]
      %v5123 = vld [vmem:[%s5068 + $0xd8] sm:$0xf]
      %v5124 = vld [vmem:[%s5068 + $0xdc] sm:$0xf]
      %v5125 = vld [vmem:[%s5068 + $0xe0] sm:$0xf]
      %v5126 = vld [vmem:[%s5068 + $0xe4] sm:$0xf]
      %v5127 = vld [vmem:[%s5068 + $0xe8] sm:$0xf]
      %v5128 = vld [vmem:[%s5068 + $0xec] sm:$0xf]
      %v5129 = vld [vmem:[%s5068 + $0xf0] sm:$0xf]
      %v5130 = vld [vmem:[%s5068 + $0xf4] sm:$0xf]
      %v5131 = vld [vmem:[%s5068 + $0xf8] sm:$0xf]
      %v5132 = vld [vmem:[%s5068 + $0xfc] sm:$0xf]
      %v5197 = vunpack.c.l.b16 %v5069
      %v5198 = vunpack.c.l.b16 %v5070
      %v5199 = vunpack.c.l.b16 %v5071
      %v5200 = vunpack.c.l.b16 %v5072
      %v5201 = vunpack.c.l.b16 %v5073
      %v5202 = vunpack.c.l.b16 %v5074
      %v5203 = vunpack.c.l.b16 %v5075
      %v5204 = vunpack.c.l.b16 %v5076
      %v5205 = vunpack.c.l.b16 %v5077
      %v5206 = vunpack.c.l.b16 %v5078
      %v5207 = vunpack.c.l.b16 %v5079
      %v5208 = vunpack.c.l.b16 %v5080
      %v5209 = vunpack.c.l.b16 %v5081
      %v5210 = vunpack.c.l.b16 %v5082
      %v5211 = vunpack.c.l.b16 %v5083
      %v5212 = vunpack.c.l.b16 %v5084
      %v5213 = vunpack.c.l.b16 %v5085
      %v5214 = vunpack.c.l.b16 %v5086
      %v5215 = vunpack.c.l.b16 %v5087
      %v5216 = vunpack.c.l.b16 %v5088
      %v5217 = vunpack.c.l.b16 %v5089
      %v5218 = vunpack.c.l.b16 %v5090
      %v5219 = vunpack.c.l.b16 %v5091
      %v5220 = vunpack.c.l.b16 %v5092
      %v5221 = vunpack.c.l.b16 %v5093
      %v5222 = vunpack.c.l.b16 %v5094
      %v5223 = vunpack.c.l.b16 %v5095
      %v5224 = vunpack.c.l.b16 %v5096
      %v5225 = vunpack.c.l.b16 %v5097
      %v5226 = vunpack.c.l.b16 %v5098
      %v5227 = vunpack.c.l.b16 %v5099
      %v5228 = vunpack.c.l.b16 %v5100
      %v5229 = vunpack.c.l.b16 %v5101
      %v5230 = vunpack.c.l.b16 %v5102
      %v5231 = vunpack.c.l.b16 %v5103
      %v5232 = vunpack.c.l.b16 %v5104
      %v5233 = vunpack.c.l.b16 %v5105
      %v5234 = vunpack.c.l.b16 %v5106
      %v5235 = vunpack.c.l.b16 %v5107
      %v5236 = vunpack.c.l.b16 %v5108
      %v5237 = vunpack.c.l.b16 %v5109
      %v5238 = vunpack.c.l.b16 %v5110
      %v5239 = vunpack.c.l.b16 %v5111
      %v5240 = vunpack.c.l.b16 %v5112
      %v5241 = vunpack.c.l.b16 %v5113
      %v5242 = vunpack.c.l.b16 %v5114
      %v5243 = vunpack.c.l.b16 %v5115
      %v5244 = vunpack.c.l.b16 %v5116
      %v5245 = vunpack.c.l.b16 %v5117
      %v5246 = vunpack.c.l.b16 %v5118
      %v5247 = vunpack.c.l.b16 %v5119
      %v5248 = vunpack.c.l.b16 %v5120
      %v5249 = vunpack.c.l.b16 %v5121
      %v5250 = vunpack.c.l.b16 %v5122
      %v5251 = vunpack.c.l.b16 %v5123
      %v5252 = vunpack.c.l.b16 %v5124
      %v5253 = vunpack.c.l.b16 %v5125
      %v5254 = vunpack.c.l.b16 %v5126
      %v5255 = vunpack.c.l.b16 %v5127
      %v5256 = vunpack.c.l.b16 %v5128
      %v5257 = vunpack.c.l.b16 %v5129
      %v5258 = vunpack.c.l.b16 %v5130
      %v5259 = vunpack.c.l.b16 %v5131
      %v5260 = vunpack.c.l.b16 %v5132
      %v5261 = vpack.c.b16 %v5198, %v5197
      %v5262 = vpack.c.b16 %v5200, %v5199
      %v5263 = vpack.c.b16 %v5202, %v5201
      %v5264 = vpack.c.b16 %v5204, %v5203
      %v5265 = vpack.c.b16 %v5206, %v5205
      %v5266 = vpack.c.b16 %v5208, %v5207
      %v5267 = vpack.c.b16 %v5210, %v5209
      %v5268 = vpack.c.b16 %v5212, %v5211
      %v5269 = vpack.c.b16 %v5214, %v5213
      %v5270 = vpack.c.b16 %v5216, %v5215
      %v5271 = vpack.c.b16 %v5218, %v5217
      %v5272 = vpack.c.b16 %v5220, %v5219
      %v5273 = vpack.c.b16 %v5222, %v5221
      %v5274 = vpack.c.b16 %v5224, %v5223
      %v5275 = vpack.c.b16 %v5226, %v5225
      %v5276 = vpack.c.b16 %v5228, %v5227
      %v5277 = vpack.c.b16 %v5230, %v5229
      %v5278 = vpack.c.b16 %v5232, %v5231
      %v5279 = vpack.c.b16 %v5234, %v5233
      %v5280 = vpack.c.b16 %v5236, %v5235
      %v5281 = vpack.c.b16 %v5238, %v5237
      %v5282 = vpack.c.b16 %v5240, %v5239
      %v5283 = vpack.c.b16 %v5242, %v5241
      %v5284 = vpack.c.b16 %v5244, %v5243
      %v5285 = vpack.c.b16 %v5246, %v5245
      %v5286 = vpack.c.b16 %v5248, %v5247
      %v5287 = vpack.c.b16 %v5250, %v5249
      %v5288 = vpack.c.b16 %v5252, %v5251
      %v5289 = vpack.c.b16 %v5254, %v5253
      %v5290 = vpack.c.b16 %v5256, %v5255
      %v5291 = vpack.c.b16 %v5258, %v5257
      %v5292 = vpack.c.b16 %v5260, %v5259
      %5325 = vmatprep.subr.bf16.mxu0 0
      %5326 = vmatpush1.bf16.msra.mxu0 %v5261
      %5327 = vmatprep.subr.bf16.mxu0 0
      %5328 = vmatpush1.bf16.msra.mxu0 %v5262
      %5329 = vmatprep.subr.bf16.mxu0 0
      %5330 = vmatpush1.bf16.msra.mxu0 %v5263
      %5331 = vmatprep.subr.bf16.mxu0 0
      %5332 = vmatpush1.bf16.msra.mxu0 %v5264
      %5333 = vmatprep.subr.bf16.mxu0 0
      %5334 = vmatpush1.bf16.msra.mxu0 %v5265
      %5335 = vmatprep.subr.bf16.mxu0 0
      %5336 = vmatpush1.bf16.msra.mxu0 %v5266
      %5337 = vmatprep.subr.bf16.mxu0 0
      %5338 = vmatpush1.bf16.msra.mxu0 %v5267
      %5339 = vmatprep.subr.bf16.mxu0 0
      %5340 = vmatpush1.bf16.msra.mxu0 %v5268
      %5341 = vmatprep.subr.bf16.mxu0 0
      %5342 = vmatpush1.bf16.msra.mxu0 %v5269
      %5343 = vmatprep.subr.bf16.mxu0 0
      %5344 = vmatpush1.bf16.msra.mxu0 %v5270
      %5345 = vmatprep.subr.bf16.mxu0 0
      %5346 = vmatpush1.bf16.msra.mxu0 %v5271
      %5347 = vmatprep.subr.bf16.mxu0 0
      %5348 = vmatpush1.bf16.msra.mxu0 %v5272
      %5349 = vmatprep.subr.bf16.mxu0 0
      %5350 = vmatpush1.bf16.msra.mxu0 %v5273
      %5351 = vmatprep.subr.bf16.mxu0 0
      %5352 = vmatpush1.bf16.msra.mxu0 %v5274
      %5353 = vmatprep.subr.bf16.mxu0 0
      %5354 = vmatpush1.bf16.msra.mxu0 %v5275
      %5355 = vmatprep.subr.bf16.mxu0 0
      %5356 = vmatpush1.bf16.msra.mxu0 %v5276
      %5357 = vmatprep.mubr.bf16.mxu0 %v5053
      %5358 = vmatmul.mubr.bf16.gmra.mrb[0].mxu0 %v5052
      %v5359 = vpop.f32.mrb[0].mxu0
      %v5360 = vadd.f32 0.0, %v5359
      %v5361 = vpop.f32.mrb[0].mxu0
      %v5362 = vpop.f32.mrb[0].mxu0
      %v5363 = vadd.f32 0.0, %v5362
      %v5364 = vpop.f32.mrb[0].mxu0
      %5365 = vmatprep.mubr.bf16.mxu0 %v5057
      %5366 = vmatmul.mubr.bf16.gmra.mrb[0].mxu0 %v5056
      %v5367 = vpop.f32.mrb[0].mxu0
      %v5368 = vadd.f32 0.0, %v5367
      %v5369 = vpop.f32.mrb[0].mxu0
      %v5370 = vpop.f32.mrb[0].mxu0
      %v5371 = vadd.f32 0.0, %v5370
      %v5372 = vpop.f32.mrb[0].mxu0
      %5373 = vmatprep.mubr.bf16.mxu0 %v5061
      %5374 = vmatmul.mubr.bf16.gmra.mrb[0].mxu0 %v5060
      %v5375 = vpop.f32.mrb[0].mxu0
      %v5376 = vadd.f32 0.0, %v5375
      %v5377 = vpop.f32.mrb[0].mxu0
      %v5378 = vpop.f32.mrb[0].mxu0
      %v5379 = vadd.f32 0.0, %v5378
      %v5380 = vpop.f32.mrb[0].mxu0
      %5381 = vmatprep.mubr.bf16.mxu0 %v5065
      %5382 = vmatmul.mubr.bf16.gmra.mrb[0].mxu0 %v5064
      %v5383 = vpop.f32.mrb[0].mxu0
      %v5384 = vadd.f32 0.0, %v5383
      %v5385 = vpop.f32.mrb[0].mxu0
      %v5386 = vpop.f32.mrb[0].mxu0
      %v5387 = vadd.f32 0.0, %v5386
      %v5388 = vpop.f32.mrb[0].mxu0
      %5389 = vdwg.mxu0
      %5390 = vmatprep.subr.bf16.mxu0 0
      %5391 = vmatpush1.bf16.msra.mxu0 %v5277
      %5392 = vmatprep.subr.bf16.mxu0 0
      %5393 = vmatpush1.bf16.msra.mxu0 %v5278
      %5394 = vmatprep.subr.bf16.mxu0 0
      %5395 = vmatpush1.bf16.msra.mxu0 %v5279
      %5396 = vmatprep.subr.bf16.mxu0 0
      %5397 = vmatpush1.bf16.msra.mxu0 %v5280
      %5398 = vmatprep.subr.bf16.mxu0 0
      %5399 = vmatpush1.bf16.msra.mxu0 %v5281
      %5400 = vmatprep.subr.bf16.mxu0 0
      %5401 = vmatpush1.bf16.msra.mxu0 %v5282
      %5402 = vmatprep.subr.bf16.mxu0 0
      %5403 = vmatpush1.bf16.msra.mxu0 %v5283
      %5404 = vmatprep.subr.bf16.mxu0 0
      %5405 = vmatpush1.bf16.msra.mxu0 %v5284
      %5406 = vmatprep.subr.bf16.mxu0 0
      %5407 = vmatpush1.bf16.msra.mxu0 %v5285
      %5408 = vmatprep.subr.bf16.mxu0 0
      %5409 = vmatpush1.bf16.msra.mxu0 %v5286
      %5410 = vmatprep.subr.bf16.mxu0 0
      %5411 = vmatpush1.bf16.msra.mxu0 %v5287
      %5412 = vmatprep.subr.bf16.mxu0 0
      %5413 = vmatpush1.bf16.msra.mxu0 %v5288
      %5414 = vmatprep.subr.bf16.mxu0 0
      %5415 = vmatpush1.bf16.msra.mxu0 %v5289
      %5416 = vmatprep.subr.bf16.mxu0 0
      %5417 = vmatpush1.bf16.msra.mxu0 %v5290
      %5418 = vmatprep.subr.bf16.mxu0 0
      %5419 = vmatpush1.bf16.msra.mxu0 %v5291
      %5420 = vmatprep.subr.bf16.mxu0 0
      %5421 = vmatpush1.bf16.msra.mxu0 %v5292
      %5422 = vmatprep.mubr.bf16.mxu0 %v5055
      %5423 = vmatmul.mubr.bf16.gmra.mrb[0].mxu0 %v5054
      %v5424 = vpop.f32.mrb[0].mxu0
      %v5425 = vadd.f32 %v5360, %v5424
      %v5426 = vpop.f32.mrb[0].mxu0
      %v5427 = vpop.f32.mrb[0].mxu0
      %v5428 = vadd.f32 %v5363, %v5427
      %v5429 = vpop.f32.mrb[0].mxu0
      %5430 = vmatprep.mubr.bf16.mxu0 %v5059
      %5431 = vmatmul.mubr.bf16.gmra.mrb[0].mxu0 %v5058
      %v5432 = vpop.f32.mrb[0].mxu0
      %v5433 = vadd.f32 %v5368, %v5432
      %v5434 = vpop.f32.mrb[0].mxu0
      %v5435 = vpop.f32.mrb[0].mxu0
      %v5436 = vadd.f32 %v5371, %v5435
      %v5437 = vpop.f32.mrb[0].mxu0
      %5438 = vmatprep.mubr.bf16.mxu0 %v5063
      %5439 = vmatmul.mubr.bf16.gmra.mrb[0].mxu0 %v5062
      %v5440 = vpop.f32.mrb[0].mxu0
      %v5441 = vadd.f32 %v5376, %v5440
      %v5442 = vpop.f32.mrb[0].mxu0
      %v5443 = vpop.f32.mrb[0].mxu0
      %v5444 = vadd.f32 %v5379, %v5443
      %v5445 = vpop.f32.mrb[0].mxu0
      %5446 = vmatprep.mubr.bf16.mxu0 %v5067
      %5447 = vmatmul.mubr.bf16.gmra.mrb[0].mxu0 %v5066
      %v5448 = vpop.f32.mrb[0].mxu0
      %v5449 = vadd.f32 %v5384, %v5448
      %v5450 = vpop.f32.mrb[0].mxu0
      %v5451 = vpop.f32.mrb[0].mxu0
      %v5452 = vadd.f32 %v5387, %v5451
      %v5453 = vpop.f32.mrb[0].mxu0
      %5454 = vdwg.mxu0
      %v5455 = vadd.f32 %v4857, %v5425
      %v5456 = vadd.f32 %v4858, %v5428
      %v5457 = vadd.f32 %v4859, %v5433
      %v5458 = vadd.f32 %v4860, %v5436
      %v5459 = vadd.f32 %v4861, %v5441
      %v5460 = vadd.f32 %v4862, %v5444
      %v5461 = vadd.f32 %v4863, %v5449
      %v5462 = vadd.f32 %v4864, %v5452
      %s5463 = scalar_lea.vmem %s1, 256
      %v5464 = vld [vmem:[%s5463] sm:$0xf]
      %v5465 = vld [vmem:[%s5463 + $0x4] sm:$0xf]
      %v5466 = vld [vmem:[%s5463 + $0x8] sm:$0xf]
      %v5467 = vld [vmem:[%s5463 + $0xc] sm:$0xf]
      %v5468 = vld [vmem:[%s5463 + $0x10] sm:$0xf]
      %v5469 = vld [vmem:[%s5463 + $0x14] sm:$0xf]
      %v5470 = vld [vmem:[%s5463 + $0x18] sm:$0xf]
      %v5471 = vld [vmem:[%s5463 + $0x1c] sm:$0xf]
      %v5480 = vunpack.c.l.b16 %v5464
      %v5481 = vunpack.c.l.b16 %v5465
      %v5482 = vunpack.c.l.b16 %v5466
      %v5483 = vunpack.c.l.b16 %v5467
      %v5484 = vunpack.c.l.b16 %v5468
      %v5485 = vunpack.c.l.b16 %v5469
      %v5486 = vunpack.c.l.b16 %v5470
      %v5487 = vunpack.c.l.b16 %v5471
      %v5488 = vpack.c.b16 %v5481, %v5480
      %v5489 = vpack.c.b16 %v5483, %v5482
      %v5490 = vpack.c.b16 %v5485, %v5484
      %v5491 = vpack.c.b16 %v5487, %v5486
      %v5493 = vsel %vm724, %v5488, 0
      %v5496 = vsel %vm724, %v5489, 0
      %v5499 = vsel %vm724, %v5490, 0
      %v5502 = vsel %vm724, %v5491, 0
      %5504 = vmatprep.subr.bf16.mxu0 %v693
      %5505 = vmatpush1.bf16.msra.mxu0 %v692
      %5506 = vmatprep.subr.bf16.mxu0 %v697
      %5507 = vmatpush1.bf16.msra.mxu0 %v696
      %5508 = vmatprep.subr.bf16.mxu0 %v701
      %5509 = vmatpush1.bf16.msra.mxu0 %v700
      %5510 = vmatprep.subr.bf16.mxu0 %v705
      %5511 = vmatpush1.bf16.msra.mxu0 %v704
      %5512 = vmatprep.subr.bf16.mxu0 0
      %5513 = vmatpush1.bf16.msra.mxu0 0
      %5514 = vmatprep.subr.bf16.mxu0 0
      %5515 = vmatpush1.bf16.msra.mxu0 0
      %5516 = vmatprep.subr.bf16.mxu0 0
      %5517 = vmatpush1.bf16.msra.mxu0 0
      %5518 = vmatprep.subr.bf16.mxu0 0
      %5519 = vmatpush1.bf16.msra.mxu0 0
      %5520 = vmatprep.subr.bf16.mxu0 0
      %5521 = vmatpush1.bf16.msra.mxu0 0
      %5522 = vmatprep.subr.bf16.mxu0 0
      %5523 = vmatpush1.bf16.msra.mxu0 0
      %5524 = vmatprep.subr.bf16.mxu0 0
      %5525 = vmatpush1.bf16.msra.mxu0 0
      %5526 = vmatprep.subr.bf16.mxu0 0
      %5527 = vmatpush1.bf16.msra.mxu0 0
      %5528 = vmatprep.subr.bf16.mxu0 0
      %5529 = vmatpush1.bf16.msra.mxu0 0
      %5530 = vmatprep.subr.bf16.mxu0 0
      %5531 = vmatpush1.bf16.msra.mxu0 0
      %5532 = vmatprep.subr.bf16.mxu0 0
      %5533 = vmatpush1.bf16.msra.mxu0 0
      %5534 = vmatprep.subr.bf16.mxu0 0
      %5535 = vmatpush1.bf16.msra.mxu0 0
      %5536 = vmatprep.mubr.bf16.mxu0 0
      %5537 = vmatmul.mubr.bf16.gmra.mrb[0].mxu0 %v5493
      %v5538 = vpop.f32.mrb[0].mxu0
      %v5539 = vadd.f32 0.0, %v5538
      %v5540 = vpop.f32.mrb[0].mxu0
      %v5541 = vadd.f32 0.0, %v5540
      %v5542 = vpop.f32.mrb[0].mxu0
      %v5543 = vadd.f32 0.0, %v5542
      %v5544 = vpop.f32.mrb[0].mxu0
      %v5545 = vadd.f32 0.0, %v5544
      %5546 = vmatprep.mubr.bf16.mxu0 0
      %5547 = vmatmul.mubr.bf16.gmra.mrb[0].mxu0 %v5496
      %v5548 = vpop.f32.mrb[0].mxu0
      %v5549 = vadd.f32 0.0, %v5548
      %v5550 = vpop.f32.mrb[0].mxu0
      %v5551 = vadd.f32 0.0, %v5550
      %v5552 = vpop.f32.mrb[0].mxu0
      %v5553 = vadd.f32 0.0, %v5552
      %v5554 = vpop.f32.mrb[0].mxu0
      %v5555 = vadd.f32 0.0, %v5554
      %5556 = vmatprep.mubr.bf16.mxu0 0
      %5557 = vmatmul.mubr.bf16.gmra.mrb[0].mxu0 %v5499
      %v5558 = vpop.f32.mrb[0].mxu0
      %v5559 = vadd.f32 0.0, %v5558
      %v5560 = vpop.f32.mrb[0].mxu0
      %v5561 = vadd.f32 0.0, %v5560
      %v5562 = vpop.f32.mrb[0].mxu0
      %v5563 = vadd.f32 0.0, %v5562
      %v5564 = vpop.f32.mrb[0].mxu0
      %v5565 = vadd.f32 0.0, %v5564
      %5566 = vmatprep.mubr.bf16.mxu0 0
      %5567 = vmatmul.mubr.bf16.gmra.mrb[0].mxu0 %v5502
      %v5568 = vpop.f32.mrb[0].mxu0
      %v5569 = vadd.f32 0.0, %v5568
      %v5570 = vpop.f32.mrb[0].mxu0
      %v5571 = vadd.f32 0.0, %v5570
      %v5572 = vpop.f32.mrb[0].mxu0
      %v5573 = vadd.f32 0.0, %v5572
      %v5574 = vpop.f32.mrb[0].mxu0
      %v5575 = vadd.f32 0.0, %v5574
      %5576 = vdwg.mxu0
      %5577 = vmatprep.subr.bf16.mxu0 %v695
      %5578 = vmatpush1.bf16.msra.mxu0 %v694
      %5579 = vmatprep.subr.bf16.mxu0 %v699
      %5580 = vmatpush1.bf16.msra.mxu0 %v698
      %5581 = vmatprep.subr.bf16.mxu0 %v703
      %5582 = vmatpush1.bf16.msra.mxu0 %v702
      %5583 = vmatprep.subr.bf16.mxu0 %v707
      %5584 = vmatpush1.bf16.msra.mxu0 %v706
      %5585 = vmatprep.subr.bf16.mxu0 0
      %5586 = vmatpush1.bf16.msra.mxu0 0
      %5587 = vmatprep.subr.bf16.mxu0 0
      %5588 = vmatpush1.bf16.msra.mxu0 0
      %5589 = vmatprep.subr.bf16.mxu0 0
      %5590 = vmatpush1.bf16.msra.mxu0 0
      %5591 = vmatprep.subr.bf16.mxu0 0
      %5592 = vmatpush1.bf16.msra.mxu0 0
      %5593 = vmatprep.subr.bf16.mxu0 0
      %5594 = vmatpush1.bf16.msra.mxu0 0
      %5595 = vmatprep.subr.bf16.mxu0 0
      %5596 = vmatpush1.bf16.msra.mxu0 0
      %5597 = vmatprep.subr.bf16.mxu0 0
      %5598 = vmatpush1.bf16.msra.mxu0 0
      %5599 = vmatprep.subr.bf16.mxu0 0
      %5600 = vmatpush1.bf16.msra.mxu0 0
      %5601 = vmatprep.subr.bf16.mxu0 0
      %5602 = vmatpush1.bf16.msra.mxu0 0
      %5603 = vmatprep.subr.bf16.mxu0 0
      %5604 = vmatpush1.bf16.msra.mxu0 0
      %5605 = vmatprep.subr.bf16.mxu0 0
      %5606 = vmatpush1.bf16.msra.mxu0 0
      %5607 = vmatprep.subr.bf16.mxu0 0
      %5608 = vmatpush1.bf16.msra.mxu0 0
      %5609 = vmatprep.mubr.bf16.mxu0 0
      %5610 = vmatmul.mubr.bf16.gmra.mrb[0].mxu0 %v5493
      %v5611 = vpop.f32.mrb[0].mxu0
      %v5612 = vadd.f32 0.0, %v5611
      %v5613 = vpop.f32.mrb[0].mxu0
      %v5614 = vadd.f32 0.0, %v5613
      %v5615 = vpop.f32.mrb[0].mxu0
      %v5616 = vadd.f32 0.0, %v5615
      %v5617 = vpop.f32.mrb[0].mxu0
      %v5618 = vadd.f32 0.0, %v5617
      %5619 = vmatprep.mubr.bf16.mxu0 0
      %5620 = vmatmul.mubr.bf16.gmra.mrb[0].mxu0 %v5496
      %v5621 = vpop.f32.mrb[0].mxu0
      %v5622 = vadd.f32 0.0, %v5621
      %v5623 = vpop.f32.mrb[0].mxu0
      %v5624 = vadd.f32 0.0, %v5623
      %v5625 = vpop.f32.mrb[0].mxu0
      %v5626 = vadd.f32 0.0, %v5625
      %v5627 = vpop.f32.mrb[0].mxu0
      %v5628 = vadd.f32 0.0, %v5627
      %5629 = vmatprep.mubr.bf16.mxu0 0
      %5630 = vmatmul.mubr.bf16.gmra.mrb[0].mxu0 %v5499
      %v5631 = vpop.f32.mrb[0].mxu0
      %v5632 = vadd.f32 0.0, %v5631
      %v5633 = vpop.f32.mrb[0].mxu0
      %v5634 = vadd.f32 0.0, %v5633
      %v5635 = vpop.f32.mrb[0].mxu0
      %v5636 = vadd.f32 0.0, %v5635
      %v5637 = vpop.f32.mrb[0].mxu0
      %v5638 = vadd.f32 0.0, %v5637
      %5639 = vmatprep.mubr.bf16.mxu0 0
      %5640 = vmatmul.mubr.bf16.gmra.mrb[0].mxu0 %v5502
      %v5641 = vpop.f32.mrb[0].mxu0
      %v5642 = vadd.f32 0.0, %v5641
      %v5643 = vpop.f32.mrb[0].mxu0
      %v5644 = vadd.f32 0.0, %v5643
      %v5645 = vpop.f32.mrb[0].mxu0
      %v5646 = vadd.f32 0.0, %v5645
      %v5647 = vpop.f32.mrb[0].mxu0
      %v5648 = vadd.f32 0.0, %v5647
      %5649 = vdwg.mxu0
      %v5650 = vpack.c.bf16 %v5543, %v5539
      %v5651 = vpack.c.bf16 %v5545, %v5541
      %v5652 = vpack.c.bf16 %v5616, %v5612
      %v5653 = vpack.c.bf16 %v5618, %v5614
      %v5654 = vpack.c.bf16 %v5553, %v5549
      %v5655 = vpack.c.bf16 %v5555, %v5551
      %v5656 = vpack.c.bf16 %v5626, %v5622
      %v5657 = vpack.c.bf16 %v5628, %v5624
      %v5658 = vpack.c.bf16 %v5563, %v5559
      %v5659 = vpack.c.bf16 %v5565, %v5561
      %v5660 = vpack.c.bf16 %v5636, %v5632
      %v5661 = vpack.c.bf16 %v5638, %v5634
      %v5662 = vpack.c.bf16 %v5573, %v5569
      %v5663 = vpack.c.bf16 %v5575, %v5571
      %v5664 = vpack.c.bf16 %v5646, %v5642
      %v5665 = vpack.c.bf16 %v5648, %v5644
      %s5666 = scalar_lea.vmem %s4, 2048
      %v5667 = vld [vmem:[%s5666] sm:$0xf]
      %v5668 = vld [vmem:[%s5666 + $0x4] sm:$0xf]
      %v5669 = vld [vmem:[%s5666 + $0x8] sm:$0xf]
      %v5670 = vld [vmem:[%s5666 + $0xc] sm:$0xf]
      %v5671 = vld [vmem:[%s5666 + $0x10] sm:$0xf]
      %v5672 = vld [vmem:[%s5666 + $0x14] sm:$0xf]
      %v5673 = vld [vmem:[%s5666 + $0x18] sm:$0xf]
      %v5674 = vld [vmem:[%s5666 + $0x1c] sm:$0xf]
      %v5675 = vld [vmem:[%s5666 + $0x20] sm:$0xf]
      %v5676 = vld [vmem:[%s5666 + $0x24] sm:$0xf]
      %v5677 = vld [vmem:[%s5666 + $0x28] sm:$0xf]
      %v5678 = vld [vmem:[%s5666 + $0x2c] sm:$0xf]
      %v5679 = vld [vmem:[%s5666 + $0x30] sm:$0xf]
      %v5680 = vld [vmem:[%s5666 + $0x34] sm:$0xf]
      %v5681 = vld [vmem:[%s5666 + $0x38] sm:$0xf]
      %v5682 = vld [vmem:[%s5666 + $0x3c] sm:$0xf]
      %v5683 = vld [vmem:[%s5666 + $0x40] sm:$0xf]
      %v5684 = vld [vmem:[%s5666 + $0x44] sm:$0xf]
      %v5685 = vld [vmem:[%s5666 + $0x48] sm:$0xf]
      %v5686 = vld [vmem:[%s5666 + $0x4c] sm:$0xf]
      %v5687 = vld [vmem:[%s5666 + $0x50] sm:$0xf]
      %v5688 = vld [vmem:[%s5666 + $0x54] sm:$0xf]
      %v5689 = vld [vmem:[%s5666 + $0x58] sm:$0xf]
      %v5690 = vld [vmem:[%s5666 + $0x5c] sm:$0xf]
      %v5691 = vld [vmem:[%s5666 + $0x60] sm:$0xf]
      %v5692 = vld [vmem:[%s5666 + $0x64] sm:$0xf]
      %v5693 = vld [vmem:[%s5666 + $0x68] sm:$0xf]
      %v5694 = vld [vmem:[%s5666 + $0x6c] sm:$0xf]
      %v5695 = vld [vmem:[%s5666 + $0x70] sm:$0xf]
      %v5696 = vld [vmem:[%s5666 + $0x74] sm:$0xf]
      %v5697 = vld [vmem:[%s5666 + $0x78] sm:$0xf]
      %v5698 = vld [vmem:[%s5666 + $0x7c] sm:$0xf]
      %v5699 = vld [vmem:[%s5666 + $0x80] sm:$0xf]
      %v5700 = vld [vmem:[%s5666 + $0x84] sm:$0xf]
      %v5701 = vld [vmem:[%s5666 + $0x88] sm:$0xf]
      %v5702 = vld [vmem:[%s5666 + $0x8c] sm:$0xf]
      %v5703 = vld [vmem:[%s5666 + $0x90] sm:$0xf]
      %v5704 = vld [vmem:[%s5666 + $0x94] sm:$0xf]
      %v5705 = vld [vmem:[%s5666 + $0x98] sm:$0xf]
      %v5706 = vld [vmem:[%s5666 + $0x9c] sm:$0xf]
      %v5707 = vld [vmem:[%s5666 + $0xa0] sm:$0xf]
      %v5708 = vld [vmem:[%s5666 + $0xa4] sm:$0xf]
      %v5709 = vld [vmem:[%s5666 + $0xa8] sm:$0xf]
      %v5710 = vld [vmem:[%s5666 + $0xac] sm:$0xf]
      %v5711 = vld [vmem:[%s5666 + $0xb0] sm:$0xf]
      %v5712 = vld [vmem:[%s5666 + $0xb4] sm:$0xf]
      %v5713 = vld [vmem:[%s5666 + $0xb8] sm:$0xf]
      %v5714 = vld [vmem:[%s5666 + $0xbc] sm:$0xf]
      %v5715 = vld [vmem:[%s5666 + $0xc0] sm:$0xf]
      %v5716 = vld [vmem:[%s5666 + $0xc4] sm:$0xf]
      %v5717 = vld [vmem:[%s5666 + $0xc8] sm:$0xf]
      %v5718 = vld [vmem:[%s5666 + $0xcc] sm:$0xf]
      %v5719 = vld [vmem:[%s5666 + $0xd0] sm:$0xf]
      %v5720 = vld [vmem:[%s5666 + $0xd4] sm:$0xf]
      %v5721 = vld [vmem:[%s5666 + $0xd8] sm:$0xf]
      %v5722 = vld [vmem:[%s5666 + $0xdc] sm:$0xf]
      %v5723 = vld [vmem:[%s5666 + $0xe0] sm:$0xf]
      %v5724 = vld [vmem:[%s5666 + $0xe4] sm:$0xf]
      %v5725 = vld [vmem:[%s5666 + $0xe8] sm:$0xf]
      %v5726 = vld [vmem:[%s5666 + $0xec] sm:$0xf]
      %v5727 = vld [vmem:[%s5666 + $0xf0] sm:$0xf]
      %v5728 = vld [vmem:[%s5666 + $0xf4] sm:$0xf]
      %v5729 = vld [vmem:[%s5666 + $0xf8] sm:$0xf]
      %v5730 = vld [vmem:[%s5666 + $0xfc] sm:$0xf]
      %v5795 = vunpack.c.l.b16 %v5667
      %v5796 = vunpack.c.l.b16 %v5668
      %v5797 = vunpack.c.l.b16 %v5669
      %v5798 = vunpack.c.l.b16 %v5670
      %v5799 = vunpack.c.l.b16 %v5671
      %v5800 = vunpack.c.l.b16 %v5672
      %v5801 = vunpack.c.l.b16 %v5673
      %v5802 = vunpack.c.l.b16 %v5674
      %v5803 = vunpack.c.l.b16 %v5675
      %v5804 = vunpack.c.l.b16 %v5676
      %v5805 = vunpack.c.l.b16 %v5677
      %v5806 = vunpack.c.l.b16 %v5678
      %v5807 = vunpack.c.l.b16 %v5679
      %v5808 = vunpack.c.l.b16 %v5680
      %v5809 = vunpack.c.l.b16 %v5681
      %v5810 = vunpack.c.l.b16 %v5682
      %v5811 = vunpack.c.l.b16 %v5683
      %v5812 = vunpack.c.l.b16 %v5684
      %v5813 = vunpack.c.l.b16 %v5685
      %v5814 = vunpack.c.l.b16 %v5686
      %v5815 = vunpack.c.l.b16 %v5687
      %v5816 = vunpack.c.l.b16 %v5688
      %v5817 = vunpack.c.l.b16 %v5689
      %v5818 = vunpack.c.l.b16 %v5690
      %v5819 = vunpack.c.l.b16 %v5691
      %v5820 = vunpack.c.l.b16 %v5692
      %v5821 = vunpack.c.l.b16 %v5693
      %v5822 = vunpack.c.l.b16 %v5694
      %v5823 = vunpack.c.l.b16 %v5695
      %v5824 = vunpack.c.l.b16 %v5696
      %v5825 = vunpack.c.l.b16 %v5697
      %v5826 = vunpack.c.l.b16 %v5698
      %v5827 = vunpack.c.l.b16 %v5699
      %v5828 = vunpack.c.l.b16 %v5700
      %v5829 = vunpack.c.l.b16 %v5701
      %v5830 = vunpack.c.l.b16 %v5702
      %v5831 = vunpack.c.l.b16 %v5703
      %v5832 = vunpack.c.l.b16 %v5704
      %v5833 = vunpack.c.l.b16 %v5705
      %v5834 = vunpack.c.l.b16 %v5706
      %v5835 = vunpack.c.l.b16 %v5707
      %v5836 = vunpack.c.l.b16 %v5708
      %v5837 = vunpack.c.l.b16 %v5709
      %v5838 = vunpack.c.l.b16 %v5710
      %v5839 = vunpack.c.l.b16 %v5711
      %v5840 = vunpack.c.l.b16 %v5712
      %v5841 = vunpack.c.l.b16 %v5713
      %v5842 = vunpack.c.l.b16 %v5714
      %v5843 = vunpack.c.l.b16 %v5715
      %v5844 = vunpack.c.l.b16 %v5716
      %v5845 = vunpack.c.l.b16 %v5717
      %v5846 = vunpack.c.l.b16 %v5718
      %v5847 = vunpack.c.l.b16 %v5719
      %v5848 = vunpack.c.l.b16 %v5720
      %v5849 = vunpack.c.l.b16 %v5721
      %v5850 = vunpack.c.l.b16 %v5722
      %v5851 = vunpack.c.l.b16 %v5723
      %v5852 = vunpack.c.l.b16 %v5724
      %v5853 = vunpack.c.l.b16 %v5725
      %v5854 = vunpack.c.l.b16 %v5726
      %v5855 = vunpack.c.l.b16 %v5727
      %v5856 = vunpack.c.l.b16 %v5728
      %v5857 = vunpack.c.l.b16 %v5729
      %v5858 = vunpack.c.l.b16 %v5730
      %v5859 = vpack.c.b16 %v5796, %v5795
      %v5860 = vpack.c.b16 %v5798, %v5797
      %v5861 = vpack.c.b16 %v5800, %v5799
      %v5862 = vpack.c.b16 %v5802, %v5801
      %v5863 = vpack.c.b16 %v5804, %v5803
      %v5864 = vpack.c.b16 %v5806, %v5805
      %v5865 = vpack.c.b16 %v5808, %v5807
      %v5866 = vpack.c.b16 %v5810, %v5809
      %v5867 = vpack.c.b16 %v5812, %v5811
      %v5868 = vpack.c.b16 %v5814, %v5813
      %v5869 = vpack.c.b16 %v5816, %v5815
      %v5870 = vpack.c.b16 %v5818, %v5817
      %v5871 = vpack.c.b16 %v5820, %v5819
      %v5872 = vpack.c.b16 %v5822, %v5821
      %v5873 = vpack.c.b16 %v5824, %v5823
      %v5874 = vpack.c.b16 %v5826, %v5825
      %v5875 = vpack.c.b16 %v5828, %v5827
      %v5876 = vpack.c.b16 %v5830, %v5829
      %v5877 = vpack.c.b16 %v5832, %v5831
      %v5878 = vpack.c.b16 %v5834, %v5833
      %v5879 = vpack.c.b16 %v5836, %v5835
      %v5880 = vpack.c.b16 %v5838, %v5837
      %v5881 = vpack.c.b16 %v5840, %v5839
      %v5882 = vpack.c.b16 %v5842, %v5841
      %v5883 = vpack.c.b16 %v5844, %v5843
      %v5884 = vpack.c.b16 %v5846, %v5845
      %v5885 = vpack.c.b16 %v5848, %v5847
      %v5886 = vpack.c.b16 %v5850, %v5849
      %v5887 = vpack.c.b16 %v5852, %v5851
      %v5888 = vpack.c.b16 %v5854, %v5853
      %v5889 = vpack.c.b16 %v5856, %v5855
      %v5890 = vpack.c.b16 %v5858, %v5857
      %5923 = vmatprep.subr.bf16.mxu0 0
      %5924 = vmatpush1.bf16.msra.mxu0 %v5859
      %5925 = vmatprep.subr.bf16.mxu0 0
      %5926 = vmatpush1.bf16.msra.mxu0 %v5860
      %5927 = vmatprep.subr.bf16.mxu0 0
      %5928 = vmatpush1.bf16.msra.mxu0 %v5861
      %5929 = vmatprep.subr.bf16.mxu0 0
      %5930 = vmatpush1.bf16.msra.mxu0 %v5862
      %5931 = vmatprep.subr.bf16.mxu0 0
      %5932 = vmatpush1.bf16.msra.mxu0 %v5863
      %5933 = vmatprep.subr.bf16.mxu0 0
      %5934 = vmatpush1.bf16.msra.mxu0 %v5864
      %5935 = vmatprep.subr.bf16.mxu0 0
      %5936 = vmatpush1.bf16.msra.mxu0 %v5865
      %5937 = vmatprep.subr.bf16.mxu0 0
      %5938 = vmatpush1.bf16.msra.mxu0 %v5866
      %5939 = vmatprep.subr.bf16.mxu0 0
      %5940 = vmatpush1.bf16.msra.mxu0 %v5867
      %5941 = vmatprep.subr.bf16.mxu0 0
      %5942 = vmatpush1.bf16.msra.mxu0 %v5868
      %5943 = vmatprep.subr.bf16.mxu0 0
      %5944 = vmatpush1.bf16.msra.mxu0 %v5869
      %5945 = vmatprep.subr.bf16.mxu0 0
      %5946 = vmatpush1.bf16.msra.mxu0 %v5870
      %5947 = vmatprep.subr.bf16.mxu0 0
      %5948 = vmatpush1.bf16.msra.mxu0 %v5871
      %5949 = vmatprep.subr.bf16.mxu0 0
      %5950 = vmatpush1.bf16.msra.mxu0 %v5872
      %5951 = vmatprep.subr.bf16.mxu0 0
      %5952 = vmatpush1.bf16.msra.mxu0 %v5873
      %5953 = vmatprep.subr.bf16.mxu0 0
      %5954 = vmatpush1.bf16.msra.mxu0 %v5874
      %5955 = vmatprep.mubr.bf16.mxu0 %v5651
      %5956 = vmatmul.mubr.bf16.gmra.mrb[0].mxu0 %v5650
      %v5957 = vpop.f32.mrb[0].mxu0
      %v5958 = vadd.f32 0.0, %v5957
      %v5959 = vpop.f32.mrb[0].mxu0
      %v5960 = vpop.f32.mrb[0].mxu0
      %v5961 = vadd.f32 0.0, %v5960
      %v5962 = vpop.f32.mrb[0].mxu0
      %5963 = vmatprep.mubr.bf16.mxu0 %v5655
      %5964 = vmatmul.mubr.bf16.gmra.mrb[0].mxu0 %v5654
      %v5965 = vpop.f32.mrb[0].mxu0
      %v5966 = vadd.f32 0.0, %v5965
      %v5967 = vpop.f32.mrb[0].mxu0
      %v5968 = vpop.f32.mrb[0].mxu0
      %v5969 = vadd.f32 0.0, %v5968
      %v5970 = vpop.f32.mrb[0].mxu0
      %5971 = vmatprep.mubr.bf16.mxu0 %v5659
      %5972 = vmatmul.mubr.bf16.gmra.mrb[0].mxu0 %v5658
      %v5973 = vpop.f32.mrb[0].mxu0
      %v5974 = vadd.f32 0.0, %v5973
      %v5975 = vpop.f32.mrb[0].mxu0
      %v5976 = vpop.f32.mrb[0].mxu0
      %v5977 = vadd.f32 0.0, %v5976
      %v5978 = vpop.f32.mrb[0].mxu0
      %5979 = vmatprep.mubr.bf16.mxu0 %v5663
      %5980 = vmatmul.mubr.bf16.gmra.mrb[0].mxu0 %v5662
      %v5981 = vpop.f32.mrb[0].mxu0
      %v5982 = vadd.f32 0.0, %v5981
      %v5983 = vpop.f32.mrb[0].mxu0
      %v5984 = vpop.f32.mrb[0].mxu0
      %v5985 = vadd.f32 0.0, %v5984
      %v5986 = vpop.f32.mrb[0].mxu0
      %5987 = vdwg.mxu0
      %5988 = vmatprep.subr.bf16.mxu0 0
      %5989 = vmatpush1.bf16.msra.mxu0 %v5875
      %5990 = vmatprep.subr.bf16.mxu0 0
      %5991 = vmatpush1.bf16.msra.mxu0 %v5876
      %5992 = vmatprep.subr.bf16.mxu0 0
      %5993 = vmatpush1.bf16.msra.mxu0 %v5877
      %5994 = vmatprep.subr.bf16.mxu0 0
      %5995 = vmatpush1.bf16.msra.mxu0 %v5878
      %5996 = vmatprep.subr.bf16.mxu0 0
      %5997 = vmatpush1.bf16.msra.mxu0 %v5879
      %5998 = vmatprep.subr.bf16.mxu0 0
      %5999 = vmatpush1.bf16.msra.mxu0 %v5880
      %6000 = vmatprep.subr.bf16.mxu0 0
      %6001 = vmatpush1.bf16.msra.mxu0 %v5881
      %6002 = vmatprep.subr.bf16.mxu0 0
      %6003 = vmatpush1.bf16.msra.mxu0 %v5882
      %6004 = vmatprep.subr.bf16.mxu0 0
      %6005 = vmatpush1.bf16.msra.mxu0 %v5883
      %6006 = vmatprep.subr.bf16.mxu0 0
      %6007 = vmatpush1.bf16.msra.mxu0 %v5884
      %6008 = vmatprep.subr.bf16.mxu0 0
      %6009 = vmatpush1.bf16.msra.mxu0 %v5885
      %6010 = vmatprep.subr.bf16.mxu0 0
      %6011 = vmatpush1.bf16.msra.mxu0 %v5886
      %6012 = vmatprep.subr.bf16.mxu0 0
      %6013 = vmatpush1.bf16.msra.mxu0 %v5887
      %6014 = vmatprep.subr.bf16.mxu0 0
      %6015 = vmatpush1.bf16.msra.mxu0 %v5888
      %6016 = vmatprep.subr.bf16.mxu0 0
      %6017 = vmatpush1.bf16.msra.mxu0 %v5889
      %6018 = vmatprep.subr.bf16.mxu0 0
      %6019 = vmatpush1.bf16.msra.mxu0 %v5890
      %6020 = vmatprep.mubr.bf16.mxu0 %v5653
      %6021 = vmatmul.mubr.bf16.gmra.mrb[0].mxu0 %v5652
      %v6022 = vpop.f32.mrb[0].mxu0
      %v6023 = vadd.f32 %v5958, %v6022
      %v6024 = vpop.f32.mrb[0].mxu0
      %v6025 = vpop.f32.mrb[0].mxu0
      %v6026 = vadd.f32 %v5961, %v6025
      %v6027 = vpop.f32.mrb[0].mxu0
      %6028 = vmatprep.mubr.bf16.mxu0 %v5657
      %6029 = vmatmul.mubr.bf16.gmra.mrb[0].mxu0 %v5656
      %v6030 = vpop.f32.mrb[0].mxu0
      %v6031 = vadd.f32 %v5966, %v6030
      %v6032 = vpop.f32.mrb[0].mxu0
      %v6033 = vpop.f32.mrb[0].mxu0
      %v6034 = vadd.f32 %v5969, %v6033
      %v6035 = vpop.f32.mrb[0].mxu0
      %6036 = vmatprep.mubr.bf16.mxu0 %v5661
      %6037 = vmatmul.mubr.bf16.gmra.mrb[0].mxu0 %v5660
      %v6038 = vpop.f32.mrb[0].mxu0
      %v6039 = vadd.f32 %v5974, %v6038
      %v6040 = vpop.f32.mrb[0].mxu0
      %v6041 = vpop.f32.mrb[0].mxu0
      %v6042 = vadd.f32 %v5977, %v6041
      %v6043 = vpop.f32.mrb[0].mxu0
      %6044 = vmatprep.mubr.bf16.mxu0 %v5665
      %6045 = vmatmul.mubr.bf16.gmra.mrb[0].mxu0 %v5664
      %v6046 = vpop.f32.mrb[0].mxu0
      %v6047 = vadd.f32 %v5982, %v6046
      %v6048 = vpop.f32.mrb[0].mxu0
      %v6049 = vpop.f32.mrb[0].mxu0
      %v6050 = vadd.f32 %v5985, %v6049
      %v6051 = vpop.f32.mrb[0].mxu0
      %6052 = vdwg.mxu0
      %v6053 = vadd.f32 %v5455, %v6023
      %v6054 = vadd.f32 %v5456, %v6026
      %v6055 = vadd.f32 %v5457, %v6031
      %v6056 = vadd.f32 %v5458, %v6034
      %v6057 = vadd.f32 %v5459, %v6039
      %v6058 = vadd.f32 %v5460, %v6042
      %v6059 = vadd.f32 %v5461, %v6047
      %v6060 = vadd.f32 %v5462, %v6050
      %v6061 = vld [vmem:[%s5] sm:$0x1]
      %v6063 = vlaneseq
      %v6064 = vshrl.u32 %v6063, 7
      %v6065 = vsub.s32 0, %v6064
      %v6066 = vrot.slane %v6061, %v6065
      %v6068 = vadd.f32 %v6053, %v6066
      %v6069 = vadd.f32 %v6054, %v6066
      %v6070 = vadd.f32 %v6055, %v6066
      %v6071 = vadd.f32 %v6056, %v6066
      %v6072 = vadd.f32 %v6057, %v6066
      %v6073 = vadd.f32 %v6058, %v6066
      %v6074 = vadd.f32 %v6059, %v6066
      %v6075 = vadd.f32 %v6060, %v6066
      %v6076 = vmax.f32 %v6068, 0.0
      %v6077 = vmax.f32 %v6069, 0.0
      %v6078 = vmax.f32 %v6070, 0.0
      %v6079 = vmax.f32 %v6071, 0.0
      %v6080 = vmax.f32 %v6072, 0.0
      %v6081 = vmax.f32 %v6073, 0.0
      %v6082 = vmax.f32 %v6074, 0.0
      %v6083 = vmax.f32 %v6075, 0.0
      %v6084 = vpack.c.bf16 %v6077, %v6076
      %v6085 = vpack.c.bf16 %v6079, %v6078
      %v6086 = vpack.c.bf16 %v6081, %v6080
      %v6087 = vpack.c.bf16 %v6083, %v6082
      %v6088 = vld [vmem:[%s2] sm:$0xf]
      %v6089 = vld [vmem:[%s2 + $0x4] sm:$0xf]
      %v6092 = vunpack.c.l.b16 %v6088
      %v6093 = vunpack.c.l.b16 %v6089
      %v6094 = vpack.c.b16 %v6093, %v6092
      %v6096 = vsel %vm724, %v6094, 0
      %6098 = vmatprep.subr.bf16.mxu0 0
      %6099 = vmatpush1.bf16.msra.mxu0 %v6084
      %6100 = vmatprep.subr.bf16.mxu0 0
      %6101 = vmatpush1.bf16.msra.mxu0 %v6085
      %6102 = vmatprep.subr.bf16.mxu0 0
      %6103 = vmatpush1.bf16.msra.mxu0 %v6086
      %6104 = vmatprep.subr.bf16.mxu0 0
      %6105 = vmatpush1.bf16.msra.mxu0 %v6087
      %6106 = vmatprep.subr.bf16.mxu0 0
      %6107 = vmatpush1.bf16.msra.mxu0 0
      %6108 = vmatprep.subr.bf16.mxu0 0
      %6109 = vmatpush1.bf16.msra.mxu0 0
      %6110 = vmatprep.subr.bf16.mxu0 0
      %6111 = vmatpush1.bf16.msra.mxu0 0
      %6112 = vmatprep.subr.bf16.mxu0 0
      %6113 = vmatpush1.bf16.msra.mxu0 0
      %6114 = vmatprep.subr.bf16.mxu0 0
      %6115 = vmatpush1.bf16.msra.mxu0 0
      %6116 = vmatprep.subr.bf16.mxu0 0
      %6117 = vmatpush1.bf16.msra.mxu0 0
      %6118 = vmatprep.subr.bf16.mxu0 0
      %6119 = vmatpush1.bf16.msra.mxu0 0
      %6120 = vmatprep.subr.bf16.mxu0 0
      %6121 = vmatpush1.bf16.msra.mxu0 0
      %6122 = vmatprep.subr.bf16.mxu0 0
      %6123 = vmatpush1.bf16.msra.mxu0 0
      %6124 = vmatprep.subr.bf16.mxu0 0
      %6125 = vmatpush1.bf16.msra.mxu0 0
      %6126 = vmatprep.subr.bf16.mxu0 0
      %6127 = vmatpush1.bf16.msra.mxu0 0
      %6128 = vmatprep.subr.bf16.mxu0 0
      %6129 = vmatpush1.bf16.msra.mxu0 0
      %6130 = vmatprep.mubr.bf16.mxu0 0
      %6131 = vmatmul.mubr.bf16.gmra.mrb[0].mxu0 %v6096
      %v6132 = vpop.f32.mrb[0].mxu0
      %v6133 = vadd.f32 0.0, %v6132
      %v6134 = vpop.f32.mrb[0].mxu0
      %v6135 = vpop.f32.mrb[0].mxu0
      %v6136 = vadd.f32 0.0, %v6135
      %v6137 = vpop.f32.mrb[0].mxu0
      %6138 = vdwg.mxu0
      %v6139 = vpack.c.bf16 %v6136, %v6133
      %v6140 = vld [vmem:[%s6] sm:$0xf]
      %v6141 = vld [vmem:[%s6 + $0x4] sm:$0xf]
      %v6142 = vld [vmem:[%s6 + $0x8] sm:$0xf]
      %v6143 = vld [vmem:[%s6 + $0xc] sm:$0xf]
      %v6144 = vld [vmem:[%s6 + $0x10] sm:$0xf]
      %v6145 = vld [vmem:[%s6 + $0x14] sm:$0xf]
      %v6146 = vld [vmem:[%s6 + $0x18] sm:$0xf]
      %v6147 = vld [vmem:[%s6 + $0x1c] sm:$0xf]
      %v6148 = vld [vmem:[%s6 + $0x20] sm:$0xf]
      %v6149 = vld [vmem:[%s6 + $0x24] sm:$0xf]
      %v6150 = vld [vmem:[%s6 + $0x28] sm:$0xf]
      %v6151 = vld [vmem:[%s6 + $0x2c] sm:$0xf]
      %v6152 = vld [vmem:[%s6 + $0x30] sm:$0xf]
      %v6153 = vld [vmem:[%s6 + $0x34] sm:$0xf]
      %v6154 = vld [vmem:[%s6 + $0x38] sm:$0xf]
      %v6155 = vld [vmem:[%s6 + $0x3c] sm:$0xf]
      %s6156 = scalar_lea.vmem %s2, 8
      %v6157 = vld [vmem:[%s6156] sm:$0xf]
      %v6158 = vld [vmem:[%s6156 + $0x4] sm:$0xf]
      %v6161 = vunpack.c.l.b16 %v6157
      %v6162 = vunpack.c.l.b16 %v6158
      %v6163 = vpack.c.b16 %v6162, %v6161
      %v6165 = vsel %vm724, %v6163, 0
      %6167 = vmatprep.subr.bf16.mxu0 0
      %6168 = vmatpush1.bf16.msra.mxu0 %v6084
      %6169 = vmatprep.subr.bf16.mxu0 0
      %6170 = vmatpush1.bf16.msra.mxu0 %v6085
      %6171 = vmatprep.subr.bf16.mxu0 0
      %6172 = vmatpush1.bf16.msra.mxu0 %v6086
      %6173 = vmatprep.subr.bf16.mxu0 0
      %6174 = vmatpush1.bf16.msra.mxu0 %v6087
      %6175 = vmatprep.subr.bf16.mxu0 0
      %6176 = vmatpush1.bf16.msra.mxu0 0
      %6177 = vmatprep.subr.bf16.mxu0 0
      %6178 = vmatpush1.bf16.msra.mxu0 0
      %6179 = vmatprep.subr.bf16.mxu0 0
      %6180 = vmatpush1.bf16.msra.mxu0 0
      %6181 = vmatprep.subr.bf16.mxu0 0
      %6182 = vmatpush1.bf16.msra.mxu0 0
      %6183 = vmatprep.subr.bf16.mxu0 0
      %6184 = vmatpush1.bf16.msra.mxu0 0
      %6185 = vmatprep.subr.bf16.mxu0 0
      %6186 = vmatpush1.bf16.msra.mxu0 0
      %6187 = vmatprep.subr.bf16.mxu0 0
      %6188 = vmatpush1.bf16.msra.mxu0 0
      %6189 = vmatprep.subr.bf16.mxu0 0
      %6190 = vmatpush1.bf16.msra.mxu0 0
      %6191 = vmatprep.subr.bf16.mxu0 0
      %6192 = vmatpush1.bf16.msra.mxu0 0
      %6193 = vmatprep.subr.bf16.mxu0 0
      %6194 = vmatpush1.bf16.msra.mxu0 0
      %6195 = vmatprep.subr.bf16.mxu0 0
      %6196 = vmatpush1.bf16.msra.mxu0 0
      %6197 = vmatprep.subr.bf16.mxu0 0
      %6198 = vmatpush1.bf16.msra.mxu0 0
      %6199 = vmatprep.mubr.bf16.mxu0 0
      %6200 = vmatmul.mubr.bf16.gmra.mrb[0].mxu0 %v6165
      %v6201 = vpop.f32.mrb[0].mxu0
      %v6202 = vadd.f32 0.0, %v6201
      %v6203 = vpop.f32.mrb[0].mxu0
      %v6204 = vpop.f32.mrb[0].mxu0
      %v6205 = vadd.f32 0.0, %v6204
      %v6206 = vpop.f32.mrb[0].mxu0
      %6207 = vdwg.mxu0
      %v6208 = vpack.c.bf16 %v6205, %v6202
      %s6209 = scalar_lea.vmem %s6, 64
      %v6210 = vld [vmem:[%s6209] sm:$0xf]
      %v6211 = vld [vmem:[%s6209 + $0x4] sm:$0xf]
      %v6212 = vld [vmem:[%s6209 + $0x8] sm:$0xf]
      %v6213 = vld [vmem:[%s6209 + $0xc] sm:$0xf]
      %v6214 = vld [vmem:[%s6209 + $0x10] sm:$0xf]
      %v6215 = vld [vmem:[%s6209 + $0x14] sm:$0xf]
      %v6216 = vld [vmem:[%s6209 + $0x18] sm:$0xf]
      %v6217 = vld [vmem:[%s6209 + $0x1c] sm:$0xf]
      %v6218 = vld [vmem:[%s6209 + $0x20] sm:$0xf]
      %v6219 = vld [vmem:[%s6209 + $0x24] sm:$0xf]
      %v6220 = vld [vmem:[%s6209 + $0x28] sm:$0xf]
      %v6221 = vld [vmem:[%s6209 + $0x2c] sm:$0xf]
      %v6222 = vld [vmem:[%s6209 + $0x30] sm:$0xf]
      %v6223 = vld [vmem:[%s6209 + $0x34] sm:$0xf]
      %v6224 = vld [vmem:[%s6209 + $0x38] sm:$0xf]
      %v6225 = vld [vmem:[%s6209 + $0x3c] sm:$0xf]
      %v6242 = vunpack.c.l.b16 %v6210
      %v6243 = vunpack.c.l.b16 %v6211
      %v6244 = vunpack.c.l.b16 %v6212
      %v6245 = vunpack.c.l.b16 %v6213
      %v6246 = vunpack.c.l.b16 %v6214
      %v6247 = vunpack.c.l.b16 %v6215
      %v6248 = vunpack.c.l.b16 %v6216
      %v6249 = vunpack.c.l.b16 %v6217
      %v6250 = vunpack.c.l.b16 %v6218
      %v6251 = vunpack.c.l.b16 %v6219
      %v6252 = vunpack.c.l.b16 %v6220
      %v6253 = vunpack.c.l.b16 %v6221
      %v6254 = vunpack.c.l.b16 %v6222
      %v6255 = vunpack.c.l.b16 %v6223
      %v6256 = vunpack.c.l.b16 %v6224
      %v6257 = vunpack.c.l.b16 %v6225
      %v6258 = vpack.c.b16 %v6243, %v6242
      %v6259 = vpack.c.b16 %v6245, %v6244
      %v6260 = vpack.c.b16 %v6247, %v6246
      %v6261 = vpack.c.b16 %v6249, %v6248
      %v6262 = vpack.c.b16 %v6251, %v6250
      %v6263 = vpack.c.b16 %v6253, %v6252
      %v6264 = vpack.c.b16 %v6255, %v6254
      %v6265 = vpack.c.b16 %v6257, %v6256
      %6274 = vmatprep.subr.bf16.mxu0 0
      %6275 = vmatpush1.bf16.msra.mxu0 %v6258
      %6276 = vmatprep.subr.bf16.mxu0 0
      %6277 = vmatpush1.bf16.msra.mxu0 %v6259
      %6278 = vmatprep.subr.bf16.mxu0 0
      %6279 = vmatpush1.bf16.msra.mxu0 %v6260
      %6280 = vmatprep.subr.bf16.mxu0 0
      %6281 = vmatpush1.bf16.msra.mxu0 %v6261
      %6282 = vmatprep.subr.bf16.mxu0 0
      %6283 = vmatpush1.bf16.msra.mxu0 %v6262
      %6284 = vmatprep.subr.bf16.mxu0 0
      %6285 = vmatpush1.bf16.msra.mxu0 %v6263
      %6286 = vmatprep.subr.bf16.mxu0 0
      %6287 = vmatpush1.bf16.msra.mxu0 %v6264
      %6288 = vmatprep.subr.bf16.mxu0 0
      %6289 = vmatpush1.bf16.msra.mxu0 %v6265
      %6290 = vmatprep.subr.bf16.mxu0 0
      %6291 = vmatpush1.bf16.msra.mxu0 0
      %6292 = vmatprep.subr.bf16.mxu0 0
      %6293 = vmatpush1.bf16.msra.mxu0 0
      %6294 = vmatprep.subr.bf16.mxu0 0
      %6295 = vmatpush1.bf16.msra.mxu0 0
      %6296 = vmatprep.subr.bf16.mxu0 0
      %6297 = vmatpush1.bf16.msra.mxu0 0
      %6298 = vmatprep.subr.bf16.mxu0 0
      %6299 = vmatpush1.bf16.msra.mxu0 0
      %6300 = vmatprep.subr.bf16.mxu0 0
      %6301 = vmatpush1.bf16.msra.mxu0 0
      %6302 = vmatprep.subr.bf16.mxu0 0
      %6303 = vmatpush1.bf16.msra.mxu0 0
      %6304 = vmatprep.subr.bf16.mxu0 0
      %6305 = vmatpush1.bf16.msra.mxu0 0
      %6306 = vmatprep.mubr.bf16.mxu0 0
      %6307 = vmatmul.mubr.bf16.gmra.mrb[0].mxu0 %v6208
      %v6308 = vpop.f32.mrb[0].mxu0
      %v6309 = vadd.f32 0.0, %v6308
      %v6310 = vpop.f32.mrb[0].mxu0
      %v6311 = vpop.f32.mrb[0].mxu0
      %v6312 = vadd.f32 0.0, %v6311
      %v6313 = vpop.f32.mrb[0].mxu0
      %6314 = vdwg.mxu0
      %v6331 = vunpack.c.l.b16 %v6140
      %v6332 = vunpack.c.l.b16 %v6141
      %v6333 = vunpack.c.l.b16 %v6142
      %v6334 = vunpack.c.l.b16 %v6143
      %v6335 = vunpack.c.l.b16 %v6144
      %v6336 = vunpack.c.l.b16 %v6145
      %v6337 = vunpack.c.l.b16 %v6146
      %v6338 = vunpack.c.l.b16 %v6147
      %v6339 = vunpack.c.l.b16 %v6148
      %v6340 = vunpack.c.l.b16 %v6149
      %v6341 = vunpack.c.l.b16 %v6150
      %v6342 = vunpack.c.l.b16 %v6151
      %v6343 = vunpack.c.l.b16 %v6152
      %v6344 = vunpack.c.l.b16 %v6153
      %v6345 = vunpack.c.l.b16 %v6154
      %v6346 = vunpack.c.l.b16 %v6155
      %v6347 = vpack.c.b16 %v6332, %v6331
      %v6348 = vpack.c.b16 %v6334, %v6333
      %v6349 = vpack.c.b16 %v6336, %v6335
      %v6350 = vpack.c.b16 %v6338, %v6337
      %v6351 = vpack.c.b16 %v6340, %v6339
      %v6352 = vpack.c.b16 %v6342, %v6341
      %v6353 = vpack.c.b16 %v6344, %v6343
      %v6354 = vpack.c.b16 %v6346, %v6345
      %6363 = vmatprep.subr.bf16.mxu0 0
      %6364 = vmatpush1.bf16.msra.mxu0 %v6347
      %6365 = vmatprep.subr.bf16.mxu0 0
      %6366 = vmatpush1.bf16.msra.mxu0 %v6348
      %6367 = vmatprep.subr.bf16.mxu0 0
      %6368 = vmatpush1.bf16.msra.mxu0 %v6349
      %6369 = vmatprep.subr.bf16.mxu0 0
      %6370 = vmatpush1.bf16.msra.mxu0 %v6350
      %6371 = vmatprep.subr.bf16.mxu0 0
      %6372 = vmatpush1.bf16.msra.mxu0 %v6351
      %6373 = vmatprep.subr.bf16.mxu0 0
      %6374 = vmatpush1.bf16.msra.mxu0 %v6352
      %6375 = vmatprep.subr.bf16.mxu0 0
      %6376 = vmatpush1.bf16.msra.mxu0 %v6353
      %6377 = vmatprep.subr.bf16.mxu0 0
      %6378 = vmatpush1.bf16.msra.mxu0 %v6354
      %6379 = vmatprep.subr.bf16.mxu0 0
      %6380 = vmatpush1.bf16.msra.mxu0 0
      %6381 = vmatprep.subr.bf16.mxu0 0
      %6382 = vmatpush1.bf16.msra.mxu0 0
      %6383 = vmatprep.subr.bf16.mxu0 0
      %6384 = vmatpush1.bf16.msra.mxu0 0
      %6385 = vmatprep.subr.bf16.mxu0 0
      %6386 = vmatpush1.bf16.msra.mxu0 0
      %6387 = vmatprep.subr.bf16.mxu0 0
      %6388 = vmatpush1.bf16.msra.mxu0 0
      %6389 = vmatprep.subr.bf16.mxu0 0
      %6390 = vmatpush1.bf16.msra.mxu0 0
      %6391 = vmatprep.subr.bf16.mxu0 0
      %6392 = vmatpush1.bf16.msra.mxu0 0
      %6393 = vmatprep.subr.bf16.mxu0 0
      %6394 = vmatpush1.bf16.msra.mxu0 0
      %6395 = vmatprep.mubr.bf16.mxu0 0
      %6396 = vmatmul.mubr.bf16.gmra.mrb[0].mxu0 %v6139
      %v6397 = vpop.f32.mrb[0].mxu0
      %v6398 = vadd.f32 %v6309, %v6397
      %v6399 = vpop.f32.mrb[0].mxu0
      %v6400 = vpop.f32.mrb[0].mxu0
      %v6401 = vadd.f32 %v6312, %v6400
      %v6402 = vpop.f32.mrb[0].mxu0
      %6403 = vdwg.mxu0
      %s6404 = scalar_lea.vmem %s2, 16
      %v6405 = vld [vmem:[%s6404] sm:$0xf]
      %v6406 = vld [vmem:[%s6404 + $0x4] sm:$0xf]
      %v6409 = vunpack.c.l.b16 %v6405
      %v6410 = vunpack.c.l.b16 %v6406
      %v6411 = vpack.c.b16 %v6410, %v6409
      %v6413 = vsel %vm724, %v6411, 0
      %6415 = vmatprep.subr.bf16.mxu0 0
      %6416 = vmatpush1.bf16.msra.mxu0 %v6084
      %6417 = vmatprep.subr.bf16.mxu0 0
      %6418 = vmatpush1.bf16.msra.mxu0 %v6085
      %6419 = vmatprep.subr.bf16.mxu0 0
      %6420 = vmatpush1.bf16.msra.mxu0 %v6086
      %6421 = vmatprep.subr.bf16.mxu0 0
      %6422 = vmatpush1.bf16.msra.mxu0 %v6087
      %6423 = vmatprep.subr.bf16.mxu0 0
      %6424 = vmatpush1.bf16.msra.mxu0 0
      %6425 = vmatprep.subr.bf16.mxu0 0
      %6426 = vmatpush1.bf16.msra.mxu0 0
      %6427 = vmatprep.subr.bf16.mxu0 0
      %6428 = vmatpush1.bf16.msra.mxu0 0
      %6429 = vmatprep.subr.bf16.mxu0 0
      %6430 = vmatpush1.bf16.msra.mxu0 0
      %6431 = vmatprep.subr.bf16.mxu0 0
      %6432 = vmatpush1.bf16.msra.mxu0 0
      %6433 = vmatprep.subr.bf16.mxu0 0
      %6434 = vmatpush1.bf16.msra.mxu0 0
      %6435 = vmatprep.subr.bf16.mxu0 0
      %6436 = vmatpush1.bf16.msra.mxu0 0
      %6437 = vmatprep.subr.bf16.mxu0 0
      %6438 = vmatpush1.bf16.msra.mxu0 0
      %6439 = vmatprep.subr.bf16.mxu0 0
      %6440 = vmatpush1.bf16.msra.mxu0 0
      %6441 = vmatprep.subr.bf16.mxu0 0
      %6442 = vmatpush1.bf16.msra.mxu0 0
      %6443 = vmatprep.subr.bf16.mxu0 0
      %6444 = vmatpush1.bf16.msra.mxu0 0
      %6445 = vmatprep.subr.bf16.mxu0 0
      %6446 = vmatpush1.bf16.msra.mxu0 0
      %6447 = vmatprep.mubr.bf16.mxu0 0
      %6448 = vmatmul.mubr.bf16.gmra.mrb[0].mxu0 %v6413
      %v6449 = vpop.f32.mrb[0].mxu0
      %v6450 = vadd.f32 0.0, %v6449
      %v6451 = vpop.f32.mrb[0].mxu0
      %v6452 = vpop.f32.mrb[0].mxu0
      %v6453 = vadd.f32 0.0, %v6452
      %v6454 = vpop.f32.mrb[0].mxu0
      %6455 = vdwg.mxu0
      %v6456 = vpack.c.bf16 %v6453, %v6450
      %s6457 = scalar_lea.vmem %s6, 128
      %v6458 = vld [vmem:[%s6457] sm:$0xf]
      %v6459 = vld [vmem:[%s6457 + $0x4] sm:$0xf]
      %v6460 = vld [vmem:[%s6457 + $0x8] sm:$0xf]
      %v6461 = vld [vmem:[%s6457 + $0xc] sm:$0xf]
      %v6462 = vld [vmem:[%s6457 + $0x10] sm:$0xf]
      %v6463 = vld [vmem:[%s6457 + $0x14] sm:$0xf]
      %v6464 = vld [vmem:[%s6457 + $0x18] sm:$0xf]
      %v6465 = vld [vmem:[%s6457 + $0x1c] sm:$0xf]
      %v6466 = vld [vmem:[%s6457 + $0x20] sm:$0xf]
      %v6467 = vld [vmem:[%s6457 + $0x24] sm:$0xf]
      %v6468 = vld [vmem:[%s6457 + $0x28] sm:$0xf]
      %v6469 = vld [vmem:[%s6457 + $0x2c] sm:$0xf]
      %v6470 = vld [vmem:[%s6457 + $0x30] sm:$0xf]
      %v6471 = vld [vmem:[%s6457 + $0x34] sm:$0xf]
      %v6472 = vld [vmem:[%s6457 + $0x38] sm:$0xf]
      %v6473 = vld [vmem:[%s6457 + $0x3c] sm:$0xf]
      %v6490 = vunpack.c.l.b16 %v6458
      %v6491 = vunpack.c.l.b16 %v6459
      %v6492 = vunpack.c.l.b16 %v6460
      %v6493 = vunpack.c.l.b16 %v6461
      %v6494 = vunpack.c.l.b16 %v6462
      %v6495 = vunpack.c.l.b16 %v6463
      %v6496 = vunpack.c.l.b16 %v6464
      %v6497 = vunpack.c.l.b16 %v6465
      %v6498 = vunpack.c.l.b16 %v6466
      %v6499 = vunpack.c.l.b16 %v6467
      %v6500 = vunpack.c.l.b16 %v6468
      %v6501 = vunpack.c.l.b16 %v6469
      %v6502 = vunpack.c.l.b16 %v6470
      %v6503 = vunpack.c.l.b16 %v6471
      %v6504 = vunpack.c.l.b16 %v6472
      %v6505 = vunpack.c.l.b16 %v6473
      %v6506 = vpack.c.b16 %v6491, %v6490
      %v6507 = vpack.c.b16 %v6493, %v6492
      %v6508 = vpack.c.b16 %v6495, %v6494
      %v6509 = vpack.c.b16 %v6497, %v6496
      %v6510 = vpack.c.b16 %v6499, %v6498
      %v6511 = vpack.c.b16 %v6501, %v6500
      %v6512 = vpack.c.b16 %v6503, %v6502
      %v6513 = vpack.c.b16 %v6505, %v6504
      %6522 = vmatprep.subr.bf16.mxu0 0
      %6523 = vmatpush1.bf16.msra.mxu0 %v6506
      %6524 = vmatprep.subr.bf16.mxu0 0
      %6525 = vmatpush1.bf16.msra.mxu0 %v6507
      %6526 = vmatprep.subr.bf16.mxu0 0
      %6527 = vmatpush1.bf16.msra.mxu0 %v6508
      %6528 = vmatprep.subr.bf16.mxu0 0
      %6529 = vmatpush1.bf16.msra.mxu0 %v6509
      %6530 = vmatprep.subr.bf16.mxu0 0
      %6531 = vmatpush1.bf16.msra.mxu0 %v6510
      %6532 = vmatprep.subr.bf16.mxu0 0
      %6533 = vmatpush1.bf16.msra.mxu0 %v6511
      %6534 = vmatprep.subr.bf16.mxu0 0
      %6535 = vmatpush1.bf16.msra.mxu0 %v6512
      %6536 = vmatprep.subr.bf16.mxu0 0
      %6537 = vmatpush1.bf16.msra.mxu0 %v6513
      %6538 = vmatprep.subr.bf16.mxu0 0
      %6539 = vmatpush1.bf16.msra.mxu0 0
      %6540 = vmatprep.subr.bf16.mxu0 0
      %6541 = vmatpush1.bf16.msra.mxu0 0
      %6542 = vmatprep.subr.bf16.mxu0 0
      %6543 = vmatpush1.bf16.msra.mxu0 0
      %6544 = vmatprep.subr.bf16.mxu0 0
      %6545 = vmatpush1.bf16.msra.mxu0 0
      %6546 = vmatprep.subr.bf16.mxu0 0
      %6547 = vmatpush1.bf16.msra.mxu0 0
      %6548 = vmatprep.subr.bf16.mxu0 0
      %6549 = vmatpush1.bf16.msra.mxu0 0
      %6550 = vmatprep.subr.bf16.mxu0 0
      %6551 = vmatpush1.bf16.msra.mxu0 0
      %6552 = vmatprep.subr.bf16.mxu0 0
      %6553 = vmatpush1.bf16.msra.mxu0 0
      %6554 = vmatprep.mubr.bf16.mxu0 0
      %6555 = vmatmul.mubr.bf16.gmra.mrb[0].mxu0 %v6456
      %v6556 = vpop.f32.mrb[0].mxu0
      %v6557 = vadd.f32 0.0, %v6556
      %v6558 = vpop.f32.mrb[0].mxu0
      %v6559 = vpop.f32.mrb[0].mxu0
      %v6560 = vadd.f32 0.0, %v6559
      %v6561 = vpop.f32.mrb[0].mxu0
      %6562 = vdwg.mxu0
      %v6563 = vadd.f32 %v6398, %v6557
      %v6564 = vadd.f32 %v6401, %v6560
      %s6565 = scalar_lea.vmem %s2, 24
      %v6566 = vld [vmem:[%s6565] sm:$0xf]
      %v6567 = vld [vmem:[%s6565 + $0x4] sm:$0xf]
      %v6570 = vunpack.c.l.b16 %v6566
      %v6571 = vunpack.c.l.b16 %v6567
      %v6572 = vpack.c.b16 %v6571, %v6570
      %v6574 = vsel %vm724, %v6572, 0
      %6576 = vmatprep.subr.bf16.mxu0 0
      %6577 = vmatpush1.bf16.msra.mxu0 %v6084
      %6578 = vmatprep.subr.bf16.mxu0 0
      %6579 = vmatpush1.bf16.msra.mxu0 %v6085
      %6580 = vmatprep.subr.bf16.mxu0 0
      %6581 = vmatpush1.bf16.msra.mxu0 %v6086
      %6582 = vmatprep.subr.bf16.mxu0 0
      %6583 = vmatpush1.bf16.msra.mxu0 %v6087
      %6584 = vmatprep.subr.bf16.mxu0 0
      %6585 = vmatpush1.bf16.msra.mxu0 0
      %6586 = vmatprep.subr.bf16.mxu0 0
      %6587 = vmatpush1.bf16.msra.mxu0 0
      %6588 = vmatprep.subr.bf16.mxu0 0
      %6589 = vmatpush1.bf16.msra.mxu0 0
      %6590 = vmatprep.subr.bf16.mxu0 0
      %6591 = vmatpush1.bf16.msra.mxu0 0
      %6592 = vmatprep.subr.bf16.mxu0 0
      %6593 = vmatpush1.bf16.msra.mxu0 0
      %6594 = vmatprep.subr.bf16.mxu0 0
      %6595 = vmatpush1.bf16.msra.mxu0 0
      %6596 = vmatprep.subr.bf16.mxu0 0
      %6597 = vmatpush1.bf16.msra.mxu0 0
      %6598 = vmatprep.subr.bf16.mxu0 0
      %6599 = vmatpush1.bf16.msra.mxu0 0
      %6600 = vmatprep.subr.bf16.mxu0 0
      %6601 = vmatpush1.bf16.msra.mxu0 0
      %6602 = vmatprep.subr.bf16.mxu0 0
      %6603 = vmatpush1.bf16.msra.mxu0 0
      %6604 = vmatprep.subr.bf16.mxu0 0
      %6605 = vmatpush1.bf16.msra.mxu0 0
      %6606 = vmatprep.subr.bf16.mxu0 0
      %6607 = vmatpush1.bf16.msra.mxu0 0
      %6608 = vmatprep.mubr.bf16.mxu0 0
      %6609 = vmatmul.mubr.bf16.gmra.mrb[0].mxu0 %v6574
      %v6610 = vpop.f32.mrb[0].mxu0
      %v6611 = vadd.f32 0.0, %v6610
      %v6612 = vpop.f32.mrb[0].mxu0
      %v6613 = vpop.f32.mrb[0].mxu0
      %v6614 = vadd.f32 0.0, %v6613
      %v6615 = vpop.f32.mrb[0].mxu0
      %6616 = vdwg.mxu0
      %v6617 = vpack.c.bf16 %v6614, %v6611
      %s6618 = scalar_lea.vmem %s6, 192
      %v6619 = vld [vmem:[%s6618] sm:$0xf]
      %v6620 = vld [vmem:[%s6618 + $0x4] sm:$0xf]
      %v6621 = vld [vmem:[%s6618 + $0x8] sm:$0xf]
      %v6622 = vld [vmem:[%s6618 + $0xc] sm:$0xf]
      %v6623 = vld [vmem:[%s6618 + $0x10] sm:$0xf]
      %v6624 = vld [vmem:[%s6618 + $0x14] sm:$0xf]
      %v6625 = vld [vmem:[%s6618 + $0x18] sm:$0xf]
      %v6626 = vld [vmem:[%s6618 + $0x1c] sm:$0xf]
      %v6627 = vld [vmem:[%s6618 + $0x20] sm:$0xf]
      %v6628 = vld [vmem:[%s6618 + $0x24] sm:$0xf]
      %v6629 = vld [vmem:[%s6618 + $0x28] sm:$0xf]
      %v6630 = vld [vmem:[%s6618 + $0x2c] sm:$0xf]
      %v6631 = vld [vmem:[%s6618 + $0x30] sm:$0xf]
      %v6632 = vld [vmem:[%s6618 + $0x34] sm:$0xf]
      %v6633 = vld [vmem:[%s6618 + $0x38] sm:$0xf]
      %v6634 = vld [vmem:[%s6618 + $0x3c] sm:$0xf]
      %v6651 = vunpack.c.l.b16 %v6619
      %v6652 = vunpack.c.l.b16 %v6620
      %v6653 = vunpack.c.l.b16 %v6621
      %v6654 = vunpack.c.l.b16 %v6622
      %v6655 = vunpack.c.l.b16 %v6623
      %v6656 = vunpack.c.l.b16 %v6624
      %v6657 = vunpack.c.l.b16 %v6625
      %v6658 = vunpack.c.l.b16 %v6626
      %v6659 = vunpack.c.l.b16 %v6627
      %v6660 = vunpack.c.l.b16 %v6628
      %v6661 = vunpack.c.l.b16 %v6629
      %v6662 = vunpack.c.l.b16 %v6630
      %v6663 = vunpack.c.l.b16 %v6631
      %v6664 = vunpack.c.l.b16 %v6632
      %v6665 = vunpack.c.l.b16 %v6633
      %v6666 = vunpack.c.l.b16 %v6634
      %v6667 = vpack.c.b16 %v6652, %v6651
      %v6668 = vpack.c.b16 %v6654, %v6653
      %v6669 = vpack.c.b16 %v6656, %v6655
      %v6670 = vpack.c.b16 %v6658, %v6657
      %v6671 = vpack.c.b16 %v6660, %v6659
      %v6672 = vpack.c.b16 %v6662, %v6661
      %v6673 = vpack.c.b16 %v6664, %v6663
      %v6674 = vpack.c.b16 %v6666, %v6665
      %6683 = vmatprep.subr.bf16.mxu0 0
      %6684 = vmatpush1.bf16.msra.mxu0 %v6667
      %6685 = vmatprep.subr.bf16.mxu0 0
      %6686 = vmatpush1.bf16.msra.mxu0 %v6668
      %6687 = vmatprep.subr.bf16.mxu0 0
      %6688 = vmatpush1.bf16.msra.mxu0 %v6669
      %6689 = vmatprep.subr.bf16.mxu0 0
      %6690 = vmatpush1.bf16.msra.mxu0 %v6670
      %6691 = vmatprep.subr.bf16.mxu0 0
      %6692 = vmatpush1.bf16.msra.mxu0 %v6671
      %6693 = vmatprep.subr.bf16.mxu0 0
      %6694 = vmatpush1.bf16.msra.mxu0 %v6672
      %6695 = vmatprep.subr.bf16.mxu0 0
      %6696 = vmatpush1.bf16.msra.mxu0 %v6673
      %6697 = vmatprep.subr.bf16.mxu0 0
      %6698 = vmatpush1.bf16.msra.mxu0 %v6674
      %6699 = vmatprep.subr.bf16.mxu0 0
      %6700 = vmatpush1.bf16.msra.mxu0 0
      %6701 = vmatprep.subr.bf16.mxu0 0
      %6702 = vmatpush1.bf16.msra.mxu0 0
      %6703 = vmatprep.subr.bf16.mxu0 0
      %6704 = vmatpush1.bf16.msra.mxu0 0
      %6705 = vmatprep.subr.bf16.mxu0 0
      %6706 = vmatpush1.bf16.msra.mxu0 0
      %6707 = vmatprep.subr.bf16.mxu0 0
      %6708 = vmatpush1.bf16.msra.mxu0 0
      %6709 = vmatprep.subr.bf16.mxu0 0
      %6710 = vmatpush1.bf16.msra.mxu0 0
      %6711 = vmatprep.subr.bf16.mxu0 0
      %6712 = vmatpush1.bf16.msra.mxu0 0
      %6713 = vmatprep.subr.bf16.mxu0 0
      %6714 = vmatpush1.bf16.msra.mxu0 0
      %6715 = vmatprep.mubr.bf16.mxu0 0
      %6716 = vmatmul.mubr.bf16.gmra.mrb[0].mxu0 %v6617
      %v6717 = vpop.f32.mrb[0].mxu0
      %v6718 = vadd.f32 0.0, %v6717
      %v6719 = vpop.f32.mrb[0].mxu0
      %v6720 = vpop.f32.mrb[0].mxu0
      %v6721 = vadd.f32 0.0, %v6720
      %v6722 = vpop.f32.mrb[0].mxu0
      %6723 = vdwg.mxu0
      %v6724 = vadd.f32 %v6563, %v6718
      %v6725 = vadd.f32 %v6564, %v6721
      %s6726 = scalar_lea.vmem %s2, 32
      %v6727 = vld [vmem:[%s6726] sm:$0xf]
      %v6728 = vld [vmem:[%s6726 + $0x4] sm:$0xf]
      %v6731 = vunpack.c.l.b16 %v6727
      %v6732 = vunpack.c.l.b16 %v6728
      %v6733 = vpack.c.b16 %v6732, %v6731
      %v6735 = vsel %vm724, %v6733, 0
      %6737 = vmatprep.subr.bf16.mxu0 0
      %6738 = vmatpush1.bf16.msra.mxu0 %v6084
      %6739 = vmatprep.subr.bf16.mxu0 0
      %6740 = vmatpush1.bf16.msra.mxu0 %v6085
      %6741 = vmatprep.subr.bf16.mxu0 0
      %6742 = vmatpush1.bf16.msra.mxu0 %v6086
      %6743 = vmatprep.subr.bf16.mxu0 0
      %6744 = vmatpush1.bf16.msra.mxu0 %v6087
      %6745 = vmatprep.subr.bf16.mxu0 0
      %6746 = vmatpush1.bf16.msra.mxu0 0
      %6747 = vmatprep.subr.bf16.mxu0 0
      %6748 = vmatpush1.bf16.msra.mxu0 0
      %6749 = vmatprep.subr.bf16.mxu0 0
      %6750 = vmatpush1.bf16.msra.mxu0 0
      %6751 = vmatprep.subr.bf16.mxu0 0
      %6752 = vmatpush1.bf16.msra.mxu0 0
      %6753 = vmatprep.subr.bf16.mxu0 0
      %6754 = vmatpush1.bf16.msra.mxu0 0
      %6755 = vmatprep.subr.bf16.mxu0 0
      %6756 = vmatpush1.bf16.msra.mxu0 0
      %6757 = vmatprep.subr.bf16.mxu0 0
      %6758 = vmatpush1.bf16.msra.mxu0 0
      %6759 = vmatprep.subr.bf16.mxu0 0
      %6760 = vmatpush1.bf16.msra.mxu0 0
      %6761 = vmatprep.subr.bf16.mxu0 0
      %6762 = vmatpush1.bf16.msra.mxu0 0
      %6763 = vmatprep.subr.bf16.mxu0 0
      %6764 = vmatpush1.bf16.msra.mxu0 0
      %6765 = vmatprep.subr.bf16.mxu0 0
      %6766 = vmatpush1.bf16.msra.mxu0 0
      %6767 = vmatprep.subr.bf16.mxu0 0
      %6768 = vmatpush1.bf16.msra.mxu0 0
      %6769 = vmatprep.mubr.bf16.mxu0 0
      %6770 = vmatmul.mubr.bf16.gmra.mrb[0].mxu0 %v6735
      %v6771 = vpop.f32.mrb[0].mxu0
      %v6772 = vadd.f32 0.0, %v6771
      %v6773 = vpop.f32.mrb[0].mxu0
      %v6774 = vpop.f32.mrb[0].mxu0
      %v6775 = vadd.f32 0.0, %v6774
      %v6776 = vpop.f32.mrb[0].mxu0
      %6777 = vdwg.mxu0
      %v6778 = vpack.c.bf16 %v6775, %v6772
      %s6779 = scalar_lea.vmem %s6, 256
      %v6780 = vld [vmem:[%s6779] sm:$0xf]
      %v6781 = vld [vmem:[%s6779 + $0x4] sm:$0xf]
      %v6782 = vld [vmem:[%s6779 + $0x8] sm:$0xf]
      %v6783 = vld [vmem:[%s6779 + $0xc] sm:$0xf]
      %v6784 = vld [vmem:[%s6779 + $0x10] sm:$0xf]
      %v6785 = vld [vmem:[%s6779 + $0x14] sm:$0xf]
      %v6786 = vld [vmem:[%s6779 + $0x18] sm:$0xf]
      %v6787 = vld [vmem:[%s6779 + $0x1c] sm:$0xf]
      %v6788 = vld [vmem:[%s6779 + $0x20] sm:$0xf]
      %v6789 = vld [vmem:[%s6779 + $0x24] sm:$0xf]
      %v6790 = vld [vmem:[%s6779 + $0x28] sm:$0xf]
      %v6791 = vld [vmem:[%s6779 + $0x2c] sm:$0xf]
      %v6792 = vld [vmem:[%s6779 + $0x30] sm:$0xf]
      %v6793 = vld [vmem:[%s6779 + $0x34] sm:$0xf]
      %v6794 = vld [vmem:[%s6779 + $0x38] sm:$0xf]
      %v6795 = vld [vmem:[%s6779 + $0x3c] sm:$0xf]
      %v6812 = vunpack.c.l.b16 %v6780
      %v6813 = vunpack.c.l.b16 %v6781
      %v6814 = vunpack.c.l.b16 %v6782
      %v6815 = vunpack.c.l.b16 %v6783
      %v6816 = vunpack.c.l.b16 %v6784
      %v6817 = vunpack.c.l.b16 %v6785
      %v6818 = vunpack.c.l.b16 %v6786
      %v6819 = vunpack.c.l.b16 %v6787
      %v6820 = vunpack.c.l.b16 %v6788
      %v6821 = vunpack.c.l.b16 %v6789
      %v6822 = vunpack.c.l.b16 %v6790
      %v6823 = vunpack.c.l.b16 %v6791
      %v6824 = vunpack.c.l.b16 %v6792
      %v6825 = vunpack.c.l.b16 %v6793
      %v6826 = vunpack.c.l.b16 %v6794
      %v6827 = vunpack.c.l.b16 %v6795
      %v6828 = vpack.c.b16 %v6813, %v6812
      %v6829 = vpack.c.b16 %v6815, %v6814
      %v6830 = vpack.c.b16 %v6817, %v6816
      %v6831 = vpack.c.b16 %v6819, %v6818
      %v6832 = vpack.c.b16 %v6821, %v6820
      %v6833 = vpack.c.b16 %v6823, %v6822
      %v6834 = vpack.c.b16 %v6825, %v6824
      %v6835 = vpack.c.b16 %v6827, %v6826
      %6844 = vmatprep.subr.bf16.mxu0 0
      %6845 = vmatpush1.bf16.msra.mxu0 %v6828
      %6846 = vmatprep.subr.bf16.mxu0 0
      %6847 = vmatpush1.bf16.msra.mxu0 %v6829
      %6848 = vmatprep.subr.bf16.mxu0 0
      %6849 = vmatpush1.bf16.msra.mxu0 %v6830
      %6850 = vmatprep.subr.bf16.mxu0 0
      %6851 = vmatpush1.bf16.msra.mxu0 %v6831
      %6852 = vmatprep.subr.bf16.mxu0 0
      %6853 = vmatpush1.bf16.msra.mxu0 %v6832
      %6854 = vmatprep.subr.bf16.mxu0 0
      %6855 = vmatpush1.bf16.msra.mxu0 %v6833
      %6856 = vmatprep.subr.bf16.mxu0 0
      %6857 = vmatpush1.bf16.msra.mxu0 %v6834
      %6858 = vmatprep.subr.bf16.mxu0 0
      %6859 = vmatpush1.bf16.msra.mxu0 %v6835
      %6860 = vmatprep.subr.bf16.mxu0 0
      %6861 = vmatpush1.bf16.msra.mxu0 0
      %6862 = vmatprep.subr.bf16.mxu0 0
      %6863 = vmatpush1.bf16.msra.mxu0 0
      %6864 = vmatprep.subr.bf16.mxu0 0
      %6865 = vmatpush1.bf16.msra.mxu0 0
      %6866 = vmatprep.subr.bf16.mxu0 0
      %6867 = vmatpush1.bf16.msra.mxu0 0
      %6868 = vmatprep.subr.bf16.mxu0 0
      %6869 = vmatpush1.bf16.msra.mxu0 0
      %6870 = vmatprep.subr.bf16.mxu0 0
      %6871 = vmatpush1.bf16.msra.mxu0 0
      %6872 = vmatprep.subr.bf16.mxu0 0
      %6873 = vmatpush1.bf16.msra.mxu0 0
      %6874 = vmatprep.subr.bf16.mxu0 0
      %6875 = vmatpush1.bf16.msra.mxu0 0
      %6876 = vmatprep.mubr.bf16.mxu0 0
      %6877 = vmatmul.mubr.bf16.gmra.mrb[0].mxu0 %v6778
      %v6878 = vpop.f32.mrb[0].mxu0
      %v6879 = vadd.f32 0.0, %v6878
      %v6880 = vpop.f32.mrb[0].mxu0
      %v6881 = vpop.f32.mrb[0].mxu0
      %v6882 = vadd.f32 0.0, %v6881
      %v6883 = vpop.f32.mrb[0].mxu0
      %6884 = vdwg.mxu0
      %v6885 = vadd.f32 %v6724, %v6879
      %v6886 = vadd.f32 %v6725, %v6882
      %s6887 = scalar_lea.vmem %s2, 40
      %v6888 = vld [vmem:[%s6887] sm:$0xf]
      %v6889 = vld [vmem:[%s6887 + $0x4] sm:$0xf]
      %v6892 = vunpack.c.l.b16 %v6888
      %v6893 = vunpack.c.l.b16 %v6889
      %v6894 = vpack.c.b16 %v6893, %v6892
      %v6896 = vsel %vm724, %v6894, 0
      %6898 = vmatprep.subr.bf16.mxu0 0
      %6899 = vmatpush1.bf16.msra.mxu0 %v6084
      %6900 = vmatprep.subr.bf16.mxu0 0
      %6901 = vmatpush1.bf16.msra.mxu0 %v6085
      %6902 = vmatprep.subr.bf16.mxu0 0
      %6903 = vmatpush1.bf16.msra.mxu0 %v6086
      %6904 = vmatprep.subr.bf16.mxu0 0
      %6905 = vmatpush1.bf16.msra.mxu0 %v6087
      %6906 = vmatprep.subr.bf16.mxu0 0
      %6907 = vmatpush1.bf16.msra.mxu0 0
      %6908 = vmatprep.subr.bf16.mxu0 0
      %6909 = vmatpush1.bf16.msra.mxu0 0
      %6910 = vmatprep.subr.bf16.mxu0 0
      %6911 = vmatpush1.bf16.msra.mxu0 0
      %6912 = vmatprep.subr.bf16.mxu0 0
      %6913 = vmatpush1.bf16.msra.mxu0 0
      %6914 = vmatprep.subr.bf16.mxu0 0
      %6915 = vmatpush1.bf16.msra.mxu0 0
      %6916 = vmatprep.subr.bf16.mxu0 0
      %6917 = vmatpush1.bf16.msra.mxu0 0
      %6918 = vmatprep.subr.bf16.mxu0 0
      %6919 = vmatpush1.bf16.msra.mxu0 0
      %6920 = vmatprep.subr.bf16.mxu0 0
      %6921 = vmatpush1.bf16.msra.mxu0 0
      %6922 = vmatprep.subr.bf16.mxu0 0
      %6923 = vmatpush1.bf16.msra.mxu0 0
      %6924 = vmatprep.subr.bf16.mxu0 0
      %6925 = vmatpush1.bf16.msra.mxu0 0
      %6926 = vmatprep.subr.bf16.mxu0 0
      %6927 = vmatpush1.bf16.msra.mxu0 0
      %6928 = vmatprep.subr.bf16.mxu0 0
      %6929 = vmatpush1.bf16.msra.mxu0 0
      %6930 = vmatprep.mubr.bf16.mxu0 0
      %6931 = vmatmul.mubr.bf16.gmra.mrb[0].mxu0 %v6896
      %v6932 = vpop.f32.mrb[0].mxu0
      %v6933 = vadd.f32 0.0, %v6932
      %v6934 = vpop.f32.mrb[0].mxu0
      %v6935 = vpop.f32.mrb[0].mxu0
      %v6936 = vadd.f32 0.0, %v6935
      %v6937 = vpop.f32.mrb[0].mxu0
      %6938 = vdwg.mxu0
      %v6939 = vpack.c.bf16 %v6936, %v6933
      %s6940 = scalar_lea.vmem %s6, 320
      %v6941 = vld [vmem:[%s6940] sm:$0xf]
      %v6942 = vld [vmem:[%s6940 + $0x4] sm:$0xf]
      %v6943 = vld [vmem:[%s6940 + $0x8] sm:$0xf]
      %v6944 = vld [vmem:[%s6940 + $0xc] sm:$0xf]
      %v6945 = vld [vmem:[%s6940 + $0x10] sm:$0xf]
      %v6946 = vld [vmem:[%s6940 + $0x14] sm:$0xf]
      %v6947 = vld [vmem:[%s6940 + $0x18] sm:$0xf]
      %v6948 = vld [vmem:[%s6940 + $0x1c] sm:$0xf]
      %v6949 = vld [vmem:[%s6940 + $0x20] sm:$0xf]
      %v6950 = vld [vmem:[%s6940 + $0x24] sm:$0xf]
      %v6951 = vld [vmem:[%s6940 + $0x28] sm:$0xf]
      %v6952 = vld [vmem:[%s6940 + $0x2c] sm:$0xf]
      %v6953 = vld [vmem:[%s6940 + $0x30] sm:$0xf]
      %v6954 = vld [vmem:[%s6940 + $0x34] sm:$0xf]
      %v6955 = vld [vmem:[%s6940 + $0x38] sm:$0xf]
      %v6956 = vld [vmem:[%s6940 + $0x3c] sm:$0xf]
      %v6973 = vunpack.c.l.b16 %v6941
      %v6974 = vunpack.c.l.b16 %v6942
      %v6975 = vunpack.c.l.b16 %v6943
      %v6976 = vunpack.c.l.b16 %v6944
      %v6977 = vunpack.c.l.b16 %v6945
      %v6978 = vunpack.c.l.b16 %v6946
      %v6979 = vunpack.c.l.b16 %v6947
      %v6980 = vunpack.c.l.b16 %v6948
      %v6981 = vunpack.c.l.b16 %v6949
      %v6982 = vunpack.c.l.b16 %v6950
      %v6983 = vunpack.c.l.b16 %v6951
      %v6984 = vunpack.c.l.b16 %v6952
      %v6985 = vunpack.c.l.b16 %v6953
      %v6986 = vunpack.c.l.b16 %v6954
      %v6987 = vunpack.c.l.b16 %v6955
      %v6988 = vunpack.c.l.b16 %v6956
      %v6989 = vpack.c.b16 %v6974, %v6973
      %v6990 = vpack.c.b16 %v6976, %v6975
      %v6991 = vpack.c.b16 %v6978, %v6977
      %v6992 = vpack.c.b16 %v6980, %v6979
      %v6993 = vpack.c.b16 %v6982, %v6981
      %v6994 = vpack.c.b16 %v6984, %v6983
      %v6995 = vpack.c.b16 %v6986, %v6985
      %v6996 = vpack.c.b16 %v6988, %v6987
      %7005 = vmatprep.subr.bf16.mxu0 0
      %7006 = vmatpush1.bf16.msra.mxu0 %v6989
      %7007 = vmatprep.subr.bf16.mxu0 0
      %7008 = vmatpush1.bf16.msra.mxu0 %v6990
      %7009 = vmatprep.subr.bf16.mxu0 0
      %7010 = vmatpush1.bf16.msra.mxu0 %v6991
      %7011 = vmatprep.subr.bf16.mxu0 0
      %7012 = vmatpush1.bf16.msra.mxu0 %v6992
      %7013 = vmatprep.subr.bf16.mxu0 0
      %7014 = vmatpush1.bf16.msra.mxu0 %v6993
      %7015 = vmatprep.subr.bf16.mxu0 0
      %7016 = vmatpush1.bf16.msra.mxu0 %v6994
      %7017 = vmatprep.subr.bf16.mxu0 0
      %7018 = vmatpush1.bf16.msra.mxu0 %v6995
      %7019 = vmatprep.subr.bf16.mxu0 0
      %7020 = vmatpush1.bf16.msra.mxu0 %v6996
      %7021 = vmatprep.subr.bf16.mxu0 0
      %7022 = vmatpush1.bf16.msra.mxu0 0
      %7023 = vmatprep.subr.bf16.mxu0 0
      %7024 = vmatpush1.bf16.msra.mxu0 0
      %7025 = vmatprep.subr.bf16.mxu0 0
      %7026 = vmatpush1.bf16.msra.mxu0 0
      %7027 = vmatprep.subr.bf16.mxu0 0
      %7028 = vmatpush1.bf16.msra.mxu0 0
      %7029 = vmatprep.subr.bf16.mxu0 0
      %7030 = vmatpush1.bf16.msra.mxu0 0
      %7031 = vmatprep.subr.bf16.mxu0 0
      %7032 = vmatpush1.bf16.msra.mxu0 0
      %7033 = vmatprep.subr.bf16.mxu0 0
      %7034 = vmatpush1.bf16.msra.mxu0 0
      %7035 = vmatprep.subr.bf16.mxu0 0
      %7036 = vmatpush1.bf16.msra.mxu0 0
      %7037 = vmatprep.mubr.bf16.mxu0 0
      %7038 = vmatmul.mubr.bf16.gmra.mrb[0].mxu0 %v6939
      %v7039 = vpop.f32.mrb[0].mxu0
      %v7040 = vadd.f32 0.0, %v7039
      %v7041 = vpop.f32.mrb[0].mxu0
      %v7042 = vpop.f32.mrb[0].mxu0
      %v7043 = vadd.f32 0.0, %v7042
      %v7044 = vpop.f32.mrb[0].mxu0
      %7045 = vdwg.mxu0
      %v7046 = vadd.f32 %v6885, %v7040
      %v7047 = vadd.f32 %v6886, %v7043
      %s7048 = scalar_lea.vmem %s2, 48
      %v7049 = vld [vmem:[%s7048] sm:$0xf]
      %v7050 = vld [vmem:[%s7048 + $0x4] sm:$0xf]
      %v7053 = vunpack.c.l.b16 %v7049
      %v7054 = vunpack.c.l.b16 %v7050
      %v7055 = vpack.c.b16 %v7054, %v7053
      %v7057 = vsel %vm724, %v7055, 0
      %7059 = vmatprep.subr.bf16.mxu0 0
      %7060 = vmatpush1.bf16.msra.mxu0 %v6084
      %7061 = vmatprep.subr.bf16.mxu0 0
      %7062 = vmatpush1.bf16.msra.mxu0 %v6085
      %7063 = vmatprep.subr.bf16.mxu0 0
      %7064 = vmatpush1.bf16.msra.mxu0 %v6086
      %7065 = vmatprep.subr.bf16.mxu0 0
      %7066 = vmatpush1.bf16.msra.mxu0 %v6087
      %7067 = vmatprep.subr.bf16.mxu0 0
      %7068 = vmatpush1.bf16.msra.mxu0 0
      %7069 = vmatprep.subr.bf16.mxu0 0
      %7070 = vmatpush1.bf16.msra.mxu0 0
      %7071 = vmatprep.subr.bf16.mxu0 0
      %7072 = vmatpush1.bf16.msra.mxu0 0
      %7073 = vmatprep.subr.bf16.mxu0 0
      %7074 = vmatpush1.bf16.msra.mxu0 0
      %7075 = vmatprep.subr.bf16.mxu0 0
      %7076 = vmatpush1.bf16.msra.mxu0 0
      %7077 = vmatprep.subr.bf16.mxu0 0
      %7078 = vmatpush1.bf16.msra.mxu0 0
      %7079 = vmatprep.subr.bf16.mxu0 0
      %7080 = vmatpush1.bf16.msra.mxu0 0
      %7081 = vmatprep.subr.bf16.mxu0 0
      %7082 = vmatpush1.bf16.msra.mxu0 0
      %7083 = vmatprep.subr.bf16.mxu0 0
      %7084 = vmatpush1.bf16.msra.mxu0 0
      %7085 = vmatprep.subr.bf16.mxu0 0
      %7086 = vmatpush1.bf16.msra.mxu0 0
      %7087 = vmatprep.subr.bf16.mxu0 0
      %7088 = vmatpush1.bf16.msra.mxu0 0
      %7089 = vmatprep.subr.bf16.mxu0 0
      %7090 = vmatpush1.bf16.msra.mxu0 0
      %7091 = vmatprep.mubr.bf16.mxu0 0
      %7092 = vmatmul.mubr.bf16.gmra.mrb[0].mxu0 %v7057
      %v7093 = vpop.f32.mrb[0].mxu0
      %v7094 = vadd.f32 0.0, %v7093
      %v7095 = vpop.f32.mrb[0].mxu0
      %v7096 = vpop.f32.mrb[0].mxu0
      %v7097 = vadd.f32 0.0, %v7096
      %v7098 = vpop.f32.mrb[0].mxu0
      %7099 = vdwg.mxu0
      %v7100 = vpack.c.bf16 %v7097, %v7094
      %s7101 = scalar_lea.vmem %s6, 384
      %v7102 = vld [vmem:[%s7101] sm:$0xf]
      %v7103 = vld [vmem:[%s7101 + $0x4] sm:$0xf]
      %v7104 = vld [vmem:[%s7101 + $0x8] sm:$0xf]
      %v7105 = vld [vmem:[%s7101 + $0xc] sm:$0xf]
      %v7106 = vld [vmem:[%s7101 + $0x10] sm:$0xf]
      %v7107 = vld [vmem:[%s7101 + $0x14] sm:$0xf]
      %v7108 = vld [vmem:[%s7101 + $0x18] sm:$0xf]
      %v7109 = vld [vmem:[%s7101 + $0x1c] sm:$0xf]
      %v7110 = vld [vmem:[%s7101 + $0x20] sm:$0xf]
      %v7111 = vld [vmem:[%s7101 + $0x24] sm:$0xf]
      %v7112 = vld [vmem:[%s7101 + $0x28] sm:$0xf]
      %v7113 = vld [vmem:[%s7101 + $0x2c] sm:$0xf]
      %v7114 = vld [vmem:[%s7101 + $0x30] sm:$0xf]
      %v7115 = vld [vmem:[%s7101 + $0x34] sm:$0xf]
      %v7116 = vld [vmem:[%s7101 + $0x38] sm:$0xf]
      %v7117 = vld [vmem:[%s7101 + $0x3c] sm:$0xf]
      %v7134 = vunpack.c.l.b16 %v7102
      %v7135 = vunpack.c.l.b16 %v7103
      %v7136 = vunpack.c.l.b16 %v7104
      %v7137 = vunpack.c.l.b16 %v7105
      %v7138 = vunpack.c.l.b16 %v7106
      %v7139 = vunpack.c.l.b16 %v7107
      %v7140 = vunpack.c.l.b16 %v7108
      %v7141 = vunpack.c.l.b16 %v7109
      %v7142 = vunpack.c.l.b16 %v7110
      %v7143 = vunpack.c.l.b16 %v7111
      %v7144 = vunpack.c.l.b16 %v7112
      %v7145 = vunpack.c.l.b16 %v7113
      %v7146 = vunpack.c.l.b16 %v7114
      %v7147 = vunpack.c.l.b16 %v7115
      %v7148 = vunpack.c.l.b16 %v7116
      %v7149 = vunpack.c.l.b16 %v7117
      %v7150 = vpack.c.b16 %v7135, %v7134
      %v7151 = vpack.c.b16 %v7137, %v7136
      %v7152 = vpack.c.b16 %v7139, %v7138
      %v7153 = vpack.c.b16 %v7141, %v7140
      %v7154 = vpack.c.b16 %v7143, %v7142
      %v7155 = vpack.c.b16 %v7145, %v7144
      %v7156 = vpack.c.b16 %v7147, %v7146
      %v7157 = vpack.c.b16 %v7149, %v7148
      %7166 = vmatprep.subr.bf16.mxu0 0
      %7167 = vmatpush1.bf16.msra.mxu0 %v7150
      %7168 = vmatprep.subr.bf16.mxu0 0
      %7169 = vmatpush1.bf16.msra.mxu0 %v7151
      %7170 = vmatprep.subr.bf16.mxu0 0
      %7171 = vmatpush1.bf16.msra.mxu0 %v7152
      %7172 = vmatprep.subr.bf16.mxu0 0
      %7173 = vmatpush1.bf16.msra.mxu0 %v7153
      %7174 = vmatprep.subr.bf16.mxu0 0
      %7175 = vmatpush1.bf16.msra.mxu0 %v7154
      %7176 = vmatprep.subr.bf16.mxu0 0
      %7177 = vmatpush1.bf16.msra.mxu0 %v7155
      %7178 = vmatprep.subr.bf16.mxu0 0
      %7179 = vmatpush1.bf16.msra.mxu0 %v7156
      %7180 = vmatprep.subr.bf16.mxu0 0
      %7181 = vmatpush1.bf16.msra.mxu0 %v7157
      %7182 = vmatprep.subr.bf16.mxu0 0
      %7183 = vmatpush1.bf16.msra.mxu0 0
      %7184 = vmatprep.subr.bf16.mxu0 0
      %7185 = vmatpush1.bf16.msra.mxu0 0
      %7186 = vmatprep.subr.bf16.mxu0 0
      %7187 = vmatpush1.bf16.msra.mxu0 0
      %7188 = vmatprep.subr.bf16.mxu0 0
      %7189 = vmatpush1.bf16.msra.mxu0 0
      %7190 = vmatprep.subr.bf16.mxu0 0
      %7191 = vmatpush1.bf16.msra.mxu0 0
      %7192 = vmatprep.subr.bf16.mxu0 0
      %7193 = vmatpush1.bf16.msra.mxu0 0
      %7194 = vmatprep.subr.bf16.mxu0 0
      %7195 = vmatpush1.bf16.msra.mxu0 0
      %7196 = vmatprep.subr.bf16.mxu0 0
      %7197 = vmatpush1.bf16.msra.mxu0 0
      %7198 = vmatprep.mubr.bf16.mxu0 0
      %7199 = vmatmul.mubr.bf16.gmra.mrb[0].mxu0 %v7100
      %v7200 = vpop.f32.mrb[0].mxu0
      %v7201 = vadd.f32 0.0, %v7200
      %v7202 = vpop.f32.mrb[0].mxu0
      %v7203 = vpop.f32.mrb[0].mxu0
      %v7204 = vadd.f32 0.0, %v7203
      %v7205 = vpop.f32.mrb[0].mxu0
      %7206 = vdwg.mxu0
      %v7207 = vadd.f32 %v7046, %v7201
      %v7208 = vadd.f32 %v7047, %v7204
      %s7209 = scalar_lea.vmem %s2, 56
      %v7210 = vld [vmem:[%s7209] sm:$0xf]
      %v7211 = vld [vmem:[%s7209 + $0x4] sm:$0xf]
      %v7214 = vunpack.c.l.b16 %v7210
      %v7215 = vunpack.c.l.b16 %v7211
      %v7216 = vpack.c.b16 %v7215, %v7214
      %v7218 = vsel %vm724, %v7216, 0
      %7220 = vmatprep.subr.bf16.mxu0 0
      %7221 = vmatpush1.bf16.msra.mxu0 %v6084
      %7222 = vmatprep.subr.bf16.mxu0 0
      %7223 = vmatpush1.bf16.msra.mxu0 %v6085
      %7224 = vmatprep.subr.bf16.mxu0 0
      %7225 = vmatpush1.bf16.msra.mxu0 %v6086
      %7226 = vmatprep.subr.bf16.mxu0 0
      %7227 = vmatpush1.bf16.msra.mxu0 %v6087
      %7228 = vmatprep.subr.bf16.mxu0 0
      %7229 = vmatpush1.bf16.msra.mxu0 0
      %7230 = vmatprep.subr.bf16.mxu0 0
      %7231 = vmatpush1.bf16.msra.mxu0 0
      %7232 = vmatprep.subr.bf16.mxu0 0
      %7233 = vmatpush1.bf16.msra.mxu0 0
      %7234 = vmatprep.subr.bf16.mxu0 0
      %7235 = vmatpush1.bf16.msra.mxu0 0
      %7236 = vmatprep.subr.bf16.mxu0 0
      %7237 = vmatpush1.bf16.msra.mxu0 0
      %7238 = vmatprep.subr.bf16.mxu0 0
      %7239 = vmatpush1.bf16.msra.mxu0 0
      %7240 = vmatprep.subr.bf16.mxu0 0
      %7241 = vmatpush1.bf16.msra.mxu0 0
      %7242 = vmatprep.subr.bf16.mxu0 0
      %7243 = vmatpush1.bf16.msra.mxu0 0
      %7244 = vmatprep.subr.bf16.mxu0 0
      %7245 = vmatpush1.bf16.msra.mxu0 0
      %7246 = vmatprep.subr.bf16.mxu0 0
      %7247 = vmatpush1.bf16.msra.mxu0 0
      %7248 = vmatprep.subr.bf16.mxu0 0
      %7249 = vmatpush1.bf16.msra.mxu0 0
      %7250 = vmatprep.subr.bf16.mxu0 0
      %7251 = vmatpush1.bf16.msra.mxu0 0
      %7252 = vmatprep.mubr.bf16.mxu0 0
      %7253 = vmatmul.mubr.bf16.gmra.mrb[0].mxu0 %v7218
      %v7254 = vpop.f32.mrb[0].mxu0
      %v7255 = vadd.f32 0.0, %v7254
      %v7256 = vpop.f32.mrb[0].mxu0
      %v7257 = vpop.f32.mrb[0].mxu0
      %v7258 = vadd.f32 0.0, %v7257
      %v7259 = vpop.f32.mrb[0].mxu0
      %7260 = vdwg.mxu0
      %v7261 = vpack.c.bf16 %v7258, %v7255
      %s7262 = scalar_lea.vmem %s6, 448
      %v7263 = vld [vmem:[%s7262] sm:$0xf]
      %v7264 = vld [vmem:[%s7262 + $0x4] sm:$0xf]
      %v7265 = vld [vmem:[%s7262 + $0x8] sm:$0xf]
      %v7266 = vld [vmem:[%s7262 + $0xc] sm:$0xf]
      %v7267 = vld [vmem:[%s7262 + $0x10] sm:$0xf]
      %v7268 = vld [vmem:[%s7262 + $0x14] sm:$0xf]
      %v7269 = vld [vmem:[%s7262 + $0x18] sm:$0xf]
      %v7270 = vld [vmem:[%s7262 + $0x1c] sm:$0xf]
      %v7271 = vld [vmem:[%s7262 + $0x20] sm:$0xf]
      %v7272 = vld [vmem:[%s7262 + $0x24] sm:$0xf]
      %v7273 = vld [vmem:[%s7262 + $0x28] sm:$0xf]
      %v7274 = vld [vmem:[%s7262 + $0x2c] sm:$0xf]
      %v7275 = vld [vmem:[%s7262 + $0x30] sm:$0xf]
      %v7276 = vld [vmem:[%s7262 + $0x34] sm:$0xf]
      %v7277 = vld [vmem:[%s7262 + $0x38] sm:$0xf]
      %v7278 = vld [vmem:[%s7262 + $0x3c] sm:$0xf]
      %v7295 = vunpack.c.l.b16 %v7263
      %v7296 = vunpack.c.l.b16 %v7264
      %v7297 = vunpack.c.l.b16 %v7265
      %v7298 = vunpack.c.l.b16 %v7266
      %v7299 = vunpack.c.l.b16 %v7267
      %v7300 = vunpack.c.l.b16 %v7268
      %v7301 = vunpack.c.l.b16 %v7269
      %v7302 = vunpack.c.l.b16 %v7270
      %v7303 = vunpack.c.l.b16 %v7271
      %v7304 = vunpack.c.l.b16 %v7272
      %v7305 = vunpack.c.l.b16 %v7273
      %v7306 = vunpack.c.l.b16 %v7274
      %v7307 = vunpack.c.l.b16 %v7275
      %v7308 = vunpack.c.l.b16 %v7276
      %v7309 = vunpack.c.l.b16 %v7277
      %v7310 = vunpack.c.l.b16 %v7278
      %v7311 = vpack.c.b16 %v7296, %v7295
      %v7312 = vpack.c.b16 %v7298, %v7297
      %v7313 = vpack.c.b16 %v7300, %v7299
      %v7314 = vpack.c.b16 %v7302, %v7301
      %v7315 = vpack.c.b16 %v7304, %v7303
      %v7316 = vpack.c.b16 %v7306, %v7305
      %v7317 = vpack.c.b16 %v7308, %v7307
      %v7318 = vpack.c.b16 %v7310, %v7309
      %7327 = vmatprep.subr.bf16.mxu0 0
      %7328 = vmatpush1.bf16.msra.mxu0 %v7311
      %7329 = vmatprep.subr.bf16.mxu0 0
      %7330 = vmatpush1.bf16.msra.mxu0 %v7312
      %7331 = vmatprep.subr.bf16.mxu0 0
      %7332 = vmatpush1.bf16.msra.mxu0 %v7313
      %7333 = vmatprep.subr.bf16.mxu0 0
      %7334 = vmatpush1.bf16.msra.mxu0 %v7314
      %7335 = vmatprep.subr.bf16.mxu0 0
      %7336 = vmatpush1.bf16.msra.mxu0 %v7315
      %7337 = vmatprep.subr.bf16.mxu0 0
      %7338 = vmatpush1.bf16.msra.mxu0 %v7316
      %7339 = vmatprep.subr.bf16.mxu0 0
      %7340 = vmatpush1.bf16.msra.mxu0 %v7317
      %7341 = vmatprep.subr.bf16.mxu0 0
      %7342 = vmatpush1.bf16.msra.mxu0 %v7318
      %7343 = vmatprep.subr.bf16.mxu0 0
      %7344 = vmatpush1.bf16.msra.mxu0 0
      %7345 = vmatprep.subr.bf16.mxu0 0
      %7346 = vmatpush1.bf16.msra.mxu0 0
      %7347 = vmatprep.subr.bf16.mxu0 0
      %7348 = vmatpush1.bf16.msra.mxu0 0
      %7349 = vmatprep.subr.bf16.mxu0 0
      %7350 = vmatpush1.bf16.msra.mxu0 0
      %7351 = vmatprep.subr.bf16.mxu0 0
      %7352 = vmatpush1.bf16.msra.mxu0 0
      %7353 = vmatprep.subr.bf16.mxu0 0
      %7354 = vmatpush1.bf16.msra.mxu0 0
      %7355 = vmatprep.subr.bf16.mxu0 0
      %7356 = vmatpush1.bf16.msra.mxu0 0
      %7357 = vmatprep.subr.bf16.mxu0 0
      %7358 = vmatpush1.bf16.msra.mxu0 0
      %7359 = vmatprep.mubr.bf16.mxu0 0
      %7360 = vmatmul.mubr.bf16.gmra.mrb[0].mxu0 %v7261
      %v7361 = vpop.f32.mrb[0].mxu0
      %v7362 = vadd.f32 0.0, %v7361
      %v7363 = vpop.f32.mrb[0].mxu0
      %v7364 = vpop.f32.mrb[0].mxu0
      %v7365 = vadd.f32 0.0, %v7364
      %v7366 = vpop.f32.mrb[0].mxu0
      %7367 = vdwg.mxu0
      %v7368 = vadd.f32 %v7207, %v7362
      %v7369 = vadd.f32 %v7208, %v7365
      %s7370 = scalar_lea.vmem %s2, 64
      %v7371 = vld [vmem:[%s7370] sm:$0xf]
      %v7372 = vld [vmem:[%s7370 + $0x4] sm:$0xf]
      %v7375 = vunpack.c.l.b16 %v7371
      %v7376 = vunpack.c.l.b16 %v7372
      %v7377 = vpack.c.b16 %v7376, %v7375
      %v7379 = vsel %vm724, %v7377, 0
      %7381 = vmatprep.subr.bf16.mxu0 0
      %7382 = vmatpush1.bf16.msra.mxu0 %v6084
      %7383 = vmatprep.subr.bf16.mxu0 0
      %7384 = vmatpush1.bf16.msra.mxu0 %v6085
      %7385 = vmatprep.subr.bf16.mxu0 0
      %7386 = vmatpush1.bf16.msra.mxu0 %v6086
      %7387 = vmatprep.subr.bf16.mxu0 0
      %7388 = vmatpush1.bf16.msra.mxu0 %v6087
      %7389 = vmatprep.subr.bf16.mxu0 0
      %7390 = vmatpush1.bf16.msra.mxu0 0
      %7391 = vmatprep.subr.bf16.mxu0 0
      %7392 = vmatpush1.bf16.msra.mxu0 0
      %7393 = vmatprep.subr.bf16.mxu0 0
      %7394 = vmatpush1.bf16.msra.mxu0 0
      %7395 = vmatprep.subr.bf16.mxu0 0
      %7396 = vmatpush1.bf16.msra.mxu0 0
      %7397 = vmatprep.subr.bf16.mxu0 0
      %7398 = vmatpush1.bf16.msra.mxu0 0
      %7399 = vmatprep.subr.bf16.mxu0 0
      %7400 = vmatpush1.bf16.msra.mxu0 0
      %7401 = vmatprep.subr.bf16.mxu0 0
      %7402 = vmatpush1.bf16.msra.mxu0 0
      %7403 = vmatprep.subr.bf16.mxu0 0
      %7404 = vmatpush1.bf16.msra.mxu0 0
      %7405 = vmatprep.subr.bf16.mxu0 0
      %7406 = vmatpush1.bf16.msra.mxu0 0
      %7407 = vmatprep.subr.bf16.mxu0 0
      %7408 = vmatpush1.bf16.msra.mxu0 0
      %7409 = vmatprep.subr.bf16.mxu0 0
      %7410 = vmatpush1.bf16.msra.mxu0 0
      %7411 = vmatprep.subr.bf16.mxu0 0
      %7412 = vmatpush1.bf16.msra.mxu0 0
      %7413 = vmatprep.mubr.bf16.mxu0 0
      %7414 = vmatmul.mubr.bf16.gmra.mrb[0].mxu0 %v7379
      %v7415 = vpop.f32.mrb[0].mxu0
      %v7416 = vadd.f32 0.0, %v7415
      %v7417 = vpop.f32.mrb[0].mxu0
      %v7418 = vpop.f32.mrb[0].mxu0
      %v7419 = vadd.f32 0.0, %v7418
      %v7420 = vpop.f32.mrb[0].mxu0
      %7421 = vdwg.mxu0
      %v7422 = vpack.c.bf16 %v7419, %v7416
      %s7423 = scalar_lea.vmem %s6, 512
      %v7424 = vld [vmem:[%s7423] sm:$0xf]
      %v7425 = vld [vmem:[%s7423 + $0x4] sm:$0xf]
      %v7426 = vld [vmem:[%s7423 + $0x8] sm:$0xf]
      %v7427 = vld [vmem:[%s7423 + $0xc] sm:$0xf]
      %v7428 = vld [vmem:[%s7423 + $0x10] sm:$0xf]
      %v7429 = vld [vmem:[%s7423 + $0x14] sm:$0xf]
      %v7430 = vld [vmem:[%s7423 + $0x18] sm:$0xf]
      %v7431 = vld [vmem:[%s7423 + $0x1c] sm:$0xf]
      %v7432 = vld [vmem:[%s7423 + $0x20] sm:$0xf]
      %v7433 = vld [vmem:[%s7423 + $0x24] sm:$0xf]
      %v7434 = vld [vmem:[%s7423 + $0x28] sm:$0xf]
      %v7435 = vld [vmem:[%s7423 + $0x2c] sm:$0xf]
      %v7436 = vld [vmem:[%s7423 + $0x30] sm:$0xf]
      %v7437 = vld [vmem:[%s7423 + $0x34] sm:$0xf]
      %v7438 = vld [vmem:[%s7423 + $0x38] sm:$0xf]
      %v7439 = vld [vmem:[%s7423 + $0x3c] sm:$0xf]
      %v7456 = vunpack.c.l.b16 %v7424
      %v7457 = vunpack.c.l.b16 %v7425
      %v7458 = vunpack.c.l.b16 %v7426
      %v7459 = vunpack.c.l.b16 %v7427
      %v7460 = vunpack.c.l.b16 %v7428
      %v7461 = vunpack.c.l.b16 %v7429
      %v7462 = vunpack.c.l.b16 %v7430
      %v7463 = vunpack.c.l.b16 %v7431
      %v7464 = vunpack.c.l.b16 %v7432
      %v7465 = vunpack.c.l.b16 %v7433
      %v7466 = vunpack.c.l.b16 %v7434
      %v7467 = vunpack.c.l.b16 %v7435
      %v7468 = vunpack.c.l.b16 %v7436
      %v7469 = vunpack.c.l.b16 %v7437
      %v7470 = vunpack.c.l.b16 %v7438
      %v7471 = vunpack.c.l.b16 %v7439
      %v7472 = vpack.c.b16 %v7457, %v7456
      %v7473 = vpack.c.b16 %v7459, %v7458
      %v7474 = vpack.c.b16 %v7461, %v7460
      %v7475 = vpack.c.b16 %v7463, %v7462
      %v7476 = vpack.c.b16 %v7465, %v7464
      %v7477 = vpack.c.b16 %v7467, %v7466
      %v7478 = vpack.c.b16 %v7469, %v7468
      %v7479 = vpack.c.b16 %v7471, %v7470
      %7488 = vmatprep.subr.bf16.mxu0 0
      %7489 = vmatpush1.bf16.msra.mxu0 %v7472
      %7490 = vmatprep.subr.bf16.mxu0 0
      %7491 = vmatpush1.bf16.msra.mxu0 %v7473
      %7492 = vmatprep.subr.bf16.mxu0 0
      %7493 = vmatpush1.bf16.msra.mxu0 %v7474
      %7494 = vmatprep.subr.bf16.mxu0 0
      %7495 = vmatpush1.bf16.msra.mxu0 %v7475
      %7496 = vmatprep.subr.bf16.mxu0 0
      %7497 = vmatpush1.bf16.msra.mxu0 %v7476
      %7498 = vmatprep.subr.bf16.mxu0 0
      %7499 = vmatpush1.bf16.msra.mxu0 %v7477
      %7500 = vmatprep.subr.bf16.mxu0 0
      %7501 = vmatpush1.bf16.msra.mxu0 %v7478
      %7502 = vmatprep.subr.bf16.mxu0 0
      %7503 = vmatpush1.bf16.msra.mxu0 %v7479
      %7504 = vmatprep.subr.bf16.mxu0 0
      %7505 = vmatpush1.bf16.msra.mxu0 0
      %7506 = vmatprep.subr.bf16.mxu0 0
      %7507 = vmatpush1.bf16.msra.mxu0 0
      %7508 = vmatprep.subr.bf16.mxu0 0
      %7509 = vmatpush1.bf16.msra.mxu0 0
      %7510 = vmatprep.subr.bf16.mxu0 0
      %7511 = vmatpush1.bf16.msra.mxu0 0
      %7512 = vmatprep.subr.bf16.mxu0 0
      %7513 = vmatpush1.bf16.msra.mxu0 0
      %7514 = vmatprep.subr.bf16.mxu0 0
      %7515 = vmatpush1.bf16.msra.mxu0 0
      %7516 = vmatprep.subr.bf16.mxu0 0
      %7517 = vmatpush1.bf16.msra.mxu0 0
      %7518 = vmatprep.subr.bf16.mxu0 0
      %7519 = vmatpush1.bf16.msra.mxu0 0
      %7520 = vmatprep.mubr.bf16.mxu0 0
      %7521 = vmatmul.mubr.bf16.gmra.mrb[0].mxu0 %v7422
      %v7522 = vpop.f32.mrb[0].mxu0
      %v7523 = vadd.f32 0.0, %v7522
      %v7524 = vpop.f32.mrb[0].mxu0
      %v7525 = vpop.f32.mrb[0].mxu0
      %v7526 = vadd.f32 0.0, %v7525
      %v7527 = vpop.f32.mrb[0].mxu0
      %7528 = vdwg.mxu0
      %v7529 = vadd.f32 %v7368, %v7523
      %v7530 = vadd.f32 %v7369, %v7526
      %v7531 = vld [vmem:[%s7] sm:$0x1]
      %v7533 = vlaneseq
      %v7534 = vshrl.u32 %v7533, 7
      %v7535 = vsub.s32 0, %v7534
      %v7536 = vrot.slane %v7531, %v7535
      %v7538 = vadd.f32 %v7529, %v7536
      %v7539 = vadd.f32 %v7530, %v7536
      %v7540 = vmax.f32 %v7538, 0.0
      %v7541 = vmax.f32 %v7539, 0.0
      %v7542 = vpack.c.bf16 %v7541, %v7540
      %v7543 = vld [vmem:[%s3] sm:$0x3]
      %vm7544 = vcmask 130048
      %v7546 = vsel %vm7544, %v7543, 0
      %7548 = vmatprep.subr.bf16.mxu0 0
      %7549 = vmatpush1.bf16.msra.mxu0 %v7542
      %7550 = vmatprep.subr.bf16.mxu0 0
      %7551 = vmatpush1.bf16.msra.mxu0 0
      %7552 = vmatprep.subr.bf16.mxu0 0
      %7553 = vmatpush1.bf16.msra.mxu0 0
      %7554 = vmatprep.subr.bf16.mxu0 0
      %7555 = vmatpush1.bf16.msra.mxu0 0
      %7556 = vmatprep.subr.bf16.mxu0 0
      %7557 = vmatpush1.bf16.msra.mxu0 0
      %7558 = vmatprep.subr.bf16.mxu0 0
      %7559 = vmatpush1.bf16.msra.mxu0 0
      %7560 = vmatprep.subr.bf16.mxu0 0
      %7561 = vmatpush1.bf16.msra.mxu0 0
      %7562 = vmatprep.subr.bf16.mxu0 0
      %7563 = vmatpush1.bf16.msra.mxu0 0
      %7564 = vmatprep.subr.bf16.mxu0 0
      %7565 = vmatpush1.bf16.msra.mxu0 0
      %7566 = vmatprep.subr.bf16.mxu0 0
      %7567 = vmatpush1.bf16.msra.mxu0 0
      %7568 = vmatprep.subr.bf16.mxu0 0
      %7569 = vmatpush1.bf16.msra.mxu0 0
      %7570 = vmatprep.subr.bf16.mxu0 0
      %7571 = vmatpush1.bf16.msra.mxu0 0
      %7572 = vmatprep.subr.bf16.mxu0 0
      %7573 = vmatpush1.bf16.msra.mxu0 0
      %7574 = vmatprep.subr.bf16.mxu0 0
      %7575 = vmatpush1.bf16.msra.mxu0 0
      %7576 = vmatprep.subr.bf16.mxu0 0
      %7577 = vmatpush1.bf16.msra.mxu0 0
      %7578 = vmatprep.subr.bf16.mxu0 0
      %7579 = vmatpush1.bf16.msra.mxu0 0
      %7580 = vmatprep.mubr.bf16.mxu0 0
      %7581 = vmatmul.mubr.bf16.gmra.mrb[0].mxu0 %v7546
      %v7582 = vpop.f32.mrb[0].mxu0
      %v7583 = vadd.f32 0.0, %v7582
      %v7584 = vpop.f32.mrb[0].mxu0
      %v7585 = vpop.f32.mrb[0].mxu0
      %v7586 = vpop.f32.mrb[0].mxu0
      %7587 = vdwg.mxu0
      %v7588 = vpack.c.bf16 %v7583, %v7583
      %v7589 = vld [vmem:[%s8] sm:$0xf]
      %v7590 = vld [vmem:[%s8 + $0x4] sm:$0xf]
      %v7591 = vld [vmem:[%s8 + $0x8] sm:$0xf]
      %v7592 = vld [vmem:[%s8 + $0xc] sm:$0xf]
      %v7593 = vld [vmem:[%s8 + $0x10] sm:$0xf]
      %v7594 = vld [vmem:[%s8 + $0x14] sm:$0xf]
      %v7595 = vld [vmem:[%s8 + $0x18] sm:$0xf]
      %v7596 = vld [vmem:[%s8 + $0x1c] sm:$0xf]
      %v7597 = vld [vmem:[%s8 + $0x20] sm:$0xf]
      %v7598 = vld [vmem:[%s8 + $0x24] sm:$0xf]
      %v7599 = vld [vmem:[%s8 + $0x28] sm:$0xf]
      %v7600 = vld [vmem:[%s8 + $0x2c] sm:$0xf]
      %v7601 = vld [vmem:[%s8 + $0x30] sm:$0xf]
      %v7602 = vld [vmem:[%s8 + $0x34] sm:$0xf]
      %v7603 = vld [vmem:[%s8 + $0x38] sm:$0xf]
      %v7604 = vld [vmem:[%s8 + $0x3c] sm:$0xf]
      %s7605 = scalar_lea.vmem %s3, 2
      %v7606 = vld [vmem:[%s7605] sm:$0x3]
      %v7608 = vsel %vm7544, %v7606, 0
      %7610 = vmatprep.subr.bf16.mxu0 0
      %7611 = vmatpush1.bf16.msra.mxu0 %v7542
      %7612 = vmatprep.subr.bf16.mxu0 0
      %7613 = vmatpush1.bf16.msra.mxu0 0
      %7614 = vmatprep.subr.bf16.mxu0 0
      %7615 = vmatpush1.bf16.msra.mxu0 0
      %7616 = vmatprep.subr.bf16.mxu0 0
      %7617 = vmatpush1.bf16.msra.mxu0 0
      %7618 = vmatprep.subr.bf16.mxu0 0
      %7619 = vmatpush1.bf16.msra.mxu0 0
      %7620 = vmatprep.subr.bf16.mxu0 0
      %7621 = vmatpush1.bf16.msra.mxu0 0
      %7622 = vmatprep.subr.bf16.mxu0 0
      %7623 = vmatpush1.bf16.msra.mxu0 0
      %7624 = vmatprep.subr.bf16.mxu0 0
      %7625 = vmatpush1.bf16.msra.mxu0 0
      %7626 = vmatprep.subr.bf16.mxu0 0
      %7627 = vmatpush1.bf16.msra.mxu0 0
      %7628 = vmatprep.subr.bf16.mxu0 0
      %7629 = vmatpush1.bf16.msra.mxu0 0
      %7630 = vmatprep.subr.bf16.mxu0 0
      %7631 = vmatpush1.bf16.msra.mxu0 0
      %7632 = vmatprep.subr.bf16.mxu0 0
      %7633 = vmatpush1.bf16.msra.mxu0 0
      %7634 = vmatprep.subr.bf16.mxu0 0
      %7635 = vmatpush1.bf16.msra.mxu0 0
      %7636 = vmatprep.subr.bf16.mxu0 0
      %7637 = vmatpush1.bf16.msra.mxu0 0
      %7638 = vmatprep.subr.bf16.mxu0 0
      %7639 = vmatpush1.bf16.msra.mxu0 0
      %7640 = vmatprep.subr.bf16.mxu0 0
      %7641 = vmatpush1.bf16.msra.mxu0 0
      %7642 = vmatprep.mubr.bf16.mxu0 0
      %7643 = vmatmul.mubr.bf16.gmra.mrb[0].mxu0 %v7608
      %v7644 = vpop.f32.mrb[0].mxu0
      %v7645 = vadd.f32 0.0, %v7644
      %v7646 = vpop.f32.mrb[0].mxu0
      %v7647 = vpop.f32.mrb[0].mxu0
      %v7648 = vpop.f32.mrb[0].mxu0
      %7649 = vdwg.mxu0
      %v7650 = vpack.c.bf16 %v7645, %v7645
      %s7651 = scalar_lea.vmem %s8, 64
      %v7652 = vld [vmem:[%s7651] sm:$0xf]
      %v7653 = vld [vmem:[%s7651 + $0x4] sm:$0xf]
      %v7654 = vld [vmem:[%s7651 + $0x8] sm:$0xf]
      %v7655 = vld [vmem:[%s7651 + $0xc] sm:$0xf]
      %v7656 = vld [vmem:[%s7651 + $0x10] sm:$0xf]
      %v7657 = vld [vmem:[%s7651 + $0x14] sm:$0xf]
      %v7658 = vld [vmem:[%s7651 + $0x18] sm:$0xf]
      %v7659 = vld [vmem:[%s7651 + $0x1c] sm:$0xf]
      %v7660 = vld [vmem:[%s7651 + $0x20] sm:$0xf]
      %v7661 = vld [vmem:[%s7651 + $0x24] sm:$0xf]
      %v7662 = vld [vmem:[%s7651 + $0x28] sm:$0xf]
      %v7663 = vld [vmem:[%s7651 + $0x2c] sm:$0xf]
      %v7664 = vld [vmem:[%s7651 + $0x30] sm:$0xf]
      %v7665 = vld [vmem:[%s7651 + $0x34] sm:$0xf]
      %v7666 = vld [vmem:[%s7651 + $0x38] sm:$0xf]
      %v7667 = vld [vmem:[%s7651 + $0x3c] sm:$0xf]
      %v7684 = vunpack.c.l.b16 %v7652
      %v7685 = vunpack.c.l.b16 %v7653
      %v7686 = vunpack.c.l.b16 %v7654
      %v7687 = vunpack.c.l.b16 %v7655
      %v7688 = vunpack.c.l.b16 %v7656
      %v7689 = vunpack.c.l.b16 %v7657
      %v7690 = vunpack.c.l.b16 %v7658
      %v7691 = vunpack.c.l.b16 %v7659
      %v7692 = vunpack.c.l.b16 %v7660
      %v7693 = vunpack.c.l.b16 %v7661
      %v7694 = vunpack.c.l.b16 %v7662
      %v7695 = vunpack.c.l.b16 %v7663
      %v7696 = vunpack.c.l.b16 %v7664
      %v7697 = vunpack.c.l.b16 %v7665
      %v7698 = vunpack.c.l.b16 %v7666
      %v7699 = vunpack.c.l.b16 %v7667
      %v7700 = vpack.c.b16 %v7685, %v7684
      %v7701 = vpack.c.b16 %v7687, %v7686
      %v7702 = vpack.c.b16 %v7689, %v7688
      %v7703 = vpack.c.b16 %v7691, %v7690
      %v7704 = vpack.c.b16 %v7693, %v7692
      %v7705 = vpack.c.b16 %v7695, %v7694
      %v7706 = vpack.c.b16 %v7697, %v7696
      %v7707 = vpack.c.b16 %v7699, %v7698
      %7716 = vmatprep.subr.bf16.mxu0 0
      %7717 = vmatpush1.bf16.msra.mxu0 %v7700
      %7718 = vmatprep.subr.bf16.mxu0 0
      %7719 = vmatpush1.bf16.msra.mxu0 %v7701
      %7720 = vmatprep.subr.bf16.mxu0 0
      %7721 = vmatpush1.bf16.msra.mxu0 %v7702
      %7722 = vmatprep.subr.bf16.mxu0 0
      %7723 = vmatpush1.bf16.msra.mxu0 %v7703
      %7724 = vmatprep.subr.bf16.mxu0 0
      %7725 = vmatpush1.bf16.msra.mxu0 %v7704
      %7726 = vmatprep.subr.bf16.mxu0 0
      %7727 = vmatpush1.bf16.msra.mxu0 %v7705
      %7728 = vmatprep.subr.bf16.mxu0 0
      %7729 = vmatpush1.bf16.msra.mxu0 %v7706
      %7730 = vmatprep.subr.bf16.mxu0 0
      %7731 = vmatpush1.bf16.msra.mxu0 %v7707
      %7732 = vmatprep.subr.bf16.mxu0 0
      %7733 = vmatpush1.bf16.msra.mxu0 0
      %7734 = vmatprep.subr.bf16.mxu0 0
      %7735 = vmatpush1.bf16.msra.mxu0 0
      %7736 = vmatprep.subr.bf16.mxu0 0
      %7737 = vmatpush1.bf16.msra.mxu0 0
      %7738 = vmatprep.subr.bf16.mxu0 0
      %7739 = vmatpush1.bf16.msra.mxu0 0
      %7740 = vmatprep.subr.bf16.mxu0 0
      %7741 = vmatpush1.bf16.msra.mxu0 0
      %7742 = vmatprep.subr.bf16.mxu0 0
      %7743 = vmatpush1.bf16.msra.mxu0 0
      %7744 = vmatprep.subr.bf16.mxu0 0
      %7745 = vmatpush1.bf16.msra.mxu0 0
      %7746 = vmatprep.subr.bf16.mxu0 0
      %7747 = vmatpush1.bf16.msra.mxu0 0
      %7748 = vmatprep.mubr.bf16.mxu0 0
      %7749 = vmatmul.mubr.bf16.gmra.mrb[0].mxu0 %v7650
      %v7750 = vpop.f32.mrb[0].mxu0
      %v7751 = vadd.f32 0.0, %v7750
      %v7752 = vpop.f32.mrb[0].mxu0
      %v7753 = vpop.f32.mrb[0].mxu0
      %v7754 = vpop.f32.mrb[0].mxu0
      %7755 = vdwg.mxu0
      %v7772 = vunpack.c.l.b16 %v7589
      %v7773 = vunpack.c.l.b16 %v7590
      %v7774 = vunpack.c.l.b16 %v7591
      %v7775 = vunpack.c.l.b16 %v7592
      %v7776 = vunpack.c.l.b16 %v7593
      %v7777 = vunpack.c.l.b16 %v7594
      %v7778 = vunpack.c.l.b16 %v7595
      %v7779 = vunpack.c.l.b16 %v7596
      %v7780 = vunpack.c.l.b16 %v7597
      %v7781 = vunpack.c.l.b16 %v7598
      %v7782 = vunpack.c.l.b16 %v7599
      %v7783 = vunpack.c.l.b16 %v7600
      %v7784 = vunpack.c.l.b16 %v7601
      %v7785 = vunpack.c.l.b16 %v7602
      %v7786 = vunpack.c.l.b16 %v7603
      %v7787 = vunpack.c.l.b16 %v7604
      %v7788 = vpack.c.b16 %v7773, %v7772
      %v7789 = vpack.c.b16 %v7775, %v7774
      %v7790 = vpack.c.b16 %v7777, %v7776
      %v7791 = vpack.c.b16 %v7779, %v7778
      %v7792 = vpack.c.b16 %v7781, %v7780
      %v7793 = vpack.c.b16 %v7783, %v7782
      %v7794 = vpack.c.b16 %v7785, %v7784
      %v7795 = vpack.c.b16 %v7787, %v7786
      %7804 = vmatprep.subr.bf16.mxu0 0
      %7805 = vmatpush1.bf16.msra.mxu0 %v7788
      %7806 = vmatprep.subr.bf16.mxu0 0
      %7807 = vmatpush1.bf16.msra.mxu0 %v7789
      %7808 = vmatprep.subr.bf16.mxu0 0
      %7809 = vmatpush1.bf16.msra.mxu0 %v7790
      %7810 = vmatprep.subr.bf16.mxu0 0
      %7811 = vmatpush1.bf16.msra.mxu0 %v7791
      %7812 = vmatprep.subr.bf16.mxu0 0
      %7813 = vmatpush1.bf16.msra.mxu0 %v7792
      %7814 = vmatprep.subr.bf16.mxu0 0
      %7815 = vmatpush1.bf16.msra.mxu0 %v7793
      %7816 = vmatprep.subr.bf16.mxu0 0
      %7817 = vmatpush1.bf16.msra.mxu0 %v7794
      %7818 = vmatprep.subr.bf16.mxu0 0
      %7819 = vmatpush1.bf16.msra.mxu0 %v7795
      %7820 = vmatprep.subr.bf16.mxu0 0
      %7821 = vmatpush1.bf16.msra.mxu0 0
      %7822 = vmatprep.subr.bf16.mxu0 0
      %7823 = vmatpush1.bf16.msra.mxu0 0
      %7824 = vmatprep.subr.bf16.mxu0 0
      %7825 = vmatpush1.bf16.msra.mxu0 0
      %7826 = vmatprep.subr.bf16.mxu0 0
      %7827 = vmatpush1.bf16.msra.mxu0 0
      %7828 = vmatprep.subr.bf16.mxu0 0
      %7829 = vmatpush1.bf16.msra.mxu0 0
      %7830 = vmatprep.subr.bf16.mxu0 0
      %7831 = vmatpush1.bf16.msra.mxu0 0
      %7832 = vmatprep.subr.bf16.mxu0 0
      %7833 = vmatpush1.bf16.msra.mxu0 0
      %7834 = vmatprep.subr.bf16.mxu0 0
      %7835 = vmatpush1.bf16.msra.mxu0 0
      %7836 = vmatprep.mubr.bf16.mxu0 0
      %7837 = vmatmul.mubr.bf16.gmra.mrb[0].mxu0 %v7588
      %v7838 = vpop.f32.mrb[0].mxu0
      %v7839 = vadd.f32 %v7751, %v7838
      %v7840 = vpop.f32.mrb[0].mxu0
      %v7841 = vpop.f32.mrb[0].mxu0
      %v7842 = vpop.f32.mrb[0].mxu0
      %7843 = vdwg.mxu0
      %s7844 = scalar_lea.vmem %s3, 4
      %v7845 = vld [vmem:[%s7844] sm:$0x3]
      %v7847 = vsel %vm7544, %v7845, 0
      %7849 = vmatprep.subr.bf16.mxu0 0
      %7850 = vmatpush1.bf16.msra.mxu0 %v7542
      %7851 = vmatprep.subr.bf16.mxu0 0
      %7852 = vmatpush1.bf16.msra.mxu0 0
      %7853 = vmatprep.subr.bf16.mxu0 0
      %7854 = vmatpush1.bf16.msra.mxu0 0
      %7855 = vmatprep.subr.bf16.mxu0 0
      %7856 = vmatpush1.bf16.msra.mxu0 0
      %7857 = vmatprep.subr.bf16.mxu0 0
      %7858 = vmatpush1.bf16.msra.mxu0 0
      %7859 = vmatprep.subr.bf16.mxu0 0
      %7860 = vmatpush1.bf16.msra.mxu0 0
      %7861 = vmatprep.subr.bf16.mxu0 0
      %7862 = vmatpush1.bf16.msra.mxu0 0
      %7863 = vmatprep.subr.bf16.mxu0 0
      %7864 = vmatpush1.bf16.msra.mxu0 0
      %7865 = vmatprep.subr.bf16.mxu0 0
      %7866 = vmatpush1.bf16.msra.mxu0 0
      %7867 = vmatprep.subr.bf16.mxu0 0
      %7868 = vmatpush1.bf16.msra.mxu0 0
      %7869 = vmatprep.subr.bf16.mxu0 0
      %7870 = vmatpush1.bf16.msra.mxu0 0
      %7871 = vmatprep.subr.bf16.mxu0 0
      %7872 = vmatpush1.bf16.msra.mxu0 0
      %7873 = vmatprep.subr.bf16.mxu0 0
      %7874 = vmatpush1.bf16.msra.mxu0 0
      %7875 = vmatprep.subr.bf16.mxu0 0
      %7876 = vmatpush1.bf16.msra.mxu0 0
      %7877 = vmatprep.subr.bf16.mxu0 0
      %7878 = vmatpush1.bf16.msra.mxu0 0
      %7879 = vmatprep.subr.bf16.mxu0 0
      %7880 = vmatpush1.bf16.msra.mxu0 0
      %7881 = vmatprep.mubr.bf16.mxu0 0
      %7882 = vmatmul.mubr.bf16.gmra.mrb[0].mxu0 %v7847
      %v7883 = vpop.f32.mrb[0].mxu0
      %v7884 = vadd.f32 0.0, %v7883
      %v7885 = vpop.f32.mrb[0].mxu0
      %v7886 = vpop.f32.mrb[0].mxu0
      %v7887 = vpop.f32.mrb[0].mxu0
      %7888 = vdwg.mxu0
      %v7889 = vpack.c.bf16 %v7884, %v7884
      %s7890 = scalar_lea.vmem %s8, 128
      %v7891 = vld [vmem:[%s7890] sm:$0xf]
      %v7892 = vld [vmem:[%s7890 + $0x4] sm:$0xf]
      %v7893 = vld [vmem:[%s7890 + $0x8] sm:$0xf]
      %v7894 = vld [vmem:[%s7890 + $0xc] sm:$0xf]
      %v7895 = vld [vmem:[%s7890 + $0x10] sm:$0xf]
      %v7896 = vld [vmem:[%s7890 + $0x14] sm:$0xf]
      %v7897 = vld [vmem:[%s7890 + $0x18] sm:$0xf]
      %v7898 = vld [vmem:[%s7890 + $0x1c] sm:$0xf]
      %v7899 = vld [vmem:[%s7890 + $0x20] sm:$0xf]
      %v7900 = vld [vmem:[%s7890 + $0x24] sm:$0xf]
      %v7901 = vld [vmem:[%s7890 + $0x28] sm:$0xf]
      %v7902 = vld [vmem:[%s7890 + $0x2c] sm:$0xf]
      %v7903 = vld [vmem:[%s7890 + $0x30] sm:$0xf]
      %v7904 = vld [vmem:[%s7890 + $0x34] sm:$0xf]
      %v7905 = vld [vmem:[%s7890 + $0x38] sm:$0xf]
      %v7906 = vld [vmem:[%s7890 + $0x3c] sm:$0xf]
      %v7923 = vunpack.c.l.b16 %v7891
      %v7924 = vunpack.c.l.b16 %v7892
      %v7925 = vunpack.c.l.b16 %v7893
      %v7926 = vunpack.c.l.b16 %v7894
      %v7927 = vunpack.c.l.b16 %v7895
      %v7928 = vunpack.c.l.b16 %v7896
      %v7929 = vunpack.c.l.b16 %v7897
      %v7930 = vunpack.c.l.b16 %v7898
      %v7931 = vunpack.c.l.b16 %v7899
      %v7932 = vunpack.c.l.b16 %v7900
      %v7933 = vunpack.c.l.b16 %v7901
      %v7934 = vunpack.c.l.b16 %v7902
      %v7935 = vunpack.c.l.b16 %v7903
      %v7936 = vunpack.c.l.b16 %v7904
      %v7937 = vunpack.c.l.b16 %v7905
      %v7938 = vunpack.c.l.b16 %v7906
      %v7939 = vpack.c.b16 %v7924, %v7923
      %v7940 = vpack.c.b16 %v7926, %v7925
      %v7941 = vpack.c.b16 %v7928, %v7927
      %v7942 = vpack.c.b16 %v7930, %v7929
      %v7943 = vpack.c.b16 %v7932, %v7931
      %v7944 = vpack.c.b16 %v7934, %v7933
      %v7945 = vpack.c.b16 %v7936, %v7935
      %v7946 = vpack.c.b16 %v7938, %v7937
      %7955 = vmatprep.subr.bf16.mxu0 0
      %7956 = vmatpush1.bf16.msra.mxu0 %v7939
      %7957 = vmatprep.subr.bf16.mxu0 0
      %7958 = vmatpush1.bf16.msra.mxu0 %v7940
      %7959 = vmatprep.subr.bf16.mxu0 0
      %7960 = vmatpush1.bf16.msra.mxu0 %v7941
      %7961 = vmatprep.subr.bf16.mxu0 0
      %7962 = vmatpush1.bf16.msra.mxu0 %v7942
      %7963 = vmatprep.subr.bf16.mxu0 0
      %7964 = vmatpush1.bf16.msra.mxu0 %v7943
      %7965 = vmatprep.subr.bf16.mxu0 0
      %7966 = vmatpush1.bf16.msra.mxu0 %v7944
      %7967 = vmatprep.subr.bf16.mxu0 0
      %7968 = vmatpush1.bf16.msra.mxu0 %v7945
      %7969 = vmatprep.subr.bf16.mxu0 0
      %7970 = vmatpush1.bf16.msra.mxu0 %v7946
      %7971 = vmatprep.subr.bf16.mxu0 0
      %7972 = vmatpush1.bf16.msra.mxu0 0
      %7973 = vmatprep.subr.bf16.mxu0 0
      %7974 = vmatpush1.bf16.msra.mxu0 0
      %7975 = vmatprep.subr.bf16.mxu0 0
      %7976 = vmatpush1.bf16.msra.mxu0 0
      %7977 = vmatprep.subr.bf16.mxu0 0
      %7978 = vmatpush1.bf16.msra.mxu0 0
      %7979 = vmatprep.subr.bf16.mxu0 0
      %7980 = vmatpush1.bf16.msra.mxu0 0
      %7981 = vmatprep.subr.bf16.mxu0 0
      %7982 = vmatpush1.bf16.msra.mxu0 0
      %7983 = vmatprep.subr.bf16.mxu0 0
      %7984 = vmatpush1.bf16.msra.mxu0 0
      %7985 = vmatprep.subr.bf16.mxu0 0
      %7986 = vmatpush1.bf16.msra.mxu0 0
      %7987 = vmatprep.mubr.bf16.mxu0 0
      %7988 = vmatmul.mubr.bf16.gmra.mrb[0].mxu0 %v7889
      %v7989 = vpop.f32.mrb[0].mxu0
      %v7990 = vadd.f32 0.0, %v7989
      %v7991 = vpop.f32.mrb[0].mxu0
      %v7992 = vpop.f32.mrb[0].mxu0
      %v7993 = vpop.f32.mrb[0].mxu0
      %7994 = vdwg.mxu0
      %v7995 = vadd.f32 %v7839, %v7990
      %s7996 = scalar_lea.vmem %s3, 6
      %v7997 = vld [vmem:[%s7996] sm:$0x3]
      %v7999 = vsel %vm7544, %v7997, 0
      %8001 = vmatprep.subr.bf16.mxu0 0
      %8002 = vmatpush1.bf16.msra.mxu0 %v7542
      %8003 = vmatprep.subr.bf16.mxu0 0
      %8004 = vmatpush1.bf16.msra.mxu0 0
      %8005 = vmatprep.subr.bf16.mxu0 0
      %8006 = vmatpush1.bf16.msra.mxu0 0
      %8007 = vmatprep.subr.bf16.mxu0 0
      %8008 = vmatpush1.bf16.msra.mxu0 0
      %8009 = vmatprep.subr.bf16.mxu0 0
      %8010 = vmatpush1.bf16.msra.mxu0 0
      %8011 = vmatprep.subr.bf16.mxu0 0
      %8012 = vmatpush1.bf16.msra.mxu0 0
      %8013 = vmatprep.subr.bf16.mxu0 0
      %8014 = vmatpush1.bf16.msra.mxu0 0
      %8015 = vmatprep.subr.bf16.mxu0 0
      %8016 = vmatpush1.bf16.msra.mxu0 0
      %8017 = vmatprep.subr.bf16.mxu0 0
      %8018 = vmatpush1.bf16.msra.mxu0 0
      %8019 = vmatprep.subr.bf16.mxu0 0
      %8020 = vmatpush1.bf16.msra.mxu0 0
      %8021 = vmatprep.subr.bf16.mxu0 0
      %8022 = vmatpush1.bf16.msra.mxu0 0
      %8023 = vmatprep.subr.bf16.mxu0 0
      %8024 = vmatpush1.bf16.msra.mxu0 0
      %8025 = vmatprep.subr.bf16.mxu0 0
      %8026 = vmatpush1.bf16.msra.mxu0 0
      %8027 = vmatprep.subr.bf16.mxu0 0
      %8028 = vmatpush1.bf16.msra.mxu0 0
      %8029 = vmatprep.subr.bf16.mxu0 0
      %8030 = vmatpush1.bf16.msra.mxu0 0
      %8031 = vmatprep.subr.bf16.mxu0 0
      %8032 = vmatpush1.bf16.msra.mxu0 0
      %8033 = vmatprep.mubr.bf16.mxu0 0
      %8034 = vmatmul.mubr.bf16.gmra.mrb[0].mxu0 %v7999
      %v8035 = vpop.f32.mrb[0].mxu0
      %v8036 = vadd.f32 0.0, %v8035
      %v8037 = vpop.f32.mrb[0].mxu0
      %v8038 = vpop.f32.mrb[0].mxu0
      %v8039 = vpop.f32.mrb[0].mxu0
      %8040 = vdwg.mxu0
      %v8041 = vpack.c.bf16 %v8036, %v8036
      %s8042 = scalar_lea.vmem %s8, 192
      %v8043 = vld [vmem:[%s8042] sm:$0xf]
      %v8044 = vld [vmem:[%s8042 + $0x4] sm:$0xf]
      %v8045 = vld [vmem:[%s8042 + $0x8] sm:$0xf]
      %v8046 = vld [vmem:[%s8042 + $0xc] sm:$0xf]
      %v8047 = vld [vmem:[%s8042 + $0x10] sm:$0xf]
      %v8048 = vld [vmem:[%s8042 + $0x14] sm:$0xf]
      %v8049 = vld [vmem:[%s8042 + $0x18] sm:$0xf]
      %v8050 = vld [vmem:[%s8042 + $0x1c] sm:$0xf]
      %v8051 = vld [vmem:[%s8042 + $0x20] sm:$0xf]
      %v8052 = vld [vmem:[%s8042 + $0x24] sm:$0xf]
      %v8053 = vld [vmem:[%s8042 + $0x28] sm:$0xf]
      %v8054 = vld [vmem:[%s8042 + $0x2c] sm:$0xf]
      %v8055 = vld [vmem:[%s8042 + $0x30] sm:$0xf]
      %v8056 = vld [vmem:[%s8042 + $0x34] sm:$0xf]
      %v8057 = vld [vmem:[%s8042 + $0x38] sm:$0xf]
      %v8058 = vld [vmem:[%s8042 + $0x3c] sm:$0xf]
      %v8075 = vunpack.c.l.b16 %v8043
      %v8076 = vunpack.c.l.b16 %v8044
      %v8077 = vunpack.c.l.b16 %v8045
      %v8078 = vunpack.c.l.b16 %v8046
      %v8079 = vunpack.c.l.b16 %v8047
      %v8080 = vunpack.c.l.b16 %v8048
      %v8081 = vunpack.c.l.b16 %v8049
      %v8082 = vunpack.c.l.b16 %v8050
      %v8083 = vunpack.c.l.b16 %v8051
      %v8084 = vunpack.c.l.b16 %v8052
      %v8085 = vunpack.c.l.b16 %v8053
      %v8086 = vunpack.c.l.b16 %v8054
      %v8087 = vunpack.c.l.b16 %v8055
      %v8088 = vunpack.c.l.b16 %v8056
      %v8089 = vunpack.c.l.b16 %v8057
      %v8090 = vunpack.c.l.b16 %v8058
      %v8091 = vpack.c.b16 %v8076, %v8075
      %v8092 = vpack.c.b16 %v8078, %v8077
      %v8093 = vpack.c.b16 %v8080, %v8079
      %v8094 = vpack.c.b16 %v8082, %v8081
      %v8095 = vpack.c.b16 %v8084, %v8083
      %v8096 = vpack.c.b16 %v8086, %v8085
      %v8097 = vpack.c.b16 %v8088, %v8087
      %v8098 = vpack.c.b16 %v8090, %v8089
      %8107 = vmatprep.subr.bf16.mxu0 0
      %8108 = vmatpush1.bf16.msra.mxu0 %v8091
      %8109 = vmatprep.subr.bf16.mxu0 0
      %8110 = vmatpush1.bf16.msra.mxu0 %v8092
      %8111 = vmatprep.subr.bf16.mxu0 0
      %8112 = vmatpush1.bf16.msra.mxu0 %v8093
      %8113 = vmatprep.subr.bf16.mxu0 0
      %8114 = vmatpush1.bf16.msra.mxu0 %v8094
      %8115 = vmatprep.subr.bf16.mxu0 0
      %8116 = vmatpush1.bf16.msra.mxu0 %v8095
      %8117 = vmatprep.subr.bf16.mxu0 0
      %8118 = vmatpush1.bf16.msra.mxu0 %v8096
      %8119 = vmatprep.subr.bf16.mxu0 0
      %8120 = vmatpush1.bf16.msra.mxu0 %v8097
      %8121 = vmatprep.subr.bf16.mxu0 0
      %8122 = vmatpush1.bf16.msra.mxu0 %v8098
      %8123 = vmatprep.subr.bf16.mxu0 0
      %8124 = vmatpush1.bf16.msra.mxu0 0
      %8125 = vmatprep.subr.bf16.mxu0 0
      %8126 = vmatpush1.bf16.msra.mxu0 0
      %8127 = vmatprep.subr.bf16.mxu0 0
      %8128 = vmatpush1.bf16.msra.mxu0 0
      %8129 = vmatprep.subr.bf16.mxu0 0
      %8130 = vmatpush1.bf16.msra.mxu0 0
      %8131 = vmatprep.subr.bf16.mxu0 0
      %8132 = vmatpush1.bf16.msra.mxu0 0
      %8133 = vmatprep.subr.bf16.mxu0 0
      %8134 = vmatpush1.bf16.msra.mxu0 0
      %8135 = vmatprep.subr.bf16.mxu0 0
      %8136 = vmatpush1.bf16.msra.mxu0 0
      %8137 = vmatprep.subr.bf16.mxu0 0
      %8138 = vmatpush1.bf16.msra.mxu0 0
      %8139 = vmatprep.mubr.bf16.mxu0 0
      %8140 = vmatmul.mubr.bf16.gmra.mrb[0].mxu0 %v8041
      %v8141 = vpop.f32.mrb[0].mxu0
      %v8142 = vadd.f32 0.0, %v8141
      %v8143 = vpop.f32.mrb[0].mxu0
      %v8144 = vpop.f32.mrb[0].mxu0
      %v8145 = vpop.f32.mrb[0].mxu0
      %8146 = vdwg.mxu0
      %v8147 = vadd.f32 %v7995, %v8142
      %s8148 = scalar_lea.vmem %s3, 8
      %v8149 = vld [vmem:[%s8148] sm:$0x3]
      %v8151 = vsel %vm7544, %v8149, 0
      %8153 = vmatprep.subr.bf16.mxu0 0
      %8154 = vmatpush1.bf16.msra.mxu0 %v7542
      %8155 = vmatprep.subr.bf16.mxu0 0
      %8156 = vmatpush1.bf16.msra.mxu0 0
      %8157 = vmatprep.subr.bf16.mxu0 0
      %8158 = vmatpush1.bf16.msra.mxu0 0
      %8159 = vmatprep.subr.bf16.mxu0 0
      %8160 = vmatpush1.bf16.msra.mxu0 0
      %8161 = vmatprep.subr.bf16.mxu0 0
      %8162 = vmatpush1.bf16.msra.mxu0 0
      %8163 = vmatprep.subr.bf16.mxu0 0
      %8164 = vmatpush1.bf16.msra.mxu0 0
      %8165 = vmatprep.subr.bf16.mxu0 0
      %8166 = vmatpush1.bf16.msra.mxu0 0
      %8167 = vmatprep.subr.bf16.mxu0 0
      %8168 = vmatpush1.bf16.msra.mxu0 0
      %8169 = vmatprep.subr.bf16.mxu0 0
      %8170 = vmatpush1.bf16.msra.mxu0 0
      %8171 = vmatprep.subr.bf16.mxu0 0
      %8172 = vmatpush1.bf16.msra.mxu0 0
      %8173 = vmatprep.subr.bf16.mxu0 0
      %8174 = vmatpush1.bf16.msra.mxu0 0
      %8175 = vmatprep.subr.bf16.mxu0 0
      %8176 = vmatpush1.bf16.msra.mxu0 0
      %8177 = vmatprep.subr.bf16.mxu0 0
      %8178 = vmatpush1.bf16.msra.mxu0 0
      %8179 = vmatprep.subr.bf16.mxu0 0
      %8180 = vmatpush1.bf16.msra.mxu0 0
      %8181 = vmatprep.subr.bf16.mxu0 0
      %8182 = vmatpush1.bf16.msra.mxu0 0
      %8183 = vmatprep.subr.bf16.mxu0 0
      %8184 = vmatpush1.bf16.msra.mxu0 0
      %8185 = vmatprep.mubr.bf16.mxu0 0
      %8186 = vmatmul.mubr.bf16.gmra.mrb[0].mxu0 %v8151
      %v8187 = vpop.f32.mrb[0].mxu0
      %v8188 = vadd.f32 0.0, %v8187
      %v8189 = vpop.f32.mrb[0].mxu0
      %v8190 = vpop.f32.mrb[0].mxu0
      %v8191 = vpop.f32.mrb[0].mxu0
      %8192 = vdwg.mxu0
      %v8193 = vpack.c.bf16 %v8188, %v8188
      %s8194 = scalar_lea.vmem %s8, 256
      %v8195 = vld [vmem:[%s8194] sm:$0xf]
      %v8196 = vld [vmem:[%s8194 + $0x4] sm:$0xf]
      %v8197 = vld [vmem:[%s8194 + $0x8] sm:$0xf]
      %v8198 = vld [vmem:[%s8194 + $0xc] sm:$0xf]
      %v8199 = vld [vmem:[%s8194 + $0x10] sm:$0xf]
      %v8200 = vld [vmem:[%s8194 + $0x14] sm:$0xf]
      %v8201 = vld [vmem:[%s8194 + $0x18] sm:$0xf]
      %v8202 = vld [vmem:[%s8194 + $0x1c] sm:$0xf]
      %v8203 = vld [vmem:[%s8194 + $0x20] sm:$0xf]
      %v8204 = vld [vmem:[%s8194 + $0x24] sm:$0xf]
      %v8205 = vld [vmem:[%s8194 + $0x28] sm:$0xf]
      %v8206 = vld [vmem:[%s8194 + $0x2c] sm:$0xf]
      %v8207 = vld [vmem:[%s8194 + $0x30] sm:$0xf]
      %v8208 = vld [vmem:[%s8194 + $0x34] sm:$0xf]
      %v8209 = vld [vmem:[%s8194 + $0x38] sm:$0xf]
      %v8210 = vld [vmem:[%s8194 + $0x3c] sm:$0xf]
      %v8227 = vunpack.c.l.b16 %v8195
      %v8228 = vunpack.c.l.b16 %v8196
      %v8229 = vunpack.c.l.b16 %v8197
      %v8230 = vunpack.c.l.b16 %v8198
      %v8231 = vunpack.c.l.b16 %v8199
      %v8232 = vunpack.c.l.b16 %v8200
      %v8233 = vunpack.c.l.b16 %v8201
      %v8234 = vunpack.c.l.b16 %v8202
      %v8235 = vunpack.c.l.b16 %v8203
      %v8236 = vunpack.c.l.b16 %v8204
      %v8237 = vunpack.c.l.b16 %v8205
      %v8238 = vunpack.c.l.b16 %v8206
      %v8239 = vunpack.c.l.b16 %v8207
      %v8240 = vunpack.c.l.b16 %v8208
      %v8241 = vunpack.c.l.b16 %v8209
      %v8242 = vunpack.c.l.b16 %v8210
      %v8243 = vpack.c.b16 %v8228, %v8227
      %v8244 = vpack.c.b16 %v8230, %v8229
      %v8245 = vpack.c.b16 %v8232, %v8231
      %v8246 = vpack.c.b16 %v8234, %v8233
      %v8247 = vpack.c.b16 %v8236, %v8235
      %v8248 = vpack.c.b16 %v8238, %v8237
      %v8249 = vpack.c.b16 %v8240, %v8239
      %v8250 = vpack.c.b16 %v8242, %v8241
      %8259 = vmatprep.subr.bf16.mxu0 0
      %8260 = vmatpush1.bf16.msra.mxu0 %v8243
      %8261 = vmatprep.subr.bf16.mxu0 0
      %8262 = vmatpush1.bf16.msra.mxu0 %v8244
      %8263 = vmatprep.subr.bf16.mxu0 0
      %8264 = vmatpush1.bf16.msra.mxu0 %v8245
      %8265 = vmatprep.subr.bf16.mxu0 0
      %8266 = vmatpush1.bf16.msra.mxu0 %v8246
      %8267 = vmatprep.subr.bf16.mxu0 0
      %8268 = vmatpush1.bf16.msra.mxu0 %v8247
      %8269 = vmatprep.subr.bf16.mxu0 0
      %8270 = vmatpush1.bf16.msra.mxu0 %v8248
      %8271 = vmatprep.subr.bf16.mxu0 0
      %8272 = vmatpush1.bf16.msra.mxu0 %v8249
      %8273 = vmatprep.subr.bf16.mxu0 0
      %8274 = vmatpush1.bf16.msra.mxu0 %v8250
      %8275 = vmatprep.subr.bf16.mxu0 0
      %8276 = vmatpush1.bf16.msra.mxu0 0
      %8277 = vmatprep.subr.bf16.mxu0 0
      %8278 = vmatpush1.bf16.msra.mxu0 0
      %8279 = vmatprep.subr.bf16.mxu0 0
      %8280 = vmatpush1.bf16.msra.mxu0 0
      %8281 = vmatprep.subr.bf16.mxu0 0
      %8282 = vmatpush1.bf16.msra.mxu0 0
      %8283 = vmatprep.subr.bf16.mxu0 0
      %8284 = vmatpush1.bf16.msra.mxu0 0
      %8285 = vmatprep.subr.bf16.mxu0 0
      %8286 = vmatpush1.bf16.msra.mxu0 0
      %8287 = vmatprep.subr.bf16.mxu0 0
      %8288 = vmatpush1.bf16.msra.mxu0 0
      %8289 = vmatprep.subr.bf16.mxu0 0
      %8290 = vmatpush1.bf16.msra.mxu0 0
      %8291 = vmatprep.mubr.bf16.mxu0 0
      %8292 = vmatmul.mubr.bf16.gmra.mrb[0].mxu0 %v8193
      %v8293 = vpop.f32.mrb[0].mxu0
      %v8294 = vadd.f32 0.0, %v8293
      %v8295 = vpop.f32.mrb[0].mxu0
      %v8296 = vpop.f32.mrb[0].mxu0
      %v8297 = vpop.f32.mrb[0].mxu0
      %8298 = vdwg.mxu0
      %v8299 = vadd.f32 %v8147, %v8294
      %s8300 = scalar_lea.vmem %s3, 10
      %v8301 = vld [vmem:[%s8300] sm:$0x3]
      %v8303 = vsel %vm7544, %v8301, 0
      %8305 = vmatprep.subr.bf16.mxu0 0
      %8306 = vmatpush1.bf16.msra.mxu0 %v7542
      %8307 = vmatprep.subr.bf16.mxu0 0
      %8308 = vmatpush1.bf16.msra.mxu0 0
      %8309 = vmatprep.subr.bf16.mxu0 0
      %8310 = vmatpush1.bf16.msra.mxu0 0
      %8311 = vmatprep.subr.bf16.mxu0 0
      %8312 = vmatpush1.bf16.msra.mxu0 0
      %8313 = vmatprep.subr.bf16.mxu0 0
      %8314 = vmatpush1.bf16.msra.mxu0 0
      %8315 = vmatprep.subr.bf16.mxu0 0
      %8316 = vmatpush1.bf16.msra.mxu0 0
      %8317 = vmatprep.subr.bf16.mxu0 0
      %8318 = vmatpush1.bf16.msra.mxu0 0
      %8319 = vmatprep.subr.bf16.mxu0 0
      %8320 = vmatpush1.bf16.msra.mxu0 0
      %8321 = vmatprep.subr.bf16.mxu0 0
      %8322 = vmatpush1.bf16.msra.mxu0 0
      %8323 = vmatprep.subr.bf16.mxu0 0
      %8324 = vmatpush1.bf16.msra.mxu0 0
      %8325 = vmatprep.subr.bf16.mxu0 0
      %8326 = vmatpush1.bf16.msra.mxu0 0
      %8327 = vmatprep.subr.bf16.mxu0 0
      %8328 = vmatpush1.bf16.msra.mxu0 0
      %8329 = vmatprep.subr.bf16.mxu0 0
      %8330 = vmatpush1.bf16.msra.mxu0 0
      %8331 = vmatprep.subr.bf16.mxu0 0
      %8332 = vmatpush1.bf16.msra.mxu0 0
      %8333 = vmatprep.subr.bf16.mxu0 0
      %8334 = vmatpush1.bf16.msra.mxu0 0
      %8335 = vmatprep.subr.bf16.mxu0 0
      %8336 = vmatpush1.bf16.msra.mxu0 0
      %8337 = vmatprep.mubr.bf16.mxu0 0
      %8338 = vmatmul.mubr.bf16.gmra.mrb[0].mxu0 %v8303
      %v8339 = vpop.f32.mrb[0].mxu0
      %v8340 = vadd.f32 0.0, %v8339
      %v8341 = vpop.f32.mrb[0].mxu0
      %v8342 = vpop.f32.mrb[0].mxu0
      %v8343 = vpop.f32.mrb[0].mxu0
      %8344 = vdwg.mxu0
      %v8345 = vpack.c.bf16 %v8340, %v8340
      %s8346 = scalar_lea.vmem %s8, 320
      %v8347 = vld [vmem:[%s8346] sm:$0xf]
      %v8348 = vld [vmem:[%s8346 + $0x4] sm:$0xf]
      %v8349 = vld [vmem:[%s8346 + $0x8] sm:$0xf]
      %v8350 = vld [vmem:[%s8346 + $0xc] sm:$0xf]
      %v8351 = vld [vmem:[%s8346 + $0x10] sm:$0xf]
      %v8352 = vld [vmem:[%s8346 + $0x14] sm:$0xf]
      %v8353 = vld [vmem:[%s8346 + $0x18] sm:$0xf]
      %v8354 = vld [vmem:[%s8346 + $0x1c] sm:$0xf]
      %v8355 = vld [vmem:[%s8346 + $0x20] sm:$0xf]
      %v8356 = vld [vmem:[%s8346 + $0x24] sm:$0xf]
      %v8357 = vld [vmem:[%s8346 + $0x28] sm:$0xf]
      %v8358 = vld [vmem:[%s8346 + $0x2c] sm:$0xf]
      %v8359 = vld [vmem:[%s8346 + $0x30] sm:$0xf]
      %v8360 = vld [vmem:[%s8346 + $0x34] sm:$0xf]
      %v8361 = vld [vmem:[%s8346 + $0x38] sm:$0xf]
      %v8362 = vld [vmem:[%s8346 + $0x3c] sm:$0xf]
      %v8379 = vunpack.c.l.b16 %v8347
      %v8380 = vunpack.c.l.b16 %v8348
      %v8381 = vunpack.c.l.b16 %v8349
      %v8382 = vunpack.c.l.b16 %v8350
      %v8383 = vunpack.c.l.b16 %v8351
      %v8384 = vunpack.c.l.b16 %v8352
      %v8385 = vunpack.c.l.b16 %v8353
      %v8386 = vunpack.c.l.b16 %v8354
      %v8387 = vunpack.c.l.b16 %v8355
      %v8388 = vunpack.c.l.b16 %v8356
      %v8389 = vunpack.c.l.b16 %v8357
      %v8390 = vunpack.c.l.b16 %v8358
      %v8391 = vunpack.c.l.b16 %v8359
      %v8392 = vunpack.c.l.b16 %v8360
      %v8393 = vunpack.c.l.b16 %v8361
      %v8394 = vunpack.c.l.b16 %v8362
      %v8395 = vpack.c.b16 %v8380, %v8379
      %v8396 = vpack.c.b16 %v8382, %v8381
      %v8397 = vpack.c.b16 %v8384, %v8383
      %v8398 = vpack.c.b16 %v8386, %v8385
      %v8399 = vpack.c.b16 %v8388, %v8387
      %v8400 = vpack.c.b16 %v8390, %v8389
      %v8401 = vpack.c.b16 %v8392, %v8391
      %v8402 = vpack.c.b16 %v8394, %v8393
      %8411 = vmatprep.subr.bf16.mxu0 0
      %8412 = vmatpush1.bf16.msra.mxu0 %v8395
      %8413 = vmatprep.subr.bf16.mxu0 0
      %8414 = vmatpush1.bf16.msra.mxu0 %v8396
      %8415 = vmatprep.subr.bf16.mxu0 0
      %8416 = vmatpush1.bf16.msra.mxu0 %v8397
      %8417 = vmatprep.subr.bf16.mxu0 0
      %8418 = vmatpush1.bf16.msra.mxu0 %v8398
      %8419 = vmatprep.subr.bf16.mxu0 0
      %8420 = vmatpush1.bf16.msra.mxu0 %v8399
      %8421 = vmatprep.subr.bf16.mxu0 0
      %8422 = vmatpush1.bf16.msra.mxu0 %v8400
      %8423 = vmatprep.subr.bf16.mxu0 0
      %8424 = vmatpush1.bf16.msra.mxu0 %v8401
      %8425 = vmatprep.subr.bf16.mxu0 0
      %8426 = vmatpush1.bf16.msra.mxu0 %v8402
      %8427 = vmatprep.subr.bf16.mxu0 0
      %8428 = vmatpush1.bf16.msra.mxu0 0
      %8429 = vmatprep.subr.bf16.mxu0 0
      %8430 = vmatpush1.bf16.msra.mxu0 0
      %8431 = vmatprep.subr.bf16.mxu0 0
      %8432 = vmatpush1.bf16.msra.mxu0 0
      %8433 = vmatprep.subr.bf16.mxu0 0
      %8434 = vmatpush1.bf16.msra.mxu0 0
      %8435 = vmatprep.subr.bf16.mxu0 0
      %8436 = vmatpush1.bf16.msra.mxu0 0
      %8437 = vmatprep.subr.bf16.mxu0 0
      %8438 = vmatpush1.bf16.msra.mxu0 0
      %8439 = vmatprep.subr.bf16.mxu0 0
      %8440 = vmatpush1.bf16.msra.mxu0 0
      %8441 = vmatprep.subr.bf16.mxu0 0
      %8442 = vmatpush1.bf16.msra.mxu0 0
      %8443 = vmatprep.mubr.bf16.mxu0 0
      %8444 = vmatmul.mubr.bf16.gmra.mrb[0].mxu0 %v8345
      %v8445 = vpop.f32.mrb[0].mxu0
      %v8446 = vadd.f32 0.0, %v8445
      %v8447 = vpop.f32.mrb[0].mxu0
      %v8448 = vpop.f32.mrb[0].mxu0
      %v8449 = vpop.f32.mrb[0].mxu0
      %8450 = vdwg.mxu0
      %v8451 = vadd.f32 %v8299, %v8446
      %s8452 = scalar_lea.vmem %s3, 12
      %v8453 = vld [vmem:[%s8452] sm:$0x3]
      %v8455 = vsel %vm7544, %v8453, 0
      %8457 = vmatprep.subr.bf16.mxu0 0
      %8458 = vmatpush1.bf16.msra.mxu0 %v7542
      %8459 = vmatprep.subr.bf16.mxu0 0
      %8460 = vmatpush1.bf16.msra.mxu0 0
      %8461 = vmatprep.subr.bf16.mxu0 0
      %8462 = vmatpush1.bf16.msra.mxu0 0
      %8463 = vmatprep.subr.bf16.mxu0 0
      %8464 = vmatpush1.bf16.msra.mxu0 0
      %8465 = vmatprep.subr.bf16.mxu0 0
      %8466 = vmatpush1.bf16.msra.mxu0 0
      %8467 = vmatprep.subr.bf16.mxu0 0
      %8468 = vmatpush1.bf16.msra.mxu0 0
      %8469 = vmatprep.subr.bf16.mxu0 0
      %8470 = vmatpush1.bf16.msra.mxu0 0
      %8471 = vmatprep.subr.bf16.mxu0 0
      %8472 = vmatpush1.bf16.msra.mxu0 0
      %8473 = vmatprep.subr.bf16.mxu0 0
      %8474 = vmatpush1.bf16.msra.mxu0 0
      %8475 = vmatprep.subr.bf16.mxu0 0
      %8476 = vmatpush1.bf16.msra.mxu0 0
      %8477 = vmatprep.subr.bf16.mxu0 0
      %8478 = vmatpush1.bf16.msra.mxu0 0
      %8479 = vmatprep.subr.bf16.mxu0 0
      %8480 = vmatpush1.bf16.msra.mxu0 0
      %8481 = vmatprep.subr.bf16.mxu0 0
      %8482 = vmatpush1.bf16.msra.mxu0 0
      %8483 = vmatprep.subr.bf16.mxu0 0
      %8484 = vmatpush1.bf16.msra.mxu0 0
      %8485 = vmatprep.subr.bf16.mxu0 0
      %8486 = vmatpush1.bf16.msra.mxu0 0
      %8487 = vmatprep.subr.bf16.mxu0 0
      %8488 = vmatpush1.bf16.msra.mxu0 0
      %8489 = vmatprep.mubr.bf16.mxu0 0
      %8490 = vmatmul.mubr.bf16.gmra.mrb[0].mxu0 %v8455
      %v8491 = vpop.f32.mrb[0].mxu0
      %v8492 = vadd.f32 0.0, %v8491
      %v8493 = vpop.f32.mrb[0].mxu0
      %v8494 = vpop.f32.mrb[0].mxu0
      %v8495 = vpop.f32.mrb[0].mxu0
      %8496 = vdwg.mxu0
      %v8497 = vpack.c.bf16 %v8492, %v8492
      %s8498 = scalar_lea.vmem %s8, 384
      %v8499 = vld [vmem:[%s8498] sm:$0xf]
      %v8500 = vld [vmem:[%s8498 + $0x4] sm:$0xf]
      %v8501 = vld [vmem:[%s8498 + $0x8] sm:$0xf]
      %v8502 = vld [vmem:[%s8498 + $0xc] sm:$0xf]
      %v8503 = vld [vmem:[%s8498 + $0x10] sm:$0xf]
      %v8504 = vld [vmem:[%s8498 + $0x14] sm:$0xf]
      %v8505 = vld [vmem:[%s8498 + $0x18] sm:$0xf]
      %v8506 = vld [vmem:[%s8498 + $0x1c] sm:$0xf]
      %v8507 = vld [vmem:[%s8498 + $0x20] sm:$0xf]
      %v8508 = vld [vmem:[%s8498 + $0x24] sm:$0xf]
      %v8509 = vld [vmem:[%s8498 + $0x28] sm:$0xf]
      %v8510 = vld [vmem:[%s8498 + $0x2c] sm:$0xf]
      %v8511 = vld [vmem:[%s8498 + $0x30] sm:$0xf]
      %v8512 = vld [vmem:[%s8498 + $0x34] sm:$0xf]
      %v8513 = vld [vmem:[%s8498 + $0x38] sm:$0xf]
      %v8514 = vld [vmem:[%s8498 + $0x3c] sm:$0xf]
      %v8531 = vunpack.c.l.b16 %v8499
      %v8532 = vunpack.c.l.b16 %v8500
      %v8533 = vunpack.c.l.b16 %v8501
      %v8534 = vunpack.c.l.b16 %v8502
      %v8535 = vunpack.c.l.b16 %v8503
      %v8536 = vunpack.c.l.b16 %v8504
      %v8537 = vunpack.c.l.b16 %v8505
      %v8538 = vunpack.c.l.b16 %v8506
      %v8539 = vunpack.c.l.b16 %v8507
      %v8540 = vunpack.c.l.b16 %v8508
      %v8541 = vunpack.c.l.b16 %v8509
      %v8542 = vunpack.c.l.b16 %v8510
      %v8543 = vunpack.c.l.b16 %v8511
      %v8544 = vunpack.c.l.b16 %v8512
      %v8545 = vunpack.c.l.b16 %v8513
      %v8546 = vunpack.c.l.b16 %v8514
      %v8547 = vpack.c.b16 %v8532, %v8531
      %v8548 = vpack.c.b16 %v8534, %v8533
      %v8549 = vpack.c.b16 %v8536, %v8535
      %v8550 = vpack.c.b16 %v8538, %v8537
      %v8551 = vpack.c.b16 %v8540, %v8539
      %v8552 = vpack.c.b16 %v8542, %v8541
      %v8553 = vpack.c.b16 %v8544, %v8543
      %v8554 = vpack.c.b16 %v8546, %v8545
      %8563 = vmatprep.subr.bf16.mxu0 0
      %8564 = vmatpush1.bf16.msra.mxu0 %v8547
      %8565 = vmatprep.subr.bf16.mxu0 0
      %8566 = vmatpush1.bf16.msra.mxu0 %v8548
      %8567 = vmatprep.subr.bf16.mxu0 0
      %8568 = vmatpush1.bf16.msra.mxu0 %v8549
      %8569 = vmatprep.subr.bf16.mxu0 0
      %8570 = vmatpush1.bf16.msra.mxu0 %v8550
      %8571 = vmatprep.subr.bf16.mxu0 0
      %8572 = vmatpush1.bf16.msra.mxu0 %v8551
      %8573 = vmatprep.subr.bf16.mxu0 0
      %8574 = vmatpush1.bf16.msra.mxu0 %v8552
      %8575 = vmatprep.subr.bf16.mxu0 0
      %8576 = vmatpush1.bf16.msra.mxu0 %v8553
      %8577 = vmatprep.subr.bf16.mxu0 0
      %8578 = vmatpush1.bf16.msra.mxu0 %v8554
      %8579 = vmatprep.subr.bf16.mxu0 0
      %8580 = vmatpush1.bf16.msra.mxu0 0
      %8581 = vmatprep.subr.bf16.mxu0 0
      %8582 = vmatpush1.bf16.msra.mxu0 0
      %8583 = vmatprep.subr.bf16.mxu0 0
      %8584 = vmatpush1.bf16.msra.mxu0 0
      %8585 = vmatprep.subr.bf16.mxu0 0
      %8586 = vmatpush1.bf16.msra.mxu0 0
      %8587 = vmatprep.subr.bf16.mxu0 0
      %8588 = vmatpush1.bf16.msra.mxu0 0
      %8589 = vmatprep.subr.bf16.mxu0 0
      %8590 = vmatpush1.bf16.msra.mxu0 0
      %8591 = vmatprep.subr.bf16.mxu0 0
      %8592 = vmatpush1.bf16.msra.mxu0 0
      %8593 = vmatprep.subr.bf16.mxu0 0
      %8594 = vmatpush1.bf16.msra.mxu0 0
      %8595 = vmatprep.mubr.bf16.mxu0 0
      %8596 = vmatmul.mubr.bf16.gmra.mrb[0].mxu0 %v8497
      %v8597 = vpop.f32.mrb[0].mxu0
      %v8598 = vadd.f32 0.0, %v8597
      %v8599 = vpop.f32.mrb[0].mxu0
      %v8600 = vpop.f32.mrb[0].mxu0
      %v8601 = vpop.f32.mrb[0].mxu0
      %8602 = vdwg.mxu0
      %v8603 = vadd.f32 %v8451, %v8598
      %s8604 = scalar_lea.vmem %s3, 14
      %v8605 = vld [vmem:[%s8604] sm:$0x3]
      %v8607 = vsel %vm7544, %v8605, 0
      %8609 = vmatprep.subr.bf16.mxu0 0
      %8610 = vmatpush1.bf16.msra.mxu0 %v7542
      %8611 = vmatprep.subr.bf16.mxu0 0
      %8612 = vmatpush1.bf16.msra.mxu0 0
      %8613 = vmatprep.subr.bf16.mxu0 0
      %8614 = vmatpush1.bf16.msra.mxu0 0
      %8615 = vmatprep.subr.bf16.mxu0 0
      %8616 = vmatpush1.bf16.msra.mxu0 0
      %8617 = vmatprep.subr.bf16.mxu0 0
      %8618 = vmatpush1.bf16.msra.mxu0 0
      %8619 = vmatprep.subr.bf16.mxu0 0
      %8620 = vmatpush1.bf16.msra.mxu0 0
      %8621 = vmatprep.subr.bf16.mxu0 0
      %8622 = vmatpush1.bf16.msra.mxu0 0
      %8623 = vmatprep.subr.bf16.mxu0 0
      %8624 = vmatpush1.bf16.msra.mxu0 0
      %8625 = vmatprep.subr.bf16.mxu0 0
      %8626 = vmatpush1.bf16.msra.mxu0 0
      %8627 = vmatprep.subr.bf16.mxu0 0
      %8628 = vmatpush1.bf16.msra.mxu0 0
      %8629 = vmatprep.subr.bf16.mxu0 0
      %8630 = vmatpush1.bf16.msra.mxu0 0
      %8631 = vmatprep.subr.bf16.mxu0 0
      %8632 = vmatpush1.bf16.msra.mxu0 0
      %8633 = vmatprep.subr.bf16.mxu0 0
      %8634 = vmatpush1.bf16.msra.mxu0 0
      %8635 = vmatprep.subr.bf16.mxu0 0
      %8636 = vmatpush1.bf16.msra.mxu0 0
      %8637 = vmatprep.subr.bf16.mxu0 0
      %8638 = vmatpush1.bf16.msra.mxu0 0
      %8639 = vmatprep.subr.bf16.mxu0 0
      %8640 = vmatpush1.bf16.msra.mxu0 0
      %8641 = vmatprep.mubr.bf16.mxu0 0
      %8642 = vmatmul.mubr.bf16.gmra.mrb[0].mxu0 %v8607
      %v8643 = vpop.f32.mrb[0].mxu0
      %v8644 = vadd.f32 0.0, %v8643
      %v8645 = vpop.f32.mrb[0].mxu0
      %v8646 = vpop.f32.mrb[0].mxu0
      %v8647 = vpop.f32.mrb[0].mxu0
      %8648 = vdwg.mxu0
      %v8649 = vpack.c.bf16 %v8644, %v8644
      %s8650 = scalar_lea.vmem %s8, 448
      %v8651 = vld [vmem:[%s8650] sm:$0xf]
      %v8652 = vld [vmem:[%s8650 + $0x4] sm:$0xf]
      %v8653 = vld [vmem:[%s8650 + $0x8] sm:$0xf]
      %v8654 = vld [vmem:[%s8650 + $0xc] sm:$0xf]
      %v8655 = vld [vmem:[%s8650 + $0x10] sm:$0xf]
      %v8656 = vld [vmem:[%s8650 + $0x14] sm:$0xf]
      %v8657 = vld [vmem:[%s8650 + $0x18] sm:$0xf]
      %v8658 = vld [vmem:[%s8650 + $0x1c] sm:$0xf]
      %v8659 = vld [vmem:[%s8650 + $0x20] sm:$0xf]
      %v8660 = vld [vmem:[%s8650 + $0x24] sm:$0xf]
      %v8661 = vld [vmem:[%s8650 + $0x28] sm:$0xf]
      %v8662 = vld [vmem:[%s8650 + $0x2c] sm:$0xf]
      %v8663 = vld [vmem:[%s8650 + $0x30] sm:$0xf]
      %v8664 = vld [vmem:[%s8650 + $0x34] sm:$0xf]
      %v8665 = vld [vmem:[%s8650 + $0x38] sm:$0xf]
      %v8666 = vld [vmem:[%s8650 + $0x3c] sm:$0xf]
      %v8683 = vunpack.c.l.b16 %v8651
      %v8684 = vunpack.c.l.b16 %v8652
      %v8685 = vunpack.c.l.b16 %v8653
      %v8686 = vunpack.c.l.b16 %v8654
      %v8687 = vunpack.c.l.b16 %v8655
      %v8688 = vunpack.c.l.b16 %v8656
      %v8689 = vunpack.c.l.b16 %v8657
      %v8690 = vunpack.c.l.b16 %v8658
      %v8691 = vunpack.c.l.b16 %v8659
      %v8692 = vunpack.c.l.b16 %v8660
      %v8693 = vunpack.c.l.b16 %v8661
      %v8694 = vunpack.c.l.b16 %v8662
      %v8695 = vunpack.c.l.b16 %v8663
      %v8696 = vunpack.c.l.b16 %v8664
      %v8697 = vunpack.c.l.b16 %v8665
      %v8698 = vunpack.c.l.b16 %v8666
      %v8699 = vpack.c.b16 %v8684, %v8683
      %v8700 = vpack.c.b16 %v8686, %v8685
      %v8701 = vpack.c.b16 %v8688, %v8687
      %v8702 = vpack.c.b16 %v8690, %v8689
      %v8703 = vpack.c.b16 %v8692, %v8691
      %v8704 = vpack.c.b16 %v8694, %v8693
      %v8705 = vpack.c.b16 %v8696, %v8695
      %v8706 = vpack.c.b16 %v8698, %v8697
      %8715 = vmatprep.subr.bf16.mxu0 0
      %8716 = vmatpush1.bf16.msra.mxu0 %v8699
      %8717 = vmatprep.subr.bf16.mxu0 0
      %8718 = vmatpush1.bf16.msra.mxu0 %v8700
      %8719 = vmatprep.subr.bf16.mxu0 0
      %8720 = vmatpush1.bf16.msra.mxu0 %v8701
      %8721 = vmatprep.subr.bf16.mxu0 0
      %8722 = vmatpush1.bf16.msra.mxu0 %v8702
      %8723 = vmatprep.subr.bf16.mxu0 0
      %8724 = vmatpush1.bf16.msra.mxu0 %v8703
      %8725 = vmatprep.subr.bf16.mxu0 0
      %8726 = vmatpush1.bf16.msra.mxu0 %v8704
      %8727 = vmatprep.subr.bf16.mxu0 0
      %8728 = vmatpush1.bf16.msra.mxu0 %v8705
      %8729 = vmatprep.subr.bf16.mxu0 0
      %8730 = vmatpush1.bf16.msra.mxu0 %v8706
      %8731 = vmatprep.subr.bf16.mxu0 0
      %8732 = vmatpush1.bf16.msra.mxu0 0
      %8733 = vmatprep.subr.bf16.mxu0 0
      %8734 = vmatpush1.bf16.msra.mxu0 0
      %8735 = vmatprep.subr.bf16.mxu0 0
      %8736 = vmatpush1.bf16.msra.mxu0 0
      %8737 = vmatprep.subr.bf16.mxu0 0
      %8738 = vmatpush1.bf16.msra.mxu0 0
      %8739 = vmatprep.subr.bf16.mxu0 0
      %8740 = vmatpush1.bf16.msra.mxu0 0
      %8741 = vmatprep.subr.bf16.mxu0 0
      %8742 = vmatpush1.bf16.msra.mxu0 0
      %8743 = vmatprep.subr.bf16.mxu0 0
      %8744 = vmatpush1.bf16.msra.mxu0 0
      %8745 = vmatprep.subr.bf16.mxu0 0
      %8746 = vmatpush1.bf16.msra.mxu0 0
      %8747 = vmatprep.mubr.bf16.mxu0 0
      %8748 = vmatmul.mubr.bf16.gmra.mrb[0].mxu0 %v8649
      %v8749 = vpop.f32.mrb[0].mxu0
      %v8750 = vadd.f32 0.0, %v8749
      %v8751 = vpop.f32.mrb[0].mxu0
      %v8752 = vpop.f32.mrb[0].mxu0
      %v8753 = vpop.f32.mrb[0].mxu0
      %8754 = vdwg.mxu0
      %v8755 = vadd.f32 %v8603, %v8750
      %s8756 = scalar_lea.vmem %s3, 16
      %v8757 = vld [vmem:[%s8756] sm:$0x3]
      %v8759 = vsel %vm7544, %v8757, 0
      %8761 = vmatprep.subr.bf16.mxu0 0
      %8762 = vmatpush1.bf16.msra.mxu0 %v7542
      %8763 = vmatprep.subr.bf16.mxu0 0
      %8764 = vmatpush1.bf16.msra.mxu0 0
      %8765 = vmatprep.subr.bf16.mxu0 0
      %8766 = vmatpush1.bf16.msra.mxu0 0
      %8767 = vmatprep.subr.bf16.mxu0 0
      %8768 = vmatpush1.bf16.msra.mxu0 0
      %8769 = vmatprep.subr.bf16.mxu0 0
      %8770 = vmatpush1.bf16.msra.mxu0 0
      %8771 = vmatprep.subr.bf16.mxu0 0
      %8772 = vmatpush1.bf16.msra.mxu0 0
      %8773 = vmatprep.subr.bf16.mxu0 0
      %8774 = vmatpush1.bf16.msra.mxu0 0
      %8775 = vmatprep.subr.bf16.mxu0 0
      %8776 = vmatpush1.bf16.msra.mxu0 0
      %8777 = vmatprep.subr.bf16.mxu0 0
      %8778 = vmatpush1.bf16.msra.mxu0 0
      %8779 = vmatprep.subr.bf16.mxu0 0
      %8780 = vmatpush1.bf16.msra.mxu0 0
      %8781 = vmatprep.subr.bf16.mxu0 0
      %8782 = vmatpush1.bf16.msra.mxu0 0
      %8783 = vmatprep.subr.bf16.mxu0 0
      %8784 = vmatpush1.bf16.msra.mxu0 0
      %8785 = vmatprep.subr.bf16.mxu0 0
      %8786 = vmatpush1.bf16.msra.mxu0 0
      %8787 = vmatprep.subr.bf16.mxu0 0
      %8788 = vmatpush1.bf16.msra.mxu0 0
      %8789 = vmatprep.subr.bf16.mxu0 0
      %8790 = vmatpush1.bf16.msra.mxu0 0
      %8791 = vmatprep.subr.bf16.mxu0 0
      %8792 = vmatpush1.bf16.msra.mxu0 0
      %8793 = vmatprep.mubr.bf16.mxu0 0
      %8794 = vmatmul.mubr.bf16.gmra.mrb[0].mxu0 %v8759
      %v8795 = vpop.f32.mrb[0].mxu0
      %v8796 = vadd.f32 0.0, %v8795
      %v8797 = vpop.f32.mrb[0].mxu0
      %v8798 = vpop.f32.mrb[0].mxu0
      %v8799 = vpop.f32.mrb[0].mxu0
      %8800 = vdwg.mxu0
      %v8801 = vpack.c.bf16 %v8796, %v8796
      %s8802 = scalar_lea.vmem %s8, 512
      %v8803 = vld [vmem:[%s8802] sm:$0xf]
      %v8804 = vld [vmem:[%s8802 + $0x4] sm:$0xf]
      %v8805 = vld [vmem:[%s8802 + $0x8] sm:$0xf]
      %v8806 = vld [vmem:[%s8802 + $0xc] sm:$0xf]
      %v8807 = vld [vmem:[%s8802 + $0x10] sm:$0xf]
      %v8808 = vld [vmem:[%s8802 + $0x14] sm:$0xf]
      %v8809 = vld [vmem:[%s8802 + $0x18] sm:$0xf]
      %v8810 = vld [vmem:[%s8802 + $0x1c] sm:$0xf]
      %v8811 = vld [vmem:[%s8802 + $0x20] sm:$0xf]
      %v8812 = vld [vmem:[%s8802 + $0x24] sm:$0xf]
      %v8813 = vld [vmem:[%s8802 + $0x28] sm:$0xf]
      %v8814 = vld [vmem:[%s8802 + $0x2c] sm:$0xf]
      %v8815 = vld [vmem:[%s8802 + $0x30] sm:$0xf]
      %v8816 = vld [vmem:[%s8802 + $0x34] sm:$0xf]
      %v8817 = vld [vmem:[%s8802 + $0x38] sm:$0xf]
      %v8818 = vld [vmem:[%s8802 + $0x3c] sm:$0xf]
      %v8835 = vunpack.c.l.b16 %v8803
      %v8836 = vunpack.c.l.b16 %v8804
      %v8837 = vunpack.c.l.b16 %v8805
      %v8838 = vunpack.c.l.b16 %v8806
      %v8839 = vunpack.c.l.b16 %v8807
      %v8840 = vunpack.c.l.b16 %v8808
      %v8841 = vunpack.c.l.b16 %v8809
      %v8842 = vunpack.c.l.b16 %v8810
      %v8843 = vunpack.c.l.b16 %v8811
      %v8844 = vunpack.c.l.b16 %v8812
      %v8845 = vunpack.c.l.b16 %v8813
      %v8846 = vunpack.c.l.b16 %v8814
      %v8847 = vunpack.c.l.b16 %v8815
      %v8848 = vunpack.c.l.b16 %v8816
      %v8849 = vunpack.c.l.b16 %v8817
      %v8850 = vunpack.c.l.b16 %v8818
      %v8851 = vpack.c.b16 %v8836, %v8835
      %v8852 = vpack.c.b16 %v8838, %v8837
      %v8853 = vpack.c.b16 %v8840, %v8839
      %v8854 = vpack.c.b16 %v8842, %v8841
      %v8855 = vpack.c.b16 %v8844, %v8843
      %v8856 = vpack.c.b16 %v8846, %v8845
      %v8857 = vpack.c.b16 %v8848, %v8847
      %v8858 = vpack.c.b16 %v8850, %v8849
      %8867 = vmatprep.subr.bf16.mxu0 0
      %8868 = vmatpush1.bf16.msra.mxu0 %v8851
      %8869 = vmatprep.subr.bf16.mxu0 0
      %8870 = vmatpush1.bf16.msra.mxu0 %v8852
      %8871 = vmatprep.subr.bf16.mxu0 0
      %8872 = vmatpush1.bf16.msra.mxu0 %v8853
      %8873 = vmatprep.subr.bf16.mxu0 0
      %8874 = vmatpush1.bf16.msra.mxu0 %v8854
      %8875 = vmatprep.subr.bf16.mxu0 0
      %8876 = vmatpush1.bf16.msra.mxu0 %v8855
      %8877 = vmatprep.subr.bf16.mxu0 0
      %8878 = vmatpush1.bf16.msra.mxu0 %v8856
      %8879 = vmatprep.subr.bf16.mxu0 0
      %8880 = vmatpush1.bf16.msra.mxu0 %v8857
      %8881 = vmatprep.subr.bf16.mxu0 0
      %8882 = vmatpush1.bf16.msra.mxu0 %v8858
      %8883 = vmatprep.subr.bf16.mxu0 0
      %8884 = vmatpush1.bf16.msra.mxu0 0
      %8885 = vmatprep.subr.bf16.mxu0 0
      %8886 = vmatpush1.bf16.msra.mxu0 0
      %8887 = vmatprep.subr.bf16.mxu0 0
      %8888 = vmatpush1.bf16.msra.mxu0 0
      %8889 = vmatprep.subr.bf16.mxu0 0
      %8890 = vmatpush1.bf16.msra.mxu0 0
      %8891 = vmatprep.subr.bf16.mxu0 0
      %8892 = vmatpush1.bf16.msra.mxu0 0
      %8893 = vmatprep.subr.bf16.mxu0 0
      %8894 = vmatpush1.bf16.msra.mxu0 0
      %8895 = vmatprep.subr.bf16.mxu0 0
      %8896 = vmatpush1.bf16.msra.mxu0 0
      %8897 = vmatprep.subr.bf16.mxu0 0
      %8898 = vmatpush1.bf16.msra.mxu0 0
      %8899 = vmatprep.mubr.bf16.mxu0 0
      %8900 = vmatmul.mubr.bf16.gmra.mrb[0].mxu0 %v8801
      %v8901 = vpop.f32.mrb[0].mxu0
      %v8902 = vadd.f32 0.0, %v8901
      %v8903 = vpop.f32.mrb[0].mxu0
      %v8904 = vpop.f32.mrb[0].mxu0
      %v8905 = vpop.f32.mrb[0].mxu0
      %8906 = vdwg.mxu0
      %v8907 = vadd.f32 %v8755, %v8902
      %v8908 = vld [vmem:[%s9] sm:$0x1]
      %v8910 = vlaneseq
      %v8911 = vshrl.u32 %v8910, 7
      %v8912 = vsub.s32 0, %v8911
      %v8913 = vrot.slane %v8908, %v8912
      %v8915 = vadd.f32 %v8907, %v8913
      %v8916 = vmax.f32 %v8915, 0.0
      %v8917 = vpack.c.bf16 %v8916, %v8916
      %v8918 = vld [vmem:[%s10] sm:$0xf]
      %v8919 = vld [vmem:[%s10 + $0x4] sm:$0xf]
      %v8920 = vld [vmem:[%s10 + $0x8] sm:$0xf]
      %v8921 = vld [vmem:[%s10 + $0xc] sm:$0xf]
      %v8922 = vld [vmem:[%s10 + $0x10] sm:$0xf]
      %v8923 = vld [vmem:[%s10 + $0x14] sm:$0xf]
      %v8924 = vld [vmem:[%s10 + $0x18] sm:$0xf]
      %v8925 = vld [vmem:[%s10 + $0x1c] sm:$0xf]
      %v8926 = vld [vmem:[%s10 + $0x20] sm:$0xf]
      %v8927 = vld [vmem:[%s10 + $0x24] sm:$0xf]
      %v8928 = vld [vmem:[%s10 + $0x28] sm:$0xf]
      %v8929 = vld [vmem:[%s10 + $0x2c] sm:$0xf]
      %v8930 = vld [vmem:[%s10 + $0x30] sm:$0xf]
      %v8931 = vld [vmem:[%s10 + $0x34] sm:$0xf]
      %v8932 = vld [vmem:[%s10 + $0x38] sm:$0xf]
      %v8933 = vld [vmem:[%s10 + $0x3c] sm:$0xf]
      %v8934 = vld [vmem:[%s11] sm:$0x1]
      %v8936 = vlaneseq
      %v8937 = vshrl.u32 %v8936, 7
      %v8938 = vsub.s32 0, %v8937
      %v8939 = vrot.slane %v8934, %v8938
      %v8957 = vunpack.c.l.b16 %v8918
      %v8958 = vunpack.c.l.b16 %v8919
      %v8959 = vunpack.c.l.b16 %v8920
      %v8960 = vunpack.c.l.b16 %v8921
      %v8961 = vunpack.c.l.b16 %v8922
      %v8962 = vunpack.c.l.b16 %v8923
      %v8963 = vunpack.c.l.b16 %v8924
      %v8964 = vunpack.c.l.b16 %v8925
      %v8965 = vunpack.c.l.b16 %v8926
      %v8966 = vunpack.c.l.b16 %v8927
      %v8967 = vunpack.c.l.b16 %v8928
      %v8968 = vunpack.c.l.b16 %v8929
      %v8969 = vunpack.c.l.b16 %v8930
      %v8970 = vunpack.c.l.b16 %v8931
      %v8971 = vunpack.c.l.b16 %v8932
      %v8972 = vunpack.c.l.b16 %v8933
      %v8973 = vpack.c.b16 %v8958, %v8957
      %v8974 = vpack.c.b16 %v8960, %v8959
      %v8975 = vpack.c.b16 %v8962, %v8961
      %v8976 = vpack.c.b16 %v8964, %v8963
      %v8977 = vpack.c.b16 %v8966, %v8965
      %v8978 = vpack.c.b16 %v8968, %v8967
      %v8979 = vpack.c.b16 %v8970, %v8969
      %v8980 = vpack.c.b16 %v8972, %v8971
      %8989 = vmatprep.subr.bf16.mxu0 0
      %8990 = vmatpush1.bf16.msra.mxu0 %v8973
      %8991 = vmatprep.subr.bf16.mxu0 0
      %8992 = vmatpush1.bf16.msra.mxu0 %v8974
      %8993 = vmatprep.subr.bf16.mxu0 0
      %8994 = vmatpush1.bf16.msra.mxu0 %v8975
      %8995 = vmatprep.subr.bf16.mxu0 0
      %8996 = vmatpush1.bf16.msra.mxu0 %v8976
      %8997 = vmatprep.subr.bf16.mxu0 0
      %8998 = vmatpush1.bf16.msra.mxu0 %v8977
      %8999 = vmatprep.subr.bf16.mxu0 0
      %9000 = vmatpush1.bf16.msra.mxu0 %v8978
      %9001 = vmatprep.subr.bf16.mxu0 0
      %9002 = vmatpush1.bf16.msra.mxu0 %v8979
      %9003 = vmatprep.subr.bf16.mxu0 0
      %9004 = vmatpush1.bf16.msra.mxu0 %v8980
      %9005 = vmatprep.subr.bf16.mxu0 0
      %9006 = vmatpush1.bf16.msra.mxu0 0
      %9007 = vmatprep.subr.bf16.mxu0 0
      %9008 = vmatpush1.bf16.msra.mxu0 0
      %9009 = vmatprep.subr.bf16.mxu0 0
      %9010 = vmatpush1.bf16.msra.mxu0 0
      %9011 = vmatprep.subr.bf16.mxu0 0
      %9012 = vmatpush1.bf16.msra.mxu0 0
      %9013 = vmatprep.subr.bf16.mxu0 0
      %9014 = vmatpush1.bf16.msra.mxu0 0
      %9015 = vmatprep.subr.bf16.mxu0 0
      %9016 = vmatpush1.bf16.msra.mxu0 0
      %9017 = vmatprep.subr.bf16.mxu0 0
      %9018 = vmatpush1.bf16.msra.mxu0 0
      %9019 = vmatprep.subr.bf16.mxu0 0
      %9020 = vmatpush1.bf16.msra.mxu0 0
      %9021 = vmatprep.mubr.bf16.mxu0 0
      %9022 = vmatmul.mubr.bf16.gmra.mrb[0].mxu0 %v6084
      %v9023 = vpop.f32.mrb[0].mxu0
      %v9024 = vadd.f32 %v8939, %v9023
      %v9025 = vpop.f32.mrb[0].mxu0
      %v9026 = vpop.f32.mrb[0].mxu0
      %v9027 = vadd.f32 %v8939, %v9026
      %v9028 = vpop.f32.mrb[0].mxu0
      %9029 = vmatprep.mubr.bf16.mxu0 0
      %9030 = vmatmul.mubr.bf16.gmra.mrb[0].mxu0 %v6085
      %v9031 = vpop.f32.mrb[0].mxu0
      %v9032 = vadd.f32 %v8939, %v9031
      %v9033 = vpop.f32.mrb[0].mxu0
      %v9034 = vpop.f32.mrb[0].mxu0
      %v9035 = vadd.f32 %v8939, %v9034
      %v9036 = vpop.f32.mrb[0].mxu0
      %9037 = vmatprep.mubr.bf16.mxu0 0
      %9038 = vmatmul.mubr.bf16.gmra.mrb[0].mxu0 %v6086
      %v9039 = vpop.f32.mrb[0].mxu0
      %v9040 = vadd.f32 %v8939, %v9039
      %v9041 = vpop.f32.mrb[0].mxu0
      %v9042 = vpop.f32.mrb[0].mxu0
      %v9043 = vadd.f32 %v8939, %v9042
      %v9044 = vpop.f32.mrb[0].mxu0
      %9045 = vmatprep.mubr.bf16.mxu0 0
      %9046 = vmatmul.mubr.bf16.gmra.mrb[0].mxu0 %v6087
      %v9047 = vpop.f32.mrb[0].mxu0
      %v9048 = vadd.f32 %v8939, %v9047
      %v9049 = vpop.f32.mrb[0].mxu0
      %v9050 = vpop.f32.mrb[0].mxu0
      %v9051 = vadd.f32 %v8939, %v9050
      %v9052 = vpop.f32.mrb[0].mxu0
      %9053 = vdwg.mxu0
      %vm9054 = vcmask 48128
      %9055 = vst.msk [vmem:[%s589] sm:$0xff] %vm9054, %v9024
      %9056 = vst.msk [vmem:[%s589 + $0x8] sm:$0xff] %vm9054, %v9027
      %9057 = vst.msk [vmem:[%s589 + $0x10] sm:$0xff] %vm9054, %v9032
      %9058 = vst.msk [vmem:[%s589 + $0x18] sm:$0xff] %vm9054, %v9035
      %9059 = vst.msk [vmem:[%s589 + $0x20] sm:$0xff] %vm9054, %v9040
      %9060 = vst.msk [vmem:[%s589 + $0x28] sm:$0xff] %vm9054, %v9043
      %9061 = vst.msk [vmem:[%s589 + $0x30] sm:$0xff] %vm9054, %v9048
      %9062 = vst.msk [vmem:[%s589 + $0x38] sm:$0xff] %vm9054, %v9051
      %v9063 = vld [vmem:[%s12] sm:$0xf]
      %v9064 = vld [vmem:[%s12 + $0x4] sm:$0xf]
      %v9065 = vld [vmem:[%s12 + $0x8] sm:$0xf]
      %v9066 = vld [vmem:[%s12 + $0xc] sm:$0xf]
      %v9067 = vld [vmem:[%s12 + $0x10] sm:$0xf]
      %v9068 = vld [vmem:[%s12 + $0x14] sm:$0xf]
      %v9069 = vld [vmem:[%s12 + $0x18] sm:$0xf]
      %v9070 = vld [vmem:[%s12 + $0x1c] sm:$0xf]
      %v9071 = vld [vmem:[%s12 + $0x20] sm:$0xf]
      %v9072 = vld [vmem:[%s12 + $0x24] sm:$0xf]
      %v9073 = vld [vmem:[%s12 + $0x28] sm:$0xf]
      %v9074 = vld [vmem:[%s12 + $0x2c] sm:$0xf]
      %v9075 = vld [vmem:[%s12 + $0x30] sm:$0xf]
      %v9076 = vld [vmem:[%s12 + $0x34] sm:$0xf]
      %v9077 = vld [vmem:[%s12 + $0x38] sm:$0xf]
      %v9078 = vld [vmem:[%s12 + $0x3c] sm:$0xf]
      %v9079 = vld [vmem:[%s13] sm:$0x1]
      %v9081 = vlaneseq
      %v9082 = vshrl.u32 %v9081, 7
      %v9083 = vsub.s32 0, %v9082
      %v9084 = vrot.slane %v9079, %v9083
      %v9102 = vunpack.c.l.b16 %v9063
      %v9103 = vunpack.c.l.b16 %v9064
      %v9104 = vunpack.c.l.b16 %v9065
      %v9105 = vunpack.c.l.b16 %v9066
      %v9106 = vunpack.c.l.b16 %v9067
      %v9107 = vunpack.c.l.b16 %v9068
      %v9108 = vunpack.c.l.b16 %v9069
      %v9109 = vunpack.c.l.b16 %v9070
      %v9110 = vunpack.c.l.b16 %v9071
      %v9111 = vunpack.c.l.b16 %v9072
      %v9112 = vunpack.c.l.b16 %v9073
      %v9113 = vunpack.c.l.b16 %v9074
      %v9114 = vunpack.c.l.b16 %v9075
      %v9115 = vunpack.c.l.b16 %v9076
      %v9116 = vunpack.c.l.b16 %v9077
      %v9117 = vunpack.c.l.b16 %v9078
      %v9118 = vpack.c.b16 %v9103, %v9102
      %v9119 = vpack.c.b16 %v9105, %v9104
      %v9120 = vpack.c.b16 %v9107, %v9106
      %v9121 = vpack.c.b16 %v9109, %v9108
      %v9122 = vpack.c.b16 %v9111, %v9110
      %v9123 = vpack.c.b16 %v9113, %v9112
      %v9124 = vpack.c.b16 %v9115, %v9114
      %v9125 = vpack.c.b16 %v9117, %v9116
      %9134 = vmatprep.subr.bf16.mxu0 0
      %9135 = vmatpush1.bf16.msra.mxu0 %v9118
      %9136 = vmatprep.subr.bf16.mxu0 0
      %9137 = vmatpush1.bf16.msra.mxu0 %v9119
      %9138 = vmatprep.subr.bf16.mxu0 0
      %9139 = vmatpush1.bf16.msra.mxu0 %v9120
      %9140 = vmatprep.subr.bf16.mxu0 0
      %9141 = vmatpush1.bf16.msra.mxu0 %v9121
      %9142 = vmatprep.subr.bf16.mxu0 0
      %9143 = vmatpush1.bf16.msra.mxu0 %v9122
      %9144 = vmatprep.subr.bf16.mxu0 0
      %9145 = vmatpush1.bf16.msra.mxu0 %v9123
      %9146 = vmatprep.subr.bf16.mxu0 0
      %9147 = vmatpush1.bf16.msra.mxu0 %v9124
      %9148 = vmatprep.subr.bf16.mxu0 0
      %9149 = vmatpush1.bf16.msra.mxu0 %v9125
      %9150 = vmatprep.subr.bf16.mxu0 0
      %9151 = vmatpush1.bf16.msra.mxu0 0
      %9152 = vmatprep.subr.bf16.mxu0 0
      %9153 = vmatpush1.bf16.msra.mxu0 0
      %9154 = vmatprep.subr.bf16.mxu0 0
      %9155 = vmatpush1.bf16.msra.mxu0 0
      %9156 = vmatprep.subr.bf16.mxu0 0
      %9157 = vmatpush1.bf16.msra.mxu0 0
      %9158 = vmatprep.subr.bf16.mxu0 0
      %9159 = vmatpush1.bf16.msra.mxu0 0
      %9160 = vmatprep.subr.bf16.mxu0 0
      %9161 = vmatpush1.bf16.msra.mxu0 0
      %9162 = vmatprep.subr.bf16.mxu0 0
      %9163 = vmatpush1.bf16.msra.mxu0 0
      %9164 = vmatprep.subr.bf16.mxu0 0
      %9165 = vmatpush1.bf16.msra.mxu0 0
      %9166 = vmatprep.mubr.bf16.mxu0 0
      %9167 = vmatmul.mubr.bf16.gmra.mrb[0].mxu0 %v7542
      %v9168 = vpop.f32.mrb[0].mxu0
      %v9169 = vadd.f32 %v9084, %v9168
      %v9170 = vpop.f32.mrb[0].mxu0
      %v9171 = vpop.f32.mrb[0].mxu0
      %v9172 = vadd.f32 %v9084, %v9171
      %v9173 = vpop.f32.mrb[0].mxu0
      %9174 = vdwg.mxu0
      %9175 = vst.msk [vmem:[%s594] sm:$0xff] %vm9054, %v9169
      %9176 = vst.msk [vmem:[%s594 + $0x8] sm:$0xff] %vm9054, %v9172
      %v9177 = vld [vmem:[%s14] sm:$0xf]
      %v9178 = vld [vmem:[%s14 + $0x4] sm:$0xf]
      %v9179 = vld [vmem:[%s14 + $0x8] sm:$0xf]
      %v9180 = vld [vmem:[%s14 + $0xc] sm:$0xf]
      %v9181 = vld [vmem:[%s14 + $0x10] sm:$0xf]
      %v9182 = vld [vmem:[%s14 + $0x14] sm:$0xf]
      %v9183 = vld [vmem:[%s14 + $0x18] sm:$0xf]
      %v9184 = vld [vmem:[%s14 + $0x1c] sm:$0xf]
      %v9185 = vld [vmem:[%s14 + $0x20] sm:$0xf]
      %v9186 = vld [vmem:[%s14 + $0x24] sm:$0xf]
      %v9187 = vld [vmem:[%s14 + $0x28] sm:$0xf]
      %v9188 = vld [vmem:[%s14 + $0x2c] sm:$0xf]
      %v9189 = vld [vmem:[%s14 + $0x30] sm:$0xf]
      %v9190 = vld [vmem:[%s14 + $0x34] sm:$0xf]
      %v9191 = vld [vmem:[%s14 + $0x38] sm:$0xf]
      %v9192 = vld [vmem:[%s14 + $0x3c] sm:$0xf]
      %v9193 = vld [vmem:[%s15] sm:$0x1]
      %v9195 = vlaneseq
      %v9196 = vshrl.u32 %v9195, 7
      %v9197 = vsub.s32 0, %v9196
      %v9198 = vrot.slane %v9193, %v9197
      %v9216 = vunpack.c.l.b16 %v9177
      %v9217 = vunpack.c.l.b16 %v9178
      %v9218 = vunpack.c.l.b16 %v9179
      %v9219 = vunpack.c.l.b16 %v9180
      %v9220 = vunpack.c.l.b16 %v9181
      %v9221 = vunpack.c.l.b16 %v9182
      %v9222 = vunpack.c.l.b16 %v9183
      %v9223 = vunpack.c.l.b16 %v9184
      %v9224 = vunpack.c.l.b16 %v9185
      %v9225 = vunpack.c.l.b16 %v9186
      %v9226 = vunpack.c.l.b16 %v9187
      %v9227 = vunpack.c.l.b16 %v9188
      %v9228 = vunpack.c.l.b16 %v9189
      %v9229 = vunpack.c.l.b16 %v9190
      %v9230 = vunpack.c.l.b16 %v9191
      %v9231 = vunpack.c.l.b16 %v9192
      %v9232 = vpack.c.b16 %v9217, %v9216
      %v9233 = vpack.c.b16 %v9219, %v9218
      %v9234 = vpack.c.b16 %v9221, %v9220
      %v9235 = vpack.c.b16 %v9223, %v9222
      %v9236 = vpack.c.b16 %v9225, %v9224
      %v9237 = vpack.c.b16 %v9227, %v9226
      %v9238 = vpack.c.b16 %v9229, %v9228
      %v9239 = vpack.c.b16 %v9231, %v9230
      %9248 = vmatprep.subr.bf16.mxu0 0
      %9249 = vmatpush1.bf16.msra.mxu0 %v9232
      %9250 = vmatprep.subr.bf16.mxu0 0
      %9251 = vmatpush1.bf16.msra.mxu0 %v9233
      %9252 = vmatprep.subr.bf16.mxu0 0
      %9253 = vmatpush1.bf16.msra.mxu0 %v9234
      %9254 = vmatprep.subr.bf16.mxu0 0
      %9255 = vmatpush1.bf16.msra.mxu0 %v9235
      %9256 = vmatprep.subr.bf16.mxu0 0
      %9257 = vmatpush1.bf16.msra.mxu0 %v9236
      %9258 = vmatprep.subr.bf16.mxu0 0
      %9259 = vmatpush1.bf16.msra.mxu0 %v9237
      %9260 = vmatprep.subr.bf16.mxu0 0
      %9261 = vmatpush1.bf16.msra.mxu0 %v9238
      %9262 = vmatprep.subr.bf16.mxu0 0
      %9263 = vmatpush1.bf16.msra.mxu0 %v9239
      %9264 = vmatprep.subr.bf16.mxu0 0
      %9265 = vmatpush1.bf16.msra.mxu0 0
      %9266 = vmatprep.subr.bf16.mxu0 0
      %9267 = vmatpush1.bf16.msra.mxu0 0
      %9268 = vmatprep.subr.bf16.mxu0 0
      %9269 = vmatpush1.bf16.msra.mxu0 0
      %9270 = vmatprep.subr.bf16.mxu0 0
      %9271 = vmatpush1.bf16.msra.mxu0 0
      %9272 = vmatprep.subr.bf16.mxu0 0
      %9273 = vmatpush1.bf16.msra.mxu0 0
      %9274 = vmatprep.subr.bf16.mxu0 0
      %9275 = vmatpush1.bf16.msra.mxu0 0
      %9276 = vmatprep.subr.bf16.mxu0 0
      %9277 = vmatpush1.bf16.msra.mxu0 0
      %9278 = vmatprep.subr.bf16.mxu0 0
      %9279 = vmatpush1.bf16.msra.mxu0 0
      %9280 = vmatprep.mubr.bf16.mxu0 0
      %9281 = vmatmul.mubr.bf16.gmra.mrb[0].mxu0 %v8917
      %v9282 = vpop.f32.mrb[0].mxu0
      %v9283 = vadd.f32 %v9198, %v9282
      %v9284 = vpop.f32.mrb[0].mxu0
      %v9285 = vpop.f32.mrb[0].mxu0
      %v9286 = vpop.f32.mrb[0].mxu0
      %9287 = vdwg.mxu0
      %vm9288 = vcmask 68608
      %9289 = vst.msk [vmem:[%s598] sm:$0xf] %vm9288, %v9283
      %p9290 = scmp.lt.s32.totalorder %s30, 1
      %s9291 = scalar_select %p9290, %s30, 1
      %s9292 = smul.addr %s9291, 8
      %s9293 = smul.addr %s9292, 8
      %s9294 = scalar_lea.vmem %s16, %s9293
      %p9295 = scmp.lt.s32.totalorder %s30, 1
      %s9296 = scalar_select %p9295, %s30, 1
      %s9297 = smul.addr %s9296, 2
      %s9298 = smul.addr %s9297, 8
      %s9299 = scalar_lea.vmem %s17, %s9298
      %p9300 = scmp.lt.s32.totalorder %s30, 1
      %s9301 = scalar_select %p9300, %s30, 1
      %s9302 = smul.addr %s9301, 4
      %s9303 = scalar_lea.vmem %s18, %s9302
      // Predicated region
      $region85: #{proposal_net_forward.1} parent=83 // pred_check
        %p9304 = pneg %p389
      $region86: #{proposal_net_forward.1} parent=83 // pred_check_branch
        %9306 = sbr.rel (%p9304) target = $region88
      $region87: #{proposal_net_forward.1} parent=83 // pred_region
        _
      $region88: #{proposal_net_forward.1} parent=83 // pred_fallthru
        _
      // Predicated region
      $region89: #{proposal_net_forward.1} parent=83 // pred_check
        %p9307 = pneg %p415
      $region90: #{proposal_net_forward.1} parent=83 // pred_check_branch
        %9309 = sbr.rel (%p9307) target = $region92
      $region91: #{proposal_net_forward.1} parent=83 // pred_region
        _
      $region92: #{proposal_net_forward.1} parent=83 // pred_fallthru
        _
      // Predicated region
      $region93: #{proposal_net_forward.1} parent=83 // pred_check
        %p9310 = pneg %p441
      $region94: #{proposal_net_forward.1} parent=83 // pred_check_branch
        %9312 = sbr.rel (%p9310) target = $region96
      $region95: #{proposal_net_forward.1} parent=83 // pred_region
        _
      $region96: #{proposal_net_forward.1} parent=83 // pred_fallthru
        _
    $region84: #{proposal_net_forward.1} parent=5 // pred_fallthru
      _
    %p9313 = scmp.le.s32.totalorder 2, %s25
    // Predicated region
    $region97: #{proposal_net_forward.1} parent=5 // pred_check
      %p9314 = pneg %p9313
    $region98: #{proposal_net_forward.1} parent=5 // pred_check_branch
      %9316 = sbr.rel (%p9314) target = $region100
    $region99: #{proposal_net_forward.1} parent=5 // pred_region
      %s9317 = ssub.s32 %s25, 2
      // Predicated region
      $region101: #{proposal_net_forward.1} parent=99 // pred_check
        %p9318 = pneg %p395
      $region102: #{proposal_net_forward.1} parent=99 // pred_check_branch
        %9320 = sbr.rel (%p9318) target = $region104
      $region103: #{proposal_net_forward.1} parent=99 // pred_region
        %p9321 = scmp.lt.s32.totalorder %s31, 1
        %s9322 = scalar_select %p9321, %s31, 1
        %s9323 = smul.addr %s9322, 8
        %s9324 = smul.addr %s9323, 8
        %s9325 = scalar_lea.vmem %s16, %s9324
      $region104: #{proposal_net_forward.1} parent=99 // pred_fallthru
        _
      // Predicated region
      $region105: #{proposal_net_forward.1} parent=99 // pred_check
        %p9326 = pneg %p421
      $region106: #{proposal_net_forward.1} parent=99 // pred_check_branch
        %9328 = sbr.rel (%p9326) target = $region108
      $region107: #{proposal_net_forward.1} parent=99 // pred_region
        %p9329 = scmp.lt.s32.totalorder %s31, 1
        %s9330 = scalar_select %p9329, %s31, 1
        %s9331 = smul.addr %s9330, 2
        %s9332 = smul.addr %s9331, 8
        %s9333 = scalar_lea.vmem %s17, %s9332
      $region108: #{proposal_net_forward.1} parent=99 // pred_fallthru
        _
      // Predicated region
      $region109: #{proposal_net_forward.1} parent=99 // pred_check
        %p9334 = pneg %p447
      $region110: #{proposal_net_forward.1} parent=99 // pred_check_branch
        %9336 = sbr.rel (%p9334) target = $region112
      $region111: #{proposal_net_forward.1} parent=99 // pred_region
        %p9337 = scmp.lt.s32.totalorder %s31, 1
        %s9338 = scalar_select %p9337, %s31, 1
        %s9339 = smul.addr %s9338, 4
        %s9340 = scalar_lea.vmem %s18, %s9339
      $region112: #{proposal_net_forward.1} parent=99 // pred_fallthru
        _
    $region100: #{proposal_net_forward.1} parent=5 // pred_fallthru
      _
  $region6: #{proposal_net_forward.1} parent=0 // loop_footer
    %s29 = sadd.s32 1, %s25
  $region7: #{proposal_net_forward.1} parent=0 // loop_footer_branch
    %24 = sbr.rel target = $region3
  $region8: #{proposal_net_forward.1} parent=0 // loop_exit
    _

</llo_original>
